<compile_context>
chip_gen: v5e
topology: v5e:2x2
jax: 0.10.0
libtpu: 0.0.40
codegen_flags: <defaults>
</compile_context>

<pallas_src>
import functools

import numpy as np
import jax
import jax.numpy as jnp
from jax import lax
from jax.experimental import pallas as pl
from jax.experimental.pallas import tpu as pltpu


P_POOL = 18      # nn.AdaptiveAvgPool2d(18)
LN_EPS = 1e-5    # nn.LayerNorm default eps


# -----------------------------------------------------------------------------
# Fused Pallas kernel: (pool -> 1x1 conv -> bilinear, folded) + decoder LayerNorm
# Channel layout everywhere: (C, HW) tiles, HW (multiple of 128) on lanes.
# -----------------------------------------------------------------------------
def _fused_pos_ln_kernel(x_ref, kct_ref, w_ref, pk_ref, pe_ref, hs_ref):
    # x_ref  : (nb, C, HWc) f32   content block, channel layout
    # kct_ref: (HWc, HWs)   bf16  K_comb^T = (K_bilinear @ K_pool)^T   (resident)
    # w_ref  : (C, C)       bf16  1x1-conv weight, (OC, IC)            (resident)
    # pk_ref : (C, 8)       f32   packed columns [conv_b | ln_gamma | ln_beta | 0...]
    # pe_ref : (nb, C, HWs) bf16  pos_embed_c
    # hs_ref : (nb, C, HWc) f32   LayerNorm(content tokens)
    kct = kct_ref[...]
    w = w_ref[...]
    pk = pk_ref[...]
    conv_b = pk[:, 0:1]          # (C, 1)
    gamma = pk[:, 1:2]           # (C, 1)
    beta = pk[:, 2:3]            # (C, 1)

    nb = x_ref.shape[0]          # static: 1 (megacore) or B (single-TC fold)
    for bi in range(nb):
        x = x_ref[bi]                                        # (C, HWc) f32
        x_bf = x.astype(jnp.bfloat16)

        # Fused spatial resample (pool + bilinear folded into K_comb), f32 accumulate.
        y = jnp.dot(x_bf, kct, preferred_element_type=jnp.float32)           # (C, HWs)
        # 1x1 conv over channels (left-multiply); bias passes through the bilinear rows.
        pe = jnp.dot(w, y.astype(jnp.bfloat16),
                     preferred_element_type=jnp.float32) + conv_b            # (C, HWs)
        pe_ref[bi] = pe.astype(pe_ref.dtype)

        # Decoder LayerNorm over channels (per token column), full f32 precision.
        mean = jnp.mean(x, axis=0, keepdims=True)                            # (1, HWc)
        xc = x - mean
        var = jnp.mean(xc * xc, axis=0, keepdims=True)
        inv = lax.rsqrt(var + LN_EPS)
        hs_ref[bi] = (xc * inv * gamma + beta).astype(hs_ref.dtype)


def _tensorcores_per_device():
    """2 for megacore parts (v7x / v5p / v4), 1 for v5e / v6e; conservative fallback 1."""
    try:
        kind = jax.devices()[0].device_kind.lower()
    except Exception:
        return 1
    return 2 if any(t in kind for t in ("v7", "7x", "v5p", "v4")) else 1


def fused_pos_ln(content_chw, k_comb_t, conv_w, param_pack):
    """content_chw: (B, C, HWc) f32  ->
         pos_embed_c: (B, C, HWs) bf16  (pool -> 1x1 conv -> bilinear, folded)
         hs         : (B, C, HWc) f32   (decoder LayerNorm of the content tokens)"""
    B, C, HWc = content_chw.shape
    _, HWs = k_comb_t.shape

    # Single-TC chips: fold all batches into one grid step (overhead + warm-up paid once).
    # Megacore chips: keep >= B parallel steps so both TensorCores get work.
    nb = B if _tensorcores_per_device() == 1 else 1
    grid = (B // nb,)

    return pl.pallas_call(
        _fused_pos_ln_kernel,
        out_shape=(
            jax.ShapeDtypeStruct((B, C, HWs), jnp.bfloat16),   # pos_embed_c
            jax.ShapeDtypeStruct((B, C, HWc), jnp.float32),    # LayerNormed content tokens
        ),
        grid_spec=pltpu.PrefetchScalarGridSpec(
            num_scalar_prefetch=0,
            grid=grid,
            in_specs=[
                pl.BlockSpec((nb, C, HWc), lambda b: (b, 0, 0)),   # content block
                pl.BlockSpec((HWc, HWs), lambda b: (0, 0)),        # K_comb^T   (resident)
                pl.BlockSpec((C, C), lambda b: (0, 0)),            # conv weight (resident)
                pl.BlockSpec((C, 8), lambda b: (0, 0)),            # packed bias/gamma/beta
            ],
            out_specs=(
                pl.BlockSpec((nb, C, HWs), lambda b: (b, 0, 0)),
                pl.BlockSpec((nb, C, HWc), lambda b: (b, 0, 0)),
            ),
        ),
        compiler_params=pltpu.CompilerParams(
            dimension_semantics=("parallel",),
            vmem_limit_bytes=32 * 1024 * 1024,
        ),
    )(content_chw, k_comb_t, conv_w, param_pack)


# -----------------------------------------------------------------------------
# Separable resampling matrices, composed once per shape and cached on device
# -----------------------------------------------------------------------------
def _adaptive_pool_matrix(out_size, in_size):
    """Matches torch.nn.AdaptiveAvgPool2d along one axis."""
    m = np.zeros((out_size, in_size), np.float64)
    for i in range(out_size):
        s = (i * in_size) // out_size
        e = -(-((i + 1) * in_size) // out_size)   # ceil div
        m[i, s:e] = 1.0 / (e - s)
    return m


def _bilinear_matrix(out_size, in_size):
    """Matches F.interpolate(mode='bilinear', align_corners=False) along one axis."""
    m = np.zeros((out_size, in_size), np.float64)
    scale = in_size / out_size
    for i in range(out_size):
        src = max((i + 0.5) * scale - 0.5, 0.0)
        i0 = min(int(np.floor(src)), in_size - 1)
        lam = src - i0
        i1 = min(i0 + 1, in_size - 1)
        m[i, i0] += 1.0 - lam
        m[i, i1] += lam
    return m


@functools.lru_cache(maxsize=None)
def _combined_resample_matrix_t(Hc, Wc, Hs, Ws):
    """K_comb^T = (K_bilinear @ K_pool)^T : (Hc*Wc, Hs*Ws), bf16, cached on device."""
    kp = np.kron(_adaptive_pool_matrix(P_POOL, Hc), _adaptive_pool_matrix(P_POOL, Wc))
    ki = np.kron(_bilinear_matrix(Hs, P_POOL), _bilinear_matrix(Ws, P_POOL))
    # Bias pass-through through the bilinear requires each interpolation row to sum to 1.
    assert np.allclose(ki.sum(axis=1), 1.0, atol=1e-6)
    k_comb = (ki @ kp).astype(np.float32)                       # (HWs, HWc), composed in f64
    return jax.device_put(jnp.asarray(k_comb.T, dtype=jnp.bfloat16))


# -----------------------------------------------------------------------------
# Parameters (deterministic, synthetic)
# -----------------------------------------------------------------------------
def init_params(key, d_model):
    k_w, k_b = jax.random.split(key)
    # new_ps = nn.Conv2d(512, 512, (1,1)); re-initialized by _reset_parameters (xavier_uniform_)
    bound_w = float(np.sqrt(6.0 / (d_model + d_model)))
    conv_w = jax.random.uniform(k_w, (d_model, d_model), jnp.float32, -bound_w, bound_w)
    bound_b = float(1.0 / np.sqrt(d_model))
    conv_b = jax.random.uniform(k_b, (d_model,), jnp.float32, -bound_b, bound_b)
    # decoder_norm = nn.LayerNorm(d_model): default weight=1, bias=0.
    ln_g = jnp.ones((d_model,), jnp.float32)
    ln_b = jnp.zeros((d_model,), jnp.float32)
    # Pack the per-channel vectors into one resident (C, 8) f32 operand (cols: b, gamma, beta).
    param_pack = jnp.zeros((d_model, 8), jnp.float32)
    param_pack = param_pack.at[:, 0].set(conv_b)
    param_pack = param_pack.at[:, 1].set(ln_g)
    param_pack = param_pack.at[:, 2].set(ln_b)
    return {
        "conv_w": conv_w.astype(jnp.bfloat16),   # (OC, IC) for the left-multiply MXU path
        "param_pack": param_pack,
    }


# -----------------------------------------------------------------------------
# Forward pass (mirrors Mamba.forward)
# -----------------------------------------------------------------------------
def mamba_forward(params, style, mask, content, pos_embed_c_in, pos_embed_s):
    del mask, pos_embed_c_in            # mask unused here; pos_embed_c is overwritten anyway
    B, C, Hc, Wc = content.shape
    Hs, Ws = style.shape[-2:]

    k_comb_t = _combined_resample_matrix_t(Hc, Wc, Hs, Ws)

    # Channel layout (B, C, HW): pure reshape, no transpose around the kernel.
    content_chw = content.reshape(B, C, Hc * Wc).astype(jnp.float32)

    # Fused: content_pool = averagepooling(content); pos_c = new_ps(content_pool);
    #        pos_embed_c = F.interpolate(pos_c, 'bilinear', size=style.shape[-2:]);
    #        plus the decoder's final LayerNorm on the content token stream.
    pos_embed_c, hs_chw = fused_pos_ln(
        content_chw, k_comb_t, params["conv_w"], params["param_pack"])

    # pos_embed_c / style / pos_embed_s would feed the encoder/decoder layer stacks.
    # TODO(synk): encoder_c / encoder_s / decoder VSSBlock(Single/Double) stacks are undefined
    # in the reference source, so only the Decoder's final LayerNorm is applied to content.
    del pos_embed_c, style, pos_embed_s

    # hs.permute(1, 2, 0).view(B, C, -1, H): in channel layout this is a pure reshape.
    N = Hc * Wc
    H = int(np.sqrt(N))                 # reference assumes square content spatial dims
    return hs_chw.reshape(B, C, -1, H)


# -----------------------------------------------------------------------------
if __name__ == "__main__":
    key = jax.random.PRNGKey(0)
    k_style, k_content, k_pos_s, k_params = jax.random.split(key, 4)

    B = 2
    C = 512          # forced by nn.Conv2d(512, 512, (1, 1)) in the module
    Hc = Wc = 16     # content spatial
    Hs = Ws = 16     # style spatial

    style = jax.random.normal(k_style, (B, C, Hs, Ws), jnp.float32)
    content = jax.random.normal(k_content, (B, C, Hc, Wc), jnp.float32)
    pos_embed_s = jax.random.normal(k_pos_s, (B, C, Hs, Ws), jnp.float32)
    mask = None
    pos_embed_c = None   # overwritten inside the reference forward

    params = init_params(k_params, C)

    out = mamba_forward(params, style, mask, content, pos_embed_c, pos_embed_s)
    out = jax.block_until_ready(out)
    assert out.shape == (B, C, Hc, Wc), out.shape
    assert bool(jnp.all(jnp.isfinite(out)))

    # LayerNorm sanity check (gamma=1, beta=0): kernel output vs pure-jnp reference (f32).
    mean = content.mean(axis=1, keepdims=True)
    var = ((content - mean) ** 2).mean(axis=1, keepdims=True)
    ref = (content - mean) * lax.rsqrt(var + LN_EPS)
    assert bool(jnp.max(jnp.abs(out - ref)) < 1e-3)

    print("KERNEL_OK")
</pallas_src>

<mosaic_0001>
module attributes {stable_mosaic.version = 11 : i64} {
  func.func @_fused_pos_ln_kernel(%arg0: i32, %arg1: memref<2x512x256xf32, #tpu.memory_space<vmem>>, %arg2: memref<256x256xbf16, #tpu.memory_space<vmem>>, %arg3: memref<512x512xbf16, #tpu.memory_space<vmem>>, %arg4: memref<512x8xf32, #tpu.memory_space<vmem>>, %arg5: memref<2x512x256xbf16, #tpu.memory_space<vmem>>, %arg6: memref<2x512x256xf32, #tpu.memory_space<vmem>>) attributes {dimension_semantics = [#tpu.dimension_semantics<parallel>], iteration_bounds = array<i64: 1>, scalar_prefetch = 0 : i64, scratch_operands = 0 : i64, tpu.core_type = #tpu.core_type<tc>, window_params = [{transform_indices = @transform_0, window_bounds = array<i64: 2, 512, 256>}, {pipeline_mode = #tpu.pipeline_mode<synchronous>, transform_indices = @transform_1, window_bounds = array<i64: 256, 256>}, {pipeline_mode = #tpu.pipeline_mode<synchronous>, transform_indices = @transform_2, window_bounds = array<i64: 512, 512>}, {pipeline_mode = #tpu.pipeline_mode<synchronous>, transform_indices = @transform_3, window_bounds = array<i64: 512, 8>}, {transform_indices = @transform_4, window_bounds = array<i64: 2, 512, 256>}, {transform_indices = @transform_5, window_bounds = array<i64: 2, 512, 256>}]} {
    %c0 = arith.constant 0 : index
    %c0_0 = arith.constant 0 : index
    %0 = vector.load %arg2[%c0, %c0_0] : memref<256x256xbf16, #tpu.memory_space<vmem>>, vector<256x256xbf16>
    %c0_1 = arith.constant 0 : index
    %c0_2 = arith.constant 0 : index
    %1 = vector.load %arg3[%c0_1, %c0_2] : memref<512x512xbf16, #tpu.memory_space<vmem>>, vector<512x512xbf16>
    %c0_3 = arith.constant 0 : index
    %c0_4 = arith.constant 0 : index
    %2 = vector.load %arg4[%c0_3, %c0_4] : memref<512x8xf32, #tpu.memory_space<vmem>>, vector<512x8xf32>
    %3 = vector.extract_strided_slice %2 {offsets = [0, 0], sizes = [512, 1], strides = [1, 1]} : vector<512x8xf32> to vector<512x1xf32>
    %4 = vector.extract_strided_slice %2 {offsets = [0, 1], sizes = [512, 1], strides = [1, 1]} : vector<512x8xf32> to vector<512x1xf32>
    %5 = vector.extract_strided_slice %2 {offsets = [0, 2], sizes = [512, 1], strides = [1, 1]} : vector<512x8xf32> to vector<512x1xf32>
    %c0_5 = arith.constant 0 : index
    %c0_6 = arith.constant 0 : index
    %c0_7 = arith.constant 0 : index
    %6 = vector.load %arg1[%c0_5, %c0_6, %c0_7] : memref<2x512x256xf32, #tpu.memory_space<vmem>>, vector<1x512x256xf32>
    %7 = vector.shape_cast %6 : vector<1x512x256xf32> to vector<512x256xf32>
    %8 = arith.truncf %7 : vector<512x256xf32> to vector<512x256xbf16>
    %cst = arith.constant dense<0.000000e+00> : vector<512x256xf32>
    %9 = tpu.matmul %8, %0, %cst {dimension_numbers = #tpu.dot_dimension_numbers<[1], [0], [0], [1], [0, 0, 1, 1], [], []>} : vector<512x256xbf16>, vector<256x256xbf16>, vector<512x256xf32> -> vector<512x256xf32>
    %10 = arith.truncf %9 : vector<512x256xf32> to vector<512x256xbf16>
    %cst_8 = arith.constant dense<0.000000e+00> : vector<512x256xf32>
    %11 = tpu.matmul %1, %10, %cst_8 {dimension_numbers = #tpu.dot_dimension_numbers<[1], [0], [0], [1], [0, 0, 1, 1], [], []>} : vector<512x512xbf16>, vector<512x256xbf16>, vector<512x256xf32> -> vector<512x256xf32>
    %12 = vector.broadcast %3 : vector<512x1xf32> to vector<512x256xf32>
    %13 = arith.addf %11, %12 : vector<512x256xf32>
    %14 = arith.truncf %13 : vector<512x256xf32> to vector<512x256xbf16>
    %c0_9 = arith.constant 0 : index
    %c0_10 = arith.constant 0 : index
    %c0_11 = arith.constant 0 : index
    %15 = vector.load %arg5[%c0_9, %c0_10, %c0_11] : memref<2x512x256xbf16, #tpu.memory_space<vmem>>, vector<1x512x256xbf16>
    %16 = vector.shape_cast %15 : vector<1x512x256xbf16> to vector<512x256xbf16>
    %17 = vector.shape_cast %14 : vector<512x256xbf16> to vector<1x512x256xbf16>
    tpu.vector_store %arg5[%c0_9, %c0_10, %c0_11], %17 {strides = array<i32>} : memref<2x512x256xbf16, #tpu.memory_space<vmem>>, vector<1x512x256xbf16>,
    %cst_12 = arith.constant dense<0.000000e+00> : vector<256xf32>
    %18 = vector.multi_reduction <add>, %7, %cst_12 [0] : vector<512x256xf32> to vector<256xf32>
    %19 = vector.shape_cast %18 : vector<256xf32> to vector<1x256xf32>
    %cst_13 = arith.constant 5.120000e+02 : f32
    %20 = vector.broadcast %cst_13 : f32 to vector<1x256xf32>
    %21 = arith.divf %19, %20 : vector<1x256xf32>
    %22 = vector.broadcast %21 : vector<1x256xf32> to vector<512x256xf32>
    %23 = arith.subf %7, %22 : vector<512x256xf32>
    %24 = arith.mulf %23, %23 : vector<512x256xf32>
    %cst_14 = arith.constant dense<0.000000e+00> : vector<256xf32>
    %25 = vector.multi_reduction <add>, %24, %cst_14 [0] : vector<512x256xf32> to vector<256xf32>
    %26 = vector.shape_cast %25 : vector<256xf32> to vector<1x256xf32>
    %cst_15 = arith.constant 5.120000e+02 : f32
    %27 = vector.broadcast %cst_15 : f32 to vector<1x256xf32>
    %28 = arith.divf %26, %27 : vector<1x256xf32>
    %cst_16 = arith.constant 9.99999974E-6 : f32
    %29 = vector.broadcast %cst_16 : f32 to vector<1x256xf32>
    %30 = arith.addf %28, %29 : vector<1x256xf32>
    %31 = math.rsqrt %30 : vector<1x256xf32>
    %32 = vector.broadcast %31 : vector<1x256xf32> to vector<512x256xf32>
    %33 = arith.mulf %23, %32 : vector<512x256xf32>
    %34 = vector.broadcast %4 : vector<512x1xf32> to vector<512x256xf32>
    %35 = arith.mulf %33, %34 : vector<512x256xf32>
    %36 = vector.broadcast %5 : vector<512x1xf32> to vector<512x256xf32>
    %37 = arith.addf %35, %36 : vector<512x256xf32>
    %c0_17 = arith.constant 0 : index
    %c0_18 = arith.constant 0 : index
    %c0_19 = arith.constant 0 : index
    %38 = vector.load %arg6[%c0_17, %c0_18, %c0_19] : memref<2x512x256xf32, #tpu.memory_space<vmem>>, vector<1x512x256xf32>
    %39 = vector.shape_cast %38 : vector<1x512x256xf32> to vector<512x256xf32>
    %40 = vector.shape_cast %37 : vector<512x256xf32> to vector<1x512x256xf32>
    tpu.vector_store %arg6[%c0_17, %c0_18, %c0_19], %40 {strides = array<i32>} : memref<2x512x256xf32, #tpu.memory_space<vmem>>, vector<1x512x256xf32>,
    %c1 = arith.constant 1 : index
    %c0_20 = arith.constant 0 : index
    %c0_21 = arith.constant 0 : index
    %41 = vector.load %arg1[%c1, %c0_20, %c0_21] : memref<2x512x256xf32, #tpu.memory_space<vmem>>, vector<1x512x256xf32>
    %42 = vector.shape_cast %41 : vector<1x512x256xf32> to vector<512x256xf32>
    %43 = arith.truncf %42 : vector<512x256xf32> to vector<512x256xbf16>
    %cst_22 = arith.constant dense<0.000000e+00> : vector<512x256xf32>
    %44 = tpu.matmul %43, %0, %cst_22 {dimension_numbers = #tpu.dot_dimension_numbers<[1], [0], [0], [1], [0, 0, 1, 1], [], []>} : vector<512x256xbf16>, vector<256x256xbf16>, vector<512x256xf32> -> vector<512x256xf32>
    %45 = arith.truncf %44 : vector<512x256xf32> to vector<512x256xbf16>
    %cst_23 = arith.constant dense<0.000000e+00> : vector<512x256xf32>
    %46 = tpu.matmul %1, %45, %cst_23 {dimension_numbers = #tpu.dot_dimension_numbers<[1], [0], [0], [1], [0, 0, 1, 1], [], []>} : vector<512x512xbf16>, vector<512x256xbf16>, vector<512x256xf32> -> vector<512x256xf32>
    %47 = vector.broadcast %3 : vector<512x1xf32> to vector<512x256xf32>
    %48 = arith.addf %46, %47 : vector<512x256xf32>
    %49 = arith.truncf %48 : vector<512x256xf32> to vector<512x256xbf16>
    %c1_24 = arith.constant 1 : index
    %c0_25 = arith.constant 0 : index
    %c0_26 = arith.constant 0 : index
    %50 = vector.load %arg5[%c1_24, %c0_25, %c0_26] : memref<2x512x256xbf16, #tpu.memory_space<vmem>>, vector<1x512x256xbf16>
    %51 = vector.shape_cast %50 : vector<1x512x256xbf16> to vector<512x256xbf16>
    %52 = vector.shape_cast %49 : vector<512x256xbf16> to vector<1x512x256xbf16>
    tpu.vector_store %arg5[%c1_24, %c0_25, %c0_26], %52 {strides = array<i32>} : memref<2x512x256xbf16, #tpu.memory_space<vmem>>, vector<1x512x256xbf16>,
    %cst_27 = arith.constant dense<0.000000e+00> : vector<256xf32>
    %53 = vector.multi_reduction <add>, %42, %cst_27 [0] : vector<512x256xf32> to vector<256xf32>
    %54 = vector.shape_cast %53 : vector<256xf32> to vector<1x256xf32>
    %cst_28 = arith.constant 5.120000e+02 : f32
    %55 = vector.broadcast %cst_28 : f32 to vector<1x256xf32>
    %56 = arith.divf %54, %55 : vector<1x256xf32>
    %57 = vector.broadcast %56 : vector<1x256xf32> to vector<512x256xf32>
    %58 = arith.subf %42, %57 : vector<512x256xf32>
    %59 = arith.mulf %58, %58 : vector<512x256xf32>
    %cst_29 = arith.constant dense<0.000000e+00> : vector<256xf32>
    %60 = vector.multi_reduction <add>, %59, %cst_29 [0] : vector<512x256xf32> to vector<256xf32>
    %61 = vector.shape_cast %60 : vector<256xf32> to vector<1x256xf32>
    %cst_30 = arith.constant 5.120000e+02 : f32
    %62 = vector.broadcast %cst_30 : f32 to vector<1x256xf32>
    %63 = arith.divf %61, %62 : vector<1x256xf32>
    %cst_31 = arith.constant 9.99999974E-6 : f32
    %64 = vector.broadcast %cst_31 : f32 to vector<1x256xf32>
    %65 = arith.addf %63, %64 : vector<1x256xf32>
    %66 = math.rsqrt %65 : vector<1x256xf32>
    %67 = vector.broadcast %66 : vector<1x256xf32> to vector<512x256xf32>
    %68 = arith.mulf %58, %67 : vector<512x256xf32>
    %69 = vector.broadcast %4 : vector<512x1xf32> to vector<512x256xf32>
    %70 = arith.mulf %68, %69 : vector<512x256xf32>
    %71 = vector.broadcast %5 : vector<512x1xf32> to vector<512x256xf32>
    %72 = arith.addf %70, %71 : vector<512x256xf32>
    %c1_32 = arith.constant 1 : index
    %c0_33 = arith.constant 0 : index
    %c0_34 = arith.constant 0 : index
    %73 = vector.load %arg6[%c1_32, %c0_33, %c0_34] : memref<2x512x256xf32, #tpu.memory_space<vmem>>, vector<1x512x256xf32>
    %74 = vector.shape_cast %73 : vector<1x512x256xf32> to vector<512x256xf32>
    %75 = vector.shape_cast %72 : vector<512x256xf32> to vector<1x512x256xf32>
    tpu.vector_store %arg6[%c1_32, %c0_33, %c0_34], %75 {strides = array<i32>} : memref<2x512x256xf32, #tpu.memory_space<vmem>>, vector<1x512x256xf32>,
    return
  }
  func.func @transform_0(%arg0: i32) -> (i32, i32, i32) {
    %c0_i32 = arith.constant 0 : i32
    %c0_i32_0 = arith.constant 0 : i32
    %c0_i32_1 = arith.constant 0 : i32
    return %arg0, %c0_i32, %c0_i32_0 : i32, i32, i32
  }
  func.func @transform_1(%arg0: i32) -> (i32, i32) {
    %c0_i32 = arith.constant 0 : i32
    %c0_i32_0 = arith.constant 0 : i32
    %c0_i32_1 = arith.constant 0 : i32
    return %c0_i32, %c0_i32_0 : i32, i32
  }
  func.func @transform_2(%arg0: i32) -> (i32, i32) {
    %c0_i32 = arith.constant 0 : i32
    %c0_i32_0 = arith.constant 0 : i32
    %c0_i32_1 = arith.constant 0 : i32
    return %c0_i32, %c0_i32_0 : i32, i32
  }
  func.func @transform_3(%arg0: i32) -> (i32, i32) {
    %c0_i32 = arith.constant 0 : i32
    %c0_i32_0 = arith.constant 0 : i32
    %c0_i32_1 = arith.constant 0 : i32
    return %c0_i32, %c0_i32_0 : i32, i32
  }
  func.func @transform_4(%arg0: i32) -> (i32, i32, i32) {
    %c0_i32 = arith.constant 0 : i32
    %c0_i32_0 = arith.constant 0 : i32
    %c0_i32_1 = arith.constant 0 : i32
    return %arg0, %c0_i32, %c0_i32_0 : i32, i32, i32
  }
  func.func @transform_5(%arg0: i32) -> (i32, i32, i32) {
    %c0_i32 = arith.constant 0 : i32
    %c0_i32_0 = arith.constant 0 : i32
    %c0_i32_1 = arith.constant 0 : i32
    return %arg0, %c0_i32, %c0_i32_0 : i32, i32, i32
  }
}

</mosaic_0001>

<llo_original>
// kernel: tpu_custom_call.1
$region0: #{tpu_custom_call.1}
  #allocation0 [shape = 'u32[]', space=smem, size = 0x4, offset = 0x4, fixed_abs, tag = 'smem constant byte address 0x4 - core index']
  #allocation1 [shape = 'u32[72,128]{1,0:T(1,128)}', space=vmem, size = 0x9000, scoped, tag = 'internal scratch']
  %s0 = inlined_call_operand.hbm [shape: f32[2,512,256], index: 0, kind: input, shape index: {}]
  %s1 = inlined_call_operand.vmem [shape: bf16[256,256], index: 1, kind: input, shape index: {}]
  %s2 = inlined_call_operand.hbm [shape: bf16[512,512], index: 2, kind: input, shape index: {}]
  %s3 = inlined_call_operand.vmem [shape: f32[512,8], index: 3, kind: input, shape index: {}]
  %s4 = inlined_call_operand.hbm [shape: bf16[2,512,256], index: 4, kind: output, shape index: {0}]
  %s5 = inlined_call_operand.hbm [shape: f32[2,512,256], index: 5, kind: output, shape index: {1}]
  %6 = xla_tuple %s4, %s5
  %s7 = sld [smem:[#allocation0]]
  $region42: #{tpu_custom_call.1} parent=0
    _
  %s9 = ssub.s32 1, %s7
  %s10 = scalar_select 0, %s9, %s7
  $region1: #{tpu_custom_call.1} parent=0
    #allocation2 [shape = 'u8[1048576]{0}', space=vmem, size = 0x100000, scoped, tag = 'input window, operand 0, single buffered']
    #allocation3 [shape = 's32[1]{0}', space=sflag, size = 0x4, scoped, tag = 'scoped memory for tpu_custom_call.1']
    #allocation4 [shape = 's32[1]{0}', space=sflag, size = 0x4, scoped, tag = 'scoped memory for tpu_custom_call.1']
    #allocation5 [shape = 'u8[524288]{0}', space=vmem, size = 0x80000, scoped, tag = 'input window, operand 2, single buffered']
    #allocation6 [shape = 's32[1]{0}', space=sflag, size = 0x4, scoped, tag = 'scoped memory for tpu_custom_call.1']
    #allocation7 [shape = 'u8[524288]{0}', space=vmem, size = 0x80000, scoped, tag = 'output window, operand 0, single buffered']
    #allocation8 [shape = 'u8[1048576]{0}', space=vmem, size = 0x100000, scoped, tag = 'output window, operand 1, single buffered']
    #allocation9 [shape = 's32[1]{0}', space=sflag, size = 0x4, scoped, tag = 'scoped memory for tpu_custom_call.1']
    %11 = vsyncpa [#allocation3], 0
    %12 = vsyncpa [#allocation6], 0
    %13 = vsyncpa [#allocation4], 0
    %14 = vsyncpa [#allocation9], 0
    // Predicated region
    $region2: #{tpu_custom_call.1} parent=1 // pred_check
      _
    $region3: #{tpu_custom_call.1} parent=1 // pred_check_branch
      %16 = sbr.rel (0) target = $region5
    $region4: #{tpu_custom_call.1} parent=1 // pred_region
      %18 = vsyncadd [#allocation3], 0
      %s19 = sshll.u32 %s0, 4
      %s20 = int_to_ptr.hbm [resolvable:$true] %s19
      %s21 = sshll.u32 [#allocation2], 4
      %s22 = int_to_ptr.vmem [resolvable:$true] %s21
      %27 = dma.hbm_to_vmem [thread:$0]  %s20, 32768, %s22, [#allocation3], 256, 256, 16
    $region5: #{tpu_custom_call.1} parent=1 // pred_fallthru
      _
    // Predicated region
    $region6: #{tpu_custom_call.1} parent=1 // pred_check
      _
    $region7: #{tpu_custom_call.1} parent=1 // pred_check_branch
      %29 = sbr.rel (0) target = $region9
    $region8: #{tpu_custom_call.1} parent=1 // pred_region
      _
    $region9: #{tpu_custom_call.1} parent=1 // pred_fallthru
      _
    // Predicated region
    $region10: #{tpu_custom_call.1} parent=1 // pred_check
      _
    $region11: #{tpu_custom_call.1} parent=1 // pred_check_branch
      %31 = sbr.rel (0) target = $region13
    $region12: #{tpu_custom_call.1} parent=1 // pred_region
      %33 = vsyncadd [#allocation6], 0
      %s34 = sshll.u32 %s2, 4
      %s35 = int_to_ptr.hbm [resolvable:$true] %s34
      %s36 = sshll.u32 [#allocation5], 4
      %s37 = int_to_ptr.vmem [resolvable:$true] %s36
      %42 = dma.hbm_to_vmem [thread:$0]  %s35, 16384, %s37, [#allocation6], 256, 256, 16
    $region13: #{tpu_custom_call.1} parent=1 // pred_fallthru
      _
    // Predicated region
    $region14: #{tpu_custom_call.1} parent=1 // pred_check
      _
    $region15: #{tpu_custom_call.1} parent=1 // pred_check_branch
      %44 = sbr.rel (0) target = $region17
    $region16: #{tpu_custom_call.1} parent=1 // pred_region
      _
    $region17: #{tpu_custom_call.1} parent=1 // pred_fallthru
      _
    // Predicated region
    $region18: #{tpu_custom_call.1} parent=1 // pred_check
      _
    $region19: #{tpu_custom_call.1} parent=1 // pred_check_branch
      %46 = sbr.rel (0) target = $region21
    $region20: #{tpu_custom_call.1} parent=1 // pred_region
      %48 = dma.done [#allocation3], 32768
    $region21: #{tpu_custom_call.1} parent=1 // pred_fallthru
      _
    // Predicated region
    $region22: #{tpu_custom_call.1} parent=1 // pred_check
      _
    $region23: #{tpu_custom_call.1} parent=1 // pred_check_branch
      %50 = sbr.rel (0) target = $region25
    $region24: #{tpu_custom_call.1} parent=1 // pred_region
      %52 = dma.done [#allocation6], 16384
    $region25: #{tpu_custom_call.1} parent=1 // pred_fallthru
      _
    %v53 = vld [vmem:[%s1] sm:$0xff]
    %v54 = vld [vmem:[%s1 + $0x8] sm:$0xff]
    %v55 = vld [vmem:[%s1 + $0x10] sm:$0xff]
    %v56 = vld [vmem:[%s1 + $0x18] sm:$0xff]
    %v57 = vld [vmem:[%s1 + $0x20] sm:$0xff]
    %v58 = vld [vmem:[%s1 + $0x28] sm:$0xff]
    %v59 = vld [vmem:[%s1 + $0x30] sm:$0xff]
    %v60 = vld [vmem:[%s1 + $0x38] sm:$0xff]
    %v61 = vld [vmem:[%s1 + $0x40] sm:$0xff]
    %v62 = vld [vmem:[%s1 + $0x48] sm:$0xff]
    %v63 = vld [vmem:[%s1 + $0x50] sm:$0xff]
    %v64 = vld [vmem:[%s1 + $0x58] sm:$0xff]
    %v65 = vld [vmem:[%s1 + $0x60] sm:$0xff]
    %v66 = vld [vmem:[%s1 + $0x68] sm:$0xff]
    %v67 = vld [vmem:[%s1 + $0x70] sm:$0xff]
    %v68 = vld [vmem:[%s1 + $0x78] sm:$0xff]
    %v69 = vld [vmem:[%s1 + $0x80] sm:$0xff]
    %v70 = vld [vmem:[%s1 + $0x88] sm:$0xff]
    %v71 = vld [vmem:[%s1 + $0x90] sm:$0xff]
    %v72 = vld [vmem:[%s1 + $0x98] sm:$0xff]
    %v73 = vld [vmem:[%s1 + $0xa0] sm:$0xff]
    %v74 = vld [vmem:[%s1 + $0xa8] sm:$0xff]
    %v75 = vld [vmem:[%s1 + $0xb0] sm:$0xff]
    %v76 = vld [vmem:[%s1 + $0xb8] sm:$0xff]
    %v77 = vld [vmem:[%s1 + $0xc0] sm:$0xff]
    %v78 = vld [vmem:[%s1 + $0xc8] sm:$0xff]
    %v79 = vld [vmem:[%s1 + $0xd0] sm:$0xff]
    %v80 = vld [vmem:[%s1 + $0xd8] sm:$0xff]
    %v81 = vld [vmem:[%s1 + $0xe0] sm:$0xff]
    %v82 = vld [vmem:[%s1 + $0xe8] sm:$0xff]
    %v83 = vld [vmem:[%s1 + $0xf0] sm:$0xff]
    %v84 = vld [vmem:[%s1 + $0xf8] sm:$0xff]
    %v85 = vld [vmem:[#allocation5] sm:$0xff]
    %v86 = vld [vmem:[#allocation5 + $0x8] sm:$0xff]
    %v87 = vld [vmem:[#allocation5 + $0x10] sm:$0xff]
    %v88 = vld [vmem:[#allocation5 + $0x18] sm:$0xff]
    %v89 = vld [vmem:[#allocation5 + $0x20] sm:$0xff]
    %v90 = vld [vmem:[#allocation5 + $0x28] sm:$0xff]
    %v91 = vld [vmem:[#allocation5 + $0x30] sm:$0xff]
    %v92 = vld [vmem:[#allocation5 + $0x38] sm:$0xff]
    %v93 = vld [vmem:[#allocation5 + $0x40] sm:$0xff]
    %v94 = vld [vmem:[#allocation5 + $0x48] sm:$0xff]
    %v95 = vld [vmem:[#allocation5 + $0x50] sm:$0xff]
    %v96 = vld [vmem:[#allocation5 + $0x58] sm:$0xff]
    %v97 = vld [vmem:[#allocation5 + $0x60] sm:$0xff]
    %v98 = vld [vmem:[#allocation5 + $0x68] sm:$0xff]
    %v99 = vld [vmem:[#allocation5 + $0x70] sm:$0xff]
    %v100 = vld [vmem:[#allocation5 + $0x78] sm:$0xff]
    %v101 = vld [vmem:[#allocation5 + $0x80] sm:$0xff]
    %v102 = vld [vmem:[#allocation5 + $0x88] sm:$0xff]
    %v103 = vld [vmem:[#allocation5 + $0x90] sm:$0xff]
    %v104 = vld [vmem:[#allocation5 + $0x98] sm:$0xff]
    %v105 = vld [vmem:[#allocation5 + $0xa0] sm:$0xff]
    %v106 = vld [vmem:[#allocation5 + $0xa8] sm:$0xff]
    %v107 = vld [vmem:[#allocation5 + $0xb0] sm:$0xff]
    %v108 = vld [vmem:[#allocation5 + $0xb8] sm:$0xff]
    %v109 = vld [vmem:[#allocation5 + $0xc0] sm:$0xff]
    %v110 = vld [vmem:[#allocation5 + $0xc8] sm:$0xff]
    %v111 = vld [vmem:[#allocation5 + $0xd0] sm:$0xff]
    %v112 = vld [vmem:[#allocation5 + $0xd8] sm:$0xff]
    %v113 = vld [vmem:[#allocation5 + $0xe0] sm:$0xff]
    %v114 = vld [vmem:[#allocation5 + $0xe8] sm:$0xff]
    %v115 = vld [vmem:[#allocation5 + $0xf0] sm:$0xff]
    %v116 = vld [vmem:[#allocation5 + $0xf8] sm:$0xff]
    %v117 = vld [vmem:[#allocation5 + $0x100] sm:$0xff]
    %v118 = vld [vmem:[#allocation5 + $0x108] sm:$0xff]
    %v119 = vld [vmem:[#allocation5 + $0x110] sm:$0xff]
    %v120 = vld [vmem:[#allocation5 + $0x118] sm:$0xff]
    %v121 = vld [vmem:[#allocation5 + $0x120] sm:$0xff]
    %v122 = vld [vmem:[#allocation5 + $0x128] sm:$0xff]
    %v123 = vld [vmem:[#allocation5 + $0x130] sm:$0xff]
    %v124 = vld [vmem:[#allocation5 + $0x138] sm:$0xff]
    %v125 = vld [vmem:[#allocation5 + $0x140] sm:$0xff]
    %v126 = vld [vmem:[#allocation5 + $0x148] sm:$0xff]
    %v127 = vld [vmem:[#allocation5 + $0x150] sm:$0xff]
    %v128 = vld [vmem:[#allocation5 + $0x158] sm:$0xff]
    %v129 = vld [vmem:[#allocation5 + $0x160] sm:$0xff]
    %v130 = vld [vmem:[#allocation5 + $0x168] sm:$0xff]
    %v131 = vld [vmem:[#allocation5 + $0x170] sm:$0xff]
    %v132 = vld [vmem:[#allocation5 + $0x178] sm:$0xff]
    %v133 = vld [vmem:[#allocation5 + $0x180] sm:$0xff]
    %v134 = vld [vmem:[#allocation5 + $0x188] sm:$0xff]
    %v135 = vld [vmem:[#allocation5 + $0x190] sm:$0xff]
    %v136 = vld [vmem:[#allocation5 + $0x198] sm:$0xff]
    %v137 = vld [vmem:[#allocation5 + $0x1a0] sm:$0xff]
    %v138 = vld [vmem:[#allocation5 + $0x1a8] sm:$0xff]
    %v139 = vld [vmem:[#allocation5 + $0x1b0] sm:$0xff]
    %v140 = vld [vmem:[#allocation5 + $0x1b8] sm:$0xff]
    %v141 = vld [vmem:[#allocation5 + $0x1c0] sm:$0xff]
    %v142 = vld [vmem:[#allocation5 + $0x1c8] sm:$0xff]
    %v143 = vld [vmem:[#allocation5 + $0x1d0] sm:$0xff]
    %v144 = vld [vmem:[#allocation5 + $0x1d8] sm:$0xff]
    %v145 = vld [vmem:[#allocation5 + $0x1e0] sm:$0xff]
    %v146 = vld [vmem:[#allocation5 + $0x1e8] sm:$0xff]
    %v147 = vld [vmem:[#allocation5 + $0x1f0] sm:$0xff]
    %v148 = vld [vmem:[#allocation5 + $0x1f8] sm:$0xff]
    %v149 = vld [vmem:[#allocation5 + $0x200] sm:$0xff]
    %v150 = vld [vmem:[#allocation5 + $0x208] sm:$0xff]
    %v151 = vld [vmem:[#allocation5 + $0x210] sm:$0xff]
    %v152 = vld [vmem:[#allocation5 + $0x218] sm:$0xff]
    %v153 = vld [vmem:[#allocation5 + $0x220] sm:$0xff]
    %v154 = vld [vmem:[#allocation5 + $0x228] sm:$0xff]
    %v155 = vld [vmem:[#allocation5 + $0x230] sm:$0xff]
    %v156 = vld [vmem:[#allocation5 + $0x238] sm:$0xff]
    %v157 = vld [vmem:[#allocation5 + $0x240] sm:$0xff]
    %v158 = vld [vmem:[#allocation5 + $0x248] sm:$0xff]
    %v159 = vld [vmem:[#allocation5 + $0x250] sm:$0xff]
    %v160 = vld [vmem:[#allocation5 + $0x258] sm:$0xff]
    %v161 = vld [vmem:[#allocation5 + $0x260] sm:$0xff]
    %v162 = vld [vmem:[#allocation5 + $0x268] sm:$0xff]
    %v163 = vld [vmem:[#allocation5 + $0x270] sm:$0xff]
    %v164 = vld [vmem:[#allocation5 + $0x278] sm:$0xff]
    %v165 = vld [vmem:[#allocation5 + $0x280] sm:$0xff]
    %v166 = vld [vmem:[#allocation5 + $0x288] sm:$0xff]
    %v167 = vld [vmem:[#allocation5 + $0x290] sm:$0xff]
    %v168 = vld [vmem:[#allocation5 + $0x298] sm:$0xff]
    %v169 = vld [vmem:[#allocation5 + $0x2a0] sm:$0xff]
    %v170 = vld [vmem:[#allocation5 + $0x2a8] sm:$0xff]
    %v171 = vld [vmem:[#allocation5 + $0x2b0] sm:$0xff]
    %v172 = vld [vmem:[#allocation5 + $0x2b8] sm:$0xff]
    %v173 = vld [vmem:[#allocation5 + $0x2c0] sm:$0xff]
    %v174 = vld [vmem:[#allocation5 + $0x2c8] sm:$0xff]
    %v175 = vld [vmem:[#allocation5 + $0x2d0] sm:$0xff]
    %v176 = vld [vmem:[#allocation5 + $0x2d8] sm:$0xff]
    %v177 = vld [vmem:[#allocation5 + $0x2e0] sm:$0xff]
    %v178 = vld [vmem:[#allocation5 + $0x2e8] sm:$0xff]
    %v179 = vld [vmem:[#allocation5 + $0x2f0] sm:$0xff]
    %v180 = vld [vmem:[#allocation5 + $0x2f8] sm:$0xff]
    %v181 = vld [vmem:[#allocation5 + $0x300] sm:$0xff]
    %v182 = vld [vmem:[#allocation5 + $0x308] sm:$0xff]
    %v183 = vld [vmem:[#allocation5 + $0x310] sm:$0xff]
    %v184 = vld [vmem:[#allocation5 + $0x318] sm:$0xff]
    %v185 = vld [vmem:[#allocation5 + $0x320] sm:$0xff]
    %v186 = vld [vmem:[#allocation5 + $0x328] sm:$0xff]
    %v187 = vld [vmem:[#allocation5 + $0x330] sm:$0xff]
    %v188 = vld [vmem:[#allocation5 + $0x338] sm:$0xff]
    %v189 = vld [vmem:[#allocation5 + $0x340] sm:$0xff]
    %v190 = vld [vmem:[#allocation5 + $0x348] sm:$0xff]
    %v191 = vld [vmem:[#allocation5 + $0x350] sm:$0xff]
    %v192 = vld [vmem:[#allocation5 + $0x358] sm:$0xff]
    %v193 = vld [vmem:[#allocation5 + $0x360] sm:$0xff]
    %v194 = vld [vmem:[#allocation5 + $0x368] sm:$0xff]
    %v195 = vld [vmem:[#allocation5 + $0x370] sm:$0xff]
    %v196 = vld [vmem:[#allocation5 + $0x378] sm:$0xff]
    %v197 = vld [vmem:[#allocation5 + $0x380] sm:$0xff]
    %v198 = vld [vmem:[#allocation5 + $0x388] sm:$0xff]
    %v199 = vld [vmem:[#allocation5 + $0x390] sm:$0xff]
    %v200 = vld [vmem:[#allocation5 + $0x398] sm:$0xff]
    %v201 = vld [vmem:[#allocation5 + $0x3a0] sm:$0xff]
    %v202 = vld [vmem:[#allocation5 + $0x3a8] sm:$0xff]
    %v203 = vld [vmem:[#allocation5 + $0x3b0] sm:$0xff]
    %v204 = vld [vmem:[#allocation5 + $0x3b8] sm:$0xff]
    %v205 = vld [vmem:[#allocation5 + $0x3c0] sm:$0xff]
    %v206 = vld [vmem:[#allocation5 + $0x3c8] sm:$0xff]
    %v207 = vld [vmem:[#allocation5 + $0x3d0] sm:$0xff]
    %v208 = vld [vmem:[#allocation5 + $0x3d8] sm:$0xff]
    %v209 = vld [vmem:[#allocation5 + $0x3e0] sm:$0xff]
    %v210 = vld [vmem:[#allocation5 + $0x3e8] sm:$0xff]
    %v211 = vld [vmem:[#allocation5 + $0x3f0] sm:$0xff]
    %v212 = vld [vmem:[#allocation5 + $0x3f8] sm:$0xff]
    %v213 = vld [vmem:[%s3] sm:$0xff]
    %v214 = vld [vmem:[%s3 + $0x8] sm:$0xff]
    %v215 = vld [vmem:[%s3 + $0x10] sm:$0xff]
    %v216 = vld [vmem:[%s3 + $0x18] sm:$0xff]
    %v217 = vld [vmem:[%s3 + $0x20] sm:$0xff]
    %v218 = vld [vmem:[%s3 + $0x28] sm:$0xff]
    %v219 = vld [vmem:[%s3 + $0x30] sm:$0xff]
    %v220 = vld [vmem:[%s3 + $0x38] sm:$0xff]
    %v221 = vld [vmem:[%s3 + $0x40] sm:$0xff]
    %v222 = vld [vmem:[%s3 + $0x48] sm:$0xff]
    %v223 = vld [vmem:[%s3 + $0x50] sm:$0xff]
    %v224 = vld [vmem:[%s3 + $0x58] sm:$0xff]
    %v225 = vld [vmem:[%s3 + $0x60] sm:$0xff]
    %v226 = vld [vmem:[%s3 + $0x68] sm:$0xff]
    %v227 = vld [vmem:[%s3 + $0x70] sm:$0xff]
    %v228 = vld [vmem:[%s3 + $0x78] sm:$0xff]
    %v229 = vld [vmem:[%s3 + $0x80] sm:$0xff]
    %v230 = vld [vmem:[%s3 + $0x88] sm:$0xff]
    %v231 = vld [vmem:[%s3 + $0x90] sm:$0xff]
    %v232 = vld [vmem:[%s3 + $0x98] sm:$0xff]
    %v233 = vld [vmem:[%s3 + $0xa0] sm:$0xff]
    %v234 = vld [vmem:[%s3 + $0xa8] sm:$0xff]
    %v235 = vld [vmem:[%s3 + $0xb0] sm:$0xff]
    %v236 = vld [vmem:[%s3 + $0xb8] sm:$0xff]
    %v237 = vld [vmem:[%s3 + $0xc0] sm:$0xff]
    %v238 = vld [vmem:[%s3 + $0xc8] sm:$0xff]
    %v239 = vld [vmem:[%s3 + $0xd0] sm:$0xff]
    %v240 = vld [vmem:[%s3 + $0xd8] sm:$0xff]
    %v241 = vld [vmem:[%s3 + $0xe0] sm:$0xff]
    %v242 = vld [vmem:[%s3 + $0xe8] sm:$0xff]
    %v243 = vld [vmem:[%s3 + $0xf0] sm:$0xff]
    %v244 = vld [vmem:[%s3 + $0xf8] sm:$0xff]
    %v245 = vld [vmem:[%s3 + $0x100] sm:$0xff]
    %v246 = vld [vmem:[%s3 + $0x108] sm:$0xff]
    %v247 = vld [vmem:[%s3 + $0x110] sm:$0xff]
    %v248 = vld [vmem:[%s3 + $0x118] sm:$0xff]
    %v249 = vld [vmem:[%s3 + $0x120] sm:$0xff]
    %v250 = vld [vmem:[%s3 + $0x128] sm:$0xff]
    %v251 = vld [vmem:[%s3 + $0x130] sm:$0xff]
    %v252 = vld [vmem:[%s3 + $0x138] sm:$0xff]
    %v253 = vld [vmem:[%s3 + $0x140] sm:$0xff]
    %v254 = vld [vmem:[%s3 + $0x148] sm:$0xff]
    %v255 = vld [vmem:[%s3 + $0x150] sm:$0xff]
    %v256 = vld [vmem:[%s3 + $0x158] sm:$0xff]
    %v257 = vld [vmem:[%s3 + $0x160] sm:$0xff]
    %v258 = vld [vmem:[%s3 + $0x168] sm:$0xff]
    %v259 = vld [vmem:[%s3 + $0x170] sm:$0xff]
    %v260 = vld [vmem:[%s3 + $0x178] sm:$0xff]
    %v261 = vld [vmem:[%s3 + $0x180] sm:$0xff]
    %v262 = vld [vmem:[%s3 + $0x188] sm:$0xff]
    %v263 = vld [vmem:[%s3 + $0x190] sm:$0xff]
    %v264 = vld [vmem:[%s3 + $0x198] sm:$0xff]
    %v265 = vld [vmem:[%s3 + $0x1a0] sm:$0xff]
    %v266 = vld [vmem:[%s3 + $0x1a8] sm:$0xff]
    %v267 = vld [vmem:[%s3 + $0x1b0] sm:$0xff]
    %v268 = vld [vmem:[%s3 + $0x1b8] sm:$0xff]
    %v269 = vld [vmem:[%s3 + $0x1c0] sm:$0xff]
    %v270 = vld [vmem:[%s3 + $0x1c8] sm:$0xff]
    %v271 = vld [vmem:[%s3 + $0x1d0] sm:$0xff]
    %v272 = vld [vmem:[%s3 + $0x1d8] sm:$0xff]
    %v273 = vld [vmem:[%s3 + $0x1e0] sm:$0xff]
    %v274 = vld [vmem:[%s3 + $0x1e8] sm:$0xff]
    %v275 = vld [vmem:[%s3 + $0x1f0] sm:$0xff]
    %v276 = vld [vmem:[%s3 + $0x1f8] sm:$0xff]
    %v277 = vld [vmem:[#allocation2] sm:$0xff]
    %v278 = vld [vmem:[#allocation2 + $0x8] sm:$0xff]
    %v279 = vld [vmem:[#allocation2 + $0x10] sm:$0xff]
    %v280 = vld [vmem:[#allocation2 + $0x18] sm:$0xff]
    %v281 = vld [vmem:[#allocation2 + $0x20] sm:$0xff]
    %v282 = vld [vmem:[#allocation2 + $0x28] sm:$0xff]
    %v283 = vld [vmem:[#allocation2 + $0x30] sm:$0xff]
    %v284 = vld [vmem:[#allocation2 + $0x38] sm:$0xff]
    %v285 = vld [vmem:[#allocation2 + $0x40] sm:$0xff]
    %v286 = vld [vmem:[#allocation2 + $0x48] sm:$0xff]
    %v287 = vld [vmem:[#allocation2 + $0x50] sm:$0xff]
    %v288 = vld [vmem:[#allocation2 + $0x58] sm:$0xff]
    %v289 = vld [vmem:[#allocation2 + $0x60] sm:$0xff]
    %v290 = vld [vmem:[#allocation2 + $0x68] sm:$0xff]
    %v291 = vld [vmem:[#allocation2 + $0x70] sm:$0xff]
    %v292 = vld [vmem:[#allocation2 + $0x78] sm:$0xff]
    %v293 = vld [vmem:[#allocation2 + $0x80] sm:$0xff]
    %v294 = vld [vmem:[#allocation2 + $0x88] sm:$0xff]
    %v295 = vld [vmem:[#allocation2 + $0x90] sm:$0xff]
    %v296 = vld [vmem:[#allocation2 + $0x98] sm:$0xff]
    %v297 = vld [vmem:[#allocation2 + $0xa0] sm:$0xff]
    %v298 = vld [vmem:[#allocation2 + $0xa8] sm:$0xff]
    %v299 = vld [vmem:[#allocation2 + $0xb0] sm:$0xff]
    %v300 = vld [vmem:[#allocation2 + $0xb8] sm:$0xff]
    %v301 = vld [vmem:[#allocation2 + $0xc0] sm:$0xff]
    %v302 = vld [vmem:[#allocation2 + $0xc8] sm:$0xff]
    %v303 = vld [vmem:[#allocation2 + $0xd0] sm:$0xff]
    %v304 = vld [vmem:[#allocation2 + $0xd8] sm:$0xff]
    %v305 = vld [vmem:[#allocation2 + $0xe0] sm:$0xff]
    %v306 = vld [vmem:[#allocation2 + $0xe8] sm:$0xff]
    %v307 = vld [vmem:[#allocation2 + $0xf0] sm:$0xff]
    %v308 = vld [vmem:[#allocation2 + $0xf8] sm:$0xff]
    %v309 = vld [vmem:[#allocation2 + $0x100] sm:$0xff]
    %v310 = vld [vmem:[#allocation2 + $0x108] sm:$0xff]
    %v311 = vld [vmem:[#allocation2 + $0x110] sm:$0xff]
    %v312 = vld [vmem:[#allocation2 + $0x118] sm:$0xff]
    %v313 = vld [vmem:[#allocation2 + $0x120] sm:$0xff]
    %v314 = vld [vmem:[#allocation2 + $0x128] sm:$0xff]
    %v315 = vld [vmem:[#allocation2 + $0x130] sm:$0xff]
    %v316 = vld [vmem:[#allocation2 + $0x138] sm:$0xff]
    %v317 = vld [vmem:[#allocation2 + $0x140] sm:$0xff]
    %v318 = vld [vmem:[#allocation2 + $0x148] sm:$0xff]
    %v319 = vld [vmem:[#allocation2 + $0x150] sm:$0xff]
    %v320 = vld [vmem:[#allocation2 + $0x158] sm:$0xff]
    %v321 = vld [vmem:[#allocation2 + $0x160] sm:$0xff]
    %v322 = vld [vmem:[#allocation2 + $0x168] sm:$0xff]
    %v323 = vld [vmem:[#allocation2 + $0x170] sm:$0xff]
    %v324 = vld [vmem:[#allocation2 + $0x178] sm:$0xff]
    %v325 = vld [vmem:[#allocation2 + $0x180] sm:$0xff]
    %v326 = vld [vmem:[#allocation2 + $0x188] sm:$0xff]
    %v327 = vld [vmem:[#allocation2 + $0x190] sm:$0xff]
    %v328 = vld [vmem:[#allocation2 + $0x198] sm:$0xff]
    %v329 = vld [vmem:[#allocation2 + $0x1a0] sm:$0xff]
    %v330 = vld [vmem:[#allocation2 + $0x1a8] sm:$0xff]
    %v331 = vld [vmem:[#allocation2 + $0x1b0] sm:$0xff]
    %v332 = vld [vmem:[#allocation2 + $0x1b8] sm:$0xff]
    %v333 = vld [vmem:[#allocation2 + $0x1c0] sm:$0xff]
    %v334 = vld [vmem:[#allocation2 + $0x1c8] sm:$0xff]
    %v335 = vld [vmem:[#allocation2 + $0x1d0] sm:$0xff]
    %v336 = vld [vmem:[#allocation2 + $0x1d8] sm:$0xff]
    %v337 = vld [vmem:[#allocation2 + $0x1e0] sm:$0xff]
    %v338 = vld [vmem:[#allocation2 + $0x1e8] sm:$0xff]
    %v339 = vld [vmem:[#allocation2 + $0x1f0] sm:$0xff]
    %v340 = vld [vmem:[#allocation2 + $0x1f8] sm:$0xff]
    %v341 = vld [vmem:[#allocation2 + $0x200] sm:$0xff]
    %v342 = vld [vmem:[#allocation2 + $0x208] sm:$0xff]
    %v343 = vld [vmem:[#allocation2 + $0x210] sm:$0xff]
    %v344 = vld [vmem:[#allocation2 + $0x218] sm:$0xff]
    %v345 = vld [vmem:[#allocation2 + $0x220] sm:$0xff]
    %v346 = vld [vmem:[#allocation2 + $0x228] sm:$0xff]
    %v347 = vld [vmem:[#allocation2 + $0x230] sm:$0xff]
    %v348 = vld [vmem:[#allocation2 + $0x238] sm:$0xff]
    %v349 = vld [vmem:[#allocation2 + $0x240] sm:$0xff]
    %v350 = vld [vmem:[#allocation2 + $0x248] sm:$0xff]
    %v351 = vld [vmem:[#allocation2 + $0x250] sm:$0xff]
    %v352 = vld [vmem:[#allocation2 + $0x258] sm:$0xff]
    %v353 = vld [vmem:[#allocation2 + $0x260] sm:$0xff]
    %v354 = vld [vmem:[#allocation2 + $0x268] sm:$0xff]
    %v355 = vld [vmem:[#allocation2 + $0x270] sm:$0xff]
    %v356 = vld [vmem:[#allocation2 + $0x278] sm:$0xff]
    %v357 = vld [vmem:[#allocation2 + $0x280] sm:$0xff]
    %v358 = vld [vmem:[#allocation2 + $0x288] sm:$0xff]
    %v359 = vld [vmem:[#allocation2 + $0x290] sm:$0xff]
    %v360 = vld [vmem:[#allocation2 + $0x298] sm:$0xff]
    %v361 = vld [vmem:[#allocation2 + $0x2a0] sm:$0xff]
    %v362 = vld [vmem:[#allocation2 + $0x2a8] sm:$0xff]
    %v363 = vld [vmem:[#allocation2 + $0x2b0] sm:$0xff]
    %v364 = vld [vmem:[#allocation2 + $0x2b8] sm:$0xff]
    %v365 = vld [vmem:[#allocation2 + $0x2c0] sm:$0xff]
    %v366 = vld [vmem:[#allocation2 + $0x2c8] sm:$0xff]
    %v367 = vld [vmem:[#allocation2 + $0x2d0] sm:$0xff]
    %v368 = vld [vmem:[#allocation2 + $0x2d8] sm:$0xff]
    %v369 = vld [vmem:[#allocation2 + $0x2e0] sm:$0xff]
    %v370 = vld [vmem:[#allocation2 + $0x2e8] sm:$0xff]
    %v371 = vld [vmem:[#allocation2 + $0x2f0] sm:$0xff]
    %v372 = vld [vmem:[#allocation2 + $0x2f8] sm:$0xff]
    %v373 = vld [vmem:[#allocation2 + $0x300] sm:$0xff]
    %v374 = vld [vmem:[#allocation2 + $0x308] sm:$0xff]
    %v375 = vld [vmem:[#allocation2 + $0x310] sm:$0xff]
    %v376 = vld [vmem:[#allocation2 + $0x318] sm:$0xff]
    %v377 = vld [vmem:[#allocation2 + $0x320] sm:$0xff]
    %v378 = vld [vmem:[#allocation2 + $0x328] sm:$0xff]
    %v379 = vld [vmem:[#allocation2 + $0x330] sm:$0xff]
    %v380 = vld [vmem:[#allocation2 + $0x338] sm:$0xff]
    %v381 = vld [vmem:[#allocation2 + $0x340] sm:$0xff]
    %v382 = vld [vmem:[#allocation2 + $0x348] sm:$0xff]
    %v383 = vld [vmem:[#allocation2 + $0x350] sm:$0xff]
    %v384 = vld [vmem:[#allocation2 + $0x358] sm:$0xff]
    %v385 = vld [vmem:[#allocation2 + $0x360] sm:$0xff]
    %v386 = vld [vmem:[#allocation2 + $0x368] sm:$0xff]
    %v387 = vld [vmem:[#allocation2 + $0x370] sm:$0xff]
    %v388 = vld [vmem:[#allocation2 + $0x378] sm:$0xff]
    %v389 = vld [vmem:[#allocation2 + $0x380] sm:$0xff]
    %v390 = vld [vmem:[#allocation2 + $0x388] sm:$0xff]
    %v391 = vld [vmem:[#allocation2 + $0x390] sm:$0xff]
    %v392 = vld [vmem:[#allocation2 + $0x398] sm:$0xff]
    %v393 = vld [vmem:[#allocation2 + $0x3a0] sm:$0xff]
    %v394 = vld [vmem:[#allocation2 + $0x3a8] sm:$0xff]
    %v395 = vld [vmem:[#allocation2 + $0x3b0] sm:$0xff]
    %v396 = vld [vmem:[#allocation2 + $0x3b8] sm:$0xff]
    %v397 = vld [vmem:[#allocation2 + $0x3c0] sm:$0xff]
    %v398 = vld [vmem:[#allocation2 + $0x3c8] sm:$0xff]
    %v399 = vld [vmem:[#allocation2 + $0x3d0] sm:$0xff]
    %v400 = vld [vmem:[#allocation2 + $0x3d8] sm:$0xff]
    %v401 = vld [vmem:[#allocation2 + $0x3e0] sm:$0xff]
    %v402 = vld [vmem:[#allocation2 + $0x3e8] sm:$0xff]
    %v403 = vld [vmem:[#allocation2 + $0x3f0] sm:$0xff]
    %v404 = vld [vmem:[#allocation2 + $0x3f8] sm:$0xff]
    %v405 = vpack.c.bf16 %v279, %v277
    %v406 = vpack.c.bf16 %v280, %v278
    %v407 = vpack.c.bf16 %v283, %v281
    %v408 = vpack.c.bf16 %v284, %v282
    %v409 = vpack.c.bf16 %v287, %v285
    %v410 = vpack.c.bf16 %v288, %v286
    %v411 = vpack.c.bf16 %v291, %v289
    %v412 = vpack.c.bf16 %v292, %v290
    %v413 = vpack.c.bf16 %v295, %v293
    %v414 = vpack.c.bf16 %v296, %v294
    %v415 = vpack.c.bf16 %v299, %v297
    %v416 = vpack.c.bf16 %v300, %v298
    %v417 = vpack.c.bf16 %v303, %v301
    %v418 = vpack.c.bf16 %v304, %v302
    %v419 = vpack.c.bf16 %v307, %v305
    %v420 = vpack.c.bf16 %v308, %v306
    %v421 = vpack.c.bf16 %v311, %v309
    %v422 = vpack.c.bf16 %v312, %v310
    %v423 = vpack.c.bf16 %v315, %v313
    %v424 = vpack.c.bf16 %v316, %v314
    %v425 = vpack.c.bf16 %v319, %v317
    %v426 = vpack.c.bf16 %v320, %v318
    %v427 = vpack.c.bf16 %v323, %v321
    %v428 = vpack.c.bf16 %v324, %v322
    %v429 = vpack.c.bf16 %v327, %v325
    %v430 = vpack.c.bf16 %v328, %v326
    %v431 = vpack.c.bf16 %v331, %v329
    %v432 = vpack.c.bf16 %v332, %v330
    %v433 = vpack.c.bf16 %v335, %v333
    %v434 = vpack.c.bf16 %v336, %v334
    %v435 = vpack.c.bf16 %v339, %v337
    %v436 = vpack.c.bf16 %v340, %v338
    %v437 = vpack.c.bf16 %v343, %v341
    %v438 = vpack.c.bf16 %v344, %v342
    %v439 = vpack.c.bf16 %v347, %v345
    %v440 = vpack.c.bf16 %v348, %v346
    %v441 = vpack.c.bf16 %v351, %v349
    %v442 = vpack.c.bf16 %v352, %v350
    %v443 = vpack.c.bf16 %v355, %v353
    %v444 = vpack.c.bf16 %v356, %v354
    %v445 = vpack.c.bf16 %v359, %v357
    %v446 = vpack.c.bf16 %v360, %v358
    %v447 = vpack.c.bf16 %v363, %v361
    %v448 = vpack.c.bf16 %v364, %v362
    %v449 = vpack.c.bf16 %v367, %v365
    %v450 = vpack.c.bf16 %v368, %v366
    %v451 = vpack.c.bf16 %v371, %v369
    %v452 = vpack.c.bf16 %v372, %v370
    %v453 = vpack.c.bf16 %v375, %v373
    %v454 = vpack.c.bf16 %v376, %v374
    %v455 = vpack.c.bf16 %v379, %v377
    %v456 = vpack.c.bf16 %v380, %v378
    %v457 = vpack.c.bf16 %v383, %v381
    %v458 = vpack.c.bf16 %v384, %v382
    %v459 = vpack.c.bf16 %v387, %v385
    %v460 = vpack.c.bf16 %v388, %v386
    %v461 = vpack.c.bf16 %v391, %v389
    %v462 = vpack.c.bf16 %v392, %v390
    %v463 = vpack.c.bf16 %v395, %v393
    %v464 = vpack.c.bf16 %v396, %v394
    %v465 = vpack.c.bf16 %v399, %v397
    %v466 = vpack.c.bf16 %v400, %v398
    %v467 = vpack.c.bf16 %v403, %v401
    %v468 = vpack.c.bf16 %v404, %v402
    %v501 = vunpack.c.l.b16 %v53
    %v502 = vunpack.c.h.b16 %v53
    %v503 = vunpack.c.l.b16 %v54
    %v504 = vunpack.c.h.b16 %v54
    %v505 = vunpack.c.l.b16 %v55
    %v506 = vunpack.c.h.b16 %v55
    %v507 = vunpack.c.l.b16 %v56
    %v508 = vunpack.c.h.b16 %v56
    %v509 = vunpack.c.l.b16 %v57
    %v510 = vunpack.c.h.b16 %v57
    %v511 = vunpack.c.l.b16 %v58
    %v512 = vunpack.c.h.b16 %v58
    %v513 = vunpack.c.l.b16 %v59
    %v514 = vunpack.c.h.b16 %v59
    %v515 = vunpack.c.l.b16 %v60
    %v516 = vunpack.c.h.b16 %v60
    %v517 = vunpack.c.l.b16 %v61
    %v518 = vunpack.c.h.b16 %v61
    %v519 = vunpack.c.l.b16 %v62
    %v520 = vunpack.c.h.b16 %v62
    %v521 = vunpack.c.l.b16 %v63
    %v522 = vunpack.c.h.b16 %v63
    %v523 = vunpack.c.l.b16 %v64
    %v524 = vunpack.c.h.b16 %v64
    %v525 = vunpack.c.l.b16 %v65
    %v526 = vunpack.c.h.b16 %v65
    %v527 = vunpack.c.l.b16 %v66
    %v528 = vunpack.c.h.b16 %v66
    %v529 = vunpack.c.l.b16 %v67
    %v530 = vunpack.c.h.b16 %v67
    %v531 = vunpack.c.l.b16 %v68
    %v532 = vunpack.c.h.b16 %v68
    %v533 = vunpack.c.l.b16 %v69
    %v534 = vunpack.c.h.b16 %v69
    %v535 = vunpack.c.l.b16 %v70
    %v536 = vunpack.c.h.b16 %v70
    %v537 = vunpack.c.l.b16 %v71
    %v538 = vunpack.c.h.b16 %v71
    %v539 = vunpack.c.l.b16 %v72
    %v540 = vunpack.c.h.b16 %v72
    %v541 = vunpack.c.l.b16 %v73
    %v542 = vunpack.c.h.b16 %v73
    %v543 = vunpack.c.l.b16 %v74
    %v544 = vunpack.c.h.b16 %v74
    %v545 = vunpack.c.l.b16 %v75
    %v546 = vunpack.c.h.b16 %v75
    %v547 = vunpack.c.l.b16 %v76
    %v548 = vunpack.c.h.b16 %v76
    %v549 = vunpack.c.l.b16 %v77
    %v550 = vunpack.c.h.b16 %v77
    %v551 = vunpack.c.l.b16 %v78
    %v552 = vunpack.c.h.b16 %v78
    %v553 = vunpack.c.l.b16 %v79
    %v554 = vunpack.c.h.b16 %v79
    %v555 = vunpack.c.l.b16 %v80
    %v556 = vunpack.c.h.b16 %v80
    %v557 = vunpack.c.l.b16 %v81
    %v558 = vunpack.c.h.b16 %v81
    %v559 = vunpack.c.l.b16 %v82
    %v560 = vunpack.c.h.b16 %v82
    %v561 = vunpack.c.l.b16 %v83
    %v562 = vunpack.c.h.b16 %v83
    %v563 = vunpack.c.l.b16 %v84
    %v564 = vunpack.c.h.b16 %v84
    %v565 = vpack.c.b16 %v503, %v501
    %v566 = vpack.c.b16 %v504, %v502
    %v567 = vpack.c.b16 %v507, %v505
    %v568 = vpack.c.b16 %v508, %v506
    %v569 = vpack.c.b16 %v511, %v509
    %v570 = vpack.c.b16 %v512, %v510
    %v571 = vpack.c.b16 %v515, %v513
    %v572 = vpack.c.b16 %v516, %v514
    %v573 = vpack.c.b16 %v519, %v517
    %v574 = vpack.c.b16 %v520, %v518
    %v575 = vpack.c.b16 %v523, %v521
    %v576 = vpack.c.b16 %v524, %v522
    %v577 = vpack.c.b16 %v527, %v525
    %v578 = vpack.c.b16 %v528, %v526
    %v579 = vpack.c.b16 %v531, %v529
    %v580 = vpack.c.b16 %v532, %v530
    %v581 = vpack.c.b16 %v535, %v533
    %v582 = vpack.c.b16 %v536, %v534
    %v583 = vpack.c.b16 %v539, %v537
    %v584 = vpack.c.b16 %v540, %v538
    %v585 = vpack.c.b16 %v543, %v541
    %v586 = vpack.c.b16 %v544, %v542
    %v587 = vpack.c.b16 %v547, %v545
    %v588 = vpack.c.b16 %v548, %v546
    %v589 = vpack.c.b16 %v551, %v549
    %v590 = vpack.c.b16 %v552, %v550
    %v591 = vpack.c.b16 %v555, %v553
    %v592 = vpack.c.b16 %v556, %v554
    %v593 = vpack.c.b16 %v559, %v557
    %v594 = vpack.c.b16 %v560, %v558
    %v595 = vpack.c.b16 %v563, %v561
    %v596 = vpack.c.b16 %v564, %v562
    %629 = vmatpush.bf16.msra.mxu0 %v579
    %630 = vmatpush.bf16.msra.mxu0 %v577
    %631 = vmatpush.bf16.msra.mxu0 %v575
    %632 = vmatpush.bf16.msra.mxu0 %v573
    %633 = vmatpush.bf16.msra.mxu0 %v571
    %634 = vmatpush.bf16.msra.mxu0 %v569
    %635 = vmatpush.bf16.msra.mxu0 %v567
    %636 = vmatpush.bf16.msra.mxu0 %v565
    %637 = vmatmul.bf16.gmra.mxu0 %v405
    %v638 = vpop.f32.mrf.mxu0
    %v639 = vadd.f32 0.0, %v638
    %v640 = vpop.f32.mrf.mxu0
    %v641 = vadd.f32 0.0, %v640
    %642 = vmatmul.bf16.gmra.mxu0 %v407
    %v643 = vpop.f32.mrf.mxu0
    %v644 = vadd.f32 0.0, %v643
    %v645 = vpop.f32.mrf.mxu0
    %v646 = vadd.f32 0.0, %v645
    %647 = vmatmul.bf16.gmra.mxu0 %v409
    %v648 = vpop.f32.mrf.mxu0
    %v649 = vadd.f32 0.0, %v648
    %v650 = vpop.f32.mrf.mxu0
    %v651 = vadd.f32 0.0, %v650
    %652 = vmatmul.bf16.gmra.mxu0 %v411
    %v653 = vpop.f32.mrf.mxu0
    %v654 = vadd.f32 0.0, %v653
    %v655 = vpop.f32.mrf.mxu0
    %v656 = vadd.f32 0.0, %v655
    %657 = vmatmul.bf16.gmra.mxu0 %v413
    %v658 = vpop.f32.mrf.mxu0
    %v659 = vadd.f32 0.0, %v658
    %v660 = vpop.f32.mrf.mxu0
    %v661 = vadd.f32 0.0, %v660
    %662 = vmatmul.bf16.gmra.mxu0 %v415
    %v663 = vpop.f32.mrf.mxu0
    %v664 = vadd.f32 0.0, %v663
    %v665 = vpop.f32.mrf.mxu0
    %v666 = vadd.f32 0.0, %v665
    %667 = vmatmul.bf16.gmra.mxu0 %v417
    %v668 = vpop.f32.mrf.mxu0
    %v669 = vadd.f32 0.0, %v668
    %v670 = vpop.f32.mrf.mxu0
    %v671 = vadd.f32 0.0, %v670
    %672 = vmatmul.bf16.gmra.mxu0 %v419
    %v673 = vpop.f32.mrf.mxu0
    %v674 = vadd.f32 0.0, %v673
    %v675 = vpop.f32.mrf.mxu0
    %v676 = vadd.f32 0.0, %v675
    %677 = vmatmul.bf16.gmra.mxu0 %v421
    %v678 = vpop.f32.mrf.mxu0
    %v679 = vadd.f32 0.0, %v678
    %v680 = vpop.f32.mrf.mxu0
    %v681 = vadd.f32 0.0, %v680
    %682 = vmatmul.bf16.gmra.mxu0 %v423
    %v683 = vpop.f32.mrf.mxu0
    %v684 = vadd.f32 0.0, %v683
    %v685 = vpop.f32.mrf.mxu0
    %v686 = vadd.f32 0.0, %v685
    %687 = vmatmul.bf16.gmra.mxu0 %v425
    %v688 = vpop.f32.mrf.mxu0
    %v689 = vadd.f32 0.0, %v688
    %v690 = vpop.f32.mrf.mxu0
    %v691 = vadd.f32 0.0, %v690
    %692 = vmatmul.bf16.gmra.mxu0 %v427
    %v693 = vpop.f32.mrf.mxu0
    %v694 = vadd.f32 0.0, %v693
    %v695 = vpop.f32.mrf.mxu0
    %v696 = vadd.f32 0.0, %v695
    %697 = vmatmul.bf16.gmra.mxu0 %v429
    %v698 = vpop.f32.mrf.mxu0
    %v699 = vadd.f32 0.0, %v698
    %v700 = vpop.f32.mrf.mxu0
    %v701 = vadd.f32 0.0, %v700
    %702 = vmatmul.bf16.gmra.mxu0 %v431
    %v703 = vpop.f32.mrf.mxu0
    %v704 = vadd.f32 0.0, %v703
    %v705 = vpop.f32.mrf.mxu0
    %v706 = vadd.f32 0.0, %v705
    %707 = vmatmul.bf16.gmra.mxu0 %v433
    %v708 = vpop.f32.mrf.mxu0
    %v709 = vadd.f32 0.0, %v708
    %v710 = vpop.f32.mrf.mxu0
    %v711 = vadd.f32 0.0, %v710
    %712 = vmatmul.bf16.gmra.mxu0 %v435
    %v713 = vpop.f32.mrf.mxu0
    %v714 = vadd.f32 0.0, %v713
    %v715 = vpop.f32.mrf.mxu0
    %v716 = vadd.f32 0.0, %v715
    %717 = vmatmul.bf16.gmra.mxu0 %v437
    %v718 = vpop.f32.mrf.mxu0
    %v719 = vadd.f32 0.0, %v718
    %v720 = vpop.f32.mrf.mxu0
    %v721 = vadd.f32 0.0, %v720
    %722 = vmatmul.bf16.gmra.mxu0 %v439
    %v723 = vpop.f32.mrf.mxu0
    %v724 = vadd.f32 0.0, %v723
    %v725 = vpop.f32.mrf.mxu0
    %v726 = vadd.f32 0.0, %v725
    %727 = vmatmul.bf16.gmra.mxu0 %v441
    %v728 = vpop.f32.mrf.mxu0
    %v729 = vadd.f32 0.0, %v728
    %v730 = vpop.f32.mrf.mxu0
    %v731 = vadd.f32 0.0, %v730
    %732 = vmatmul.bf16.gmra.mxu0 %v443
    %v733 = vpop.f32.mrf.mxu0
    %v734 = vadd.f32 0.0, %v733
    %v735 = vpop.f32.mrf.mxu0
    %v736 = vadd.f32 0.0, %v735
    %737 = vmatmul.bf16.gmra.mxu0 %v445
    %v738 = vpop.f32.mrf.mxu0
    %v739 = vadd.f32 0.0, %v738
    %v740 = vpop.f32.mrf.mxu0
    %v741 = vadd.f32 0.0, %v740
    %742 = vmatmul.bf16.gmra.mxu0 %v447
    %v743 = vpop.f32.mrf.mxu0
    %v744 = vadd.f32 0.0, %v743
    %v745 = vpop.f32.mrf.mxu0
    %v746 = vadd.f32 0.0, %v745
    %747 = vmatmul.bf16.gmra.mxu0 %v449
    %v748 = vpop.f32.mrf.mxu0
    %v749 = vadd.f32 0.0, %v748
    %v750 = vpop.f32.mrf.mxu0
    %v751 = vadd.f32 0.0, %v750
    %752 = vmatmul.bf16.gmra.mxu0 %v451
    %v753 = vpop.f32.mrf.mxu0
    %v754 = vadd.f32 0.0, %v753
    %v755 = vpop.f32.mrf.mxu0
    %v756 = vadd.f32 0.0, %v755
    %757 = vmatmul.bf16.gmra.mxu0 %v453
    %v758 = vpop.f32.mrf.mxu0
    %v759 = vadd.f32 0.0, %v758
    %v760 = vpop.f32.mrf.mxu0
    %v761 = vadd.f32 0.0, %v760
    %762 = vmatmul.bf16.gmra.mxu0 %v455
    %v763 = vpop.f32.mrf.mxu0
    %v764 = vadd.f32 0.0, %v763
    %v765 = vpop.f32.mrf.mxu0
    %v766 = vadd.f32 0.0, %v765
    %767 = vmatmul.bf16.gmra.mxu0 %v457
    %v768 = vpop.f32.mrf.mxu0
    %v769 = vadd.f32 0.0, %v768
    %v770 = vpop.f32.mrf.mxu0
    %v771 = vadd.f32 0.0, %v770
    %772 = vmatmul.bf16.gmra.mxu0 %v459
    %v773 = vpop.f32.mrf.mxu0
    %v774 = vadd.f32 0.0, %v773
    %v775 = vpop.f32.mrf.mxu0
    %v776 = vadd.f32 0.0, %v775
    %777 = vmatmul.bf16.gmra.mxu0 %v461
    %v778 = vpop.f32.mrf.mxu0
    %v779 = vadd.f32 0.0, %v778
    %v780 = vpop.f32.mrf.mxu0
    %v781 = vadd.f32 0.0, %v780
    %782 = vmatmul.bf16.gmra.mxu0 %v463
    %v783 = vpop.f32.mrf.mxu0
    %v784 = vadd.f32 0.0, %v783
    %v785 = vpop.f32.mrf.mxu0
    %v786 = vadd.f32 0.0, %v785
    %787 = vmatmul.bf16.gmra.mxu0 %v465
    %v788 = vpop.f32.mrf.mxu0
    %v789 = vadd.f32 0.0, %v788
    %v790 = vpop.f32.mrf.mxu0
    %v791 = vadd.f32 0.0, %v790
    %792 = vmatmul.bf16.gmra.mxu0 %v467
    %v793 = vpop.f32.mrf.mxu0
    %v794 = vadd.f32 0.0, %v793
    %v795 = vpop.f32.mrf.mxu0
    %v796 = vadd.f32 0.0, %v795
    %797 = vdwg.mxu0
    %798 = vmatpush.bf16.msra.mxu0 %v595
    %799 = vmatpush.bf16.msra.mxu0 %v593
    %800 = vmatpush.bf16.msra.mxu0 %v591
    %801 = vmatpush.bf16.msra.mxu0 %v589
    %802 = vmatpush.bf16.msra.mxu0 %v587
    %803 = vmatpush.bf16.msra.mxu0 %v585
    %804 = vmatpush.bf16.msra.mxu0 %v583
    %805 = vmatpush.bf16.msra.mxu0 %v581
    %806 = vmatmul.bf16.gmra.mxu0 %v406
    %v807 = vpop.f32.mrf.mxu0
    %v808 = vadd.f32 %v639, %v807
    %v809 = vpop.f32.mrf.mxu0
    %v810 = vadd.f32 %v641, %v809
    %811 = vmatmul.bf16.gmra.mxu0 %v408
    %v812 = vpop.f32.mrf.mxu0
    %v813 = vadd.f32 %v644, %v812
    %v814 = vpop.f32.mrf.mxu0
    %v815 = vadd.f32 %v646, %v814
    %816 = vmatmul.bf16.gmra.mxu0 %v410
    %v817 = vpop.f32.mrf.mxu0
    %v818 = vadd.f32 %v649, %v817
    %v819 = vpop.f32.mrf.mxu0
    %v820 = vadd.f32 %v651, %v819
    %821 = vmatmul.bf16.gmra.mxu0 %v412
    %v822 = vpop.f32.mrf.mxu0
    %v823 = vadd.f32 %v654, %v822
    %v824 = vpop.f32.mrf.mxu0
    %v825 = vadd.f32 %v656, %v824
    %826 = vmatmul.bf16.gmra.mxu0 %v414
    %v827 = vpop.f32.mrf.mxu0
    %v828 = vadd.f32 %v659, %v827
    %v829 = vpop.f32.mrf.mxu0
    %v830 = vadd.f32 %v661, %v829
    %831 = vmatmul.bf16.gmra.mxu0 %v416
    %v832 = vpop.f32.mrf.mxu0
    %v833 = vadd.f32 %v664, %v832
    %v834 = vpop.f32.mrf.mxu0
    %v835 = vadd.f32 %v666, %v834
    %836 = vmatmul.bf16.gmra.mxu0 %v418
    %v837 = vpop.f32.mrf.mxu0
    %v838 = vadd.f32 %v669, %v837
    %v839 = vpop.f32.mrf.mxu0
    %v840 = vadd.f32 %v671, %v839
    %841 = vmatmul.bf16.gmra.mxu0 %v420
    %v842 = vpop.f32.mrf.mxu0
    %v843 = vadd.f32 %v674, %v842
    %v844 = vpop.f32.mrf.mxu0
    %v845 = vadd.f32 %v676, %v844
    %846 = vmatmul.bf16.gmra.mxu0 %v422
    %v847 = vpop.f32.mrf.mxu0
    %v848 = vadd.f32 %v679, %v847
    %v849 = vpop.f32.mrf.mxu0
    %v850 = vadd.f32 %v681, %v849
    %851 = vmatmul.bf16.gmra.mxu0 %v424
    %v852 = vpop.f32.mrf.mxu0
    %v853 = vadd.f32 %v684, %v852
    %v854 = vpop.f32.mrf.mxu0
    %v855 = vadd.f32 %v686, %v854
    %856 = vmatmul.bf16.gmra.mxu0 %v426
    %v857 = vpop.f32.mrf.mxu0
    %v858 = vadd.f32 %v689, %v857
    %v859 = vpop.f32.mrf.mxu0
    %v860 = vadd.f32 %v691, %v859
    %861 = vmatmul.bf16.gmra.mxu0 %v428
    %v862 = vpop.f32.mrf.mxu0
    %v863 = vadd.f32 %v694, %v862
    %v864 = vpop.f32.mrf.mxu0
    %v865 = vadd.f32 %v696, %v864
    %866 = vmatmul.bf16.gmra.mxu0 %v430
    %v867 = vpop.f32.mrf.mxu0
    %v868 = vadd.f32 %v699, %v867
    %v869 = vpop.f32.mrf.mxu0
    %v870 = vadd.f32 %v701, %v869
    %871 = vmatmul.bf16.gmra.mxu0 %v432
    %v872 = vpop.f32.mrf.mxu0
    %v873 = vadd.f32 %v704, %v872
    %v874 = vpop.f32.mrf.mxu0
    %v875 = vadd.f32 %v706, %v874
    %876 = vmatmul.bf16.gmra.mxu0 %v434
    %v877 = vpop.f32.mrf.mxu0
    %v878 = vadd.f32 %v709, %v877
    %v879 = vpop.f32.mrf.mxu0
    %v880 = vadd.f32 %v711, %v879
    %881 = vmatmul.bf16.gmra.mxu0 %v436
    %v882 = vpop.f32.mrf.mxu0
    %v883 = vadd.f32 %v714, %v882
    %v884 = vpop.f32.mrf.mxu0
    %v885 = vadd.f32 %v716, %v884
    %886 = vmatmul.bf16.gmra.mxu0 %v438
    %v887 = vpop.f32.mrf.mxu0
    %v888 = vadd.f32 %v719, %v887
    %v889 = vpop.f32.mrf.mxu0
    %v890 = vadd.f32 %v721, %v889
    %891 = vmatmul.bf16.gmra.mxu0 %v440
    %v892 = vpop.f32.mrf.mxu0
    %v893 = vadd.f32 %v724, %v892
    %v894 = vpop.f32.mrf.mxu0
    %v895 = vadd.f32 %v726, %v894
    %896 = vmatmul.bf16.gmra.mxu0 %v442
    %v897 = vpop.f32.mrf.mxu0
    %v898 = vadd.f32 %v729, %v897
    %v899 = vpop.f32.mrf.mxu0
    %v900 = vadd.f32 %v731, %v899
    %901 = vmatmul.bf16.gmra.mxu0 %v444
    %v902 = vpop.f32.mrf.mxu0
    %v903 = vadd.f32 %v734, %v902
    %v904 = vpop.f32.mrf.mxu0
    %v905 = vadd.f32 %v736, %v904
    %906 = vmatmul.bf16.gmra.mxu0 %v446
    %v907 = vpop.f32.mrf.mxu0
    %v908 = vadd.f32 %v739, %v907
    %v909 = vpop.f32.mrf.mxu0
    %v910 = vadd.f32 %v741, %v909
    %911 = vmatmul.bf16.gmra.mxu0 %v448
    %v912 = vpop.f32.mrf.mxu0
    %v913 = vadd.f32 %v744, %v912
    %v914 = vpop.f32.mrf.mxu0
    %v915 = vadd.f32 %v746, %v914
    %916 = vmatmul.bf16.gmra.mxu0 %v450
    %v917 = vpop.f32.mrf.mxu0
    %v918 = vadd.f32 %v749, %v917
    %v919 = vpop.f32.mrf.mxu0
    %v920 = vadd.f32 %v751, %v919
    %921 = vmatmul.bf16.gmra.mxu0 %v452
    %v922 = vpop.f32.mrf.mxu0
    %v923 = vadd.f32 %v754, %v922
    %v924 = vpop.f32.mrf.mxu0
    %v925 = vadd.f32 %v756, %v924
    %926 = vmatmul.bf16.gmra.mxu0 %v454
    %v927 = vpop.f32.mrf.mxu0
    %v928 = vadd.f32 %v759, %v927
    %v929 = vpop.f32.mrf.mxu0
    %v930 = vadd.f32 %v761, %v929
    %931 = vmatmul.bf16.gmra.mxu0 %v456
    %v932 = vpop.f32.mrf.mxu0
    %v933 = vadd.f32 %v764, %v932
    %v934 = vpop.f32.mrf.mxu0
    %v935 = vadd.f32 %v766, %v934
    %936 = vmatmul.bf16.gmra.mxu0 %v458
    %v937 = vpop.f32.mrf.mxu0
    %v938 = vadd.f32 %v769, %v937
    %v939 = vpop.f32.mrf.mxu0
    %v940 = vadd.f32 %v771, %v939
    %941 = vmatmul.bf16.gmra.mxu0 %v460
    %v942 = vpop.f32.mrf.mxu0
    %v943 = vadd.f32 %v774, %v942
    %v944 = vpop.f32.mrf.mxu0
    %v945 = vadd.f32 %v776, %v944
    %946 = vmatmul.bf16.gmra.mxu0 %v462
    %v947 = vpop.f32.mrf.mxu0
    %v948 = vadd.f32 %v779, %v947
    %v949 = vpop.f32.mrf.mxu0
    %v950 = vadd.f32 %v781, %v949
    %951 = vmatmul.bf16.gmra.mxu0 %v464
    %v952 = vpop.f32.mrf.mxu0
    %v953 = vadd.f32 %v784, %v952
    %v954 = vpop.f32.mrf.mxu0
    %v955 = vadd.f32 %v786, %v954
    %956 = vmatmul.bf16.gmra.mxu0 %v466
    %v957 = vpop.f32.mrf.mxu0
    %v958 = vadd.f32 %v789, %v957
    %v959 = vpop.f32.mrf.mxu0
    %v960 = vadd.f32 %v791, %v959
    %961 = vmatmul.bf16.gmra.mxu0 %v468
    %v962 = vpop.f32.mrf.mxu0
    %v963 = vadd.f32 %v794, %v962
    %v964 = vpop.f32.mrf.mxu0
    %v965 = vadd.f32 %v796, %v964
    %966 = vdwg.mxu0
    %967 = vmatpush.bf16.msra.mxu0 %v580
    %968 = vmatpush.bf16.msra.mxu0 %v578
    %969 = vmatpush.bf16.msra.mxu0 %v576
    %970 = vmatpush.bf16.msra.mxu0 %v574
    %971 = vmatpush.bf16.msra.mxu0 %v572
    %972 = vmatpush.bf16.msra.mxu0 %v570
    %973 = vmatpush.bf16.msra.mxu0 %v568
    %974 = vmatpush.bf16.msra.mxu0 %v566
    %975 = vmatmul.bf16.gmra.mxu0 %v405
    %v976 = vpop.f32.mrf.mxu0
    %v977 = vadd.f32 0.0, %v976
    %v978 = vpop.f32.mrf.mxu0
    %v979 = vadd.f32 0.0, %v978
    %980 = vmatmul.bf16.gmra.mxu0 %v407
    %v981 = vpop.f32.mrf.mxu0
    %v982 = vadd.f32 0.0, %v981
    %v983 = vpop.f32.mrf.mxu0
    %v984 = vadd.f32 0.0, %v983
    %985 = vmatmul.bf16.gmra.mxu0 %v409
    %v986 = vpop.f32.mrf.mxu0
    %v987 = vadd.f32 0.0, %v986
    %v988 = vpop.f32.mrf.mxu0
    %v989 = vadd.f32 0.0, %v988
    %990 = vmatmul.bf16.gmra.mxu0 %v411
    %v991 = vpop.f32.mrf.mxu0
    %v992 = vadd.f32 0.0, %v991
    %v993 = vpop.f32.mrf.mxu0
    %v994 = vadd.f32 0.0, %v993
    %995 = vmatmul.bf16.gmra.mxu0 %v413
    %v996 = vpop.f32.mrf.mxu0
    %v997 = vadd.f32 0.0, %v996
    %v998 = vpop.f32.mrf.mxu0
    %v999 = vadd.f32 0.0, %v998
    %1000 = vmatmul.bf16.gmra.mxu0 %v415
    %v1001 = vpop.f32.mrf.mxu0
    %v1002 = vadd.f32 0.0, %v1001
    %v1003 = vpop.f32.mrf.mxu0
    %v1004 = vadd.f32 0.0, %v1003
    %1005 = vmatmul.bf16.gmra.mxu0 %v417
    %v1006 = vpop.f32.mrf.mxu0
    %v1007 = vadd.f32 0.0, %v1006
    %v1008 = vpop.f32.mrf.mxu0
    %v1009 = vadd.f32 0.0, %v1008
    %1010 = vmatmul.bf16.gmra.mxu0 %v419
    %v1011 = vpop.f32.mrf.mxu0
    %v1012 = vadd.f32 0.0, %v1011
    %v1013 = vpop.f32.mrf.mxu0
    %v1014 = vadd.f32 0.0, %v1013
    %1015 = vmatmul.bf16.gmra.mxu0 %v421
    %v1016 = vpop.f32.mrf.mxu0
    %v1017 = vadd.f32 0.0, %v1016
    %v1018 = vpop.f32.mrf.mxu0
    %v1019 = vadd.f32 0.0, %v1018
    %1020 = vmatmul.bf16.gmra.mxu0 %v423
    %v1021 = vpop.f32.mrf.mxu0
    %v1022 = vadd.f32 0.0, %v1021
    %v1023 = vpop.f32.mrf.mxu0
    %v1024 = vadd.f32 0.0, %v1023
    %1025 = vmatmul.bf16.gmra.mxu0 %v425
    %v1026 = vpop.f32.mrf.mxu0
    %v1027 = vadd.f32 0.0, %v1026
    %v1028 = vpop.f32.mrf.mxu0
    %v1029 = vadd.f32 0.0, %v1028
    %1030 = vmatmul.bf16.gmra.mxu0 %v427
    %v1031 = vpop.f32.mrf.mxu0
    %v1032 = vadd.f32 0.0, %v1031
    %v1033 = vpop.f32.mrf.mxu0
    %v1034 = vadd.f32 0.0, %v1033
    %1035 = vmatmul.bf16.gmra.mxu0 %v429
    %v1036 = vpop.f32.mrf.mxu0
    %v1037 = vadd.f32 0.0, %v1036
    %v1038 = vpop.f32.mrf.mxu0
    %v1039 = vadd.f32 0.0, %v1038
    %1040 = vmatmul.bf16.gmra.mxu0 %v431
    %v1041 = vpop.f32.mrf.mxu0
    %v1042 = vadd.f32 0.0, %v1041
    %v1043 = vpop.f32.mrf.mxu0
    %v1044 = vadd.f32 0.0, %v1043
    %1045 = vmatmul.bf16.gmra.mxu0 %v433
    %v1046 = vpop.f32.mrf.mxu0
    %v1047 = vadd.f32 0.0, %v1046
    %v1048 = vpop.f32.mrf.mxu0
    %v1049 = vadd.f32 0.0, %v1048
    %1050 = vmatmul.bf16.gmra.mxu0 %v435
    %v1051 = vpop.f32.mrf.mxu0
    %v1052 = vadd.f32 0.0, %v1051
    %v1053 = vpop.f32.mrf.mxu0
    %v1054 = vadd.f32 0.0, %v1053
    %1055 = vmatmul.bf16.gmra.mxu0 %v437
    %v1056 = vpop.f32.mrf.mxu0
    %v1057 = vadd.f32 0.0, %v1056
    %v1058 = vpop.f32.mrf.mxu0
    %v1059 = vadd.f32 0.0, %v1058
    %1060 = vmatmul.bf16.gmra.mxu0 %v439
    %v1061 = vpop.f32.mrf.mxu0
    %v1062 = vadd.f32 0.0, %v1061
    %v1063 = vpop.f32.mrf.mxu0
    %v1064 = vadd.f32 0.0, %v1063
    %1065 = vmatmul.bf16.gmra.mxu0 %v441
    %v1066 = vpop.f32.mrf.mxu0
    %v1067 = vadd.f32 0.0, %v1066
    %v1068 = vpop.f32.mrf.mxu0
    %v1069 = vadd.f32 0.0, %v1068
    %1070 = vmatmul.bf16.gmra.mxu0 %v443
    %v1071 = vpop.f32.mrf.mxu0
    %v1072 = vadd.f32 0.0, %v1071
    %v1073 = vpop.f32.mrf.mxu0
    %v1074 = vadd.f32 0.0, %v1073
    %1075 = vmatmul.bf16.gmra.mxu0 %v445
    %v1076 = vpop.f32.mrf.mxu0
    %v1077 = vadd.f32 0.0, %v1076
    %v1078 = vpop.f32.mrf.mxu0
    %v1079 = vadd.f32 0.0, %v1078
    %1080 = vmatmul.bf16.gmra.mxu0 %v447
    %v1081 = vpop.f32.mrf.mxu0
    %v1082 = vadd.f32 0.0, %v1081
    %v1083 = vpop.f32.mrf.mxu0
    %v1084 = vadd.f32 0.0, %v1083
    %1085 = vmatmul.bf16.gmra.mxu0 %v449
    %v1086 = vpop.f32.mrf.mxu0
    %v1087 = vadd.f32 0.0, %v1086
    %v1088 = vpop.f32.mrf.mxu0
    %v1089 = vadd.f32 0.0, %v1088
    %1090 = vmatmul.bf16.gmra.mxu0 %v451
    %v1091 = vpop.f32.mrf.mxu0
    %v1092 = vadd.f32 0.0, %v1091
    %v1093 = vpop.f32.mrf.mxu0
    %v1094 = vadd.f32 0.0, %v1093
    %1095 = vmatmul.bf16.gmra.mxu0 %v453
    %v1096 = vpop.f32.mrf.mxu0
    %v1097 = vadd.f32 0.0, %v1096
    %v1098 = vpop.f32.mrf.mxu0
    %v1099 = vadd.f32 0.0, %v1098
    %1100 = vmatmul.bf16.gmra.mxu0 %v455
    %v1101 = vpop.f32.mrf.mxu0
    %v1102 = vadd.f32 0.0, %v1101
    %v1103 = vpop.f32.mrf.mxu0
    %v1104 = vadd.f32 0.0, %v1103
    %1105 = vmatmul.bf16.gmra.mxu0 %v457
    %v1106 = vpop.f32.mrf.mxu0
    %v1107 = vadd.f32 0.0, %v1106
    %v1108 = vpop.f32.mrf.mxu0
    %v1109 = vadd.f32 0.0, %v1108
    %1110 = vmatmul.bf16.gmra.mxu0 %v459
    %v1111 = vpop.f32.mrf.mxu0
    %v1112 = vadd.f32 0.0, %v1111
    %v1113 = vpop.f32.mrf.mxu0
    %v1114 = vadd.f32 0.0, %v1113
    %1115 = vmatmul.bf16.gmra.mxu0 %v461
    %v1116 = vpop.f32.mrf.mxu0
    %v1117 = vadd.f32 0.0, %v1116
    %v1118 = vpop.f32.mrf.mxu0
    %v1119 = vadd.f32 0.0, %v1118
    %1120 = vmatmul.bf16.gmra.mxu0 %v463
    %v1121 = vpop.f32.mrf.mxu0
    %v1122 = vadd.f32 0.0, %v1121
    %v1123 = vpop.f32.mrf.mxu0
    %v1124 = vadd.f32 0.0, %v1123
    %1125 = vmatmul.bf16.gmra.mxu0 %v465
    %v1126 = vpop.f32.mrf.mxu0
    %v1127 = vadd.f32 0.0, %v1126
    %v1128 = vpop.f32.mrf.mxu0
    %v1129 = vadd.f32 0.0, %v1128
    %1130 = vmatmul.bf16.gmra.mxu0 %v467
    %v1131 = vpop.f32.mrf.mxu0
    %v1132 = vadd.f32 0.0, %v1131
    %v1133 = vpop.f32.mrf.mxu0
    %v1134 = vadd.f32 0.0, %v1133
    %1135 = vdwg.mxu0
    %1136 = vmatpush.bf16.msra.mxu0 %v596
    %1137 = vmatpush.bf16.msra.mxu0 %v594
    %1138 = vmatpush.bf16.msra.mxu0 %v592
    %1139 = vmatpush.bf16.msra.mxu0 %v590
    %1140 = vmatpush.bf16.msra.mxu0 %v588
    %1141 = vmatpush.bf16.msra.mxu0 %v586
    %1142 = vmatpush.bf16.msra.mxu0 %v584
    %1143 = vmatpush.bf16.msra.mxu0 %v582
    %1144 = vmatmul.bf16.gmra.mxu0 %v406
    %v1145 = vpop.f32.mrf.mxu0
    %v1146 = vadd.f32 %v977, %v1145
    %v1147 = vpop.f32.mrf.mxu0
    %v1148 = vadd.f32 %v979, %v1147
    %1149 = vmatmul.bf16.gmra.mxu0 %v408
    %v1150 = vpop.f32.mrf.mxu0
    %v1151 = vadd.f32 %v982, %v1150
    %v1152 = vpop.f32.mrf.mxu0
    %v1153 = vadd.f32 %v984, %v1152
    %1154 = vmatmul.bf16.gmra.mxu0 %v410
    %v1155 = vpop.f32.mrf.mxu0
    %v1156 = vadd.f32 %v987, %v1155
    %v1157 = vpop.f32.mrf.mxu0
    %v1158 = vadd.f32 %v989, %v1157
    %1159 = vmatmul.bf16.gmra.mxu0 %v412
    %v1160 = vpop.f32.mrf.mxu0
    %v1161 = vadd.f32 %v992, %v1160
    %v1162 = vpop.f32.mrf.mxu0
    %v1163 = vadd.f32 %v994, %v1162
    %1164 = vmatmul.bf16.gmra.mxu0 %v414
    %v1165 = vpop.f32.mrf.mxu0
    %v1166 = vadd.f32 %v997, %v1165
    %v1167 = vpop.f32.mrf.mxu0
    %v1168 = vadd.f32 %v999, %v1167
    %1169 = vmatmul.bf16.gmra.mxu0 %v416
    %v1170 = vpop.f32.mrf.mxu0
    %v1171 = vadd.f32 %v1002, %v1170
    %v1172 = vpop.f32.mrf.mxu0
    %v1173 = vadd.f32 %v1004, %v1172
    %1174 = vmatmul.bf16.gmra.mxu0 %v418
    %v1175 = vpop.f32.mrf.mxu0
    %v1176 = vadd.f32 %v1007, %v1175
    %v1177 = vpop.f32.mrf.mxu0
    %v1178 = vadd.f32 %v1009, %v1177
    %1179 = vmatmul.bf16.gmra.mxu0 %v420
    %v1180 = vpop.f32.mrf.mxu0
    %v1181 = vadd.f32 %v1012, %v1180
    %v1182 = vpop.f32.mrf.mxu0
    %v1183 = vadd.f32 %v1014, %v1182
    %1184 = vmatmul.bf16.gmra.mxu0 %v422
    %v1185 = vpop.f32.mrf.mxu0
    %v1186 = vadd.f32 %v1017, %v1185
    %v1187 = vpop.f32.mrf.mxu0
    %v1188 = vadd.f32 %v1019, %v1187
    %1189 = vmatmul.bf16.gmra.mxu0 %v424
    %v1190 = vpop.f32.mrf.mxu0
    %v1191 = vadd.f32 %v1022, %v1190
    %v1192 = vpop.f32.mrf.mxu0
    %v1193 = vadd.f32 %v1024, %v1192
    %1194 = vmatmul.bf16.gmra.mxu0 %v426
    %v1195 = vpop.f32.mrf.mxu0
    %v1196 = vadd.f32 %v1027, %v1195
    %v1197 = vpop.f32.mrf.mxu0
    %v1198 = vadd.f32 %v1029, %v1197
    %1199 = vmatmul.bf16.gmra.mxu0 %v428
    %v1200 = vpop.f32.mrf.mxu0
    %v1201 = vadd.f32 %v1032, %v1200
    %v1202 = vpop.f32.mrf.mxu0
    %v1203 = vadd.f32 %v1034, %v1202
    %1204 = vmatmul.bf16.gmra.mxu0 %v430
    %v1205 = vpop.f32.mrf.mxu0
    %v1206 = vadd.f32 %v1037, %v1205
    %v1207 = vpop.f32.mrf.mxu0
    %v1208 = vadd.f32 %v1039, %v1207
    %1209 = vmatmul.bf16.gmra.mxu0 %v432
    %v1210 = vpop.f32.mrf.mxu0
    %v1211 = vadd.f32 %v1042, %v1210
    %v1212 = vpop.f32.mrf.mxu0
    %v1213 = vadd.f32 %v1044, %v1212
    %1214 = vmatmul.bf16.gmra.mxu0 %v434
    %v1215 = vpop.f32.mrf.mxu0
    %v1216 = vadd.f32 %v1047, %v1215
    %v1217 = vpop.f32.mrf.mxu0
    %v1218 = vadd.f32 %v1049, %v1217
    %1219 = vmatmul.bf16.gmra.mxu0 %v436
    %v1220 = vpop.f32.mrf.mxu0
    %v1221 = vadd.f32 %v1052, %v1220
    %v1222 = vpop.f32.mrf.mxu0
    %v1223 = vadd.f32 %v1054, %v1222
    %1224 = vmatmul.bf16.gmra.mxu0 %v438
    %v1225 = vpop.f32.mrf.mxu0
    %v1226 = vadd.f32 %v1057, %v1225
    %v1227 = vpop.f32.mrf.mxu0
    %v1228 = vadd.f32 %v1059, %v1227
    %1229 = vmatmul.bf16.gmra.mxu0 %v440
    %v1230 = vpop.f32.mrf.mxu0
    %v1231 = vadd.f32 %v1062, %v1230
    %v1232 = vpop.f32.mrf.mxu0
    %v1233 = vadd.f32 %v1064, %v1232
    %1234 = vmatmul.bf16.gmra.mxu0 %v442
    %v1235 = vpop.f32.mrf.mxu0
    %v1236 = vadd.f32 %v1067, %v1235
    %v1237 = vpop.f32.mrf.mxu0
    %v1238 = vadd.f32 %v1069, %v1237
    %1239 = vmatmul.bf16.gmra.mxu0 %v444
    %v1240 = vpop.f32.mrf.mxu0
    %v1241 = vadd.f32 %v1072, %v1240
    %v1242 = vpop.f32.mrf.mxu0
    %v1243 = vadd.f32 %v1074, %v1242
    %1244 = vmatmul.bf16.gmra.mxu0 %v446
    %v1245 = vpop.f32.mrf.mxu0
    %v1246 = vadd.f32 %v1077, %v1245
    %v1247 = vpop.f32.mrf.mxu0
    %v1248 = vadd.f32 %v1079, %v1247
    %1249 = vmatmul.bf16.gmra.mxu0 %v448
    %v1250 = vpop.f32.mrf.mxu0
    %v1251 = vadd.f32 %v1082, %v1250
    %v1252 = vpop.f32.mrf.mxu0
    %v1253 = vadd.f32 %v1084, %v1252
    %1254 = vmatmul.bf16.gmra.mxu0 %v450
    %v1255 = vpop.f32.mrf.mxu0
    %v1256 = vadd.f32 %v1087, %v1255
    %v1257 = vpop.f32.mrf.mxu0
    %v1258 = vadd.f32 %v1089, %v1257
    %1259 = vmatmul.bf16.gmra.mxu0 %v452
    %v1260 = vpop.f32.mrf.mxu0
    %v1261 = vadd.f32 %v1092, %v1260
    %v1262 = vpop.f32.mrf.mxu0
    %v1263 = vadd.f32 %v1094, %v1262
    %1264 = vmatmul.bf16.gmra.mxu0 %v454
    %v1265 = vpop.f32.mrf.mxu0
    %v1266 = vadd.f32 %v1097, %v1265
    %v1267 = vpop.f32.mrf.mxu0
    %v1268 = vadd.f32 %v1099, %v1267
    %1269 = vmatmul.bf16.gmra.mxu0 %v456
    %v1270 = vpop.f32.mrf.mxu0
    %v1271 = vadd.f32 %v1102, %v1270
    %v1272 = vpop.f32.mrf.mxu0
    %v1273 = vadd.f32 %v1104, %v1272
    %1274 = vmatmul.bf16.gmra.mxu0 %v458
    %v1275 = vpop.f32.mrf.mxu0
    %v1276 = vadd.f32 %v1107, %v1275
    %v1277 = vpop.f32.mrf.mxu0
    %v1278 = vadd.f32 %v1109, %v1277
    %1279 = vmatmul.bf16.gmra.mxu0 %v460
    %v1280 = vpop.f32.mrf.mxu0
    %v1281 = vadd.f32 %v1112, %v1280
    %v1282 = vpop.f32.mrf.mxu0
    %v1283 = vadd.f32 %v1114, %v1282
    %1284 = vmatmul.bf16.gmra.mxu0 %v462
    %v1285 = vpop.f32.mrf.mxu0
    %v1286 = vadd.f32 %v1117, %v1285
    %v1287 = vpop.f32.mrf.mxu0
    %v1288 = vadd.f32 %v1119, %v1287
    %1289 = vmatmul.bf16.gmra.mxu0 %v464
    %v1290 = vpop.f32.mrf.mxu0
    %v1291 = vadd.f32 %v1122, %v1290
    %v1292 = vpop.f32.mrf.mxu0
    %v1293 = vadd.f32 %v1124, %v1292
    %1294 = vmatmul.bf16.gmra.mxu0 %v466
    %v1295 = vpop.f32.mrf.mxu0
    %v1296 = vadd.f32 %v1127, %v1295
    %v1297 = vpop.f32.mrf.mxu0
    %v1298 = vadd.f32 %v1129, %v1297
    %1299 = vmatmul.bf16.gmra.mxu0 %v468
    %v1300 = vpop.f32.mrf.mxu0
    %v1301 = vadd.f32 %v1132, %v1300
    %v1302 = vpop.f32.mrf.mxu0
    %v1303 = vadd.f32 %v1134, %v1302
    %1304 = vdwg.mxu0
    %v1305 = vpack.c.bf16 %v810, %v808
    %v1306 = vpack.c.bf16 %v1148, %v1146
    %v1307 = vpack.c.bf16 %v815, %v813
    %v1308 = vpack.c.bf16 %v1153, %v1151
    %v1309 = vpack.c.bf16 %v820, %v818
    %v1310 = vpack.c.bf16 %v1158, %v1156
    %v1311 = vpack.c.bf16 %v825, %v823
    %v1312 = vpack.c.bf16 %v1163, %v1161
    %v1313 = vpack.c.bf16 %v830, %v828
    %v1314 = vpack.c.bf16 %v1168, %v1166
    %v1315 = vpack.c.bf16 %v835, %v833
    %v1316 = vpack.c.bf16 %v1173, %v1171
    %v1317 = vpack.c.bf16 %v840, %v838
    %v1318 = vpack.c.bf16 %v1178, %v1176
    %v1319 = vpack.c.bf16 %v845, %v843
    %v1320 = vpack.c.bf16 %v1183, %v1181
    %v1321 = vpack.c.bf16 %v850, %v848
    %v1322 = vpack.c.bf16 %v1188, %v1186
    %v1323 = vpack.c.bf16 %v855, %v853
    %v1324 = vpack.c.bf16 %v1193, %v1191
    %v1325 = vpack.c.bf16 %v860, %v858
    %v1326 = vpack.c.bf16 %v1198, %v1196
    %v1327 = vpack.c.bf16 %v865, %v863
    %v1328 = vpack.c.bf16 %v1203, %v1201
    %v1329 = vpack.c.bf16 %v870, %v868
    %v1330 = vpack.c.bf16 %v1208, %v1206
    %v1331 = vpack.c.bf16 %v875, %v873
    %v1332 = vpack.c.bf16 %v1213, %v1211
    %v1333 = vpack.c.bf16 %v880, %v878
    %v1334 = vpack.c.bf16 %v1218, %v1216
    %v1335 = vpack.c.bf16 %v885, %v883
    %v1336 = vpack.c.bf16 %v1223, %v1221
    %v1337 = vpack.c.bf16 %v890, %v888
    %v1338 = vpack.c.bf16 %v1228, %v1226
    %v1339 = vpack.c.bf16 %v895, %v893
    %v1340 = vpack.c.bf16 %v1233, %v1231
    %v1341 = vpack.c.bf16 %v900, %v898
    %v1342 = vpack.c.bf16 %v1238, %v1236
    %v1343 = vpack.c.bf16 %v905, %v903
    %v1344 = vpack.c.bf16 %v1243, %v1241
    %v1345 = vpack.c.bf16 %v910, %v908
    %v1346 = vpack.c.bf16 %v1248, %v1246
    %v1347 = vpack.c.bf16 %v915, %v913
    %v1348 = vpack.c.bf16 %v1253, %v1251
    %v1349 = vpack.c.bf16 %v920, %v918
    %v1350 = vpack.c.bf16 %v1258, %v1256
    %v1351 = vpack.c.bf16 %v925, %v923
    %v1352 = vpack.c.bf16 %v1263, %v1261
    %v1353 = vpack.c.bf16 %v930, %v928
    %v1354 = vpack.c.bf16 %v1268, %v1266
    %v1355 = vpack.c.bf16 %v935, %v933
    %v1356 = vpack.c.bf16 %v1273, %v1271
    %v1357 = vpack.c.bf16 %v940, %v938
    %v1358 = vpack.c.bf16 %v1278, %v1276
    %v1359 = vpack.c.bf16 %v945, %v943
    %v1360 = vpack.c.bf16 %v1283, %v1281
    %v1361 = vpack.c.bf16 %v950, %v948
    %v1362 = vpack.c.bf16 %v1288, %v1286
    %v1363 = vpack.c.bf16 %v955, %v953
    %v1364 = vpack.c.bf16 %v1293, %v1291
    %v1365 = vpack.c.bf16 %v960, %v958
    %v1366 = vpack.c.bf16 %v1298, %v1296
    %v1367 = vpack.c.bf16 %v965, %v963
    %v1368 = vpack.c.bf16 %v1303, %v1301
    %1370 = vset.pattern.permute.xlu0 0
    %1371 = vperm.xlu0 %1370, %v213
    %v1372 = vpop.permute.xlu0 %1371
    %1375 = vset.pattern.permute.xlu0 0
    %1376 = vperm.xlu0 %1375, %v214
    %v1377 = vpop.permute.xlu0 %1376
    %1380 = vset.pattern.permute.xlu0 0
    %1381 = vperm.xlu0 %1380, %v215
    %v1382 = vpop.permute.xlu0 %1381
    %1385 = vset.pattern.permute.xlu0 0
    %1386 = vperm.xlu0 %1385, %v216
    %v1387 = vpop.permute.xlu0 %1386
    %1390 = vset.pattern.permute.xlu0 0
    %1391 = vperm.xlu0 %1390, %v217
    %v1392 = vpop.permute.xlu0 %1391
    %1395 = vset.pattern.permute.xlu0 0
    %1396 = vperm.xlu0 %1395, %v218
    %v1397 = vpop.permute.xlu0 %1396
    %1400 = vset.pattern.permute.xlu0 0
    %1401 = vperm.xlu0 %1400, %v219
    %v1402 = vpop.permute.xlu0 %1401
    %1405 = vset.pattern.permute.xlu0 0
    %1406 = vperm.xlu0 %1405, %v220
    %v1407 = vpop.permute.xlu0 %1406
    %1410 = vset.pattern.permute.xlu0 0
    %1411 = vperm.xlu0 %1410, %v221
    %v1412 = vpop.permute.xlu0 %1411
    %1415 = vset.pattern.permute.xlu0 0
    %1416 = vperm.xlu0 %1415, %v222
    %v1417 = vpop.permute.xlu0 %1416
    %1420 = vset.pattern.permute.xlu0 0
    %1421 = vperm.xlu0 %1420, %v223
    %v1422 = vpop.permute.xlu0 %1421
    %1425 = vset.pattern.permute.xlu0 0
    %1426 = vperm.xlu0 %1425, %v224
    %v1427 = vpop.permute.xlu0 %1426
    %1430 = vset.pattern.permute.xlu0 0
    %1431 = vperm.xlu0 %1430, %v225
    %v1432 = vpop.permute.xlu0 %1431
    %1435 = vset.pattern.permute.xlu0 0
    %1436 = vperm.xlu0 %1435, %v226
    %v1437 = vpop.permute.xlu0 %1436
    %1440 = vset.pattern.permute.xlu0 0
    %1441 = vperm.xlu0 %1440, %v227
    %v1442 = vpop.permute.xlu0 %1441
    %1445 = vset.pattern.permute.xlu0 0
    %1446 = vperm.xlu0 %1445, %v228
    %v1447 = vpop.permute.xlu0 %1446
    %1450 = vset.pattern.permute.xlu0 0
    %1451 = vperm.xlu0 %1450, %v229
    %v1452 = vpop.permute.xlu0 %1451
    %1455 = vset.pattern.permute.xlu0 0
    %1456 = vperm.xlu0 %1455, %v230
    %v1457 = vpop.permute.xlu0 %1456
    %1460 = vset.pattern.permute.xlu0 0
    %1461 = vperm.xlu0 %1460, %v231
    %v1462 = vpop.permute.xlu0 %1461
    %1465 = vset.pattern.permute.xlu0 0
    %1466 = vperm.xlu0 %1465, %v232
    %v1467 = vpop.permute.xlu0 %1466
    %1470 = vset.pattern.permute.xlu0 0
    %1471 = vperm.xlu0 %1470, %v233
    %v1472 = vpop.permute.xlu0 %1471
    %1475 = vset.pattern.permute.xlu0 0
    %1476 = vperm.xlu0 %1475, %v234
    %v1477 = vpop.permute.xlu0 %1476
    %1480 = vset.pattern.permute.xlu0 0
    %1481 = vperm.xlu0 %1480, %v235
    %v1482 = vpop.permute.xlu0 %1481
    %1485 = vset.pattern.permute.xlu0 0
    %1486 = vperm.xlu0 %1485, %v236
    %v1487 = vpop.permute.xlu0 %1486
    %1490 = vset.pattern.permute.xlu0 0
    %1491 = vperm.xlu0 %1490, %v237
    %v1492 = vpop.permute.xlu0 %1491
    %1495 = vset.pattern.permute.xlu0 0
    %1496 = vperm.xlu0 %1495, %v238
    %v1497 = vpop.permute.xlu0 %1496
    %1500 = vset.pattern.permute.xlu0 0
    %1501 = vperm.xlu0 %1500, %v239
    %v1502 = vpop.permute.xlu0 %1501
    %1505 = vset.pattern.permute.xlu0 0
    %1506 = vperm.xlu0 %1505, %v240
    %v1507 = vpop.permute.xlu0 %1506
    %1510 = vset.pattern.permute.xlu0 0
    %1511 = vperm.xlu0 %1510, %v241
    %v1512 = vpop.permute.xlu0 %1511
    %1515 = vset.pattern.permute.xlu0 0
    %1516 = vperm.xlu0 %1515, %v242
    %v1517 = vpop.permute.xlu0 %1516
    %1520 = vset.pattern.permute.xlu0 0
    %1521 = vperm.xlu0 %1520, %v243
    %v1522 = vpop.permute.xlu0 %1521
    %1525 = vset.pattern.permute.xlu0 0
    %1526 = vperm.xlu0 %1525, %v244
    %v1527 = vpop.permute.xlu0 %1526
    %1530 = vset.pattern.permute.xlu0 0
    %1531 = vperm.xlu0 %1530, %v245
    %v1532 = vpop.permute.xlu0 %1531
    %1535 = vset.pattern.permute.xlu0 0
    %1536 = vperm.xlu0 %1535, %v246
    %v1537 = vpop.permute.xlu0 %1536
    %1540 = vset.pattern.permute.xlu0 0
    %1541 = vperm.xlu0 %1540, %v247
    %v1542 = vpop.permute.xlu0 %1541
    %1545 = vset.pattern.permute.xlu0 0
    %1546 = vperm.xlu0 %1545, %v248
    %v1547 = vpop.permute.xlu0 %1546
    %1550 = vset.pattern.permute.xlu0 0
    %1551 = vperm.xlu0 %1550, %v249
    %v1552 = vpop.permute.xlu0 %1551
    %1555 = vset.pattern.permute.xlu0 0
    %1556 = vperm.xlu0 %1555, %v250
    %v1557 = vpop.permute.xlu0 %1556
    %1560 = vset.pattern.permute.xlu0 0
    %1561 = vperm.xlu0 %1560, %v251
    %v1562 = vpop.permute.xlu0 %1561
    %1565 = vset.pattern.permute.xlu0 0
    %1566 = vperm.xlu0 %1565, %v252
    %v1567 = vpop.permute.xlu0 %1566
    %1570 = vset.pattern.permute.xlu0 0
    %1571 = vperm.xlu0 %1570, %v253
    %v1572 = vpop.permute.xlu0 %1571
    %1575 = vset.pattern.permute.xlu0 0
    %1576 = vperm.xlu0 %1575, %v254
    %v1577 = vpop.permute.xlu0 %1576
    %1580 = vset.pattern.permute.xlu0 0
    %1581 = vperm.xlu0 %1580, %v255
    %v1582 = vpop.permute.xlu0 %1581
    %1585 = vset.pattern.permute.xlu0 0
    %1586 = vperm.xlu0 %1585, %v256
    %v1587 = vpop.permute.xlu0 %1586
    %1590 = vset.pattern.permute.xlu0 0
    %1591 = vperm.xlu0 %1590, %v257
    %v1592 = vpop.permute.xlu0 %1591
    %1595 = vset.pattern.permute.xlu0 0
    %1596 = vperm.xlu0 %1595, %v258
    %v1597 = vpop.permute.xlu0 %1596
    %1600 = vset.pattern.permute.xlu0 0
    %1601 = vperm.xlu0 %1600, %v259
    %v1602 = vpop.permute.xlu0 %1601
    %1605 = vset.pattern.permute.xlu0 0
    %1606 = vperm.xlu0 %1605, %v260
    %v1607 = vpop.permute.xlu0 %1606
    %1610 = vset.pattern.permute.xlu0 0
    %1611 = vperm.xlu0 %1610, %v261
    %v1612 = vpop.permute.xlu0 %1611
    %1615 = vset.pattern.permute.xlu0 0
    %1616 = vperm.xlu0 %1615, %v262
    %v1617 = vpop.permute.xlu0 %1616
    %1620 = vset.pattern.permute.xlu0 0
    %1621 = vperm.xlu0 %1620, %v263
    %v1622 = vpop.permute.xlu0 %1621
    %1625 = vset.pattern.permute.xlu0 0
    %1626 = vperm.xlu0 %1625, %v264
    %v1627 = vpop.permute.xlu0 %1626
    %1630 = vset.pattern.permute.xlu0 0
    %1631 = vperm.xlu0 %1630, %v265
    %v1632 = vpop.permute.xlu0 %1631
    %1635 = vset.pattern.permute.xlu0 0
    %1636 = vperm.xlu0 %1635, %v266
    %v1637 = vpop.permute.xlu0 %1636
    %1640 = vset.pattern.permute.xlu0 0
    %1641 = vperm.xlu0 %1640, %v267
    %v1642 = vpop.permute.xlu0 %1641
    %1645 = vset.pattern.permute.xlu0 0
    %1646 = vperm.xlu0 %1645, %v268
    %v1647 = vpop.permute.xlu0 %1646
    %1650 = vset.pattern.permute.xlu0 0
    %1651 = vperm.xlu0 %1650, %v269
    %v1652 = vpop.permute.xlu0 %1651
    %1655 = vset.pattern.permute.xlu0 0
    %1656 = vperm.xlu0 %1655, %v270
    %v1657 = vpop.permute.xlu0 %1656
    %1660 = vset.pattern.permute.xlu0 0
    %1661 = vperm.xlu0 %1660, %v271
    %v1662 = vpop.permute.xlu0 %1661
    %1665 = vset.pattern.permute.xlu0 0
    %1666 = vperm.xlu0 %1665, %v272
    %v1667 = vpop.permute.xlu0 %1666
    %1670 = vset.pattern.permute.xlu0 0
    %1671 = vperm.xlu0 %1670, %v273
    %v1672 = vpop.permute.xlu0 %1671
    %1675 = vset.pattern.permute.xlu0 0
    %1676 = vperm.xlu0 %1675, %v274
    %v1677 = vpop.permute.xlu0 %1676
    %1680 = vset.pattern.permute.xlu0 0
    %1681 = vperm.xlu0 %1680, %v275
    %v1682 = vpop.permute.xlu0 %1681
    %1685 = vset.pattern.permute.xlu0 0
    %1686 = vperm.xlu0 %1685, %v276
    %v1687 = vpop.permute.xlu0 %1686
    %v1817 = vunpack.c.l.b16 %v85
    %v1818 = vunpack.c.h.b16 %v85
    %v1819 = vunpack.c.l.b16 %v86
    %v1820 = vunpack.c.h.b16 %v86
    %v1821 = vunpack.c.l.b16 %v87
    %v1822 = vunpack.c.h.b16 %v87
    %v1823 = vunpack.c.l.b16 %v88
    %v1824 = vunpack.c.h.b16 %v88
    %v1825 = vunpack.c.l.b16 %v89
    %v1826 = vunpack.c.h.b16 %v89
    %v1827 = vunpack.c.l.b16 %v90
    %v1828 = vunpack.c.h.b16 %v90
    %v1829 = vunpack.c.l.b16 %v91
    %v1830 = vunpack.c.h.b16 %v91
    %v1831 = vunpack.c.l.b16 %v92
    %v1832 = vunpack.c.h.b16 %v92
    %v1833 = vunpack.c.l.b16 %v93
    %v1834 = vunpack.c.h.b16 %v93
    %v1835 = vunpack.c.l.b16 %v94
    %v1836 = vunpack.c.h.b16 %v94
    %v1837 = vunpack.c.l.b16 %v95
    %v1838 = vunpack.c.h.b16 %v95
    %v1839 = vunpack.c.l.b16 %v96
    %v1840 = vunpack.c.h.b16 %v96
    %v1841 = vunpack.c.l.b16 %v97
    %v1842 = vunpack.c.h.b16 %v97
    %v1843 = vunpack.c.l.b16 %v98
    %v1844 = vunpack.c.h.b16 %v98
    %v1845 = vunpack.c.l.b16 %v99
    %v1846 = vunpack.c.h.b16 %v99
    %v1847 = vunpack.c.l.b16 %v100
    %v1848 = vunpack.c.h.b16 %v100
    %v1849 = vunpack.c.l.b16 %v101
    %v1850 = vunpack.c.h.b16 %v101
    %v1851 = vunpack.c.l.b16 %v102
    %v1852 = vunpack.c.h.b16 %v102
    %v1853 = vunpack.c.l.b16 %v103
    %v1854 = vunpack.c.h.b16 %v103
    %v1855 = vunpack.c.l.b16 %v104
    %v1856 = vunpack.c.h.b16 %v104
    %v1857 = vunpack.c.l.b16 %v105
    %v1858 = vunpack.c.h.b16 %v105
    %v1859 = vunpack.c.l.b16 %v106
    %v1860 = vunpack.c.h.b16 %v106
    %v1861 = vunpack.c.l.b16 %v107
    %v1862 = vunpack.c.h.b16 %v107
    %v1863 = vunpack.c.l.b16 %v108
    %v1864 = vunpack.c.h.b16 %v108
    %v1865 = vunpack.c.l.b16 %v109
    %v1866 = vunpack.c.h.b16 %v109
    %v1867 = vunpack.c.l.b16 %v110
    %v1868 = vunpack.c.h.b16 %v110
    %v1869 = vunpack.c.l.b16 %v111
    %v1870 = vunpack.c.h.b16 %v111
    %v1871 = vunpack.c.l.b16 %v112
    %v1872 = vunpack.c.h.b16 %v112
    %v1873 = vunpack.c.l.b16 %v113
    %v1874 = vunpack.c.h.b16 %v113
    %v1875 = vunpack.c.l.b16 %v114
    %v1876 = vunpack.c.h.b16 %v114
    %v1877 = vunpack.c.l.b16 %v115
    %v1878 = vunpack.c.h.b16 %v115
    %v1879 = vunpack.c.l.b16 %v116
    %v1880 = vunpack.c.h.b16 %v116
    %v1881 = vunpack.c.l.b16 %v117
    %v1882 = vunpack.c.h.b16 %v117
    %v1883 = vunpack.c.l.b16 %v118
    %v1884 = vunpack.c.h.b16 %v118
    %v1885 = vunpack.c.l.b16 %v119
    %v1886 = vunpack.c.h.b16 %v119
    %v1887 = vunpack.c.l.b16 %v120
    %v1888 = vunpack.c.h.b16 %v120
    %v1889 = vunpack.c.l.b16 %v121
    %v1890 = vunpack.c.h.b16 %v121
    %v1891 = vunpack.c.l.b16 %v122
    %v1892 = vunpack.c.h.b16 %v122
    %v1893 = vunpack.c.l.b16 %v123
    %v1894 = vunpack.c.h.b16 %v123
    %v1895 = vunpack.c.l.b16 %v124
    %v1896 = vunpack.c.h.b16 %v124
    %v1897 = vunpack.c.l.b16 %v125
    %v1898 = vunpack.c.h.b16 %v125
    %v1899 = vunpack.c.l.b16 %v126
    %v1900 = vunpack.c.h.b16 %v126
    %v1901 = vunpack.c.l.b16 %v127
    %v1902 = vunpack.c.h.b16 %v127
    %v1903 = vunpack.c.l.b16 %v128
    %v1904 = vunpack.c.h.b16 %v128
    %v1905 = vunpack.c.l.b16 %v129
    %v1906 = vunpack.c.h.b16 %v129
    %v1907 = vunpack.c.l.b16 %v130
    %v1908 = vunpack.c.h.b16 %v130
    %v1909 = vunpack.c.l.b16 %v131
    %v1910 = vunpack.c.h.b16 %v131
    %v1911 = vunpack.c.l.b16 %v132
    %v1912 = vunpack.c.h.b16 %v132
    %v1913 = vunpack.c.l.b16 %v133
    %v1914 = vunpack.c.h.b16 %v133
    %v1915 = vunpack.c.l.b16 %v134
    %v1916 = vunpack.c.h.b16 %v134
    %v1917 = vunpack.c.l.b16 %v135
    %v1918 = vunpack.c.h.b16 %v135
    %v1919 = vunpack.c.l.b16 %v136
    %v1920 = vunpack.c.h.b16 %v136
    %v1921 = vunpack.c.l.b16 %v137
    %v1922 = vunpack.c.h.b16 %v137
    %v1923 = vunpack.c.l.b16 %v138
    %v1924 = vunpack.c.h.b16 %v138
    %v1925 = vunpack.c.l.b16 %v139
    %v1926 = vunpack.c.h.b16 %v139
    %v1927 = vunpack.c.l.b16 %v140
    %v1928 = vunpack.c.h.b16 %v140
    %v1929 = vunpack.c.l.b16 %v141
    %v1930 = vunpack.c.h.b16 %v141
    %v1931 = vunpack.c.l.b16 %v142
    %v1932 = vunpack.c.h.b16 %v142
    %v1933 = vunpack.c.l.b16 %v143
    %v1934 = vunpack.c.h.b16 %v143
    %v1935 = vunpack.c.l.b16 %v144
    %v1936 = vunpack.c.h.b16 %v144
    %v1937 = vunpack.c.l.b16 %v145
    %v1938 = vunpack.c.h.b16 %v145
    %v1939 = vunpack.c.l.b16 %v146
    %v1940 = vunpack.c.h.b16 %v146
    %v1941 = vunpack.c.l.b16 %v147
    %v1942 = vunpack.c.h.b16 %v147
    %v1943 = vunpack.c.l.b16 %v148
    %v1944 = vunpack.c.h.b16 %v148
    %v1945 = vunpack.c.l.b16 %v149
    %v1946 = vunpack.c.h.b16 %v149
    %v1947 = vunpack.c.l.b16 %v150
    %v1948 = vunpack.c.h.b16 %v150
    %v1949 = vunpack.c.l.b16 %v151
    %v1950 = vunpack.c.h.b16 %v151
    %v1951 = vunpack.c.l.b16 %v152
    %v1952 = vunpack.c.h.b16 %v152
    %v1953 = vunpack.c.l.b16 %v153
    %v1954 = vunpack.c.h.b16 %v153
    %v1955 = vunpack.c.l.b16 %v154
    %v1956 = vunpack.c.h.b16 %v154
    %v1957 = vunpack.c.l.b16 %v155
    %v1958 = vunpack.c.h.b16 %v155
    %v1959 = vunpack.c.l.b16 %v156
    %v1960 = vunpack.c.h.b16 %v156
    %v1961 = vunpack.c.l.b16 %v157
    %v1962 = vunpack.c.h.b16 %v157
    %v1963 = vunpack.c.l.b16 %v158
    %v1964 = vunpack.c.h.b16 %v158
    %v1965 = vunpack.c.l.b16 %v159
    %v1966 = vunpack.c.h.b16 %v159
    %v1967 = vunpack.c.l.b16 %v160
    %v1968 = vunpack.c.h.b16 %v160
    %v1969 = vunpack.c.l.b16 %v161
    %v1970 = vunpack.c.h.b16 %v161
    %v1971 = vunpack.c.l.b16 %v162
    %v1972 = vunpack.c.h.b16 %v162
    %v1973 = vunpack.c.l.b16 %v163
    %v1974 = vunpack.c.h.b16 %v163
    %v1975 = vunpack.c.l.b16 %v164
    %v1976 = vunpack.c.h.b16 %v164
    %v1977 = vunpack.c.l.b16 %v165
    %v1978 = vunpack.c.h.b16 %v165
    %v1979 = vunpack.c.l.b16 %v166
    %v1980 = vunpack.c.h.b16 %v166
    %v1981 = vunpack.c.l.b16 %v167
    %v1982 = vunpack.c.h.b16 %v167
    %v1983 = vunpack.c.l.b16 %v168
    %v1984 = vunpack.c.h.b16 %v168
    %v1985 = vunpack.c.l.b16 %v169
    %v1986 = vunpack.c.h.b16 %v169
    %v1987 = vunpack.c.l.b16 %v170
    %v1988 = vunpack.c.h.b16 %v170
    %v1989 = vunpack.c.l.b16 %v171
    %v1990 = vunpack.c.h.b16 %v171
    %v1991 = vunpack.c.l.b16 %v172
    %v1992 = vunpack.c.h.b16 %v172
    %v1993 = vunpack.c.l.b16 %v173
    %v1994 = vunpack.c.h.b16 %v173
    %v1995 = vunpack.c.l.b16 %v174
    %v1996 = vunpack.c.h.b16 %v174
    %v1997 = vunpack.c.l.b16 %v175
    %v1998 = vunpack.c.h.b16 %v175
    %v1999 = vunpack.c.l.b16 %v176
    %v2000 = vunpack.c.h.b16 %v176
    %v2001 = vunpack.c.l.b16 %v177
    %v2002 = vunpack.c.h.b16 %v177
    %v2003 = vunpack.c.l.b16 %v178
    %v2004 = vunpack.c.h.b16 %v178
    %v2005 = vunpack.c.l.b16 %v179
    %v2006 = vunpack.c.h.b16 %v179
    %v2007 = vunpack.c.l.b16 %v180
    %v2008 = vunpack.c.h.b16 %v180
    %v2009 = vunpack.c.l.b16 %v181
    %v2010 = vunpack.c.h.b16 %v181
    %v2011 = vunpack.c.l.b16 %v182
    %v2012 = vunpack.c.h.b16 %v182
    %v2013 = vunpack.c.l.b16 %v183
    %v2014 = vunpack.c.h.b16 %v183
    %v2015 = vunpack.c.l.b16 %v184
    %v2016 = vunpack.c.h.b16 %v184
    %v2017 = vunpack.c.l.b16 %v185
    %v2018 = vunpack.c.h.b16 %v185
    %v2019 = vunpack.c.l.b16 %v186
    %v2020 = vunpack.c.h.b16 %v186
    %v2021 = vunpack.c.l.b16 %v187
    %v2022 = vunpack.c.h.b16 %v187
    %v2023 = vunpack.c.l.b16 %v188
    %v2024 = vunpack.c.h.b16 %v188
    %v2025 = vunpack.c.l.b16 %v189
    %v2026 = vunpack.c.h.b16 %v189
    %v2027 = vunpack.c.l.b16 %v190
    %v2028 = vunpack.c.h.b16 %v190
    %v2029 = vunpack.c.l.b16 %v191
    %v2030 = vunpack.c.h.b16 %v191
    %v2031 = vunpack.c.l.b16 %v192
    %v2032 = vunpack.c.h.b16 %v192
    %v2033 = vunpack.c.l.b16 %v193
    %v2034 = vunpack.c.h.b16 %v193
    %v2035 = vunpack.c.l.b16 %v194
    %v2036 = vunpack.c.h.b16 %v194
    %v2037 = vunpack.c.l.b16 %v195
    %v2038 = vunpack.c.h.b16 %v195
    %v2039 = vunpack.c.l.b16 %v196
    %v2040 = vunpack.c.h.b16 %v196
    %v2041 = vunpack.c.l.b16 %v197
    %v2042 = vunpack.c.h.b16 %v197
    %v2043 = vunpack.c.l.b16 %v198
    %v2044 = vunpack.c.h.b16 %v198
    %v2045 = vunpack.c.l.b16 %v199
    %v2046 = vunpack.c.h.b16 %v199
    %v2047 = vunpack.c.l.b16 %v200
    %v2048 = vunpack.c.h.b16 %v200
    %v2049 = vunpack.c.l.b16 %v201
    %v2050 = vunpack.c.h.b16 %v201
    %v2051 = vunpack.c.l.b16 %v202
    %v2052 = vunpack.c.h.b16 %v202
    %v2053 = vunpack.c.l.b16 %v203
    %v2054 = vunpack.c.h.b16 %v203
    %v2055 = vunpack.c.l.b16 %v204
    %v2056 = vunpack.c.h.b16 %v204
    %v2057 = vunpack.c.l.b16 %v205
    %v2058 = vunpack.c.h.b16 %v205
    %v2059 = vunpack.c.l.b16 %v206
    %v2060 = vunpack.c.h.b16 %v206
    %v2061 = vunpack.c.l.b16 %v207
    %v2062 = vunpack.c.h.b16 %v207
    %v2063 = vunpack.c.l.b16 %v208
    %v2064 = vunpack.c.h.b16 %v208
    %v2065 = vunpack.c.l.b16 %v209
    %v2066 = vunpack.c.h.b16 %v209
    %v2067 = vunpack.c.l.b16 %v210
    %v2068 = vunpack.c.h.b16 %v210
    %v2069 = vunpack.c.l.b16 %v211
    %v2070 = vunpack.c.h.b16 %v211
    %v2071 = vunpack.c.l.b16 %v212
    %v2072 = vunpack.c.h.b16 %v212
    %v2073 = vpack.c.b16 %v1821, %v1817
    %v2074 = vpack.c.b16 %v1822, %v1818
    %v2075 = vpack.c.b16 %v1823, %v1819
    %v2076 = vpack.c.b16 %v1824, %v1820
    %v2077 = vpack.c.b16 %v1829, %v1825
    %v2078 = vpack.c.b16 %v1830, %v1826
    %v2079 = vpack.c.b16 %v1831, %v1827
    %v2080 = vpack.c.b16 %v1832, %v1828
    %v2081 = vpack.c.b16 %v1837, %v1833
    %v2082 = vpack.c.b16 %v1838, %v1834
    %v2083 = vpack.c.b16 %v1839, %v1835
    %v2084 = vpack.c.b16 %v1840, %v1836
    %v2085 = vpack.c.b16 %v1845, %v1841
    %v2086 = vpack.c.b16 %v1846, %v1842
    %v2087 = vpack.c.b16 %v1847, %v1843
    %v2088 = vpack.c.b16 %v1848, %v1844
    %v2089 = vpack.c.b16 %v1853, %v1849
    %v2090 = vpack.c.b16 %v1854, %v1850
    %v2091 = vpack.c.b16 %v1855, %v1851
    %v2092 = vpack.c.b16 %v1856, %v1852
    %v2093 = vpack.c.b16 %v1861, %v1857
    %v2094 = vpack.c.b16 %v1862, %v1858
    %v2095 = vpack.c.b16 %v1863, %v1859
    %v2096 = vpack.c.b16 %v1864, %v1860
    %v2097 = vpack.c.b16 %v1869, %v1865
    %v2098 = vpack.c.b16 %v1870, %v1866
    %v2099 = vpack.c.b16 %v1871, %v1867
    %v2100 = vpack.c.b16 %v1872, %v1868
    %v2101 = vpack.c.b16 %v1877, %v1873
    %v2102 = vpack.c.b16 %v1878, %v1874
    %v2103 = vpack.c.b16 %v1879, %v1875
    %v2104 = vpack.c.b16 %v1880, %v1876
    %v2105 = vpack.c.b16 %v1885, %v1881
    %v2106 = vpack.c.b16 %v1886, %v1882
    %v2107 = vpack.c.b16 %v1887, %v1883
    %v2108 = vpack.c.b16 %v1888, %v1884
    %v2109 = vpack.c.b16 %v1893, %v1889
    %v2110 = vpack.c.b16 %v1894, %v1890
    %v2111 = vpack.c.b16 %v1895, %v1891
    %v2112 = vpack.c.b16 %v1896, %v1892
    %v2113 = vpack.c.b16 %v1901, %v1897
    %v2114 = vpack.c.b16 %v1902, %v1898
    %v2115 = vpack.c.b16 %v1903, %v1899
    %v2116 = vpack.c.b16 %v1904, %v1900
    %v2117 = vpack.c.b16 %v1909, %v1905
    %v2118 = vpack.c.b16 %v1910, %v1906
    %v2119 = vpack.c.b16 %v1911, %v1907
    %v2120 = vpack.c.b16 %v1912, %v1908
    %v2121 = vpack.c.b16 %v1917, %v1913
    %v2122 = vpack.c.b16 %v1918, %v1914
    %v2123 = vpack.c.b16 %v1919, %v1915
    %v2124 = vpack.c.b16 %v1920, %v1916
    %v2125 = vpack.c.b16 %v1925, %v1921
    %v2126 = vpack.c.b16 %v1926, %v1922
    %v2127 = vpack.c.b16 %v1927, %v1923
    %v2128 = vpack.c.b16 %v1928, %v1924
    %v2129 = vpack.c.b16 %v1933, %v1929
    %v2130 = vpack.c.b16 %v1934, %v1930
    %v2131 = vpack.c.b16 %v1935, %v1931
    %v2132 = vpack.c.b16 %v1936, %v1932
    %v2133 = vpack.c.b16 %v1941, %v1937
    %v2134 = vpack.c.b16 %v1942, %v1938
    %v2135 = vpack.c.b16 %v1943, %v1939
    %v2136 = vpack.c.b16 %v1944, %v1940
    %v2137 = vpack.c.b16 %v1949, %v1945
    %v2138 = vpack.c.b16 %v1950, %v1946
    %v2139 = vpack.c.b16 %v1951, %v1947
    %v2140 = vpack.c.b16 %v1952, %v1948
    %v2141 = vpack.c.b16 %v1957, %v1953
    %v2142 = vpack.c.b16 %v1958, %v1954
    %v2143 = vpack.c.b16 %v1959, %v1955
    %v2144 = vpack.c.b16 %v1960, %v1956
    %v2145 = vpack.c.b16 %v1965, %v1961
    %v2146 = vpack.c.b16 %v1966, %v1962
    %v2147 = vpack.c.b16 %v1967, %v1963
    %v2148 = vpack.c.b16 %v1968, %v1964
    %v2149 = vpack.c.b16 %v1973, %v1969
    %v2150 = vpack.c.b16 %v1974, %v1970
    %v2151 = vpack.c.b16 %v1975, %v1971
    %v2152 = vpack.c.b16 %v1976, %v1972
    %v2153 = vpack.c.b16 %v1981, %v1977
    %v2154 = vpack.c.b16 %v1982, %v1978
    %v2155 = vpack.c.b16 %v1983, %v1979
    %v2156 = vpack.c.b16 %v1984, %v1980
    %v2157 = vpack.c.b16 %v1989, %v1985
    %v2158 = vpack.c.b16 %v1990, %v1986
    %v2159 = vpack.c.b16 %v1991, %v1987
    %v2160 = vpack.c.b16 %v1992, %v1988
    %v2161 = vpack.c.b16 %v1997, %v1993
    %v2162 = vpack.c.b16 %v1998, %v1994
    %v2163 = vpack.c.b16 %v1999, %v1995
    %v2164 = vpack.c.b16 %v2000, %v1996
    %v2165 = vpack.c.b16 %v2005, %v2001
    %v2166 = vpack.c.b16 %v2006, %v2002
    %v2167 = vpack.c.b16 %v2007, %v2003
    %v2168 = vpack.c.b16 %v2008, %v2004
    %v2169 = vpack.c.b16 %v2013, %v2009
    %v2170 = vpack.c.b16 %v2014, %v2010
    %v2171 = vpack.c.b16 %v2015, %v2011
    %v2172 = vpack.c.b16 %v2016, %v2012
    %v2173 = vpack.c.b16 %v2021, %v2017
    %v2174 = vpack.c.b16 %v2022, %v2018
    %v2175 = vpack.c.b16 %v2023, %v2019
    %v2176 = vpack.c.b16 %v2024, %v2020
    %v2177 = vpack.c.b16 %v2029, %v2025
    %v2178 = vpack.c.b16 %v2030, %v2026
    %v2179 = vpack.c.b16 %v2031, %v2027
    %v2180 = vpack.c.b16 %v2032, %v2028
    %v2181 = vpack.c.b16 %v2037, %v2033
    %v2182 = vpack.c.b16 %v2038, %v2034
    %v2183 = vpack.c.b16 %v2039, %v2035
    %v2184 = vpack.c.b16 %v2040, %v2036
    %v2185 = vpack.c.b16 %v2045, %v2041
    %v2186 = vpack.c.b16 %v2046, %v2042
    %v2187 = vpack.c.b16 %v2047, %v2043
    %v2188 = vpack.c.b16 %v2048, %v2044
    %v2189 = vpack.c.b16 %v2053, %v2049
    %v2190 = vpack.c.b16 %v2054, %v2050
    %v2191 = vpack.c.b16 %v2055, %v2051
    %v2192 = vpack.c.b16 %v2056, %v2052
    %v2193 = vpack.c.b16 %v2061, %v2057
    %v2194 = vpack.c.b16 %v2062, %v2058
    %v2195 = vpack.c.b16 %v2063, %v2059
    %v2196 = vpack.c.b16 %v2064, %v2060
    %v2197 = vpack.c.b16 %v2069, %v2065
    %v2198 = vpack.c.b16 %v2070, %v2066
    %v2199 = vpack.c.b16 %v2071, %v2067
    %v2200 = vpack.c.b16 %v2072, %v2068
    %2329 = vmatpush.bf16.msra.mxu0 %v1319
    %2330 = vmatpush.bf16.msra.mxu0 %v1317
    %2331 = vmatpush.bf16.msra.mxu0 %v1315
    %2332 = vmatpush.bf16.msra.mxu0 %v1313
    %2333 = vmatpush.bf16.msra.mxu0 %v1311
    %2334 = vmatpush.bf16.msra.mxu0 %v1309
    %2335 = vmatpush.bf16.msra.mxu0 %v1307
    %2336 = vmatpush.bf16.msra.mxu0 %v1305
    %2337 = vmatmul.bf16.gmra.mxu0 %v2073
    %v2338 = vpop.f32.mrf.mxu0
    %v2339 = vadd.f32 %v1372, %v2338
    %v2340 = vpop.f32.mrf.mxu0
    %v2341 = vadd.f32 %v1377, %v2340
    %2342 = vmatmul.bf16.gmra.mxu0 %v2077
    %v2343 = vpop.f32.mrf.mxu0
    %v2344 = vadd.f32 %v1382, %v2343
    %v2345 = vpop.f32.mrf.mxu0
    %v2346 = vadd.f32 %v1387, %v2345
    %2347 = vmatmul.bf16.gmra.mxu0 %v2081
    %v2348 = vpop.f32.mrf.mxu0
    %v2349 = vadd.f32 %v1392, %v2348
    %v2350 = vpop.f32.mrf.mxu0
    %v2351 = vadd.f32 %v1397, %v2350
    %2352 = vmatmul.bf16.gmra.mxu0 %v2085
    %v2353 = vpop.f32.mrf.mxu0
    %v2354 = vadd.f32 %v1402, %v2353
    %v2355 = vpop.f32.mrf.mxu0
    %v2356 = vadd.f32 %v1407, %v2355
    %2357 = vmatmul.bf16.gmra.mxu0 %v2089
    %v2358 = vpop.f32.mrf.mxu0
    %v2359 = vadd.f32 %v1412, %v2358
    %v2360 = vpop.f32.mrf.mxu0
    %v2361 = vadd.f32 %v1417, %v2360
    %2362 = vmatmul.bf16.gmra.mxu0 %v2093
    %v2363 = vpop.f32.mrf.mxu0
    %v2364 = vadd.f32 %v1422, %v2363
    %v2365 = vpop.f32.mrf.mxu0
    %v2366 = vadd.f32 %v1427, %v2365
    %2367 = vmatmul.bf16.gmra.mxu0 %v2097
    %v2368 = vpop.f32.mrf.mxu0
    %v2369 = vadd.f32 %v1432, %v2368
    %v2370 = vpop.f32.mrf.mxu0
    %v2371 = vadd.f32 %v1437, %v2370
    %2372 = vmatmul.bf16.gmra.mxu0 %v2101
    %v2373 = vpop.f32.mrf.mxu0
    %v2374 = vadd.f32 %v1442, %v2373
    %v2375 = vpop.f32.mrf.mxu0
    %v2376 = vadd.f32 %v1447, %v2375
    %2377 = vmatmul.bf16.gmra.mxu0 %v2105
    %v2378 = vpop.f32.mrf.mxu0
    %v2379 = vadd.f32 %v1452, %v2378
    %v2380 = vpop.f32.mrf.mxu0
    %v2381 = vadd.f32 %v1457, %v2380
    %2382 = vmatmul.bf16.gmra.mxu0 %v2109
    %v2383 = vpop.f32.mrf.mxu0
    %v2384 = vadd.f32 %v1462, %v2383
    %v2385 = vpop.f32.mrf.mxu0
    %v2386 = vadd.f32 %v1467, %v2385
    %2387 = vmatmul.bf16.gmra.mxu0 %v2113
    %v2388 = vpop.f32.mrf.mxu0
    %v2389 = vadd.f32 %v1472, %v2388
    %v2390 = vpop.f32.mrf.mxu0
    %v2391 = vadd.f32 %v1477, %v2390
    %2392 = vmatmul.bf16.gmra.mxu0 %v2117
    %v2393 = vpop.f32.mrf.mxu0
    %v2394 = vadd.f32 %v1482, %v2393
    %v2395 = vpop.f32.mrf.mxu0
    %v2396 = vadd.f32 %v1487, %v2395
    %2397 = vmatmul.bf16.gmra.mxu0 %v2121
    %v2398 = vpop.f32.mrf.mxu0
    %v2399 = vadd.f32 %v1492, %v2398
    %v2400 = vpop.f32.mrf.mxu0
    %v2401 = vadd.f32 %v1497, %v2400
    %2402 = vmatmul.bf16.gmra.mxu0 %v2125
    %v2403 = vpop.f32.mrf.mxu0
    %v2404 = vadd.f32 %v1502, %v2403
    %v2405 = vpop.f32.mrf.mxu0
    %v2406 = vadd.f32 %v1507, %v2405
    %2407 = vmatmul.bf16.gmra.mxu0 %v2129
    %v2408 = vpop.f32.mrf.mxu0
    %v2409 = vadd.f32 %v1512, %v2408
    %v2410 = vpop.f32.mrf.mxu0
    %v2411 = vadd.f32 %v1517, %v2410
    %2412 = vmatmul.bf16.gmra.mxu0 %v2133
    %v2413 = vpop.f32.mrf.mxu0
    %v2414 = vadd.f32 %v1522, %v2413
    %v2415 = vpop.f32.mrf.mxu0
    %v2416 = vadd.f32 %v1527, %v2415
    %2417 = vmatmul.bf16.gmra.mxu0 %v2137
    %v2418 = vpop.f32.mrf.mxu0
    %v2419 = vadd.f32 %v1532, %v2418
    %v2420 = vpop.f32.mrf.mxu0
    %v2421 = vadd.f32 %v1537, %v2420
    %2422 = vmatmul.bf16.gmra.mxu0 %v2141
    %v2423 = vpop.f32.mrf.mxu0
    %v2424 = vadd.f32 %v1542, %v2423
    %v2425 = vpop.f32.mrf.mxu0
    %v2426 = vadd.f32 %v1547, %v2425
    %2427 = vmatmul.bf16.gmra.mxu0 %v2145
    %v2428 = vpop.f32.mrf.mxu0
    %v2429 = vadd.f32 %v1552, %v2428
    %v2430 = vpop.f32.mrf.mxu0
    %v2431 = vadd.f32 %v1557, %v2430
    %2432 = vmatmul.bf16.gmra.mxu0 %v2149
    %v2433 = vpop.f32.mrf.mxu0
    %v2434 = vadd.f32 %v1562, %v2433
    %v2435 = vpop.f32.mrf.mxu0
    %v2436 = vadd.f32 %v1567, %v2435
    %2437 = vmatmul.bf16.gmra.mxu0 %v2153
    %v2438 = vpop.f32.mrf.mxu0
    %v2439 = vadd.f32 %v1572, %v2438
    %v2440 = vpop.f32.mrf.mxu0
    %v2441 = vadd.f32 %v1577, %v2440
    %2442 = vmatmul.bf16.gmra.mxu0 %v2157
    %v2443 = vpop.f32.mrf.mxu0
    %v2444 = vadd.f32 %v1582, %v2443
    %v2445 = vpop.f32.mrf.mxu0
    %v2446 = vadd.f32 %v1587, %v2445
    %2447 = vmatmul.bf16.gmra.mxu0 %v2161
    %v2448 = vpop.f32.mrf.mxu0
    %v2449 = vadd.f32 %v1592, %v2448
    %v2450 = vpop.f32.mrf.mxu0
    %v2451 = vadd.f32 %v1597, %v2450
    %2452 = vmatmul.bf16.gmra.mxu0 %v2165
    %v2453 = vpop.f32.mrf.mxu0
    %v2454 = vadd.f32 %v1602, %v2453
    %v2455 = vpop.f32.mrf.mxu0
    %v2456 = vadd.f32 %v1607, %v2455
    %2457 = vmatmul.bf16.gmra.mxu0 %v2169
    %v2458 = vpop.f32.mrf.mxu0
    %v2459 = vadd.f32 %v1612, %v2458
    %v2460 = vpop.f32.mrf.mxu0
    %v2461 = vadd.f32 %v1617, %v2460
    %2462 = vmatmul.bf16.gmra.mxu0 %v2173
    %v2463 = vpop.f32.mrf.mxu0
    %v2464 = vadd.f32 %v1622, %v2463
    %v2465 = vpop.f32.mrf.mxu0
    %v2466 = vadd.f32 %v1627, %v2465
    %2467 = vmatmul.bf16.gmra.mxu0 %v2177
    %v2468 = vpop.f32.mrf.mxu0
    %v2469 = vadd.f32 %v1632, %v2468
    %v2470 = vpop.f32.mrf.mxu0
    %v2471 = vadd.f32 %v1637, %v2470
    %2472 = vmatmul.bf16.gmra.mxu0 %v2181
    %v2473 = vpop.f32.mrf.mxu0
    %v2474 = vadd.f32 %v1642, %v2473
    %v2475 = vpop.f32.mrf.mxu0
    %v2476 = vadd.f32 %v1647, %v2475
    %2477 = vmatmul.bf16.gmra.mxu0 %v2185
    %v2478 = vpop.f32.mrf.mxu0
    %v2479 = vadd.f32 %v1652, %v2478
    %v2480 = vpop.f32.mrf.mxu0
    %v2481 = vadd.f32 %v1657, %v2480
    %2482 = vmatmul.bf16.gmra.mxu0 %v2189
    %v2483 = vpop.f32.mrf.mxu0
    %v2484 = vadd.f32 %v1662, %v2483
    %v2485 = vpop.f32.mrf.mxu0
    %v2486 = vadd.f32 %v1667, %v2485
    %2487 = vmatmul.bf16.gmra.mxu0 %v2193
    %v2488 = vpop.f32.mrf.mxu0
    %v2489 = vadd.f32 %v1672, %v2488
    %v2490 = vpop.f32.mrf.mxu0
    %v2491 = vadd.f32 %v1677, %v2490
    %2492 = vmatmul.bf16.gmra.mxu0 %v2197
    %v2493 = vpop.f32.mrf.mxu0
    %v2494 = vadd.f32 %v1682, %v2493
    %v2495 = vpop.f32.mrf.mxu0
    %v2496 = vadd.f32 %v1687, %v2495
    %2497 = vdwg.mxu0
    %2498 = vmatpush.bf16.msra.mxu0 %v1335
    %2499 = vmatpush.bf16.msra.mxu0 %v1333
    %2500 = vmatpush.bf16.msra.mxu0 %v1331
    %2501 = vmatpush.bf16.msra.mxu0 %v1329
    %2502 = vmatpush.bf16.msra.mxu0 %v1327
    %2503 = vmatpush.bf16.msra.mxu0 %v1325
    %2504 = vmatpush.bf16.msra.mxu0 %v1323
    %2505 = vmatpush.bf16.msra.mxu0 %v1321
    %2506 = vmatmul.bf16.gmra.mxu0 %v2074
    %v2507 = vpop.f32.mrf.mxu0
    %v2508 = vadd.f32 %v2339, %v2507
    %v2509 = vpop.f32.mrf.mxu0
    %v2510 = vadd.f32 %v2341, %v2509
    %2511 = vmatmul.bf16.gmra.mxu0 %v2078
    %v2512 = vpop.f32.mrf.mxu0
    %v2513 = vadd.f32 %v2344, %v2512
    %v2514 = vpop.f32.mrf.mxu0
    %v2515 = vadd.f32 %v2346, %v2514
    %2516 = vmatmul.bf16.gmra.mxu0 %v2082
    %v2517 = vpop.f32.mrf.mxu0
    %v2518 = vadd.f32 %v2349, %v2517
    %v2519 = vpop.f32.mrf.mxu0
    %v2520 = vadd.f32 %v2351, %v2519
    %2521 = vmatmul.bf16.gmra.mxu0 %v2086
    %v2522 = vpop.f32.mrf.mxu0
    %v2523 = vadd.f32 %v2354, %v2522
    %v2524 = vpop.f32.mrf.mxu0
    %v2525 = vadd.f32 %v2356, %v2524
    %2526 = vmatmul.bf16.gmra.mxu0 %v2090
    %v2527 = vpop.f32.mrf.mxu0
    %v2528 = vadd.f32 %v2359, %v2527
    %v2529 = vpop.f32.mrf.mxu0
    %v2530 = vadd.f32 %v2361, %v2529
    %2531 = vmatmul.bf16.gmra.mxu0 %v2094
    %v2532 = vpop.f32.mrf.mxu0
    %v2533 = vadd.f32 %v2364, %v2532
    %v2534 = vpop.f32.mrf.mxu0
    %v2535 = vadd.f32 %v2366, %v2534
    %2536 = vmatmul.bf16.gmra.mxu0 %v2098
    %v2537 = vpop.f32.mrf.mxu0
    %v2538 = vadd.f32 %v2369, %v2537
    %v2539 = vpop.f32.mrf.mxu0
    %v2540 = vadd.f32 %v2371, %v2539
    %2541 = vmatmul.bf16.gmra.mxu0 %v2102
    %v2542 = vpop.f32.mrf.mxu0
    %v2543 = vadd.f32 %v2374, %v2542
    %v2544 = vpop.f32.mrf.mxu0
    %v2545 = vadd.f32 %v2376, %v2544
    %2546 = vmatmul.bf16.gmra.mxu0 %v2106
    %v2547 = vpop.f32.mrf.mxu0
    %v2548 = vadd.f32 %v2379, %v2547
    %v2549 = vpop.f32.mrf.mxu0
    %v2550 = vadd.f32 %v2381, %v2549
    %2551 = vmatmul.bf16.gmra.mxu0 %v2110
    %v2552 = vpop.f32.mrf.mxu0
    %v2553 = vadd.f32 %v2384, %v2552
    %v2554 = vpop.f32.mrf.mxu0
    %v2555 = vadd.f32 %v2386, %v2554
    %2556 = vmatmul.bf16.gmra.mxu0 %v2114
    %v2557 = vpop.f32.mrf.mxu0
    %v2558 = vadd.f32 %v2389, %v2557
    %v2559 = vpop.f32.mrf.mxu0
    %v2560 = vadd.f32 %v2391, %v2559
    %2561 = vmatmul.bf16.gmra.mxu0 %v2118
    %v2562 = vpop.f32.mrf.mxu0
    %v2563 = vadd.f32 %v2394, %v2562
    %v2564 = vpop.f32.mrf.mxu0
    %v2565 = vadd.f32 %v2396, %v2564
    %2566 = vmatmul.bf16.gmra.mxu0 %v2122
    %v2567 = vpop.f32.mrf.mxu0
    %v2568 = vadd.f32 %v2399, %v2567
    %v2569 = vpop.f32.mrf.mxu0
    %v2570 = vadd.f32 %v2401, %v2569
    %2571 = vmatmul.bf16.gmra.mxu0 %v2126
    %v2572 = vpop.f32.mrf.mxu0
    %v2573 = vadd.f32 %v2404, %v2572
    %v2574 = vpop.f32.mrf.mxu0
    %v2575 = vadd.f32 %v2406, %v2574
    %2576 = vmatmul.bf16.gmra.mxu0 %v2130
    %v2577 = vpop.f32.mrf.mxu0
    %v2578 = vadd.f32 %v2409, %v2577
    %v2579 = vpop.f32.mrf.mxu0
    %v2580 = vadd.f32 %v2411, %v2579
    %2581 = vmatmul.bf16.gmra.mxu0 %v2134
    %v2582 = vpop.f32.mrf.mxu0
    %v2583 = vadd.f32 %v2414, %v2582
    %v2584 = vpop.f32.mrf.mxu0
    %v2585 = vadd.f32 %v2416, %v2584
    %2586 = vmatmul.bf16.gmra.mxu0 %v2138
    %v2587 = vpop.f32.mrf.mxu0
    %v2588 = vadd.f32 %v2419, %v2587
    %v2589 = vpop.f32.mrf.mxu0
    %v2590 = vadd.f32 %v2421, %v2589
    %2591 = vmatmul.bf16.gmra.mxu0 %v2142
    %v2592 = vpop.f32.mrf.mxu0
    %v2593 = vadd.f32 %v2424, %v2592
    %v2594 = vpop.f32.mrf.mxu0
    %v2595 = vadd.f32 %v2426, %v2594
    %2596 = vmatmul.bf16.gmra.mxu0 %v2146
    %v2597 = vpop.f32.mrf.mxu0
    %v2598 = vadd.f32 %v2429, %v2597
    %v2599 = vpop.f32.mrf.mxu0
    %v2600 = vadd.f32 %v2431, %v2599
    %2601 = vmatmul.bf16.gmra.mxu0 %v2150
    %v2602 = vpop.f32.mrf.mxu0
    %v2603 = vadd.f32 %v2434, %v2602
    %v2604 = vpop.f32.mrf.mxu0
    %v2605 = vadd.f32 %v2436, %v2604
    %2606 = vmatmul.bf16.gmra.mxu0 %v2154
    %v2607 = vpop.f32.mrf.mxu0
    %v2608 = vadd.f32 %v2439, %v2607
    %v2609 = vpop.f32.mrf.mxu0
    %v2610 = vadd.f32 %v2441, %v2609
    %2611 = vmatmul.bf16.gmra.mxu0 %v2158
    %v2612 = vpop.f32.mrf.mxu0
    %v2613 = vadd.f32 %v2444, %v2612
    %v2614 = vpop.f32.mrf.mxu0
    %v2615 = vadd.f32 %v2446, %v2614
    %2616 = vmatmul.bf16.gmra.mxu0 %v2162
    %v2617 = vpop.f32.mrf.mxu0
    %v2618 = vadd.f32 %v2449, %v2617
    %v2619 = vpop.f32.mrf.mxu0
    %v2620 = vadd.f32 %v2451, %v2619
    %2621 = vmatmul.bf16.gmra.mxu0 %v2166
    %v2622 = vpop.f32.mrf.mxu0
    %v2623 = vadd.f32 %v2454, %v2622
    %v2624 = vpop.f32.mrf.mxu0
    %v2625 = vadd.f32 %v2456, %v2624
    %2626 = vmatmul.bf16.gmra.mxu0 %v2170
    %v2627 = vpop.f32.mrf.mxu0
    %v2628 = vadd.f32 %v2459, %v2627
    %v2629 = vpop.f32.mrf.mxu0
    %v2630 = vadd.f32 %v2461, %v2629
    %2631 = vmatmul.bf16.gmra.mxu0 %v2174
    %v2632 = vpop.f32.mrf.mxu0
    %v2633 = vadd.f32 %v2464, %v2632
    %v2634 = vpop.f32.mrf.mxu0
    %v2635 = vadd.f32 %v2466, %v2634
    %2636 = vmatmul.bf16.gmra.mxu0 %v2178
    %v2637 = vpop.f32.mrf.mxu0
    %v2638 = vadd.f32 %v2469, %v2637
    %v2639 = vpop.f32.mrf.mxu0
    %v2640 = vadd.f32 %v2471, %v2639
    %2641 = vmatmul.bf16.gmra.mxu0 %v2182
    %v2642 = vpop.f32.mrf.mxu0
    %v2643 = vadd.f32 %v2474, %v2642
    %v2644 = vpop.f32.mrf.mxu0
    %v2645 = vadd.f32 %v2476, %v2644
    %2646 = vmatmul.bf16.gmra.mxu0 %v2186
    %v2647 = vpop.f32.mrf.mxu0
    %v2648 = vadd.f32 %v2479, %v2647
    %v2649 = vpop.f32.mrf.mxu0
    %v2650 = vadd.f32 %v2481, %v2649
    %2651 = vmatmul.bf16.gmra.mxu0 %v2190
    %v2652 = vpop.f32.mrf.mxu0
    %v2653 = vadd.f32 %v2484, %v2652
    %v2654 = vpop.f32.mrf.mxu0
    %v2655 = vadd.f32 %v2486, %v2654
    %2656 = vmatmul.bf16.gmra.mxu0 %v2194
    %v2657 = vpop.f32.mrf.mxu0
    %v2658 = vadd.f32 %v2489, %v2657
    %v2659 = vpop.f32.mrf.mxu0
    %v2660 = vadd.f32 %v2491, %v2659
    %2661 = vmatmul.bf16.gmra.mxu0 %v2198
    %v2662 = vpop.f32.mrf.mxu0
    %v2663 = vadd.f32 %v2494, %v2662
    %v2664 = vpop.f32.mrf.mxu0
    %v2665 = vadd.f32 %v2496, %v2664
    %2666 = vdwg.mxu0
    %2667 = vmatpush.bf16.msra.mxu0 %v1351
    %2668 = vmatpush.bf16.msra.mxu0 %v1349
    %2669 = vmatpush.bf16.msra.mxu0 %v1347
    %2670 = vmatpush.bf16.msra.mxu0 %v1345
    %2671 = vmatpush.bf16.msra.mxu0 %v1343
    %2672 = vmatpush.bf16.msra.mxu0 %v1341
    %2673 = vmatpush.bf16.msra.mxu0 %v1339
    %2674 = vmatpush.bf16.msra.mxu0 %v1337
    %2675 = vmatmul.bf16.gmra.mxu0 %v2075
    %v2676 = vpop.f32.mrf.mxu0
    %v2677 = vadd.f32 %v2508, %v2676
    %v2678 = vpop.f32.mrf.mxu0
    %v2679 = vadd.f32 %v2510, %v2678
    %2680 = vmatmul.bf16.gmra.mxu0 %v2079
    %v2681 = vpop.f32.mrf.mxu0
    %v2682 = vadd.f32 %v2513, %v2681
    %v2683 = vpop.f32.mrf.mxu0
    %v2684 = vadd.f32 %v2515, %v2683
    %2685 = vmatmul.bf16.gmra.mxu0 %v2083
    %v2686 = vpop.f32.mrf.mxu0
    %v2687 = vadd.f32 %v2518, %v2686
    %v2688 = vpop.f32.mrf.mxu0
    %v2689 = vadd.f32 %v2520, %v2688
    %2690 = vmatmul.bf16.gmra.mxu0 %v2087
    %v2691 = vpop.f32.mrf.mxu0
    %v2692 = vadd.f32 %v2523, %v2691
    %v2693 = vpop.f32.mrf.mxu0
    %v2694 = vadd.f32 %v2525, %v2693
    %2695 = vmatmul.bf16.gmra.mxu0 %v2091
    %v2696 = vpop.f32.mrf.mxu0
    %v2697 = vadd.f32 %v2528, %v2696
    %v2698 = vpop.f32.mrf.mxu0
    %v2699 = vadd.f32 %v2530, %v2698
    %2700 = vmatmul.bf16.gmra.mxu0 %v2095
    %v2701 = vpop.f32.mrf.mxu0
    %v2702 = vadd.f32 %v2533, %v2701
    %v2703 = vpop.f32.mrf.mxu0
    %v2704 = vadd.f32 %v2535, %v2703
    %2705 = vmatmul.bf16.gmra.mxu0 %v2099
    %v2706 = vpop.f32.mrf.mxu0
    %v2707 = vadd.f32 %v2538, %v2706
    %v2708 = vpop.f32.mrf.mxu0
    %v2709 = vadd.f32 %v2540, %v2708
    %2710 = vmatmul.bf16.gmra.mxu0 %v2103
    %v2711 = vpop.f32.mrf.mxu0
    %v2712 = vadd.f32 %v2543, %v2711
    %v2713 = vpop.f32.mrf.mxu0
    %v2714 = vadd.f32 %v2545, %v2713
    %2715 = vmatmul.bf16.gmra.mxu0 %v2107
    %v2716 = vpop.f32.mrf.mxu0
    %v2717 = vadd.f32 %v2548, %v2716
    %v2718 = vpop.f32.mrf.mxu0
    %v2719 = vadd.f32 %v2550, %v2718
    %2720 = vmatmul.bf16.gmra.mxu0 %v2111
    %v2721 = vpop.f32.mrf.mxu0
    %v2722 = vadd.f32 %v2553, %v2721
    %v2723 = vpop.f32.mrf.mxu0
    %v2724 = vadd.f32 %v2555, %v2723
    %2725 = vmatmul.bf16.gmra.mxu0 %v2115
    %v2726 = vpop.f32.mrf.mxu0
    %v2727 = vadd.f32 %v2558, %v2726
    %v2728 = vpop.f32.mrf.mxu0
    %v2729 = vadd.f32 %v2560, %v2728
    %2730 = vmatmul.bf16.gmra.mxu0 %v2119
    %v2731 = vpop.f32.mrf.mxu0
    %v2732 = vadd.f32 %v2563, %v2731
    %v2733 = vpop.f32.mrf.mxu0
    %v2734 = vadd.f32 %v2565, %v2733
    %2735 = vmatmul.bf16.gmra.mxu0 %v2123
    %v2736 = vpop.f32.mrf.mxu0
    %v2737 = vadd.f32 %v2568, %v2736
    %v2738 = vpop.f32.mrf.mxu0
    %v2739 = vadd.f32 %v2570, %v2738
    %2740 = vmatmul.bf16.gmra.mxu0 %v2127
    %v2741 = vpop.f32.mrf.mxu0
    %v2742 = vadd.f32 %v2573, %v2741
    %v2743 = vpop.f32.mrf.mxu0
    %v2744 = vadd.f32 %v2575, %v2743
    %2745 = vmatmul.bf16.gmra.mxu0 %v2131
    %v2746 = vpop.f32.mrf.mxu0
    %v2747 = vadd.f32 %v2578, %v2746
    %v2748 = vpop.f32.mrf.mxu0
    %v2749 = vadd.f32 %v2580, %v2748
    %2750 = vmatmul.bf16.gmra.mxu0 %v2135
    %v2751 = vpop.f32.mrf.mxu0
    %v2752 = vadd.f32 %v2583, %v2751
    %v2753 = vpop.f32.mrf.mxu0
    %v2754 = vadd.f32 %v2585, %v2753
    %2755 = vmatmul.bf16.gmra.mxu0 %v2139
    %v2756 = vpop.f32.mrf.mxu0
    %v2757 = vadd.f32 %v2588, %v2756
    %v2758 = vpop.f32.mrf.mxu0
    %v2759 = vadd.f32 %v2590, %v2758
    %2760 = vmatmul.bf16.gmra.mxu0 %v2143
    %v2761 = vpop.f32.mrf.mxu0
    %v2762 = vadd.f32 %v2593, %v2761
    %v2763 = vpop.f32.mrf.mxu0
    %v2764 = vadd.f32 %v2595, %v2763
    %2765 = vmatmul.bf16.gmra.mxu0 %v2147
    %v2766 = vpop.f32.mrf.mxu0
    %v2767 = vadd.f32 %v2598, %v2766
    %v2768 = vpop.f32.mrf.mxu0
    %v2769 = vadd.f32 %v2600, %v2768
    %2770 = vmatmul.bf16.gmra.mxu0 %v2151
    %v2771 = vpop.f32.mrf.mxu0
    %v2772 = vadd.f32 %v2603, %v2771
    %v2773 = vpop.f32.mrf.mxu0
    %v2774 = vadd.f32 %v2605, %v2773
    %2775 = vmatmul.bf16.gmra.mxu0 %v2155
    %v2776 = vpop.f32.mrf.mxu0
    %v2777 = vadd.f32 %v2608, %v2776
    %v2778 = vpop.f32.mrf.mxu0
    %v2779 = vadd.f32 %v2610, %v2778
    %2780 = vmatmul.bf16.gmra.mxu0 %v2159
    %v2781 = vpop.f32.mrf.mxu0
    %v2782 = vadd.f32 %v2613, %v2781
    %v2783 = vpop.f32.mrf.mxu0
    %v2784 = vadd.f32 %v2615, %v2783
    %2785 = vmatmul.bf16.gmra.mxu0 %v2163
    %v2786 = vpop.f32.mrf.mxu0
    %v2787 = vadd.f32 %v2618, %v2786
    %v2788 = vpop.f32.mrf.mxu0
    %v2789 = vadd.f32 %v2620, %v2788
    %2790 = vmatmul.bf16.gmra.mxu0 %v2167
    %v2791 = vpop.f32.mrf.mxu0
    %v2792 = vadd.f32 %v2623, %v2791
    %v2793 = vpop.f32.mrf.mxu0
    %v2794 = vadd.f32 %v2625, %v2793
    %2795 = vmatmul.bf16.gmra.mxu0 %v2171
    %v2796 = vpop.f32.mrf.mxu0
    %v2797 = vadd.f32 %v2628, %v2796
    %v2798 = vpop.f32.mrf.mxu0
    %v2799 = vadd.f32 %v2630, %v2798
    %2800 = vmatmul.bf16.gmra.mxu0 %v2175
    %v2801 = vpop.f32.mrf.mxu0
    %v2802 = vadd.f32 %v2633, %v2801
    %v2803 = vpop.f32.mrf.mxu0
    %v2804 = vadd.f32 %v2635, %v2803
    %2805 = vmatmul.bf16.gmra.mxu0 %v2179
    %v2806 = vpop.f32.mrf.mxu0
    %v2807 = vadd.f32 %v2638, %v2806
    %v2808 = vpop.f32.mrf.mxu0
    %v2809 = vadd.f32 %v2640, %v2808
    %2810 = vmatmul.bf16.gmra.mxu0 %v2183
    %v2811 = vpop.f32.mrf.mxu0
    %v2812 = vadd.f32 %v2643, %v2811
    %v2813 = vpop.f32.mrf.mxu0
    %v2814 = vadd.f32 %v2645, %v2813
    %2815 = vmatmul.bf16.gmra.mxu0 %v2187
    %v2816 = vpop.f32.mrf.mxu0
    %v2817 = vadd.f32 %v2648, %v2816
    %v2818 = vpop.f32.mrf.mxu0
    %v2819 = vadd.f32 %v2650, %v2818
    %2820 = vmatmul.bf16.gmra.mxu0 %v2191
    %v2821 = vpop.f32.mrf.mxu0
    %v2822 = vadd.f32 %v2653, %v2821
    %v2823 = vpop.f32.mrf.mxu0
    %v2824 = vadd.f32 %v2655, %v2823
    %2825 = vmatmul.bf16.gmra.mxu0 %v2195
    %v2826 = vpop.f32.mrf.mxu0
    %v2827 = vadd.f32 %v2658, %v2826
    %v2828 = vpop.f32.mrf.mxu0
    %v2829 = vadd.f32 %v2660, %v2828
    %2830 = vmatmul.bf16.gmra.mxu0 %v2199
    %v2831 = vpop.f32.mrf.mxu0
    %v2832 = vadd.f32 %v2663, %v2831
    %v2833 = vpop.f32.mrf.mxu0
    %v2834 = vadd.f32 %v2665, %v2833
    %2835 = vdwg.mxu0
    %2836 = vmatpush.bf16.msra.mxu0 %v1367
    %2837 = vmatpush.bf16.msra.mxu0 %v1365
    %2838 = vmatpush.bf16.msra.mxu0 %v1363
    %2839 = vmatpush.bf16.msra.mxu0 %v1361
    %2840 = vmatpush.bf16.msra.mxu0 %v1359
    %2841 = vmatpush.bf16.msra.mxu0 %v1357
    %2842 = vmatpush.bf16.msra.mxu0 %v1355
    %2843 = vmatpush.bf16.msra.mxu0 %v1353
    %2844 = vmatmul.bf16.gmra.mxu0 %v2076
    %v2845 = vpop.f32.mrf.mxu0
    %v2846 = vadd.f32 %v2677, %v2845
    %v2847 = vpop.f32.mrf.mxu0
    %v2848 = vadd.f32 %v2679, %v2847
    %2849 = vmatmul.bf16.gmra.mxu0 %v2080
    %v2850 = vpop.f32.mrf.mxu0
    %v2851 = vadd.f32 %v2682, %v2850
    %v2852 = vpop.f32.mrf.mxu0
    %v2853 = vadd.f32 %v2684, %v2852
    %2854 = vmatmul.bf16.gmra.mxu0 %v2084
    %v2855 = vpop.f32.mrf.mxu0
    %v2856 = vadd.f32 %v2687, %v2855
    %v2857 = vpop.f32.mrf.mxu0
    %v2858 = vadd.f32 %v2689, %v2857
    %2859 = vmatmul.bf16.gmra.mxu0 %v2088
    %v2860 = vpop.f32.mrf.mxu0
    %v2861 = vadd.f32 %v2692, %v2860
    %v2862 = vpop.f32.mrf.mxu0
    %v2863 = vadd.f32 %v2694, %v2862
    %2864 = vmatmul.bf16.gmra.mxu0 %v2092
    %v2865 = vpop.f32.mrf.mxu0
    %v2866 = vadd.f32 %v2697, %v2865
    %v2867 = vpop.f32.mrf.mxu0
    %v2868 = vadd.f32 %v2699, %v2867
    %2869 = vmatmul.bf16.gmra.mxu0 %v2096
    %v2870 = vpop.f32.mrf.mxu0
    %v2871 = vadd.f32 %v2702, %v2870
    %v2872 = vpop.f32.mrf.mxu0
    %v2873 = vadd.f32 %v2704, %v2872
    %2874 = vmatmul.bf16.gmra.mxu0 %v2100
    %v2875 = vpop.f32.mrf.mxu0
    %v2876 = vadd.f32 %v2707, %v2875
    %v2877 = vpop.f32.mrf.mxu0
    %v2878 = vadd.f32 %v2709, %v2877
    %2879 = vmatmul.bf16.gmra.mxu0 %v2104
    %v2880 = vpop.f32.mrf.mxu0
    %v2881 = vadd.f32 %v2712, %v2880
    %v2882 = vpop.f32.mrf.mxu0
    %v2883 = vadd.f32 %v2714, %v2882
    %2884 = vmatmul.bf16.gmra.mxu0 %v2108
    %v2885 = vpop.f32.mrf.mxu0
    %v2886 = vadd.f32 %v2717, %v2885
    %v2887 = vpop.f32.mrf.mxu0
    %v2888 = vadd.f32 %v2719, %v2887
    %2889 = vmatmul.bf16.gmra.mxu0 %v2112
    %v2890 = vpop.f32.mrf.mxu0
    %v2891 = vadd.f32 %v2722, %v2890
    %v2892 = vpop.f32.mrf.mxu0
    %v2893 = vadd.f32 %v2724, %v2892
    %2894 = vmatmul.bf16.gmra.mxu0 %v2116
    %v2895 = vpop.f32.mrf.mxu0
    %v2896 = vadd.f32 %v2727, %v2895
    %v2897 = vpop.f32.mrf.mxu0
    %v2898 = vadd.f32 %v2729, %v2897
    %2899 = vmatmul.bf16.gmra.mxu0 %v2120
    %v2900 = vpop.f32.mrf.mxu0
    %v2901 = vadd.f32 %v2732, %v2900
    %v2902 = vpop.f32.mrf.mxu0
    %v2903 = vadd.f32 %v2734, %v2902
    %2904 = vmatmul.bf16.gmra.mxu0 %v2124
    %v2905 = vpop.f32.mrf.mxu0
    %v2906 = vadd.f32 %v2737, %v2905
    %v2907 = vpop.f32.mrf.mxu0
    %v2908 = vadd.f32 %v2739, %v2907
    %2909 = vmatmul.bf16.gmra.mxu0 %v2128
    %v2910 = vpop.f32.mrf.mxu0
    %v2911 = vadd.f32 %v2742, %v2910
    %v2912 = vpop.f32.mrf.mxu0
    %v2913 = vadd.f32 %v2744, %v2912
    %2914 = vmatmul.bf16.gmra.mxu0 %v2132
    %v2915 = vpop.f32.mrf.mxu0
    %v2916 = vadd.f32 %v2747, %v2915
    %v2917 = vpop.f32.mrf.mxu0
    %v2918 = vadd.f32 %v2749, %v2917
    %2919 = vmatmul.bf16.gmra.mxu0 %v2136
    %v2920 = vpop.f32.mrf.mxu0
    %v2921 = vadd.f32 %v2752, %v2920
    %v2922 = vpop.f32.mrf.mxu0
    %v2923 = vadd.f32 %v2754, %v2922
    %2924 = vmatmul.bf16.gmra.mxu0 %v2140
    %v2925 = vpop.f32.mrf.mxu0
    %v2926 = vadd.f32 %v2757, %v2925
    %v2927 = vpop.f32.mrf.mxu0
    %v2928 = vadd.f32 %v2759, %v2927
    %2929 = vmatmul.bf16.gmra.mxu0 %v2144
    %v2930 = vpop.f32.mrf.mxu0
    %v2931 = vadd.f32 %v2762, %v2930
    %v2932 = vpop.f32.mrf.mxu0
    %v2933 = vadd.f32 %v2764, %v2932
    %2934 = vmatmul.bf16.gmra.mxu0 %v2148
    %v2935 = vpop.f32.mrf.mxu0
    %v2936 = vadd.f32 %v2767, %v2935
    %v2937 = vpop.f32.mrf.mxu0
    %v2938 = vadd.f32 %v2769, %v2937
    %2939 = vmatmul.bf16.gmra.mxu0 %v2152
    %v2940 = vpop.f32.mrf.mxu0
    %v2941 = vadd.f32 %v2772, %v2940
    %v2942 = vpop.f32.mrf.mxu0
    %v2943 = vadd.f32 %v2774, %v2942
    %2944 = vmatmul.bf16.gmra.mxu0 %v2156
    %v2945 = vpop.f32.mrf.mxu0
    %v2946 = vadd.f32 %v2777, %v2945
    %v2947 = vpop.f32.mrf.mxu0
    %v2948 = vadd.f32 %v2779, %v2947
    %2949 = vmatmul.bf16.gmra.mxu0 %v2160
    %v2950 = vpop.f32.mrf.mxu0
    %v2951 = vadd.f32 %v2782, %v2950
    %v2952 = vpop.f32.mrf.mxu0
    %v2953 = vadd.f32 %v2784, %v2952
    %2954 = vmatmul.bf16.gmra.mxu0 %v2164
    %v2955 = vpop.f32.mrf.mxu0
    %v2956 = vadd.f32 %v2787, %v2955
    %v2957 = vpop.f32.mrf.mxu0
    %v2958 = vadd.f32 %v2789, %v2957
    %2959 = vmatmul.bf16.gmra.mxu0 %v2168
    %v2960 = vpop.f32.mrf.mxu0
    %v2961 = vadd.f32 %v2792, %v2960
    %v2962 = vpop.f32.mrf.mxu0
    %v2963 = vadd.f32 %v2794, %v2962
    %2964 = vmatmul.bf16.gmra.mxu0 %v2172
    %v2965 = vpop.f32.mrf.mxu0
    %v2966 = vadd.f32 %v2797, %v2965
    %v2967 = vpop.f32.mrf.mxu0
    %v2968 = vadd.f32 %v2799, %v2967
    %2969 = vmatmul.bf16.gmra.mxu0 %v2176
    %v2970 = vpop.f32.mrf.mxu0
    %v2971 = vadd.f32 %v2802, %v2970
    %v2972 = vpop.f32.mrf.mxu0
    %v2973 = vadd.f32 %v2804, %v2972
    %2974 = vmatmul.bf16.gmra.mxu0 %v2180
    %v2975 = vpop.f32.mrf.mxu0
    %v2976 = vadd.f32 %v2807, %v2975
    %v2977 = vpop.f32.mrf.mxu0
    %v2978 = vadd.f32 %v2809, %v2977
    %2979 = vmatmul.bf16.gmra.mxu0 %v2184
    %v2980 = vpop.f32.mrf.mxu0
    %v2981 = vadd.f32 %v2812, %v2980
    %v2982 = vpop.f32.mrf.mxu0
    %v2983 = vadd.f32 %v2814, %v2982
    %2984 = vmatmul.bf16.gmra.mxu0 %v2188
    %v2985 = vpop.f32.mrf.mxu0
    %v2986 = vadd.f32 %v2817, %v2985
    %v2987 = vpop.f32.mrf.mxu0
    %v2988 = vadd.f32 %v2819, %v2987
    %2989 = vmatmul.bf16.gmra.mxu0 %v2192
    %v2990 = vpop.f32.mrf.mxu0
    %v2991 = vadd.f32 %v2822, %v2990
    %v2992 = vpop.f32.mrf.mxu0
    %v2993 = vadd.f32 %v2824, %v2992
    %2994 = vmatmul.bf16.gmra.mxu0 %v2196
    %v2995 = vpop.f32.mrf.mxu0
    %v2996 = vadd.f32 %v2827, %v2995
    %v2997 = vpop.f32.mrf.mxu0
    %v2998 = vadd.f32 %v2829, %v2997
    %2999 = vmatmul.bf16.gmra.mxu0 %v2200
    %v3000 = vpop.f32.mrf.mxu0
    %v3001 = vadd.f32 %v2832, %v3000
    %v3002 = vpop.f32.mrf.mxu0
    %v3003 = vadd.f32 %v2834, %v3002
    %3004 = vdwg.mxu0
    %3005 = vmatpush.bf16.msra.mxu0 %v1320
    %3006 = vmatpush.bf16.msra.mxu0 %v1318
    %3007 = vmatpush.bf16.msra.mxu0 %v1316
    %3008 = vmatpush.bf16.msra.mxu0 %v1314
    %3009 = vmatpush.bf16.msra.mxu0 %v1312
    %3010 = vmatpush.bf16.msra.mxu0 %v1310
    %3011 = vmatpush.bf16.msra.mxu0 %v1308
    %3012 = vmatpush.bf16.msra.mxu0 %v1306
    %3013 = vmatmul.bf16.gmra.mxu0 %v2073
    %v3014 = vpop.f32.mrf.mxu0
    %v3015 = vadd.f32 %v1372, %v3014
    %v3016 = vpop.f32.mrf.mxu0
    %v3017 = vadd.f32 %v1377, %v3016
    %3018 = vmatmul.bf16.gmra.mxu0 %v2077
    %v3019 = vpop.f32.mrf.mxu0
    %v3020 = vadd.f32 %v1382, %v3019
    %v3021 = vpop.f32.mrf.mxu0
    %v3022 = vadd.f32 %v1387, %v3021
    %3023 = vmatmul.bf16.gmra.mxu0 %v2081
    %v3024 = vpop.f32.mrf.mxu0
    %v3025 = vadd.f32 %v1392, %v3024
    %v3026 = vpop.f32.mrf.mxu0
    %v3027 = vadd.f32 %v1397, %v3026
    %3028 = vmatmul.bf16.gmra.mxu0 %v2085
    %v3029 = vpop.f32.mrf.mxu0
    %v3030 = vadd.f32 %v1402, %v3029
    %v3031 = vpop.f32.mrf.mxu0
    %v3032 = vadd.f32 %v1407, %v3031
    %3033 = vmatmul.bf16.gmra.mxu0 %v2089
    %v3034 = vpop.f32.mrf.mxu0
    %v3035 = vadd.f32 %v1412, %v3034
    %v3036 = vpop.f32.mrf.mxu0
    %v3037 = vadd.f32 %v1417, %v3036
    %3038 = vmatmul.bf16.gmra.mxu0 %v2093
    %v3039 = vpop.f32.mrf.mxu0
    %v3040 = vadd.f32 %v1422, %v3039
    %v3041 = vpop.f32.mrf.mxu0
    %v3042 = vadd.f32 %v1427, %v3041
    %3043 = vmatmul.bf16.gmra.mxu0 %v2097
    %v3044 = vpop.f32.mrf.mxu0
    %v3045 = vadd.f32 %v1432, %v3044
    %v3046 = vpop.f32.mrf.mxu0
    %v3047 = vadd.f32 %v1437, %v3046
    %3048 = vmatmul.bf16.gmra.mxu0 %v2101
    %v3049 = vpop.f32.mrf.mxu0
    %v3050 = vadd.f32 %v1442, %v3049
    %v3051 = vpop.f32.mrf.mxu0
    %v3052 = vadd.f32 %v1447, %v3051
    %3053 = vmatmul.bf16.gmra.mxu0 %v2105
    %v3054 = vpop.f32.mrf.mxu0
    %v3055 = vadd.f32 %v1452, %v3054
    %v3056 = vpop.f32.mrf.mxu0
    %v3057 = vadd.f32 %v1457, %v3056
    %3058 = vmatmul.bf16.gmra.mxu0 %v2109
    %v3059 = vpop.f32.mrf.mxu0
    %v3060 = vadd.f32 %v1462, %v3059
    %v3061 = vpop.f32.mrf.mxu0
    %v3062 = vadd.f32 %v1467, %v3061
    %3063 = vmatmul.bf16.gmra.mxu0 %v2113
    %v3064 = vpop.f32.mrf.mxu0
    %v3065 = vadd.f32 %v1472, %v3064
    %v3066 = vpop.f32.mrf.mxu0
    %v3067 = vadd.f32 %v1477, %v3066
    %3068 = vmatmul.bf16.gmra.mxu0 %v2117
    %v3069 = vpop.f32.mrf.mxu0
    %v3070 = vadd.f32 %v1482, %v3069
    %v3071 = vpop.f32.mrf.mxu0
    %v3072 = vadd.f32 %v1487, %v3071
    %3073 = vmatmul.bf16.gmra.mxu0 %v2121
    %v3074 = vpop.f32.mrf.mxu0
    %v3075 = vadd.f32 %v1492, %v3074
    %v3076 = vpop.f32.mrf.mxu0
    %v3077 = vadd.f32 %v1497, %v3076
    %3078 = vmatmul.bf16.gmra.mxu0 %v2125
    %v3079 = vpop.f32.mrf.mxu0
    %v3080 = vadd.f32 %v1502, %v3079
    %v3081 = vpop.f32.mrf.mxu0
    %v3082 = vadd.f32 %v1507, %v3081
    %3083 = vmatmul.bf16.gmra.mxu0 %v2129
    %v3084 = vpop.f32.mrf.mxu0
    %v3085 = vadd.f32 %v1512, %v3084
    %v3086 = vpop.f32.mrf.mxu0
    %v3087 = vadd.f32 %v1517, %v3086
    %3088 = vmatmul.bf16.gmra.mxu0 %v2133
    %v3089 = vpop.f32.mrf.mxu0
    %v3090 = vadd.f32 %v1522, %v3089
    %v3091 = vpop.f32.mrf.mxu0
    %v3092 = vadd.f32 %v1527, %v3091
    %3093 = vmatmul.bf16.gmra.mxu0 %v2137
    %v3094 = vpop.f32.mrf.mxu0
    %v3095 = vadd.f32 %v1532, %v3094
    %v3096 = vpop.f32.mrf.mxu0
    %v3097 = vadd.f32 %v1537, %v3096
    %3098 = vmatmul.bf16.gmra.mxu0 %v2141
    %v3099 = vpop.f32.mrf.mxu0
    %v3100 = vadd.f32 %v1542, %v3099
    %v3101 = vpop.f32.mrf.mxu0
    %v3102 = vadd.f32 %v1547, %v3101
    %3103 = vmatmul.bf16.gmra.mxu0 %v2145
    %v3104 = vpop.f32.mrf.mxu0
    %v3105 = vadd.f32 %v1552, %v3104
    %v3106 = vpop.f32.mrf.mxu0
    %v3107 = vadd.f32 %v1557, %v3106
    %3108 = vmatmul.bf16.gmra.mxu0 %v2149
    %v3109 = vpop.f32.mrf.mxu0
    %v3110 = vadd.f32 %v1562, %v3109
    %v3111 = vpop.f32.mrf.mxu0
    %v3112 = vadd.f32 %v1567, %v3111
    %3113 = vmatmul.bf16.gmra.mxu0 %v2153
    %v3114 = vpop.f32.mrf.mxu0
    %v3115 = vadd.f32 %v1572, %v3114
    %v3116 = vpop.f32.mrf.mxu0
    %v3117 = vadd.f32 %v1577, %v3116
    %3118 = vmatmul.bf16.gmra.mxu0 %v2157
    %v3119 = vpop.f32.mrf.mxu0
    %v3120 = vadd.f32 %v1582, %v3119
    %v3121 = vpop.f32.mrf.mxu0
    %v3122 = vadd.f32 %v1587, %v3121
    %3123 = vmatmul.bf16.gmra.mxu0 %v2161
    %v3124 = vpop.f32.mrf.mxu0
    %v3125 = vadd.f32 %v1592, %v3124
    %v3126 = vpop.f32.mrf.mxu0
    %v3127 = vadd.f32 %v1597, %v3126
    %3128 = vmatmul.bf16.gmra.mxu0 %v2165
    %v3129 = vpop.f32.mrf.mxu0
    %v3130 = vadd.f32 %v1602, %v3129
    %v3131 = vpop.f32.mrf.mxu0
    %v3132 = vadd.f32 %v1607, %v3131
    %3133 = vmatmul.bf16.gmra.mxu0 %v2169
    %v3134 = vpop.f32.mrf.mxu0
    %v3135 = vadd.f32 %v1612, %v3134
    %v3136 = vpop.f32.mrf.mxu0
    %v3137 = vadd.f32 %v1617, %v3136
    %3138 = vmatmul.bf16.gmra.mxu0 %v2173
    %v3139 = vpop.f32.mrf.mxu0
    %v3140 = vadd.f32 %v1622, %v3139
    %v3141 = vpop.f32.mrf.mxu0
    %v3142 = vadd.f32 %v1627, %v3141
    %3143 = vmatmul.bf16.gmra.mxu0 %v2177
    %v3144 = vpop.f32.mrf.mxu0
    %v3145 = vadd.f32 %v1632, %v3144
    %v3146 = vpop.f32.mrf.mxu0
    %v3147 = vadd.f32 %v1637, %v3146
    %3148 = vmatmul.bf16.gmra.mxu0 %v2181
    %v3149 = vpop.f32.mrf.mxu0
    %v3150 = vadd.f32 %v1642, %v3149
    %v3151 = vpop.f32.mrf.mxu0
    %v3152 = vadd.f32 %v1647, %v3151
    %3153 = vmatmul.bf16.gmra.mxu0 %v2185
    %v3154 = vpop.f32.mrf.mxu0
    %v3155 = vadd.f32 %v1652, %v3154
    %v3156 = vpop.f32.mrf.mxu0
    %v3157 = vadd.f32 %v1657, %v3156
    %3158 = vmatmul.bf16.gmra.mxu0 %v2189
    %v3159 = vpop.f32.mrf.mxu0
    %v3160 = vadd.f32 %v1662, %v3159
    %v3161 = vpop.f32.mrf.mxu0
    %v3162 = vadd.f32 %v1667, %v3161
    %3163 = vmatmul.bf16.gmra.mxu0 %v2193
    %v3164 = vpop.f32.mrf.mxu0
    %v3165 = vadd.f32 %v1672, %v3164
    %v3166 = vpop.f32.mrf.mxu0
    %v3167 = vadd.f32 %v1677, %v3166
    %3168 = vmatmul.bf16.gmra.mxu0 %v2197
    %v3169 = vpop.f32.mrf.mxu0
    %v3170 = vadd.f32 %v1682, %v3169
    %v3171 = vpop.f32.mrf.mxu0
    %v3172 = vadd.f32 %v1687, %v3171
    %3173 = vdwg.mxu0
    %3174 = vmatpush.bf16.msra.mxu0 %v1336
    %3175 = vmatpush.bf16.msra.mxu0 %v1334
    %3176 = vmatpush.bf16.msra.mxu0 %v1332
    %3177 = vmatpush.bf16.msra.mxu0 %v1330
    %3178 = vmatpush.bf16.msra.mxu0 %v1328
    %3179 = vmatpush.bf16.msra.mxu0 %v1326
    %3180 = vmatpush.bf16.msra.mxu0 %v1324
    %3181 = vmatpush.bf16.msra.mxu0 %v1322
    %3182 = vmatmul.bf16.gmra.mxu0 %v2074
    %v3183 = vpop.f32.mrf.mxu0
    %v3184 = vadd.f32 %v3015, %v3183
    %v3185 = vpop.f32.mrf.mxu0
    %v3186 = vadd.f32 %v3017, %v3185
    %3187 = vmatmul.bf16.gmra.mxu0 %v2078
    %v3188 = vpop.f32.mrf.mxu0
    %v3189 = vadd.f32 %v3020, %v3188
    %v3190 = vpop.f32.mrf.mxu0
    %v3191 = vadd.f32 %v3022, %v3190
    %3192 = vmatmul.bf16.gmra.mxu0 %v2082
    %v3193 = vpop.f32.mrf.mxu0
    %v3194 = vadd.f32 %v3025, %v3193
    %v3195 = vpop.f32.mrf.mxu0
    %v3196 = vadd.f32 %v3027, %v3195
    %3197 = vmatmul.bf16.gmra.mxu0 %v2086
    %v3198 = vpop.f32.mrf.mxu0
    %v3199 = vadd.f32 %v3030, %v3198
    %v3200 = vpop.f32.mrf.mxu0
    %v3201 = vadd.f32 %v3032, %v3200
    %3202 = vmatmul.bf16.gmra.mxu0 %v2090
    %v3203 = vpop.f32.mrf.mxu0
    %v3204 = vadd.f32 %v3035, %v3203
    %v3205 = vpop.f32.mrf.mxu0
    %v3206 = vadd.f32 %v3037, %v3205
    %3207 = vmatmul.bf16.gmra.mxu0 %v2094
    %v3208 = vpop.f32.mrf.mxu0
    %v3209 = vadd.f32 %v3040, %v3208
    %v3210 = vpop.f32.mrf.mxu0
    %v3211 = vadd.f32 %v3042, %v3210
    %3212 = vmatmul.bf16.gmra.mxu0 %v2098
    %v3213 = vpop.f32.mrf.mxu0
    %v3214 = vadd.f32 %v3045, %v3213
    %v3215 = vpop.f32.mrf.mxu0
    %v3216 = vadd.f32 %v3047, %v3215
    %3217 = vmatmul.bf16.gmra.mxu0 %v2102
    %v3218 = vpop.f32.mrf.mxu0
    %v3219 = vadd.f32 %v3050, %v3218
    %v3220 = vpop.f32.mrf.mxu0
    %v3221 = vadd.f32 %v3052, %v3220
    %3222 = vmatmul.bf16.gmra.mxu0 %v2106
    %v3223 = vpop.f32.mrf.mxu0
    %v3224 = vadd.f32 %v3055, %v3223
    %v3225 = vpop.f32.mrf.mxu0
    %v3226 = vadd.f32 %v3057, %v3225
    %3227 = vmatmul.bf16.gmra.mxu0 %v2110
    %v3228 = vpop.f32.mrf.mxu0
    %v3229 = vadd.f32 %v3060, %v3228
    %v3230 = vpop.f32.mrf.mxu0
    %v3231 = vadd.f32 %v3062, %v3230
    %3232 = vmatmul.bf16.gmra.mxu0 %v2114
    %v3233 = vpop.f32.mrf.mxu0
    %v3234 = vadd.f32 %v3065, %v3233
    %v3235 = vpop.f32.mrf.mxu0
    %v3236 = vadd.f32 %v3067, %v3235
    %3237 = vmatmul.bf16.gmra.mxu0 %v2118
    %v3238 = vpop.f32.mrf.mxu0
    %v3239 = vadd.f32 %v3070, %v3238
    %v3240 = vpop.f32.mrf.mxu0
    %v3241 = vadd.f32 %v3072, %v3240
    %3242 = vmatmul.bf16.gmra.mxu0 %v2122
    %v3243 = vpop.f32.mrf.mxu0
    %v3244 = vadd.f32 %v3075, %v3243
    %v3245 = vpop.f32.mrf.mxu0
    %v3246 = vadd.f32 %v3077, %v3245
    %3247 = vmatmul.bf16.gmra.mxu0 %v2126
    %v3248 = vpop.f32.mrf.mxu0
    %v3249 = vadd.f32 %v3080, %v3248
    %v3250 = vpop.f32.mrf.mxu0
    %v3251 = vadd.f32 %v3082, %v3250
    %3252 = vmatmul.bf16.gmra.mxu0 %v2130
    %v3253 = vpop.f32.mrf.mxu0
    %v3254 = vadd.f32 %v3085, %v3253
    %v3255 = vpop.f32.mrf.mxu0
    %v3256 = vadd.f32 %v3087, %v3255
    %3257 = vmatmul.bf16.gmra.mxu0 %v2134
    %v3258 = vpop.f32.mrf.mxu0
    %v3259 = vadd.f32 %v3090, %v3258
    %v3260 = vpop.f32.mrf.mxu0
    %v3261 = vadd.f32 %v3092, %v3260
    %3262 = vmatmul.bf16.gmra.mxu0 %v2138
    %v3263 = vpop.f32.mrf.mxu0
    %v3264 = vadd.f32 %v3095, %v3263
    %v3265 = vpop.f32.mrf.mxu0
    %v3266 = vadd.f32 %v3097, %v3265
    %3267 = vmatmul.bf16.gmra.mxu0 %v2142
    %v3268 = vpop.f32.mrf.mxu0
    %v3269 = vadd.f32 %v3100, %v3268
    %v3270 = vpop.f32.mrf.mxu0
    %v3271 = vadd.f32 %v3102, %v3270
    %3272 = vmatmul.bf16.gmra.mxu0 %v2146
    %v3273 = vpop.f32.mrf.mxu0
    %v3274 = vadd.f32 %v3105, %v3273
    %v3275 = vpop.f32.mrf.mxu0
    %v3276 = vadd.f32 %v3107, %v3275
    %3277 = vmatmul.bf16.gmra.mxu0 %v2150
    %v3278 = vpop.f32.mrf.mxu0
    %v3279 = vadd.f32 %v3110, %v3278
    %v3280 = vpop.f32.mrf.mxu0
    %v3281 = vadd.f32 %v3112, %v3280
    %3282 = vmatmul.bf16.gmra.mxu0 %v2154
    %v3283 = vpop.f32.mrf.mxu0
    %v3284 = vadd.f32 %v3115, %v3283
    %v3285 = vpop.f32.mrf.mxu0
    %v3286 = vadd.f32 %v3117, %v3285
    %3287 = vmatmul.bf16.gmra.mxu0 %v2158
    %v3288 = vpop.f32.mrf.mxu0
    %v3289 = vadd.f32 %v3120, %v3288
    %v3290 = vpop.f32.mrf.mxu0
    %v3291 = vadd.f32 %v3122, %v3290
    %3292 = vmatmul.bf16.gmra.mxu0 %v2162
    %v3293 = vpop.f32.mrf.mxu0
    %v3294 = vadd.f32 %v3125, %v3293
    %v3295 = vpop.f32.mrf.mxu0
    %v3296 = vadd.f32 %v3127, %v3295
    %3297 = vmatmul.bf16.gmra.mxu0 %v2166
    %v3298 = vpop.f32.mrf.mxu0
    %v3299 = vadd.f32 %v3130, %v3298
    %v3300 = vpop.f32.mrf.mxu0
    %v3301 = vadd.f32 %v3132, %v3300
    %3302 = vmatmul.bf16.gmra.mxu0 %v2170
    %v3303 = vpop.f32.mrf.mxu0
    %v3304 = vadd.f32 %v3135, %v3303
    %v3305 = vpop.f32.mrf.mxu0
    %v3306 = vadd.f32 %v3137, %v3305
    %3307 = vmatmul.bf16.gmra.mxu0 %v2174
    %v3308 = vpop.f32.mrf.mxu0
    %v3309 = vadd.f32 %v3140, %v3308
    %v3310 = vpop.f32.mrf.mxu0
    %v3311 = vadd.f32 %v3142, %v3310
    %3312 = vmatmul.bf16.gmra.mxu0 %v2178
    %v3313 = vpop.f32.mrf.mxu0
    %v3314 = vadd.f32 %v3145, %v3313
    %v3315 = vpop.f32.mrf.mxu0
    %v3316 = vadd.f32 %v3147, %v3315
    %3317 = vmatmul.bf16.gmra.mxu0 %v2182
    %v3318 = vpop.f32.mrf.mxu0
    %v3319 = vadd.f32 %v3150, %v3318
    %v3320 = vpop.f32.mrf.mxu0
    %v3321 = vadd.f32 %v3152, %v3320
    %3322 = vmatmul.bf16.gmra.mxu0 %v2186
    %v3323 = vpop.f32.mrf.mxu0
    %v3324 = vadd.f32 %v3155, %v3323
    %v3325 = vpop.f32.mrf.mxu0
    %v3326 = vadd.f32 %v3157, %v3325
    %3327 = vmatmul.bf16.gmra.mxu0 %v2190
    %v3328 = vpop.f32.mrf.mxu0
    %v3329 = vadd.f32 %v3160, %v3328
    %v3330 = vpop.f32.mrf.mxu0
    %v3331 = vadd.f32 %v3162, %v3330
    %3332 = vmatmul.bf16.gmra.mxu0 %v2194
    %v3333 = vpop.f32.mrf.mxu0
    %v3334 = vadd.f32 %v3165, %v3333
    %v3335 = vpop.f32.mrf.mxu0
    %v3336 = vadd.f32 %v3167, %v3335
    %3337 = vmatmul.bf16.gmra.mxu0 %v2198
    %v3338 = vpop.f32.mrf.mxu0
    %v3339 = vadd.f32 %v3170, %v3338
    %v3340 = vpop.f32.mrf.mxu0
    %v3341 = vadd.f32 %v3172, %v3340
    %3342 = vdwg.mxu0
    %3343 = vmatpush.bf16.msra.mxu0 %v1352
    %3344 = vmatpush.bf16.msra.mxu0 %v1350
    %3345 = vmatpush.bf16.msra.mxu0 %v1348
    %3346 = vmatpush.bf16.msra.mxu0 %v1346
    %3347 = vmatpush.bf16.msra.mxu0 %v1344
    %3348 = vmatpush.bf16.msra.mxu0 %v1342
    %3349 = vmatpush.bf16.msra.mxu0 %v1340
    %3350 = vmatpush.bf16.msra.mxu0 %v1338
    %3351 = vmatmul.bf16.gmra.mxu0 %v2075
    %v3352 = vpop.f32.mrf.mxu0
    %v3353 = vadd.f32 %v3184, %v3352
    %v3354 = vpop.f32.mrf.mxu0
    %v3355 = vadd.f32 %v3186, %v3354
    %3356 = vmatmul.bf16.gmra.mxu0 %v2079
    %v3357 = vpop.f32.mrf.mxu0
    %v3358 = vadd.f32 %v3189, %v3357
    %v3359 = vpop.f32.mrf.mxu0
    %v3360 = vadd.f32 %v3191, %v3359
    %3361 = vmatmul.bf16.gmra.mxu0 %v2083
    %v3362 = vpop.f32.mrf.mxu0
    %v3363 = vadd.f32 %v3194, %v3362
    %v3364 = vpop.f32.mrf.mxu0
    %v3365 = vadd.f32 %v3196, %v3364
    %3366 = vmatmul.bf16.gmra.mxu0 %v2087
    %v3367 = vpop.f32.mrf.mxu0
    %v3368 = vadd.f32 %v3199, %v3367
    %v3369 = vpop.f32.mrf.mxu0
    %v3370 = vadd.f32 %v3201, %v3369
    %3371 = vmatmul.bf16.gmra.mxu0 %v2091
    %v3372 = vpop.f32.mrf.mxu0
    %v3373 = vadd.f32 %v3204, %v3372
    %v3374 = vpop.f32.mrf.mxu0
    %v3375 = vadd.f32 %v3206, %v3374
    %3376 = vmatmul.bf16.gmra.mxu0 %v2095
    %v3377 = vpop.f32.mrf.mxu0
    %v3378 = vadd.f32 %v3209, %v3377
    %v3379 = vpop.f32.mrf.mxu0
    %v3380 = vadd.f32 %v3211, %v3379
    %3381 = vmatmul.bf16.gmra.mxu0 %v2099
    %v3382 = vpop.f32.mrf.mxu0
    %v3383 = vadd.f32 %v3214, %v3382
    %v3384 = vpop.f32.mrf.mxu0
    %v3385 = vadd.f32 %v3216, %v3384
    %3386 = vmatmul.bf16.gmra.mxu0 %v2103
    %v3387 = vpop.f32.mrf.mxu0
    %v3388 = vadd.f32 %v3219, %v3387
    %v3389 = vpop.f32.mrf.mxu0
    %v3390 = vadd.f32 %v3221, %v3389
    %3391 = vmatmul.bf16.gmra.mxu0 %v2107
    %v3392 = vpop.f32.mrf.mxu0
    %v3393 = vadd.f32 %v3224, %v3392
    %v3394 = vpop.f32.mrf.mxu0
    %v3395 = vadd.f32 %v3226, %v3394
    %3396 = vmatmul.bf16.gmra.mxu0 %v2111
    %v3397 = vpop.f32.mrf.mxu0
    %v3398 = vadd.f32 %v3229, %v3397
    %v3399 = vpop.f32.mrf.mxu0
    %v3400 = vadd.f32 %v3231, %v3399
    %3401 = vmatmul.bf16.gmra.mxu0 %v2115
    %v3402 = vpop.f32.mrf.mxu0
    %v3403 = vadd.f32 %v3234, %v3402
    %v3404 = vpop.f32.mrf.mxu0
    %v3405 = vadd.f32 %v3236, %v3404
    %3406 = vmatmul.bf16.gmra.mxu0 %v2119
    %v3407 = vpop.f32.mrf.mxu0
    %v3408 = vadd.f32 %v3239, %v3407
    %v3409 = vpop.f32.mrf.mxu0
    %v3410 = vadd.f32 %v3241, %v3409
    %3411 = vmatmul.bf16.gmra.mxu0 %v2123
    %v3412 = vpop.f32.mrf.mxu0
    %v3413 = vadd.f32 %v3244, %v3412
    %v3414 = vpop.f32.mrf.mxu0
    %v3415 = vadd.f32 %v3246, %v3414
    %3416 = vmatmul.bf16.gmra.mxu0 %v2127
    %v3417 = vpop.f32.mrf.mxu0
    %v3418 = vadd.f32 %v3249, %v3417
    %v3419 = vpop.f32.mrf.mxu0
    %v3420 = vadd.f32 %v3251, %v3419
    %3421 = vmatmul.bf16.gmra.mxu0 %v2131
    %v3422 = vpop.f32.mrf.mxu0
    %v3423 = vadd.f32 %v3254, %v3422
    %v3424 = vpop.f32.mrf.mxu0
    %v3425 = vadd.f32 %v3256, %v3424
    %3426 = vmatmul.bf16.gmra.mxu0 %v2135
    %v3427 = vpop.f32.mrf.mxu0
    %v3428 = vadd.f32 %v3259, %v3427
    %v3429 = vpop.f32.mrf.mxu0
    %v3430 = vadd.f32 %v3261, %v3429
    %3431 = vmatmul.bf16.gmra.mxu0 %v2139
    %v3432 = vpop.f32.mrf.mxu0
    %v3433 = vadd.f32 %v3264, %v3432
    %v3434 = vpop.f32.mrf.mxu0
    %v3435 = vadd.f32 %v3266, %v3434
    %3436 = vmatmul.bf16.gmra.mxu0 %v2143
    %v3437 = vpop.f32.mrf.mxu0
    %v3438 = vadd.f32 %v3269, %v3437
    %v3439 = vpop.f32.mrf.mxu0
    %v3440 = vadd.f32 %v3271, %v3439
    %3441 = vmatmul.bf16.gmra.mxu0 %v2147
    %v3442 = vpop.f32.mrf.mxu0
    %v3443 = vadd.f32 %v3274, %v3442
    %v3444 = vpop.f32.mrf.mxu0
    %v3445 = vadd.f32 %v3276, %v3444
    %3446 = vmatmul.bf16.gmra.mxu0 %v2151
    %v3447 = vpop.f32.mrf.mxu0
    %v3448 = vadd.f32 %v3279, %v3447
    %v3449 = vpop.f32.mrf.mxu0
    %v3450 = vadd.f32 %v3281, %v3449
    %3451 = vmatmul.bf16.gmra.mxu0 %v2155
    %v3452 = vpop.f32.mrf.mxu0
    %v3453 = vadd.f32 %v3284, %v3452
    %v3454 = vpop.f32.mrf.mxu0
    %v3455 = vadd.f32 %v3286, %v3454
    %3456 = vmatmul.bf16.gmra.mxu0 %v2159
    %v3457 = vpop.f32.mrf.mxu0
    %v3458 = vadd.f32 %v3289, %v3457
    %v3459 = vpop.f32.mrf.mxu0
    %v3460 = vadd.f32 %v3291, %v3459
    %3461 = vmatmul.bf16.gmra.mxu0 %v2163
    %v3462 = vpop.f32.mrf.mxu0
    %v3463 = vadd.f32 %v3294, %v3462
    %v3464 = vpop.f32.mrf.mxu0
    %v3465 = vadd.f32 %v3296, %v3464
    %3466 = vmatmul.bf16.gmra.mxu0 %v2167
    %v3467 = vpop.f32.mrf.mxu0
    %v3468 = vadd.f32 %v3299, %v3467
    %v3469 = vpop.f32.mrf.mxu0
    %v3470 = vadd.f32 %v3301, %v3469
    %3471 = vmatmul.bf16.gmra.mxu0 %v2171
    %v3472 = vpop.f32.mrf.mxu0
    %v3473 = vadd.f32 %v3304, %v3472
    %v3474 = vpop.f32.mrf.mxu0
    %v3475 = vadd.f32 %v3306, %v3474
    %3476 = vmatmul.bf16.gmra.mxu0 %v2175
    %v3477 = vpop.f32.mrf.mxu0
    %v3478 = vadd.f32 %v3309, %v3477
    %v3479 = vpop.f32.mrf.mxu0
    %v3480 = vadd.f32 %v3311, %v3479
    %3481 = vmatmul.bf16.gmra.mxu0 %v2179
    %v3482 = vpop.f32.mrf.mxu0
    %v3483 = vadd.f32 %v3314, %v3482
    %v3484 = vpop.f32.mrf.mxu0
    %v3485 = vadd.f32 %v3316, %v3484
    %3486 = vmatmul.bf16.gmra.mxu0 %v2183
    %v3487 = vpop.f32.mrf.mxu0
    %v3488 = vadd.f32 %v3319, %v3487
    %v3489 = vpop.f32.mrf.mxu0
    %v3490 = vadd.f32 %v3321, %v3489
    %3491 = vmatmul.bf16.gmra.mxu0 %v2187
    %v3492 = vpop.f32.mrf.mxu0
    %v3493 = vadd.f32 %v3324, %v3492
    %v3494 = vpop.f32.mrf.mxu0
    %v3495 = vadd.f32 %v3326, %v3494
    %3496 = vmatmul.bf16.gmra.mxu0 %v2191
    %v3497 = vpop.f32.mrf.mxu0
    %v3498 = vadd.f32 %v3329, %v3497
    %v3499 = vpop.f32.mrf.mxu0
    %v3500 = vadd.f32 %v3331, %v3499
    %3501 = vmatmul.bf16.gmra.mxu0 %v2195
    %v3502 = vpop.f32.mrf.mxu0
    %v3503 = vadd.f32 %v3334, %v3502
    %v3504 = vpop.f32.mrf.mxu0
    %v3505 = vadd.f32 %v3336, %v3504
    %3506 = vmatmul.bf16.gmra.mxu0 %v2199
    %v3507 = vpop.f32.mrf.mxu0
    %v3508 = vadd.f32 %v3339, %v3507
    %v3509 = vpop.f32.mrf.mxu0
    %v3510 = vadd.f32 %v3341, %v3509
    %3511 = vdwg.mxu0
    %3512 = vmatpush.bf16.msra.mxu0 %v1368
    %3513 = vmatpush.bf16.msra.mxu0 %v1366
    %3514 = vmatpush.bf16.msra.mxu0 %v1364
    %3515 = vmatpush.bf16.msra.mxu0 %v1362
    %3516 = vmatpush.bf16.msra.mxu0 %v1360
    %3517 = vmatpush.bf16.msra.mxu0 %v1358
    %3518 = vmatpush.bf16.msra.mxu0 %v1356
    %3519 = vmatpush.bf16.msra.mxu0 %v1354
    %3520 = vmatmul.bf16.gmra.mxu0 %v2076
    %v3521 = vpop.f32.mrf.mxu0
    %v3522 = vadd.f32 %v3353, %v3521
    %v3523 = vpop.f32.mrf.mxu0
    %v3524 = vadd.f32 %v3355, %v3523
    %3525 = vmatmul.bf16.gmra.mxu0 %v2080
    %v3526 = vpop.f32.mrf.mxu0
    %v3527 = vadd.f32 %v3358, %v3526
    %v3528 = vpop.f32.mrf.mxu0
    %v3529 = vadd.f32 %v3360, %v3528
    %3530 = vmatmul.bf16.gmra.mxu0 %v2084
    %v3531 = vpop.f32.mrf.mxu0
    %v3532 = vadd.f32 %v3363, %v3531
    %v3533 = vpop.f32.mrf.mxu0
    %v3534 = vadd.f32 %v3365, %v3533
    %3535 = vmatmul.bf16.gmra.mxu0 %v2088
    %v3536 = vpop.f32.mrf.mxu0
    %v3537 = vadd.f32 %v3368, %v3536
    %v3538 = vpop.f32.mrf.mxu0
    %v3539 = vadd.f32 %v3370, %v3538
    %3540 = vmatmul.bf16.gmra.mxu0 %v2092
    %v3541 = vpop.f32.mrf.mxu0
    %v3542 = vadd.f32 %v3373, %v3541
    %v3543 = vpop.f32.mrf.mxu0
    %v3544 = vadd.f32 %v3375, %v3543
    %3545 = vmatmul.bf16.gmra.mxu0 %v2096
    %v3546 = vpop.f32.mrf.mxu0
    %v3547 = vadd.f32 %v3378, %v3546
    %v3548 = vpop.f32.mrf.mxu0
    %v3549 = vadd.f32 %v3380, %v3548
    %3550 = vmatmul.bf16.gmra.mxu0 %v2100
    %v3551 = vpop.f32.mrf.mxu0
    %v3552 = vadd.f32 %v3383, %v3551
    %v3553 = vpop.f32.mrf.mxu0
    %v3554 = vadd.f32 %v3385, %v3553
    %3555 = vmatmul.bf16.gmra.mxu0 %v2104
    %v3556 = vpop.f32.mrf.mxu0
    %v3557 = vadd.f32 %v3388, %v3556
    %v3558 = vpop.f32.mrf.mxu0
    %v3559 = vadd.f32 %v3390, %v3558
    %3560 = vmatmul.bf16.gmra.mxu0 %v2108
    %v3561 = vpop.f32.mrf.mxu0
    %v3562 = vadd.f32 %v3393, %v3561
    %v3563 = vpop.f32.mrf.mxu0
    %v3564 = vadd.f32 %v3395, %v3563
    %3565 = vmatmul.bf16.gmra.mxu0 %v2112
    %v3566 = vpop.f32.mrf.mxu0
    %v3567 = vadd.f32 %v3398, %v3566
    %v3568 = vpop.f32.mrf.mxu0
    %v3569 = vadd.f32 %v3400, %v3568
    %3570 = vmatmul.bf16.gmra.mxu0 %v2116
    %v3571 = vpop.f32.mrf.mxu0
    %v3572 = vadd.f32 %v3403, %v3571
    %v3573 = vpop.f32.mrf.mxu0
    %v3574 = vadd.f32 %v3405, %v3573
    %3575 = vmatmul.bf16.gmra.mxu0 %v2120
    %v3576 = vpop.f32.mrf.mxu0
    %v3577 = vadd.f32 %v3408, %v3576
    %v3578 = vpop.f32.mrf.mxu0
    %v3579 = vadd.f32 %v3410, %v3578
    %3580 = vmatmul.bf16.gmra.mxu0 %v2124
    %v3581 = vpop.f32.mrf.mxu0
    %v3582 = vadd.f32 %v3413, %v3581
    %v3583 = vpop.f32.mrf.mxu0
    %v3584 = vadd.f32 %v3415, %v3583
    %3585 = vmatmul.bf16.gmra.mxu0 %v2128
    %v3586 = vpop.f32.mrf.mxu0
    %v3587 = vadd.f32 %v3418, %v3586
    %v3588 = vpop.f32.mrf.mxu0
    %v3589 = vadd.f32 %v3420, %v3588
    %3590 = vmatmul.bf16.gmra.mxu0 %v2132
    %v3591 = vpop.f32.mrf.mxu0
    %v3592 = vadd.f32 %v3423, %v3591
    %v3593 = vpop.f32.mrf.mxu0
    %v3594 = vadd.f32 %v3425, %v3593
    %3595 = vmatmul.bf16.gmra.mxu0 %v2136
    %v3596 = vpop.f32.mrf.mxu0
    %v3597 = vadd.f32 %v3428, %v3596
    %v3598 = vpop.f32.mrf.mxu0
    %v3599 = vadd.f32 %v3430, %v3598
    %3600 = vmatmul.bf16.gmra.mxu0 %v2140
    %v3601 = vpop.f32.mrf.mxu0
    %v3602 = vadd.f32 %v3433, %v3601
    %v3603 = vpop.f32.mrf.mxu0
    %v3604 = vadd.f32 %v3435, %v3603
    %3605 = vmatmul.bf16.gmra.mxu0 %v2144
    %v3606 = vpop.f32.mrf.mxu0
    %v3607 = vadd.f32 %v3438, %v3606
    %v3608 = vpop.f32.mrf.mxu0
    %v3609 = vadd.f32 %v3440, %v3608
    %3610 = vmatmul.bf16.gmra.mxu0 %v2148
    %v3611 = vpop.f32.mrf.mxu0
    %v3612 = vadd.f32 %v3443, %v3611
    %v3613 = vpop.f32.mrf.mxu0
    %v3614 = vadd.f32 %v3445, %v3613
    %3615 = vmatmul.bf16.gmra.mxu0 %v2152
    %v3616 = vpop.f32.mrf.mxu0
    %v3617 = vadd.f32 %v3448, %v3616
    %v3618 = vpop.f32.mrf.mxu0
    %v3619 = vadd.f32 %v3450, %v3618
    %3620 = vmatmul.bf16.gmra.mxu0 %v2156
    %v3621 = vpop.f32.mrf.mxu0
    %v3622 = vadd.f32 %v3453, %v3621
    %v3623 = vpop.f32.mrf.mxu0
    %v3624 = vadd.f32 %v3455, %v3623
    %3625 = vmatmul.bf16.gmra.mxu0 %v2160
    %v3626 = vpop.f32.mrf.mxu0
    %v3627 = vadd.f32 %v3458, %v3626
    %v3628 = vpop.f32.mrf.mxu0
    %v3629 = vadd.f32 %v3460, %v3628
    %3630 = vmatmul.bf16.gmra.mxu0 %v2164
    %v3631 = vpop.f32.mrf.mxu0
    %v3632 = vadd.f32 %v3463, %v3631
    %v3633 = vpop.f32.mrf.mxu0
    %v3634 = vadd.f32 %v3465, %v3633
    %3635 = vmatmul.bf16.gmra.mxu0 %v2168
    %v3636 = vpop.f32.mrf.mxu0
    %v3637 = vadd.f32 %v3468, %v3636
    %v3638 = vpop.f32.mrf.mxu0
    %v3639 = vadd.f32 %v3470, %v3638
    %3640 = vmatmul.bf16.gmra.mxu0 %v2172
    %v3641 = vpop.f32.mrf.mxu0
    %v3642 = vadd.f32 %v3473, %v3641
    %v3643 = vpop.f32.mrf.mxu0
    %v3644 = vadd.f32 %v3475, %v3643
    %3645 = vmatmul.bf16.gmra.mxu0 %v2176
    %v3646 = vpop.f32.mrf.mxu0
    %v3647 = vadd.f32 %v3478, %v3646
    %v3648 = vpop.f32.mrf.mxu0
    %v3649 = vadd.f32 %v3480, %v3648
    %3650 = vmatmul.bf16.gmra.mxu0 %v2180
    %v3651 = vpop.f32.mrf.mxu0
    %v3652 = vadd.f32 %v3483, %v3651
    %v3653 = vpop.f32.mrf.mxu0
    %v3654 = vadd.f32 %v3485, %v3653
    %3655 = vmatmul.bf16.gmra.mxu0 %v2184
    %v3656 = vpop.f32.mrf.mxu0
    %v3657 = vadd.f32 %v3488, %v3656
    %v3658 = vpop.f32.mrf.mxu0
    %v3659 = vadd.f32 %v3490, %v3658
    %3660 = vmatmul.bf16.gmra.mxu0 %v2188
    %v3661 = vpop.f32.mrf.mxu0
    %v3662 = vadd.f32 %v3493, %v3661
    %v3663 = vpop.f32.mrf.mxu0
    %v3664 = vadd.f32 %v3495, %v3663
    %3665 = vmatmul.bf16.gmra.mxu0 %v2192
    %v3666 = vpop.f32.mrf.mxu0
    %v3667 = vadd.f32 %v3498, %v3666
    %v3668 = vpop.f32.mrf.mxu0
    %v3669 = vadd.f32 %v3500, %v3668
    %3670 = vmatmul.bf16.gmra.mxu0 %v2196
    %v3671 = vpop.f32.mrf.mxu0
    %v3672 = vadd.f32 %v3503, %v3671
    %v3673 = vpop.f32.mrf.mxu0
    %v3674 = vadd.f32 %v3505, %v3673
    %3675 = vmatmul.bf16.gmra.mxu0 %v2200
    %v3676 = vpop.f32.mrf.mxu0
    %v3677 = vadd.f32 %v3508, %v3676
    %v3678 = vpop.f32.mrf.mxu0
    %v3679 = vadd.f32 %v3510, %v3678
    %3680 = vdwg.mxu0
    %v3681 = vpack.c.bf16 %v3522, %v2846
    %v3682 = vpack.c.bf16 %v3524, %v2848
    %v3683 = vpack.c.bf16 %v3527, %v2851
    %v3684 = vpack.c.bf16 %v3529, %v2853
    %v3685 = vpack.c.bf16 %v3532, %v2856
    %v3686 = vpack.c.bf16 %v3534, %v2858
    %v3687 = vpack.c.bf16 %v3537, %v2861
    %v3688 = vpack.c.bf16 %v3539, %v2863
    %v3689 = vpack.c.bf16 %v3542, %v2866
    %v3690 = vpack.c.bf16 %v3544, %v2868
    %v3691 = vpack.c.bf16 %v3547, %v2871
    %v3692 = vpack.c.bf16 %v3549, %v2873
    %v3693 = vpack.c.bf16 %v3552, %v2876
    %v3694 = vpack.c.bf16 %v3554, %v2878
    %v3695 = vpack.c.bf16 %v3557, %v2881
    %v3696 = vpack.c.bf16 %v3559, %v2883
    %v3697 = vpack.c.bf16 %v3562, %v2886
    %v3698 = vpack.c.bf16 %v3564, %v2888
    %v3699 = vpack.c.bf16 %v3567, %v2891
    %v3700 = vpack.c.bf16 %v3569, %v2893
    %v3701 = vpack.c.bf16 %v3572, %v2896
    %v3702 = vpack.c.bf16 %v3574, %v2898
    %v3703 = vpack.c.bf16 %v3577, %v2901
    %v3704 = vpack.c.bf16 %v3579, %v2903
    %v3705 = vpack.c.bf16 %v3582, %v2906
    %v3706 = vpack.c.bf16 %v3584, %v2908
    %v3707 = vpack.c.bf16 %v3587, %v2911
    %v3708 = vpack.c.bf16 %v3589, %v2913
    %v3709 = vpack.c.bf16 %v3592, %v2916
    %v3710 = vpack.c.bf16 %v3594, %v2918
    %v3711 = vpack.c.bf16 %v3597, %v2921
    %v3712 = vpack.c.bf16 %v3599, %v2923
    %v3713 = vpack.c.bf16 %v3602, %v2926
    %v3714 = vpack.c.bf16 %v3604, %v2928
    %v3715 = vpack.c.bf16 %v3607, %v2931
    %v3716 = vpack.c.bf16 %v3609, %v2933
    %v3717 = vpack.c.bf16 %v3612, %v2936
    %v3718 = vpack.c.bf16 %v3614, %v2938
    %v3719 = vpack.c.bf16 %v3617, %v2941
    %v3720 = vpack.c.bf16 %v3619, %v2943
    %v3721 = vpack.c.bf16 %v3622, %v2946
    %v3722 = vpack.c.bf16 %v3624, %v2948
    %v3723 = vpack.c.bf16 %v3627, %v2951
    %v3724 = vpack.c.bf16 %v3629, %v2953
    %v3725 = vpack.c.bf16 %v3632, %v2956
    %v3726 = vpack.c.bf16 %v3634, %v2958
    %v3727 = vpack.c.bf16 %v3637, %v2961
    %v3728 = vpack.c.bf16 %v3639, %v2963
    %v3729 = vpack.c.bf16 %v3642, %v2966
    %v3730 = vpack.c.bf16 %v3644, %v2968
    %v3731 = vpack.c.bf16 %v3647, %v2971
    %v3732 = vpack.c.bf16 %v3649, %v2973
    %v3733 = vpack.c.bf16 %v3652, %v2976
    %v3734 = vpack.c.bf16 %v3654, %v2978
    %v3735 = vpack.c.bf16 %v3657, %v2981
    %v3736 = vpack.c.bf16 %v3659, %v2983
    %v3737 = vpack.c.bf16 %v3662, %v2986
    %v3738 = vpack.c.bf16 %v3664, %v2988
    %v3739 = vpack.c.bf16 %v3667, %v2991
    %v3740 = vpack.c.bf16 %v3669, %v2993
    %v3741 = vpack.c.bf16 %v3672, %v2996
    %v3742 = vpack.c.bf16 %v3674, %v2998
    %v3743 = vpack.c.bf16 %v3677, %v3001
    %v3744 = vpack.c.bf16 %v3679, %v3003
    %3745 = vst [vmem:[#allocation7] sm:$0xff] %v3681
    %3746 = vst [vmem:[#allocation7 + $0x8] sm:$0xff] %v3682
    %3747 = vst [vmem:[#allocation7 + $0x10] sm:$0xff] %v3683
    %3748 = vst [vmem:[#allocation7 + $0x18] sm:$0xff] %v3684
    %3749 = vst [vmem:[#allocation7 + $0x20] sm:$0xff] %v3685
    %3750 = vst [vmem:[#allocation7 + $0x28] sm:$0xff] %v3686
    %3751 = vst [vmem:[#allocation7 + $0x30] sm:$0xff] %v3687
    %3752 = vst [vmem:[#allocation7 + $0x38] sm:$0xff] %v3688
    %3753 = vst [vmem:[#allocation7 + $0x40] sm:$0xff] %v3689
    %3754 = vst [vmem:[#allocation7 + $0x48] sm:$0xff] %v3690
    %3755 = vst [vmem:[#allocation7 + $0x50] sm:$0xff] %v3691
    %3756 = vst [vmem:[#allocation7 + $0x58] sm:$0xff] %v3692
    %3757 = vst [vmem:[#allocation7 + $0x60] sm:$0xff] %v3693
    %3758 = vst [vmem:[#allocation7 + $0x68] sm:$0xff] %v3694
    %3759 = vst [vmem:[#allocation7 + $0x70] sm:$0xff] %v3695
    %3760 = vst [vmem:[#allocation7 + $0x78] sm:$0xff] %v3696
    %3761 = vst [vmem:[#allocation7 + $0x80] sm:$0xff] %v3697
    %3762 = vst [vmem:[#allocation7 + $0x88] sm:$0xff] %v3698
    %3763 = vst [vmem:[#allocation7 + $0x90] sm:$0xff] %v3699
    %3764 = vst [vmem:[#allocation7 + $0x98] sm:$0xff] %v3700
    %3765 = vst [vmem:[#allocation7 + $0xa0] sm:$0xff] %v3701
    %3766 = vst [vmem:[#allocation7 + $0xa8] sm:$0xff] %v3702
    %3767 = vst [vmem:[#allocation7 + $0xb0] sm:$0xff] %v3703
    %3768 = vst [vmem:[#allocation7 + $0xb8] sm:$0xff] %v3704
    %3769 = vst [vmem:[#allocation7 + $0xc0] sm:$0xff] %v3705
    %3770 = vst [vmem:[#allocation7 + $0xc8] sm:$0xff] %v3706
    %3771 = vst [vmem:[#allocation7 + $0xd0] sm:$0xff] %v3707
    %3772 = vst [vmem:[#allocation7 + $0xd8] sm:$0xff] %v3708
    %3773 = vst [vmem:[#allocation7 + $0xe0] sm:$0xff] %v3709
    %3774 = vst [vmem:[#allocation7 + $0xe8] sm:$0xff] %v3710
    %3775 = vst [vmem:[#allocation7 + $0xf0] sm:$0xff] %v3711
    %3776 = vst [vmem:[#allocation7 + $0xf8] sm:$0xff] %v3712
    %3777 = vst [vmem:[#allocation7 + $0x100] sm:$0xff] %v3713
    %3778 = vst [vmem:[#allocation7 + $0x108] sm:$0xff] %v3714
    %3779 = vst [vmem:[#allocation7 + $0x110] sm:$0xff] %v3715
    %3780 = vst [vmem:[#allocation7 + $0x118] sm:$0xff] %v3716
    %3781 = vst [vmem:[#allocation7 + $0x120] sm:$0xff] %v3717
    %3782 = vst [vmem:[#allocation7 + $0x128] sm:$0xff] %v3718
    %3783 = vst [vmem:[#allocation7 + $0x130] sm:$0xff] %v3719
    %3784 = vst [vmem:[#allocation7 + $0x138] sm:$0xff] %v3720
    %3785 = vst [vmem:[#allocation7 + $0x140] sm:$0xff] %v3721
    %3786 = vst [vmem:[#allocation7 + $0x148] sm:$0xff] %v3722
    %3787 = vst [vmem:[#allocation7 + $0x150] sm:$0xff] %v3723
    %3788 = vst [vmem:[#allocation7 + $0x158] sm:$0xff] %v3724
    %3789 = vst [vmem:[#allocation7 + $0x160] sm:$0xff] %v3725
    %3790 = vst [vmem:[#allocation7 + $0x168] sm:$0xff] %v3726
    %3791 = vst [vmem:[#allocation7 + $0x170] sm:$0xff] %v3727
    %3792 = vst [vmem:[#allocation7 + $0x178] sm:$0xff] %v3728
    %3793 = vst [vmem:[#allocation7 + $0x180] sm:$0xff] %v3729
    %3794 = vst [vmem:[#allocation7 + $0x188] sm:$0xff] %v3730
    %3795 = vst [vmem:[#allocation7 + $0x190] sm:$0xff] %v3731
    %3796 = vst [vmem:[#allocation7 + $0x198] sm:$0xff] %v3732
    %3797 = vst [vmem:[#allocation7 + $0x1a0] sm:$0xff] %v3733
    %3798 = vst [vmem:[#allocation7 + $0x1a8] sm:$0xff] %v3734
    %3799 = vst [vmem:[#allocation7 + $0x1b0] sm:$0xff] %v3735
    %3800 = vst [vmem:[#allocation7 + $0x1b8] sm:$0xff] %v3736
    %3801 = vst [vmem:[#allocation7 + $0x1c0] sm:$0xff] %v3737
    %3802 = vst [vmem:[#allocation7 + $0x1c8] sm:$0xff] %v3738
    %3803 = vst [vmem:[#allocation7 + $0x1d0] sm:$0xff] %v3739
    %3804 = vst [vmem:[#allocation7 + $0x1d8] sm:$0xff] %v3740
    %3805 = vst [vmem:[#allocation7 + $0x1e0] sm:$0xff] %v3741
    %3806 = vst [vmem:[#allocation7 + $0x1e8] sm:$0xff] %v3742
    %3807 = vst [vmem:[#allocation7 + $0x1f0] sm:$0xff] %v3743
    %3808 = vst [vmem:[#allocation7 + $0x1f8] sm:$0xff] %v3744
    %v3809 = vadd.f32 %v277, %v279
    %v3810 = vadd.f32 %v3809, %v281
    %v3811 = vadd.f32 %v3810, %v283
    %v3812 = vadd.f32 %v3811, %v285
    %v3813 = vadd.f32 %v3812, %v287
    %v3814 = vadd.f32 %v3813, %v289
    %v3815 = vadd.f32 %v3814, %v291
    %v3816 = vadd.f32 %v3815, %v293
    %v3817 = vadd.f32 %v3816, %v295
    %v3818 = vadd.f32 %v3817, %v297
    %v3819 = vadd.f32 %v3818, %v299
    %v3820 = vadd.f32 %v3819, %v301
    %v3821 = vadd.f32 %v3820, %v303
    %v3822 = vadd.f32 %v3821, %v305
    %v3823 = vadd.f32 %v3822, %v307
    %v3824 = vadd.f32 %v3823, %v309
    %v3825 = vadd.f32 %v3824, %v311
    %v3826 = vadd.f32 %v3825, %v313
    %v3827 = vadd.f32 %v3826, %v315
    %v3828 = vadd.f32 %v3827, %v317
    %v3829 = vadd.f32 %v3828, %v319
    %v3830 = vadd.f32 %v3829, %v321
    %v3831 = vadd.f32 %v3830, %v323
    %v3832 = vadd.f32 %v3831, %v325
    %v3833 = vadd.f32 %v3832, %v327
    %v3834 = vadd.f32 %v3833, %v329
    %v3835 = vadd.f32 %v3834, %v331
    %v3836 = vadd.f32 %v3835, %v333
    %v3837 = vadd.f32 %v3836, %v335
    %v3838 = vadd.f32 %v3837, %v337
    %v3839 = vadd.f32 %v3838, %v339
    %v3840 = vadd.f32 %v3839, %v341
    %v3841 = vadd.f32 %v3840, %v343
    %v3842 = vadd.f32 %v3841, %v345
    %v3843 = vadd.f32 %v3842, %v347
    %v3844 = vadd.f32 %v3843, %v349
    %v3845 = vadd.f32 %v3844, %v351
    %v3846 = vadd.f32 %v3845, %v353
    %v3847 = vadd.f32 %v3846, %v355
    %v3848 = vadd.f32 %v3847, %v357
    %v3849 = vadd.f32 %v3848, %v359
    %v3850 = vadd.f32 %v3849, %v361
    %v3851 = vadd.f32 %v3850, %v363
    %v3852 = vadd.f32 %v3851, %v365
    %v3853 = vadd.f32 %v3852, %v367
    %v3854 = vadd.f32 %v3853, %v369
    %v3855 = vadd.f32 %v3854, %v371
    %v3856 = vadd.f32 %v3855, %v373
    %v3857 = vadd.f32 %v3856, %v375
    %v3858 = vadd.f32 %v3857, %v377
    %v3859 = vadd.f32 %v3858, %v379
    %v3860 = vadd.f32 %v3859, %v381
    %v3861 = vadd.f32 %v3860, %v383
    %v3862 = vadd.f32 %v3861, %v385
    %v3863 = vadd.f32 %v3862, %v387
    %v3864 = vadd.f32 %v3863, %v389
    %v3865 = vadd.f32 %v3864, %v391
    %v3866 = vadd.f32 %v3865, %v393
    %v3867 = vadd.f32 %v3866, %v395
    %v3868 = vadd.f32 %v3867, %v397
    %v3869 = vadd.f32 %v3868, %v399
    %v3870 = vadd.f32 %v3869, %v401
    %v3871 = vadd.f32 %v3870, %v403
    %v3872 = vrot.slane %v3871, 4
    %v3873 = vadd.f32 %v3871, %v3872
    %v3874 = vrot.slane %v3873, 2
    %v3875 = vadd.f32 %v3873, %v3874
    %v3876 = vrot.slane %v3875, 1
    %v3877 = vadd.f32 %v3875, %v3876
    %v3878 = vadd.f32 %v278, %v280
    %v3879 = vadd.f32 %v3878, %v282
    %v3880 = vadd.f32 %v3879, %v284
    %v3881 = vadd.f32 %v3880, %v286
    %v3882 = vadd.f32 %v3881, %v288
    %v3883 = vadd.f32 %v3882, %v290
    %v3884 = vadd.f32 %v3883, %v292
    %v3885 = vadd.f32 %v3884, %v294
    %v3886 = vadd.f32 %v3885, %v296
    %v3887 = vadd.f32 %v3886, %v298
    %v3888 = vadd.f32 %v3887, %v300
    %v3889 = vadd.f32 %v3888, %v302
    %v3890 = vadd.f32 %v3889, %v304
    %v3891 = vadd.f32 %v3890, %v306
    %v3892 = vadd.f32 %v3891, %v308
    %v3893 = vadd.f32 %v3892, %v310
    %v3894 = vadd.f32 %v3893, %v312
    %v3895 = vadd.f32 %v3894, %v314
    %v3896 = vadd.f32 %v3895, %v316
    %v3897 = vadd.f32 %v3896, %v318
    %v3898 = vadd.f32 %v3897, %v320
    %v3899 = vadd.f32 %v3898, %v322
    %v3900 = vadd.f32 %v3899, %v324
    %v3901 = vadd.f32 %v3900, %v326
    %v3902 = vadd.f32 %v3901, %v328
    %v3903 = vadd.f32 %v3902, %v330
    %v3904 = vadd.f32 %v3903, %v332
    %v3905 = vadd.f32 %v3904, %v334
    %v3906 = vadd.f32 %v3905, %v336
    %v3907 = vadd.f32 %v3906, %v338
    %v3908 = vadd.f32 %v3907, %v340
    %v3909 = vadd.f32 %v3908, %v342
    %v3910 = vadd.f32 %v3909, %v344
    %v3911 = vadd.f32 %v3910, %v346
    %v3912 = vadd.f32 %v3911, %v348
    %v3913 = vadd.f32 %v3912, %v350
    %v3914 = vadd.f32 %v3913, %v352
    %v3915 = vadd.f32 %v3914, %v354
    %v3916 = vadd.f32 %v3915, %v356
    %v3917 = vadd.f32 %v3916, %v358
    %v3918 = vadd.f32 %v3917, %v360
    %v3919 = vadd.f32 %v3918, %v362
    %v3920 = vadd.f32 %v3919, %v364
    %v3921 = vadd.f32 %v3920, %v366
    %v3922 = vadd.f32 %v3921, %v368
    %v3923 = vadd.f32 %v3922, %v370
    %v3924 = vadd.f32 %v3923, %v372
    %v3925 = vadd.f32 %v3924, %v374
    %v3926 = vadd.f32 %v3925, %v376
    %v3927 = vadd.f32 %v3926, %v378
    %v3928 = vadd.f32 %v3927, %v380
    %v3929 = vadd.f32 %v3928, %v382
    %v3930 = vadd.f32 %v3929, %v384
    %v3931 = vadd.f32 %v3930, %v386
    %v3932 = vadd.f32 %v3931, %v388
    %v3933 = vadd.f32 %v3932, %v390
    %v3934 = vadd.f32 %v3933, %v392
    %v3935 = vadd.f32 %v3934, %v394
    %v3936 = vadd.f32 %v3935, %v396
    %v3937 = vadd.f32 %v3936, %v398
    %v3938 = vadd.f32 %v3937, %v400
    %v3939 = vadd.f32 %v3938, %v402
    %v3940 = vadd.f32 %v3939, %v404
    %v3941 = vrot.slane %v3940, 4
    %v3942 = vadd.f32 %v3940, %v3941
    %v3943 = vrot.slane %v3942, 2
    %v3944 = vadd.f32 %v3942, %v3943
    %v3945 = vrot.slane %v3944, 1
    %v3946 = vadd.f32 %v3944, %v3945
    %v3947 = vrcp.pop 512.0
    %v3948 = vmul.f32 512.0, %v3947
    %v3949 = vsub.f32 1.0, %v3948
    %v3950 = vmul.f32 %v3947, %v3949
    %v3951 = vadd.f32 %v3947, %v3950
    %vm3952 = vweird.f32 %v3947
    %v3953 = vsel %vm3952, %v3947, %v3951
    %v3954 = vmul.f32 %v3877, %v3953
    %v3955 = vmul.f32 %v3946, %v3953
    %v3956 = vsub.f32 %v277, %v3954
    %v3957 = vsub.f32 %v278, %v3955
    %v3958 = vsub.f32 %v279, %v3954
    %v3959 = vsub.f32 %v280, %v3955
    %v3960 = vsub.f32 %v281, %v3954
    %v3961 = vsub.f32 %v282, %v3955
    %v3962 = vsub.f32 %v283, %v3954
    %v3963 = vsub.f32 %v284, %v3955
    %v3964 = vsub.f32 %v285, %v3954
    %v3965 = vsub.f32 %v286, %v3955
    %v3966 = vsub.f32 %v287, %v3954
    %v3967 = vsub.f32 %v288, %v3955
    %v3968 = vsub.f32 %v289, %v3954
    %v3969 = vsub.f32 %v290, %v3955
    %v3970 = vsub.f32 %v291, %v3954
    %v3971 = vsub.f32 %v292, %v3955
    %v3972 = vsub.f32 %v293, %v3954
    %v3973 = vsub.f32 %v294, %v3955
    %v3974 = vsub.f32 %v295, %v3954
    %v3975 = vsub.f32 %v296, %v3955
    %v3976 = vsub.f32 %v297, %v3954
    %v3977 = vsub.f32 %v298, %v3955
    %v3978 = vsub.f32 %v299, %v3954
    %v3979 = vsub.f32 %v300, %v3955
    %v3980 = vsub.f32 %v301, %v3954
    %v3981 = vsub.f32 %v302, %v3955
    %v3982 = vsub.f32 %v303, %v3954
    %v3983 = vsub.f32 %v304, %v3955
    %v3984 = vsub.f32 %v305, %v3954
    %v3985 = vsub.f32 %v306, %v3955
    %v3986 = vsub.f32 %v307, %v3954
    %v3987 = vsub.f32 %v308, %v3955
    %v3988 = vsub.f32 %v309, %v3954
    %v3989 = vsub.f32 %v310, %v3955
    %v3990 = vsub.f32 %v311, %v3954
    %v3991 = vsub.f32 %v312, %v3955
    %v3992 = vsub.f32 %v313, %v3954
    %v3993 = vsub.f32 %v314, %v3955
    %v3994 = vsub.f32 %v315, %v3954
    %v3995 = vsub.f32 %v316, %v3955
    %v3996 = vsub.f32 %v317, %v3954
    %v3997 = vsub.f32 %v318, %v3955
    %v3998 = vsub.f32 %v319, %v3954
    %v3999 = vsub.f32 %v320, %v3955
    %v4000 = vsub.f32 %v321, %v3954
    %v4001 = vsub.f32 %v322, %v3955
    %v4002 = vsub.f32 %v323, %v3954
    %v4003 = vsub.f32 %v324, %v3955
    %v4004 = vsub.f32 %v325, %v3954
    %v4005 = vsub.f32 %v326, %v3955
    %v4006 = vsub.f32 %v327, %v3954
    %v4007 = vsub.f32 %v328, %v3955
    %v4008 = vsub.f32 %v329, %v3954
    %v4009 = vsub.f32 %v330, %v3955
    %v4010 = vsub.f32 %v331, %v3954
    %v4011 = vsub.f32 %v332, %v3955
    %v4012 = vsub.f32 %v333, %v3954
    %v4013 = vsub.f32 %v334, %v3955
    %v4014 = vsub.f32 %v335, %v3954
    %v4015 = vsub.f32 %v336, %v3955
    %v4016 = vsub.f32 %v337, %v3954
    %v4017 = vsub.f32 %v338, %v3955
    %v4018 = vsub.f32 %v339, %v3954
    %v4019 = vsub.f32 %v340, %v3955
    %v4020 = vsub.f32 %v341, %v3954
    %v4021 = vsub.f32 %v342, %v3955
    %v4022 = vsub.f32 %v343, %v3954
    %v4023 = vsub.f32 %v344, %v3955
    %v4024 = vsub.f32 %v345, %v3954
    %v4025 = vsub.f32 %v346, %v3955
    %v4026 = vsub.f32 %v347, %v3954
    %v4027 = vsub.f32 %v348, %v3955
    %v4028 = vsub.f32 %v349, %v3954
    %v4029 = vsub.f32 %v350, %v3955
    %v4030 = vsub.f32 %v351, %v3954
    %v4031 = vsub.f32 %v352, %v3955
    %v4032 = vsub.f32 %v353, %v3954
    %v4033 = vsub.f32 %v354, %v3955
    %v4034 = vsub.f32 %v355, %v3954
    %v4035 = vsub.f32 %v356, %v3955
    %v4036 = vsub.f32 %v357, %v3954
    %v4037 = vsub.f32 %v358, %v3955
    %v4038 = vsub.f32 %v359, %v3954
    %v4039 = vsub.f32 %v360, %v3955
    %v4040 = vsub.f32 %v361, %v3954
    %v4041 = vsub.f32 %v362, %v3955
    %v4042 = vsub.f32 %v363, %v3954
    %v4043 = vsub.f32 %v364, %v3955
    %v4044 = vsub.f32 %v365, %v3954
    %v4045 = vsub.f32 %v366, %v3955
    %v4046 = vsub.f32 %v367, %v3954
    %v4047 = vsub.f32 %v368, %v3955
    %v4048 = vsub.f32 %v369, %v3954
    %v4049 = vsub.f32 %v370, %v3955
    %v4050 = vsub.f32 %v371, %v3954
    %v4051 = vsub.f32 %v372, %v3955
    %v4052 = vsub.f32 %v373, %v3954
    %v4053 = vsub.f32 %v374, %v3955
    %v4054 = vsub.f32 %v375, %v3954
    %v4055 = vsub.f32 %v376, %v3955
    %v4056 = vsub.f32 %v377, %v3954
    %v4057 = vsub.f32 %v378, %v3955
    %v4058 = vsub.f32 %v379, %v3954
    %v4059 = vsub.f32 %v380, %v3955
    %v4060 = vsub.f32 %v381, %v3954
    %v4061 = vsub.f32 %v382, %v3955
    %v4062 = vsub.f32 %v383, %v3954
    %v4063 = vsub.f32 %v384, %v3955
    %v4064 = vsub.f32 %v385, %v3954
    %v4065 = vsub.f32 %v386, %v3955
    %v4066 = vsub.f32 %v387, %v3954
    %v4067 = vsub.f32 %v388, %v3955
    %v4068 = vsub.f32 %v389, %v3954
    %v4069 = vsub.f32 %v390, %v3955
    %v4070 = vsub.f32 %v391, %v3954
    %v4071 = vsub.f32 %v392, %v3955
    %v4072 = vsub.f32 %v393, %v3954
    %v4073 = vsub.f32 %v394, %v3955
    %v4074 = vsub.f32 %v395, %v3954
    %v4075 = vsub.f32 %v396, %v3955
    %v4076 = vsub.f32 %v397, %v3954
    %v4077 = vsub.f32 %v398, %v3955
    %v4078 = vsub.f32 %v399, %v3954
    %v4079 = vsub.f32 %v400, %v3955
    %v4080 = vsub.f32 %v401, %v3954
    %v4081 = vsub.f32 %v402, %v3955
    %v4082 = vsub.f32 %v403, %v3954
    %v4083 = vsub.f32 %v404, %v3955
    %v4084 = vmul.f32 %v3956, %v3956
    %v4085 = vmul.f32 %v3957, %v3957
    %v4086 = vmul.f32 %v3958, %v3958
    %v4087 = vmul.f32 %v3959, %v3959
    %v4088 = vmul.f32 %v3960, %v3960
    %v4089 = vmul.f32 %v3961, %v3961
    %v4090 = vmul.f32 %v3962, %v3962
    %v4091 = vmul.f32 %v3963, %v3963
    %v4092 = vmul.f32 %v3964, %v3964
    %v4093 = vmul.f32 %v3965, %v3965
    %v4094 = vmul.f32 %v3966, %v3966
    %v4095 = vmul.f32 %v3967, %v3967
    %v4096 = vmul.f32 %v3968, %v3968
    %v4097 = vmul.f32 %v3969, %v3969
    %v4098 = vmul.f32 %v3970, %v3970
    %v4099 = vmul.f32 %v3971, %v3971
    %v4100 = vmul.f32 %v3972, %v3972
    %v4101 = vmul.f32 %v3973, %v3973
    %v4102 = vmul.f32 %v3974, %v3974
    %v4103 = vmul.f32 %v3975, %v3975
    %v4104 = vmul.f32 %v3976, %v3976
    %v4105 = vmul.f32 %v3977, %v3977
    %v4106 = vmul.f32 %v3978, %v3978
    %v4107 = vmul.f32 %v3979, %v3979
    %v4108 = vmul.f32 %v3980, %v3980
    %v4109 = vmul.f32 %v3981, %v3981
    %v4110 = vmul.f32 %v3982, %v3982
    %v4111 = vmul.f32 %v3983, %v3983
    %v4112 = vmul.f32 %v3984, %v3984
    %v4113 = vmul.f32 %v3985, %v3985
    %v4114 = vmul.f32 %v3986, %v3986
    %v4115 = vmul.f32 %v3987, %v3987
    %v4116 = vmul.f32 %v3988, %v3988
    %v4117 = vmul.f32 %v3989, %v3989
    %v4118 = vmul.f32 %v3990, %v3990
    %v4119 = vmul.f32 %v3991, %v3991
    %v4120 = vmul.f32 %v3992, %v3992
    %v4121 = vmul.f32 %v3993, %v3993
    %v4122 = vmul.f32 %v3994, %v3994
    %v4123 = vmul.f32 %v3995, %v3995
    %v4124 = vmul.f32 %v3996, %v3996
    %v4125 = vmul.f32 %v3997, %v3997
    %v4126 = vmul.f32 %v3998, %v3998
    %v4127 = vmul.f32 %v3999, %v3999
    %v4128 = vmul.f32 %v4000, %v4000
    %v4129 = vmul.f32 %v4001, %v4001
    %v4130 = vmul.f32 %v4002, %v4002
    %v4131 = vmul.f32 %v4003, %v4003
    %v4132 = vmul.f32 %v4004, %v4004
    %v4133 = vmul.f32 %v4005, %v4005
    %v4134 = vmul.f32 %v4006, %v4006
    %v4135 = vmul.f32 %v4007, %v4007
    %v4136 = vmul.f32 %v4008, %v4008
    %v4137 = vmul.f32 %v4009, %v4009
    %v4138 = vmul.f32 %v4010, %v4010
    %v4139 = vmul.f32 %v4011, %v4011
    %v4140 = vmul.f32 %v4012, %v4012
    %v4141 = vmul.f32 %v4013, %v4013
    %v4142 = vmul.f32 %v4014, %v4014
    %v4143 = vmul.f32 %v4015, %v4015
    %v4144 = vmul.f32 %v4016, %v4016
    %v4145 = vmul.f32 %v4017, %v4017
    %v4146 = vmul.f32 %v4018, %v4018
    %v4147 = vmul.f32 %v4019, %v4019
    %v4148 = vmul.f32 %v4020, %v4020
    %v4149 = vmul.f32 %v4021, %v4021
    %v4150 = vmul.f32 %v4022, %v4022
    %v4151 = vmul.f32 %v4023, %v4023
    %v4152 = vmul.f32 %v4024, %v4024
    %v4153 = vmul.f32 %v4025, %v4025
    %v4154 = vmul.f32 %v4026, %v4026
    %v4155 = vmul.f32 %v4027, %v4027
    %v4156 = vmul.f32 %v4028, %v4028
    %v4157 = vmul.f32 %v4029, %v4029
    %v4158 = vmul.f32 %v4030, %v4030
    %v4159 = vmul.f32 %v4031, %v4031
    %v4160 = vmul.f32 %v4032, %v4032
    %v4161 = vmul.f32 %v4033, %v4033
    %v4162 = vmul.f32 %v4034, %v4034
    %v4163 = vmul.f32 %v4035, %v4035
    %v4164 = vmul.f32 %v4036, %v4036
    %v4165 = vmul.f32 %v4037, %v4037
    %v4166 = vmul.f32 %v4038, %v4038
    %v4167 = vmul.f32 %v4039, %v4039
    %v4168 = vmul.f32 %v4040, %v4040
    %v4169 = vmul.f32 %v4041, %v4041
    %v4170 = vmul.f32 %v4042, %v4042
    %v4171 = vmul.f32 %v4043, %v4043
    %v4172 = vmul.f32 %v4044, %v4044
    %v4173 = vmul.f32 %v4045, %v4045
    %v4174 = vmul.f32 %v4046, %v4046
    %v4175 = vmul.f32 %v4047, %v4047
    %v4176 = vmul.f32 %v4048, %v4048
    %v4177 = vmul.f32 %v4049, %v4049
    %v4178 = vmul.f32 %v4050, %v4050
    %v4179 = vmul.f32 %v4051, %v4051
    %v4180 = vmul.f32 %v4052, %v4052
    %v4181 = vmul.f32 %v4053, %v4053
    %v4182 = vmul.f32 %v4054, %v4054
    %v4183 = vmul.f32 %v4055, %v4055
    %v4184 = vmul.f32 %v4056, %v4056
    %v4185 = vmul.f32 %v4057, %v4057
    %v4186 = vmul.f32 %v4058, %v4058
    %v4187 = vmul.f32 %v4059, %v4059
    %v4188 = vmul.f32 %v4060, %v4060
    %v4189 = vmul.f32 %v4061, %v4061
    %v4190 = vmul.f32 %v4062, %v4062
    %v4191 = vmul.f32 %v4063, %v4063
    %v4192 = vmul.f32 %v4064, %v4064
    %v4193 = vmul.f32 %v4065, %v4065
    %v4194 = vmul.f32 %v4066, %v4066
    %v4195 = vmul.f32 %v4067, %v4067
    %v4196 = vmul.f32 %v4068, %v4068
    %v4197 = vmul.f32 %v4069, %v4069
    %v4198 = vmul.f32 %v4070, %v4070
    %v4199 = vmul.f32 %v4071, %v4071
    %v4200 = vmul.f32 %v4072, %v4072
    %v4201 = vmul.f32 %v4073, %v4073
    %v4202 = vmul.f32 %v4074, %v4074
    %v4203 = vmul.f32 %v4075, %v4075
    %v4204 = vmul.f32 %v4076, %v4076
    %v4205 = vmul.f32 %v4077, %v4077
    %v4206 = vmul.f32 %v4078, %v4078
    %v4207 = vmul.f32 %v4079, %v4079
    %v4208 = vmul.f32 %v4080, %v4080
    %v4209 = vmul.f32 %v4081, %v4081
    %v4210 = vmul.f32 %v4082, %v4082
    %v4211 = vmul.f32 %v4083, %v4083
    %v4212 = vadd.f32 %v4084, %v4086
    %v4213 = vadd.f32 %v4212, %v4088
    %v4214 = vadd.f32 %v4213, %v4090
    %v4215 = vadd.f32 %v4214, %v4092
    %v4216 = vadd.f32 %v4215, %v4094
    %v4217 = vadd.f32 %v4216, %v4096
    %v4218 = vadd.f32 %v4217, %v4098
    %v4219 = vadd.f32 %v4218, %v4100
    %v4220 = vadd.f32 %v4219, %v4102
    %v4221 = vadd.f32 %v4220, %v4104
    %v4222 = vadd.f32 %v4221, %v4106
    %v4223 = vadd.f32 %v4222, %v4108
    %v4224 = vadd.f32 %v4223, %v4110
    %v4225 = vadd.f32 %v4224, %v4112
    %v4226 = vadd.f32 %v4225, %v4114
    %v4227 = vadd.f32 %v4226, %v4116
    %v4228 = vadd.f32 %v4227, %v4118
    %v4229 = vadd.f32 %v4228, %v4120
    %v4230 = vadd.f32 %v4229, %v4122
    %v4231 = vadd.f32 %v4230, %v4124
    %v4232 = vadd.f32 %v4231, %v4126
    %v4233 = vadd.f32 %v4232, %v4128
    %v4234 = vadd.f32 %v4233, %v4130
    %v4235 = vadd.f32 %v4234, %v4132
    %v4236 = vadd.f32 %v4235, %v4134
    %v4237 = vadd.f32 %v4236, %v4136
    %v4238 = vadd.f32 %v4237, %v4138
    %v4239 = vadd.f32 %v4238, %v4140
    %v4240 = vadd.f32 %v4239, %v4142
    %v4241 = vadd.f32 %v4240, %v4144
    %v4242 = vadd.f32 %v4241, %v4146
    %v4243 = vadd.f32 %v4242, %v4148
    %v4244 = vadd.f32 %v4243, %v4150
    %v4245 = vadd.f32 %v4244, %v4152
    %v4246 = vadd.f32 %v4245, %v4154
    %v4247 = vadd.f32 %v4246, %v4156
    %v4248 = vadd.f32 %v4247, %v4158
    %v4249 = vadd.f32 %v4248, %v4160
    %v4250 = vadd.f32 %v4249, %v4162
    %v4251 = vadd.f32 %v4250, %v4164
    %v4252 = vadd.f32 %v4251, %v4166
    %v4253 = vadd.f32 %v4252, %v4168
    %v4254 = vadd.f32 %v4253, %v4170
    %v4255 = vadd.f32 %v4254, %v4172
    %v4256 = vadd.f32 %v4255, %v4174
    %v4257 = vadd.f32 %v4256, %v4176
    %v4258 = vadd.f32 %v4257, %v4178
    %v4259 = vadd.f32 %v4258, %v4180
    %v4260 = vadd.f32 %v4259, %v4182
    %v4261 = vadd.f32 %v4260, %v4184
    %v4262 = vadd.f32 %v4261, %v4186
    %v4263 = vadd.f32 %v4262, %v4188
    %v4264 = vadd.f32 %v4263, %v4190
    %v4265 = vadd.f32 %v4264, %v4192
    %v4266 = vadd.f32 %v4265, %v4194
    %v4267 = vadd.f32 %v4266, %v4196
    %v4268 = vadd.f32 %v4267, %v4198
    %v4269 = vadd.f32 %v4268, %v4200
    %v4270 = vadd.f32 %v4269, %v4202
    %v4271 = vadd.f32 %v4270, %v4204
    %v4272 = vadd.f32 %v4271, %v4206
    %v4273 = vadd.f32 %v4272, %v4208
    %v4274 = vadd.f32 %v4273, %v4210
    %v4275 = vrot.slane %v4274, 4
    %v4276 = vadd.f32 %v4274, %v4275
    %v4277 = vrot.slane %v4276, 2
    %v4278 = vadd.f32 %v4276, %v4277
    %v4279 = vrot.slane %v4278, 1
    %v4280 = vadd.f32 %v4278, %v4279
    %v4281 = vadd.f32 %v4085, %v4087
    %v4282 = vadd.f32 %v4281, %v4089
    %v4283 = vadd.f32 %v4282, %v4091
    %v4284 = vadd.f32 %v4283, %v4093
    %v4285 = vadd.f32 %v4284, %v4095
    %v4286 = vadd.f32 %v4285, %v4097
    %v4287 = vadd.f32 %v4286, %v4099
    %v4288 = vadd.f32 %v4287, %v4101
    %v4289 = vadd.f32 %v4288, %v4103
    %v4290 = vadd.f32 %v4289, %v4105
    %v4291 = vadd.f32 %v4290, %v4107
    %v4292 = vadd.f32 %v4291, %v4109
    %v4293 = vadd.f32 %v4292, %v4111
    %v4294 = vadd.f32 %v4293, %v4113
    %v4295 = vadd.f32 %v4294, %v4115
    %v4296 = vadd.f32 %v4295, %v4117
    %v4297 = vadd.f32 %v4296, %v4119
    %v4298 = vadd.f32 %v4297, %v4121
    %v4299 = vadd.f32 %v4298, %v4123
    %v4300 = vadd.f32 %v4299, %v4125
    %v4301 = vadd.f32 %v4300, %v4127
    %v4302 = vadd.f32 %v4301, %v4129
    %v4303 = vadd.f32 %v4302, %v4131
    %v4304 = vadd.f32 %v4303, %v4133
    %v4305 = vadd.f32 %v4304, %v4135
    %v4306 = vadd.f32 %v4305, %v4137
    %v4307 = vadd.f32 %v4306, %v4139
    %v4308 = vadd.f32 %v4307, %v4141
    %v4309 = vadd.f32 %v4308, %v4143
    %v4310 = vadd.f32 %v4309, %v4145
    %v4311 = vadd.f32 %v4310, %v4147
    %v4312 = vadd.f32 %v4311, %v4149
    %v4313 = vadd.f32 %v4312, %v4151
    %v4314 = vadd.f32 %v4313, %v4153
    %v4315 = vadd.f32 %v4314, %v4155
    %v4316 = vadd.f32 %v4315, %v4157
    %v4317 = vadd.f32 %v4316, %v4159
    %v4318 = vadd.f32 %v4317, %v4161
    %v4319 = vadd.f32 %v4318, %v4163
    %v4320 = vadd.f32 %v4319, %v4165
    %v4321 = vadd.f32 %v4320, %v4167
    %v4322 = vadd.f32 %v4321, %v4169
    %v4323 = vadd.f32 %v4322, %v4171
    %v4324 = vadd.f32 %v4323, %v4173
    %v4325 = vadd.f32 %v4324, %v4175
    %v4326 = vadd.f32 %v4325, %v4177
    %v4327 = vadd.f32 %v4326, %v4179
    %v4328 = vadd.f32 %v4327, %v4181
    %v4329 = vadd.f32 %v4328, %v4183
    %v4330 = vadd.f32 %v4329, %v4185
    %v4331 = vadd.f32 %v4330, %v4187
    %v4332 = vadd.f32 %v4331, %v4189
    %v4333 = vadd.f32 %v4332, %v4191
    %v4334 = vadd.f32 %v4333, %v4193
    %v4335 = vadd.f32 %v4334, %v4195
    %v4336 = vadd.f32 %v4335, %v4197
    %v4337 = vadd.f32 %v4336, %v4199
    %v4338 = vadd.f32 %v4337, %v4201
    %v4339 = vadd.f32 %v4338, %v4203
    %v4340 = vadd.f32 %v4339, %v4205
    %v4341 = vadd.f32 %v4340, %v4207
    %v4342 = vadd.f32 %v4341, %v4209
    %v4343 = vadd.f32 %v4342, %v4211
    %v4344 = vrot.slane %v4343, 4
    %v4345 = vadd.f32 %v4343, %v4344
    %v4346 = vrot.slane %v4345, 2
    %v4347 = vadd.f32 %v4345, %v4346
    %v4348 = vrot.slane %v4347, 1
    %v4349 = vadd.f32 %v4347, %v4348
    %v4350 = vmul.f32 %v4280, %v3953
    %v4351 = vmul.f32 %v4349, %v3953
    %v4352 = vadd.f32 %v4350, 1e-05
    %v4353 = vadd.f32 %v4351, 1e-05
    %v4354 = vrsqrt.pop %v4352
    %v4355 = vmul.f32 %v4354, %v4352
    %v4356 = vmul.f32 %v4355, %v4354
    %v4357 = vmul.f32 0.5, %v4356
    %v4358 = vsub.f32 1.5, %v4357
    %v4359 = vmul.f32 %v4354, %v4358
    %vm4360 = vweird.f32 %v4352
    %vm4361 = vweird.f32 %v4354
    %vm4362 = vmor %vm4360, %vm4361
    %v4363 = vsel %vm4362, %v4354, %v4359
    %v4364 = vrsqrt.pop %v4353
    %v4365 = vmul.f32 %v4364, %v4353
    %v4366 = vmul.f32 %v4365, %v4364
    %v4367 = vmul.f32 0.5, %v4366
    %v4368 = vsub.f32 1.5, %v4367
    %v4369 = vmul.f32 %v4364, %v4368
    %vm4370 = vweird.f32 %v4353
    %vm4371 = vweird.f32 %v4364
    %vm4372 = vmor %vm4370, %vm4371
    %v4373 = vsel %vm4372, %v4364, %v4369
    %v4374 = vmul.f32 %v3956, %v4363
    %v4375 = vmul.f32 %v3957, %v4373
    %v4376 = vmul.f32 %v3958, %v4363
    %v4377 = vmul.f32 %v3959, %v4373
    %v4378 = vmul.f32 %v3960, %v4363
    %v4379 = vmul.f32 %v3961, %v4373
    %v4380 = vmul.f32 %v3962, %v4363
    %v4381 = vmul.f32 %v3963, %v4373
    %v4382 = vmul.f32 %v3964, %v4363
    %v4383 = vmul.f32 %v3965, %v4373
    %v4384 = vmul.f32 %v3966, %v4363
    %v4385 = vmul.f32 %v3967, %v4373
    %v4386 = vmul.f32 %v3968, %v4363
    %v4387 = vmul.f32 %v3969, %v4373
    %v4388 = vmul.f32 %v3970, %v4363
    %v4389 = vmul.f32 %v3971, %v4373
    %v4390 = vmul.f32 %v3972, %v4363
    %v4391 = vmul.f32 %v3973, %v4373
    %v4392 = vmul.f32 %v3974, %v4363
    %v4393 = vmul.f32 %v3975, %v4373
    %v4394 = vmul.f32 %v3976, %v4363
    %v4395 = vmul.f32 %v3977, %v4373
    %v4396 = vmul.f32 %v3978, %v4363
    %v4397 = vmul.f32 %v3979, %v4373
    %v4398 = vmul.f32 %v3980, %v4363
    %v4399 = vmul.f32 %v3981, %v4373
    %v4400 = vmul.f32 %v3982, %v4363
    %v4401 = vmul.f32 %v3983, %v4373
    %v4402 = vmul.f32 %v3984, %v4363
    %v4403 = vmul.f32 %v3985, %v4373
    %v4404 = vmul.f32 %v3986, %v4363
    %v4405 = vmul.f32 %v3987, %v4373
    %v4406 = vmul.f32 %v3988, %v4363
    %v4407 = vmul.f32 %v3989, %v4373
    %v4408 = vmul.f32 %v3990, %v4363
    %v4409 = vmul.f32 %v3991, %v4373
    %v4410 = vmul.f32 %v3992, %v4363
    %v4411 = vmul.f32 %v3993, %v4373
    %v4412 = vmul.f32 %v3994, %v4363
    %v4413 = vmul.f32 %v3995, %v4373
    %v4414 = vmul.f32 %v3996, %v4363
    %v4415 = vmul.f32 %v3997, %v4373
    %v4416 = vmul.f32 %v3998, %v4363
    %v4417 = vmul.f32 %v3999, %v4373
    %v4418 = vmul.f32 %v4000, %v4363
    %v4419 = vmul.f32 %v4001, %v4373
    %v4420 = vmul.f32 %v4002, %v4363
    %v4421 = vmul.f32 %v4003, %v4373
    %v4422 = vmul.f32 %v4004, %v4363
    %v4423 = vmul.f32 %v4005, %v4373
    %v4424 = vmul.f32 %v4006, %v4363
    %v4425 = vmul.f32 %v4007, %v4373
    %v4426 = vmul.f32 %v4008, %v4363
    %v4427 = vmul.f32 %v4009, %v4373
    %v4428 = vmul.f32 %v4010, %v4363
    %v4429 = vmul.f32 %v4011, %v4373
    %v4430 = vmul.f32 %v4012, %v4363
    %v4431 = vmul.f32 %v4013, %v4373
    %v4432 = vmul.f32 %v4014, %v4363
    %v4433 = vmul.f32 %v4015, %v4373
    %v4434 = vmul.f32 %v4016, %v4363
    %v4435 = vmul.f32 %v4017, %v4373
    %v4436 = vmul.f32 %v4018, %v4363
    %v4437 = vmul.f32 %v4019, %v4373
    %v4438 = vmul.f32 %v4020, %v4363
    %v4439 = vmul.f32 %v4021, %v4373
    %v4440 = vmul.f32 %v4022, %v4363
    %v4441 = vmul.f32 %v4023, %v4373
    %v4442 = vmul.f32 %v4024, %v4363
    %v4443 = vmul.f32 %v4025, %v4373
    %v4444 = vmul.f32 %v4026, %v4363
    %v4445 = vmul.f32 %v4027, %v4373
    %v4446 = vmul.f32 %v4028, %v4363
    %v4447 = vmul.f32 %v4029, %v4373
    %v4448 = vmul.f32 %v4030, %v4363
    %v4449 = vmul.f32 %v4031, %v4373
    %v4450 = vmul.f32 %v4032, %v4363
    %v4451 = vmul.f32 %v4033, %v4373
    %v4452 = vmul.f32 %v4034, %v4363
    %v4453 = vmul.f32 %v4035, %v4373
    %v4454 = vmul.f32 %v4036, %v4363
    %v4455 = vmul.f32 %v4037, %v4373
    %v4456 = vmul.f32 %v4038, %v4363
    %v4457 = vmul.f32 %v4039, %v4373
    %v4458 = vmul.f32 %v4040, %v4363
    %v4459 = vmul.f32 %v4041, %v4373
    %v4460 = vmul.f32 %v4042, %v4363
    %v4461 = vmul.f32 %v4043, %v4373
    %v4462 = vmul.f32 %v4044, %v4363
    %v4463 = vmul.f32 %v4045, %v4373
    %v4464 = vmul.f32 %v4046, %v4363
    %v4465 = vmul.f32 %v4047, %v4373
    %v4466 = vmul.f32 %v4048, %v4363
    %v4467 = vmul.f32 %v4049, %v4373
    %v4468 = vmul.f32 %v4050, %v4363
    %v4469 = vmul.f32 %v4051, %v4373
    %v4470 = vmul.f32 %v4052, %v4363
    %v4471 = vmul.f32 %v4053, %v4373
    %v4472 = vmul.f32 %v4054, %v4363
    %v4473 = vmul.f32 %v4055, %v4373
    %v4474 = vmul.f32 %v4056, %v4363
    %v4475 = vmul.f32 %v4057, %v4373
    %v4476 = vmul.f32 %v4058, %v4363
    %v4477 = vmul.f32 %v4059, %v4373
    %v4478 = vmul.f32 %v4060, %v4363
    %v4479 = vmul.f32 %v4061, %v4373
    %v4480 = vmul.f32 %v4062, %v4363
    %v4481 = vmul.f32 %v4063, %v4373
    %v4482 = vmul.f32 %v4064, %v4363
    %v4483 = vmul.f32 %v4065, %v4373
    %v4484 = vmul.f32 %v4066, %v4363
    %v4485 = vmul.f32 %v4067, %v4373
    %v4486 = vmul.f32 %v4068, %v4363
    %v4487 = vmul.f32 %v4069, %v4373
    %v4488 = vmul.f32 %v4070, %v4363
    %v4489 = vmul.f32 %v4071, %v4373
    %v4490 = vmul.f32 %v4072, %v4363
    %v4491 = vmul.f32 %v4073, %v4373
    %v4492 = vmul.f32 %v4074, %v4363
    %v4493 = vmul.f32 %v4075, %v4373
    %v4494 = vmul.f32 %v4076, %v4363
    %v4495 = vmul.f32 %v4077, %v4373
    %v4496 = vmul.f32 %v4078, %v4363
    %v4497 = vmul.f32 %v4079, %v4373
    %v4498 = vmul.f32 %v4080, %v4363
    %v4499 = vmul.f32 %v4081, %v4373
    %v4500 = vmul.f32 %v4082, %v4363
    %v4501 = vmul.f32 %v4083, %v4373
    %4502 = vset.pattern.permute.xlu0 1
    %4503 = vperm.xlu0 %4502, %v213
    %v4504 = vpop.permute.xlu0 %4503
    %4506 = vset.pattern.permute.xlu0 1
    %4507 = vperm.xlu0 %4506, %v214
    %v4508 = vpop.permute.xlu0 %4507
    %4510 = vset.pattern.permute.xlu0 1
    %4511 = vperm.xlu0 %4510, %v215
    %v4512 = vpop.permute.xlu0 %4511
    %4514 = vset.pattern.permute.xlu0 1
    %4515 = vperm.xlu0 %4514, %v216
    %v4516 = vpop.permute.xlu0 %4515
    %4518 = vset.pattern.permute.xlu0 1
    %4519 = vperm.xlu0 %4518, %v217
    %v4520 = vpop.permute.xlu0 %4519
    %4522 = vset.pattern.permute.xlu0 1
    %4523 = vperm.xlu0 %4522, %v218
    %v4524 = vpop.permute.xlu0 %4523
    %4526 = vset.pattern.permute.xlu0 1
    %4527 = vperm.xlu0 %4526, %v219
    %v4528 = vpop.permute.xlu0 %4527
    %4530 = vset.pattern.permute.xlu0 1
    %4531 = vperm.xlu0 %4530, %v220
    %v4532 = vpop.permute.xlu0 %4531
    %4534 = vset.pattern.permute.xlu0 1
    %4535 = vperm.xlu0 %4534, %v221
    %v4536 = vpop.permute.xlu0 %4535
    %4538 = vset.pattern.permute.xlu0 1
    %4539 = vperm.xlu0 %4538, %v222
    %v4540 = vpop.permute.xlu0 %4539
    %4542 = vset.pattern.permute.xlu0 1
    %4543 = vperm.xlu0 %4542, %v223
    %v4544 = vpop.permute.xlu0 %4543
    %4546 = vset.pattern.permute.xlu0 1
    %4547 = vperm.xlu0 %4546, %v224
    %v4548 = vpop.permute.xlu0 %4547
    %4550 = vset.pattern.permute.xlu0 1
    %4551 = vperm.xlu0 %4550, %v225
    %v4552 = vpop.permute.xlu0 %4551
    %4554 = vset.pattern.permute.xlu0 1
    %4555 = vperm.xlu0 %4554, %v226
    %v4556 = vpop.permute.xlu0 %4555
    %4558 = vset.pattern.permute.xlu0 1
    %4559 = vperm.xlu0 %4558, %v227
    %v4560 = vpop.permute.xlu0 %4559
    %4562 = vset.pattern.permute.xlu0 1
    %4563 = vperm.xlu0 %4562, %v228
    %v4564 = vpop.permute.xlu0 %4563
    %4566 = vset.pattern.permute.xlu0 1
    %4567 = vperm.xlu0 %4566, %v229
    %v4568 = vpop.permute.xlu0 %4567
    %4570 = vset.pattern.permute.xlu0 1
    %4571 = vperm.xlu0 %4570, %v230
    %v4572 = vpop.permute.xlu0 %4571
    %4574 = vset.pattern.permute.xlu0 1
    %4575 = vperm.xlu0 %4574, %v231
    %v4576 = vpop.permute.xlu0 %4575
    %4578 = vset.pattern.permute.xlu0 1
    %4579 = vperm.xlu0 %4578, %v232
    %v4580 = vpop.permute.xlu0 %4579
    %4582 = vset.pattern.permute.xlu0 1
    %4583 = vperm.xlu0 %4582, %v233
    %v4584 = vpop.permute.xlu0 %4583
    %4586 = vset.pattern.permute.xlu0 1
    %4587 = vperm.xlu0 %4586, %v234
    %v4588 = vpop.permute.xlu0 %4587
    %4590 = vset.pattern.permute.xlu0 1
    %4591 = vperm.xlu0 %4590, %v235
    %v4592 = vpop.permute.xlu0 %4591
    %4594 = vset.pattern.permute.xlu0 1
    %4595 = vperm.xlu0 %4594, %v236
    %v4596 = vpop.permute.xlu0 %4595
    %4598 = vset.pattern.permute.xlu0 1
    %4599 = vperm.xlu0 %4598, %v237
    %v4600 = vpop.permute.xlu0 %4599
    %4602 = vset.pattern.permute.xlu0 1
    %4603 = vperm.xlu0 %4602, %v238
    %v4604 = vpop.permute.xlu0 %4603
    %4606 = vset.pattern.permute.xlu0 1
    %4607 = vperm.xlu0 %4606, %v239
    %v4608 = vpop.permute.xlu0 %4607
    %4610 = vset.pattern.permute.xlu0 1
    %4611 = vperm.xlu0 %4610, %v240
    %v4612 = vpop.permute.xlu0 %4611
    %4614 = vset.pattern.permute.xlu0 1
    %4615 = vperm.xlu0 %4614, %v241
    %v4616 = vpop.permute.xlu0 %4615
    %4618 = vset.pattern.permute.xlu0 1
    %4619 = vperm.xlu0 %4618, %v242
    %v4620 = vpop.permute.xlu0 %4619
    %4622 = vset.pattern.permute.xlu0 1
    %4623 = vperm.xlu0 %4622, %v243
    %v4624 = vpop.permute.xlu0 %4623
    %4626 = vset.pattern.permute.xlu0 1
    %4627 = vperm.xlu0 %4626, %v244
    %v4628 = vpop.permute.xlu0 %4627
    %4630 = vset.pattern.permute.xlu0 1
    %4631 = vperm.xlu0 %4630, %v245
    %v4632 = vpop.permute.xlu0 %4631
    %4634 = vset.pattern.permute.xlu0 1
    %4635 = vperm.xlu0 %4634, %v246
    %v4636 = vpop.permute.xlu0 %4635
    %4638 = vset.pattern.permute.xlu0 1
    %4639 = vperm.xlu0 %4638, %v247
    %v4640 = vpop.permute.xlu0 %4639
    %4642 = vset.pattern.permute.xlu0 1
    %4643 = vperm.xlu0 %4642, %v248
    %v4644 = vpop.permute.xlu0 %4643
    %4646 = vset.pattern.permute.xlu0 1
    %4647 = vperm.xlu0 %4646, %v249
    %v4648 = vpop.permute.xlu0 %4647
    %4650 = vset.pattern.permute.xlu0 1
    %4651 = vperm.xlu0 %4650, %v250
    %v4652 = vpop.permute.xlu0 %4651
    %4654 = vset.pattern.permute.xlu0 1
    %4655 = vperm.xlu0 %4654, %v251
    %v4656 = vpop.permute.xlu0 %4655
    %4658 = vset.pattern.permute.xlu0 1
    %4659 = vperm.xlu0 %4658, %v252
    %v4660 = vpop.permute.xlu0 %4659
    %4662 = vset.pattern.permute.xlu0 1
    %4663 = vperm.xlu0 %4662, %v253
    %v4664 = vpop.permute.xlu0 %4663
    %4666 = vset.pattern.permute.xlu0 1
    %4667 = vperm.xlu0 %4666, %v254
    %v4668 = vpop.permute.xlu0 %4667
    %4670 = vset.pattern.permute.xlu0 1
    %4671 = vperm.xlu0 %4670, %v255
    %v4672 = vpop.permute.xlu0 %4671
    %4674 = vset.pattern.permute.xlu0 1
    %4675 = vperm.xlu0 %4674, %v256
    %v4676 = vpop.permute.xlu0 %4675
    %4678 = vset.pattern.permute.xlu0 1
    %4679 = vperm.xlu0 %4678, %v257
    %v4680 = vpop.permute.xlu0 %4679
    %4682 = vset.pattern.permute.xlu0 1
    %4683 = vperm.xlu0 %4682, %v258
    %v4684 = vpop.permute.xlu0 %4683
    %4686 = vset.pattern.permute.xlu0 1
    %4687 = vperm.xlu0 %4686, %v259
    %v4688 = vpop.permute.xlu0 %4687
    %4690 = vset.pattern.permute.xlu0 1
    %4691 = vperm.xlu0 %4690, %v260
    %v4692 = vpop.permute.xlu0 %4691
    %4694 = vset.pattern.permute.xlu0 1
    %4695 = vperm.xlu0 %4694, %v261
    %v4696 = vpop.permute.xlu0 %4695
    %4698 = vset.pattern.permute.xlu0 1
    %4699 = vperm.xlu0 %4698, %v262
    %v4700 = vpop.permute.xlu0 %4699
    %4702 = vset.pattern.permute.xlu0 1
    %4703 = vperm.xlu0 %4702, %v263
    %v4704 = vpop.permute.xlu0 %4703
    %4706 = vset.pattern.permute.xlu0 1
    %4707 = vperm.xlu0 %4706, %v264
    %v4708 = vpop.permute.xlu0 %4707
    %4710 = vset.pattern.permute.xlu0 1
    %4711 = vperm.xlu0 %4710, %v265
    %v4712 = vpop.permute.xlu0 %4711
    %4714 = vset.pattern.permute.xlu0 1
    %4715 = vperm.xlu0 %4714, %v266
    %v4716 = vpop.permute.xlu0 %4715
    %4718 = vset.pattern.permute.xlu0 1
    %4719 = vperm.xlu0 %4718, %v267
    %v4720 = vpop.permute.xlu0 %4719
    %4722 = vset.pattern.permute.xlu0 1
    %4723 = vperm.xlu0 %4722, %v268
    %v4724 = vpop.permute.xlu0 %4723
    %4726 = vset.pattern.permute.xlu0 1
    %4727 = vperm.xlu0 %4726, %v269
    %v4728 = vpop.permute.xlu0 %4727
    %4730 = vset.pattern.permute.xlu0 1
    %4731 = vperm.xlu0 %4730, %v270
    %v4732 = vpop.permute.xlu0 %4731
    %4734 = vset.pattern.permute.xlu0 1
    %4735 = vperm.xlu0 %4734, %v271
    %v4736 = vpop.permute.xlu0 %4735
    %4738 = vset.pattern.permute.xlu0 1
    %4739 = vperm.xlu0 %4738, %v272
    %v4740 = vpop.permute.xlu0 %4739
    %4742 = vset.pattern.permute.xlu0 1
    %4743 = vperm.xlu0 %4742, %v273
    %v4744 = vpop.permute.xlu0 %4743
    %4746 = vset.pattern.permute.xlu0 1
    %4747 = vperm.xlu0 %4746, %v274
    %v4748 = vpop.permute.xlu0 %4747
    %4750 = vset.pattern.permute.xlu0 1
    %4751 = vperm.xlu0 %4750, %v275
    %v4752 = vpop.permute.xlu0 %4751
    %4754 = vset.pattern.permute.xlu0 1
    %4755 = vperm.xlu0 %4754, %v276
    %v4756 = vpop.permute.xlu0 %4755
    %v4758 = vmul.f32 %v4374, %v4504
    %v4759 = vmul.f32 %v4375, %v4504
    %v4760 = vmul.f32 %v4376, %v4508
    %v4761 = vmul.f32 %v4377, %v4508
    %v4762 = vmul.f32 %v4378, %v4512
    %v4763 = vmul.f32 %v4379, %v4512
    %v4764 = vmul.f32 %v4380, %v4516
    %v4765 = vmul.f32 %v4381, %v4516
    %v4766 = vmul.f32 %v4382, %v4520
    %v4767 = vmul.f32 %v4383, %v4520
    %v4768 = vmul.f32 %v4384, %v4524
    %v4769 = vmul.f32 %v4385, %v4524
    %v4770 = vmul.f32 %v4386, %v4528
    %v4771 = vmul.f32 %v4387, %v4528
    %v4772 = vmul.f32 %v4388, %v4532
    %v4773 = vmul.f32 %v4389, %v4532
    %v4774 = vmul.f32 %v4390, %v4536
    %v4775 = vmul.f32 %v4391, %v4536
    %v4776 = vmul.f32 %v4392, %v4540
    %v4777 = vmul.f32 %v4393, %v4540
    %v4778 = vmul.f32 %v4394, %v4544
    %v4779 = vmul.f32 %v4395, %v4544
    %v4780 = vmul.f32 %v4396, %v4548
    %v4781 = vmul.f32 %v4397, %v4548
    %v4782 = vmul.f32 %v4398, %v4552
    %v4783 = vmul.f32 %v4399, %v4552
    %v4784 = vmul.f32 %v4400, %v4556
    %v4785 = vmul.f32 %v4401, %v4556
    %v4786 = vmul.f32 %v4402, %v4560
    %v4787 = vmul.f32 %v4403, %v4560
    %v4788 = vmul.f32 %v4404, %v4564
    %v4789 = vmul.f32 %v4405, %v4564
    %v4790 = vmul.f32 %v4406, %v4568
    %v4791 = vmul.f32 %v4407, %v4568
    %v4792 = vmul.f32 %v4408, %v4572
    %v4793 = vmul.f32 %v4409, %v4572
    %v4794 = vmul.f32 %v4410, %v4576
    %v4795 = vmul.f32 %v4411, %v4576
    %v4796 = vmul.f32 %v4412, %v4580
    %v4797 = vmul.f32 %v4413, %v4580
    %v4798 = vmul.f32 %v4414, %v4584
    %v4799 = vmul.f32 %v4415, %v4584
    %v4800 = vmul.f32 %v4416, %v4588
    %v4801 = vmul.f32 %v4417, %v4588
    %v4802 = vmul.f32 %v4418, %v4592
    %v4803 = vmul.f32 %v4419, %v4592
    %v4804 = vmul.f32 %v4420, %v4596
    %v4805 = vmul.f32 %v4421, %v4596
    %v4806 = vmul.f32 %v4422, %v4600
    %v4807 = vmul.f32 %v4423, %v4600
    %v4808 = vmul.f32 %v4424, %v4604
    %v4809 = vmul.f32 %v4425, %v4604
    %v4810 = vmul.f32 %v4426, %v4608
    %v4811 = vmul.f32 %v4427, %v4608
    %v4812 = vmul.f32 %v4428, %v4612
    %v4813 = vmul.f32 %v4429, %v4612
    %v4814 = vmul.f32 %v4430, %v4616
    %v4815 = vmul.f32 %v4431, %v4616
    %v4816 = vmul.f32 %v4432, %v4620
    %v4817 = vmul.f32 %v4433, %v4620
    %v4818 = vmul.f32 %v4434, %v4624
    %v4819 = vmul.f32 %v4435, %v4624
    %v4820 = vmul.f32 %v4436, %v4628
    %v4821 = vmul.f32 %v4437, %v4628
    %v4822 = vmul.f32 %v4438, %v4632
    %v4823 = vmul.f32 %v4439, %v4632
    %v4824 = vmul.f32 %v4440, %v4636
    %v4825 = vmul.f32 %v4441, %v4636
    %v4826 = vmul.f32 %v4442, %v4640
    %v4827 = vmul.f32 %v4443, %v4640
    %v4828 = vmul.f32 %v4444, %v4644
    %v4829 = vmul.f32 %v4445, %v4644
    %v4830 = vmul.f32 %v4446, %v4648
    %v4831 = vmul.f32 %v4447, %v4648
    %v4832 = vmul.f32 %v4448, %v4652
    %v4833 = vmul.f32 %v4449, %v4652
    %v4834 = vmul.f32 %v4450, %v4656
    %v4835 = vmul.f32 %v4451, %v4656
    %v4836 = vmul.f32 %v4452, %v4660
    %v4837 = vmul.f32 %v4453, %v4660
    %v4838 = vmul.f32 %v4454, %v4664
    %v4839 = vmul.f32 %v4455, %v4664
    %v4840 = vmul.f32 %v4456, %v4668
    %v4841 = vmul.f32 %v4457, %v4668
    %v4842 = vmul.f32 %v4458, %v4672
    %v4843 = vmul.f32 %v4459, %v4672
    %v4844 = vmul.f32 %v4460, %v4676
    %v4845 = vmul.f32 %v4461, %v4676
    %v4846 = vmul.f32 %v4462, %v4680
    %v4847 = vmul.f32 %v4463, %v4680
    %v4848 = vmul.f32 %v4464, %v4684
    %v4849 = vmul.f32 %v4465, %v4684
    %v4850 = vmul.f32 %v4466, %v4688
    %v4851 = vmul.f32 %v4467, %v4688
    %v4852 = vmul.f32 %v4468, %v4692
    %v4853 = vmul.f32 %v4469, %v4692
    %v4854 = vmul.f32 %v4470, %v4696
    %v4855 = vmul.f32 %v4471, %v4696
    %v4856 = vmul.f32 %v4472, %v4700
    %v4857 = vmul.f32 %v4473, %v4700
    %v4858 = vmul.f32 %v4474, %v4704
    %v4859 = vmul.f32 %v4475, %v4704
    %v4860 = vmul.f32 %v4476, %v4708
    %v4861 = vmul.f32 %v4477, %v4708
    %v4862 = vmul.f32 %v4478, %v4712
    %v4863 = vmul.f32 %v4479, %v4712
    %v4864 = vmul.f32 %v4480, %v4716
    %v4865 = vmul.f32 %v4481, %v4716
    %v4866 = vmul.f32 %v4482, %v4720
    %v4867 = vmul.f32 %v4483, %v4720
    %v4868 = vmul.f32 %v4484, %v4724
    %v4869 = vmul.f32 %v4485, %v4724
    %v4870 = vmul.f32 %v4486, %v4728
    %v4871 = vmul.f32 %v4487, %v4728
    %v4872 = vmul.f32 %v4488, %v4732
    %v4873 = vmul.f32 %v4489, %v4732
    %v4874 = vmul.f32 %v4490, %v4736
    %v4875 = vmul.f32 %v4491, %v4736
    %v4876 = vmul.f32 %v4492, %v4740
    %v4877 = vmul.f32 %v4493, %v4740
    %v4878 = vmul.f32 %v4494, %v4744
    %v4879 = vmul.f32 %v4495, %v4744
    %v4880 = vmul.f32 %v4496, %v4748
    %v4881 = vmul.f32 %v4497, %v4748
    %v4882 = vmul.f32 %v4498, %v4752
    %v4883 = vmul.f32 %v4499, %v4752
    %v4884 = vmul.f32 %v4500, %v4756
    %v4885 = vmul.f32 %v4501, %v4756
    %4886 = vset.pattern.permute.xlu0 2
    %4887 = vperm.xlu0 %4886, %v213
    %v4888 = vpop.permute.xlu0 %4887
    %4890 = vset.pattern.permute.xlu0 2
    %4891 = vperm.xlu0 %4890, %v214
    %v4892 = vpop.permute.xlu0 %4891
    %4894 = vset.pattern.permute.xlu0 2
    %4895 = vperm.xlu0 %4894, %v215
    %v4896 = vpop.permute.xlu0 %4895
    %4898 = vset.pattern.permute.xlu0 2
    %4899 = vperm.xlu0 %4898, %v216
    %v4900 = vpop.permute.xlu0 %4899
    %4902 = vset.pattern.permute.xlu0 2
    %4903 = vperm.xlu0 %4902, %v217
    %v4904 = vpop.permute.xlu0 %4903
    %4906 = vset.pattern.permute.xlu0 2
    %4907 = vperm.xlu0 %4906, %v218
    %v4908 = vpop.permute.xlu0 %4907
    %4910 = vset.pattern.permute.xlu0 2
    %4911 = vperm.xlu0 %4910, %v219
    %v4912 = vpop.permute.xlu0 %4911
    %4914 = vset.pattern.permute.xlu0 2
    %4915 = vperm.xlu0 %4914, %v220
    %v4916 = vpop.permute.xlu0 %4915
    %4918 = vset.pattern.permute.xlu0 2
    %4919 = vperm.xlu0 %4918, %v221
    %v4920 = vpop.permute.xlu0 %4919
    %4922 = vset.pattern.permute.xlu0 2
    %4923 = vperm.xlu0 %4922, %v222
    %v4924 = vpop.permute.xlu0 %4923
    %4926 = vset.pattern.permute.xlu0 2
    %4927 = vperm.xlu0 %4926, %v223
    %v4928 = vpop.permute.xlu0 %4927
    %4930 = vset.pattern.permute.xlu0 2
    %4931 = vperm.xlu0 %4930, %v224
    %v4932 = vpop.permute.xlu0 %4931
    %4934 = vset.pattern.permute.xlu0 2
    %4935 = vperm.xlu0 %4934, %v225
    %v4936 = vpop.permute.xlu0 %4935
    %4938 = vset.pattern.permute.xlu0 2
    %4939 = vperm.xlu0 %4938, %v226
    %v4940 = vpop.permute.xlu0 %4939
    %4942 = vset.pattern.permute.xlu0 2
    %4943 = vperm.xlu0 %4942, %v227
    %v4944 = vpop.permute.xlu0 %4943
    %4946 = vset.pattern.permute.xlu0 2
    %4947 = vperm.xlu0 %4946, %v228
    %v4948 = vpop.permute.xlu0 %4947
    %4950 = vset.pattern.permute.xlu0 2
    %4951 = vperm.xlu0 %4950, %v229
    %v4952 = vpop.permute.xlu0 %4951
    %4954 = vset.pattern.permute.xlu0 2
    %4955 = vperm.xlu0 %4954, %v230
    %v4956 = vpop.permute.xlu0 %4955
    %4958 = vset.pattern.permute.xlu0 2
    %4959 = vperm.xlu0 %4958, %v231
    %v4960 = vpop.permute.xlu0 %4959
    %4962 = vset.pattern.permute.xlu0 2
    %4963 = vperm.xlu0 %4962, %v232
    %v4964 = vpop.permute.xlu0 %4963
    %4966 = vset.pattern.permute.xlu0 2
    %4967 = vperm.xlu0 %4966, %v233
    %v4968 = vpop.permute.xlu0 %4967
    %4970 = vset.pattern.permute.xlu0 2
    %4971 = vperm.xlu0 %4970, %v234
    %v4972 = vpop.permute.xlu0 %4971
    %4974 = vset.pattern.permute.xlu0 2
    %4975 = vperm.xlu0 %4974, %v235
    %v4976 = vpop.permute.xlu0 %4975
    %4978 = vset.pattern.permute.xlu0 2
    %4979 = vperm.xlu0 %4978, %v236
    %v4980 = vpop.permute.xlu0 %4979
    %4982 = vset.pattern.permute.xlu0 2
    %4983 = vperm.xlu0 %4982, %v237
    %v4984 = vpop.permute.xlu0 %4983
    %4986 = vset.pattern.permute.xlu0 2
    %4987 = vperm.xlu0 %4986, %v238
    %v4988 = vpop.permute.xlu0 %4987
    %4990 = vset.pattern.permute.xlu0 2
    %4991 = vperm.xlu0 %4990, %v239
    %v4992 = vpop.permute.xlu0 %4991
    %4994 = vset.pattern.permute.xlu0 2
    %4995 = vperm.xlu0 %4994, %v240
    %v4996 = vpop.permute.xlu0 %4995
    %4998 = vset.pattern.permute.xlu0 2
    %4999 = vperm.xlu0 %4998, %v241
    %v5000 = vpop.permute.xlu0 %4999
    %5002 = vset.pattern.permute.xlu0 2
    %5003 = vperm.xlu0 %5002, %v242
    %v5004 = vpop.permute.xlu0 %5003
    %5006 = vset.pattern.permute.xlu0 2
    %5007 = vperm.xlu0 %5006, %v243
    %v5008 = vpop.permute.xlu0 %5007
    %5010 = vset.pattern.permute.xlu0 2
    %5011 = vperm.xlu0 %5010, %v244
    %v5012 = vpop.permute.xlu0 %5011
    %5014 = vset.pattern.permute.xlu0 2
    %5015 = vperm.xlu0 %5014, %v245
    %v5016 = vpop.permute.xlu0 %5015
    %5018 = vset.pattern.permute.xlu0 2
    %5019 = vperm.xlu0 %5018, %v246
    %v5020 = vpop.permute.xlu0 %5019
    %5022 = vset.pattern.permute.xlu0 2
    %5023 = vperm.xlu0 %5022, %v247
    %v5024 = vpop.permute.xlu0 %5023
    %5026 = vset.pattern.permute.xlu0 2
    %5027 = vperm.xlu0 %5026, %v248
    %v5028 = vpop.permute.xlu0 %5027
    %5030 = vset.pattern.permute.xlu0 2
    %5031 = vperm.xlu0 %5030, %v249
    %v5032 = vpop.permute.xlu0 %5031
    %5034 = vset.pattern.permute.xlu0 2
    %5035 = vperm.xlu0 %5034, %v250
    %v5036 = vpop.permute.xlu0 %5035
    %5038 = vset.pattern.permute.xlu0 2
    %5039 = vperm.xlu0 %5038, %v251
    %v5040 = vpop.permute.xlu0 %5039
    %5042 = vset.pattern.permute.xlu0 2
    %5043 = vperm.xlu0 %5042, %v252
    %v5044 = vpop.permute.xlu0 %5043
    %5046 = vset.pattern.permute.xlu0 2
    %5047 = vperm.xlu0 %5046, %v253
    %v5048 = vpop.permute.xlu0 %5047
    %5050 = vset.pattern.permute.xlu0 2
    %5051 = vperm.xlu0 %5050, %v254
    %v5052 = vpop.permute.xlu0 %5051
    %5054 = vset.pattern.permute.xlu0 2
    %5055 = vperm.xlu0 %5054, %v255
    %v5056 = vpop.permute.xlu0 %5055
    %5058 = vset.pattern.permute.xlu0 2
    %5059 = vperm.xlu0 %5058, %v256
    %v5060 = vpop.permute.xlu0 %5059
    %5062 = vset.pattern.permute.xlu0 2
    %5063 = vperm.xlu0 %5062, %v257
    %v5064 = vpop.permute.xlu0 %5063
    %5066 = vset.pattern.permute.xlu0 2
    %5067 = vperm.xlu0 %5066, %v258
    %v5068 = vpop.permute.xlu0 %5067
    %5070 = vset.pattern.permute.xlu0 2
    %5071 = vperm.xlu0 %5070, %v259
    %v5072 = vpop.permute.xlu0 %5071
    %5074 = vset.pattern.permute.xlu0 2
    %5075 = vperm.xlu0 %5074, %v260
    %v5076 = vpop.permute.xlu0 %5075
    %5078 = vset.pattern.permute.xlu0 2
    %5079 = vperm.xlu0 %5078, %v261
    %v5080 = vpop.permute.xlu0 %5079
    %5082 = vset.pattern.permute.xlu0 2
    %5083 = vperm.xlu0 %5082, %v262
    %v5084 = vpop.permute.xlu0 %5083
    %5086 = vset.pattern.permute.xlu0 2
    %5087 = vperm.xlu0 %5086, %v263
    %v5088 = vpop.permute.xlu0 %5087
    %5090 = vset.pattern.permute.xlu0 2
    %5091 = vperm.xlu0 %5090, %v264
    %v5092 = vpop.permute.xlu0 %5091
    %5094 = vset.pattern.permute.xlu0 2
    %5095 = vperm.xlu0 %5094, %v265
    %v5096 = vpop.permute.xlu0 %5095
    %5098 = vset.pattern.permute.xlu0 2
    %5099 = vperm.xlu0 %5098, %v266
    %v5100 = vpop.permute.xlu0 %5099
    %5102 = vset.pattern.permute.xlu0 2
    %5103 = vperm.xlu0 %5102, %v267
    %v5104 = vpop.permute.xlu0 %5103
    %5106 = vset.pattern.permute.xlu0 2
    %5107 = vperm.xlu0 %5106, %v268
    %v5108 = vpop.permute.xlu0 %5107
    %5110 = vset.pattern.permute.xlu0 2
    %5111 = vperm.xlu0 %5110, %v269
    %v5112 = vpop.permute.xlu0 %5111
    %5114 = vset.pattern.permute.xlu0 2
    %5115 = vperm.xlu0 %5114, %v270
    %v5116 = vpop.permute.xlu0 %5115
    %5118 = vset.pattern.permute.xlu0 2
    %5119 = vperm.xlu0 %5118, %v271
    %v5120 = vpop.permute.xlu0 %5119
    %5122 = vset.pattern.permute.xlu0 2
    %5123 = vperm.xlu0 %5122, %v272
    %v5124 = vpop.permute.xlu0 %5123
    %5126 = vset.pattern.permute.xlu0 2
    %5127 = vperm.xlu0 %5126, %v273
    %v5128 = vpop.permute.xlu0 %5127
    %5130 = vset.pattern.permute.xlu0 2
    %5131 = vperm.xlu0 %5130, %v274
    %v5132 = vpop.permute.xlu0 %5131
    %5134 = vset.pattern.permute.xlu0 2
    %5135 = vperm.xlu0 %5134, %v275
    %v5136 = vpop.permute.xlu0 %5135
    %5138 = vset.pattern.permute.xlu0 2
    %5139 = vperm.xlu0 %5138, %v276
    %v5140 = vpop.permute.xlu0 %5139
    %v5142 = vadd.f32 %v4758, %v4888
    %v5143 = vadd.f32 %v4759, %v4888
    %v5144 = vadd.f32 %v4760, %v4892
    %v5145 = vadd.f32 %v4761, %v4892
    %v5146 = vadd.f32 %v4762, %v4896
    %v5147 = vadd.f32 %v4763, %v4896
    %v5148 = vadd.f32 %v4764, %v4900
    %v5149 = vadd.f32 %v4765, %v4900
    %v5150 = vadd.f32 %v4766, %v4904
    %v5151 = vadd.f32 %v4767, %v4904
    %v5152 = vadd.f32 %v4768, %v4908
    %v5153 = vadd.f32 %v4769, %v4908
    %v5154 = vadd.f32 %v4770, %v4912
    %v5155 = vadd.f32 %v4771, %v4912
    %v5156 = vadd.f32 %v4772, %v4916
    %v5157 = vadd.f32 %v4773, %v4916
    %v5158 = vadd.f32 %v4774, %v4920
    %v5159 = vadd.f32 %v4775, %v4920
    %v5160 = vadd.f32 %v4776, %v4924
    %v5161 = vadd.f32 %v4777, %v4924
    %v5162 = vadd.f32 %v4778, %v4928
    %v5163 = vadd.f32 %v4779, %v4928
    %v5164 = vadd.f32 %v4780, %v4932
    %v5165 = vadd.f32 %v4781, %v4932
    %v5166 = vadd.f32 %v4782, %v4936
    %v5167 = vadd.f32 %v4783, %v4936
    %v5168 = vadd.f32 %v4784, %v4940
    %v5169 = vadd.f32 %v4785, %v4940
    %v5170 = vadd.f32 %v4786, %v4944
    %v5171 = vadd.f32 %v4787, %v4944
    %v5172 = vadd.f32 %v4788, %v4948
    %v5173 = vadd.f32 %v4789, %v4948
    %v5174 = vadd.f32 %v4790, %v4952
    %v5175 = vadd.f32 %v4791, %v4952
    %v5176 = vadd.f32 %v4792, %v4956
    %v5177 = vadd.f32 %v4793, %v4956
    %v5178 = vadd.f32 %v4794, %v4960
    %v5179 = vadd.f32 %v4795, %v4960
    %v5180 = vadd.f32 %v4796, %v4964
    %v5181 = vadd.f32 %v4797, %v4964
    %v5182 = vadd.f32 %v4798, %v4968
    %v5183 = vadd.f32 %v4799, %v4968
    %v5184 = vadd.f32 %v4800, %v4972
    %v5185 = vadd.f32 %v4801, %v4972
    %v5186 = vadd.f32 %v4802, %v4976
    %v5187 = vadd.f32 %v4803, %v4976
    %v5188 = vadd.f32 %v4804, %v4980
    %v5189 = vadd.f32 %v4805, %v4980
    %v5190 = vadd.f32 %v4806, %v4984
    %v5191 = vadd.f32 %v4807, %v4984
    %v5192 = vadd.f32 %v4808, %v4988
    %v5193 = vadd.f32 %v4809, %v4988
    %v5194 = vadd.f32 %v4810, %v4992
    %v5195 = vadd.f32 %v4811, %v4992
    %v5196 = vadd.f32 %v4812, %v4996
    %v5197 = vadd.f32 %v4813, %v4996
    %v5198 = vadd.f32 %v4814, %v5000
    %v5199 = vadd.f32 %v4815, %v5000
    %v5200 = vadd.f32 %v4816, %v5004
    %v5201 = vadd.f32 %v4817, %v5004
    %v5202 = vadd.f32 %v4818, %v5008
    %v5203 = vadd.f32 %v4819, %v5008
    %v5204 = vadd.f32 %v4820, %v5012
    %v5205 = vadd.f32 %v4821, %v5012
    %v5206 = vadd.f32 %v4822, %v5016
    %v5207 = vadd.f32 %v4823, %v5016
    %v5208 = vadd.f32 %v4824, %v5020
    %v5209 = vadd.f32 %v4825, %v5020
    %v5210 = vadd.f32 %v4826, %v5024
    %v5211 = vadd.f32 %v4827, %v5024
    %v5212 = vadd.f32 %v4828, %v5028
    %v5213 = vadd.f32 %v4829, %v5028
    %v5214 = vadd.f32 %v4830, %v5032
    %v5215 = vadd.f32 %v4831, %v5032
    %v5216 = vadd.f32 %v4832, %v5036
    %v5217 = vadd.f32 %v4833, %v5036
    %v5218 = vadd.f32 %v4834, %v5040
    %v5219 = vadd.f32 %v4835, %v5040
    %v5220 = vadd.f32 %v4836, %v5044
    %v5221 = vadd.f32 %v4837, %v5044
    %v5222 = vadd.f32 %v4838, %v5048
    %v5223 = vadd.f32 %v4839, %v5048
    %v5224 = vadd.f32 %v4840, %v5052
    %v5225 = vadd.f32 %v4841, %v5052
    %v5226 = vadd.f32 %v4842, %v5056
    %v5227 = vadd.f32 %v4843, %v5056
    %v5228 = vadd.f32 %v4844, %v5060
    %v5229 = vadd.f32 %v4845, %v5060
    %v5230 = vadd.f32 %v4846, %v5064
    %v5231 = vadd.f32 %v4847, %v5064
    %v5232 = vadd.f32 %v4848, %v5068
    %v5233 = vadd.f32 %v4849, %v5068
    %v5234 = vadd.f32 %v4850, %v5072
    %v5235 = vadd.f32 %v4851, %v5072
    %v5236 = vadd.f32 %v4852, %v5076
    %v5237 = vadd.f32 %v4853, %v5076
    %v5238 = vadd.f32 %v4854, %v5080
    %v5239 = vadd.f32 %v4855, %v5080
    %v5240 = vadd.f32 %v4856, %v5084
    %v5241 = vadd.f32 %v4857, %v5084
    %v5242 = vadd.f32 %v4858, %v5088
    %v5243 = vadd.f32 %v4859, %v5088
    %v5244 = vadd.f32 %v4860, %v5092
    %v5245 = vadd.f32 %v4861, %v5092
    %v5246 = vadd.f32 %v4862, %v5096
    %v5247 = vadd.f32 %v4863, %v5096
    %v5248 = vadd.f32 %v4864, %v5100
    %v5249 = vadd.f32 %v4865, %v5100
    %v5250 = vadd.f32 %v4866, %v5104
    %v5251 = vadd.f32 %v4867, %v5104
    %v5252 = vadd.f32 %v4868, %v5108
    %v5253 = vadd.f32 %v4869, %v5108
    %v5254 = vadd.f32 %v4870, %v5112
    %v5255 = vadd.f32 %v4871, %v5112
    %v5256 = vadd.f32 %v4872, %v5116
    %v5257 = vadd.f32 %v4873, %v5116
    %v5258 = vadd.f32 %v4874, %v5120
    %v5259 = vadd.f32 %v4875, %v5120
    %v5260 = vadd.f32 %v4876, %v5124
    %v5261 = vadd.f32 %v4877, %v5124
    %v5262 = vadd.f32 %v4878, %v5128
    %v5263 = vadd.f32 %v4879, %v5128
    %v5264 = vadd.f32 %v4880, %v5132
    %v5265 = vadd.f32 %v4881, %v5132
    %v5266 = vadd.f32 %v4882, %v5136
    %v5267 = vadd.f32 %v4883, %v5136
    %v5268 = vadd.f32 %v4884, %v5140
    %v5269 = vadd.f32 %v4885, %v5140
    %5270 = vst [vmem:[#allocation8] sm:$0xff] %v5142
    %5271 = vst [vmem:[#allocation8 + $0x8] sm:$0xff] %v5143
    %5272 = vst [vmem:[#allocation8 + $0x10] sm:$0xff] %v5144
    %5273 = vst [vmem:[#allocation8 + $0x18] sm:$0xff] %v5145
    %5274 = vst [vmem:[#allocation8 + $0x20] sm:$0xff] %v5146
    %5275 = vst [vmem:[#allocation8 + $0x28] sm:$0xff] %v5147
    %5276 = vst [vmem:[#allocation8 + $0x30] sm:$0xff] %v5148
    %5277 = vst [vmem:[#allocation8 + $0x38] sm:$0xff] %v5149
    %5278 = vst [vmem:[#allocation8 + $0x40] sm:$0xff] %v5150
    %5279 = vst [vmem:[#allocation8 + $0x48] sm:$0xff] %v5151
    %5280 = vst [vmem:[#allocation8 + $0x50] sm:$0xff] %v5152
    %5281 = vst [vmem:[#allocation8 + $0x58] sm:$0xff] %v5153
    %5282 = vst [vmem:[#allocation8 + $0x60] sm:$0xff] %v5154
    %5283 = vst [vmem:[#allocation8 + $0x68] sm:$0xff] %v5155
    %5284 = vst [vmem:[#allocation8 + $0x70] sm:$0xff] %v5156
    %5285 = vst [vmem:[#allocation8 + $0x78] sm:$0xff] %v5157
    %5286 = vst [vmem:[#allocation8 + $0x80] sm:$0xff] %v5158
    %5287 = vst [vmem:[#allocation8 + $0x88] sm:$0xff] %v5159
    %5288 = vst [vmem:[#allocation8 + $0x90] sm:$0xff] %v5160
    %5289 = vst [vmem:[#allocation8 + $0x98] sm:$0xff] %v5161
    %5290 = vst [vmem:[#allocation8 + $0xa0] sm:$0xff] %v5162
    %5291 = vst [vmem:[#allocation8 + $0xa8] sm:$0xff] %v5163
    %5292 = vst [vmem:[#allocation8 + $0xb0] sm:$0xff] %v5164
    %5293 = vst [vmem:[#allocation8 + $0xb8] sm:$0xff] %v5165
    %5294 = vst [vmem:[#allocation8 + $0xc0] sm:$0xff] %v5166
    %5295 = vst [vmem:[#allocation8 + $0xc8] sm:$0xff] %v5167
    %5296 = vst [vmem:[#allocation8 + $0xd0] sm:$0xff] %v5168
    %5297 = vst [vmem:[#allocation8 + $0xd8] sm:$0xff] %v5169
    %5298 = vst [vmem:[#allocation8 + $0xe0] sm:$0xff] %v5170
    %5299 = vst [vmem:[#allocation8 + $0xe8] sm:$0xff] %v5171
    %5300 = vst [vmem:[#allocation8 + $0xf0] sm:$0xff] %v5172
    %5301 = vst [vmem:[#allocation8 + $0xf8] sm:$0xff] %v5173
    %5302 = vst [vmem:[#allocation8 + $0x100] sm:$0xff] %v5174
    %5303 = vst [vmem:[#allocation8 + $0x108] sm:$0xff] %v5175
    %5304 = vst [vmem:[#allocation8 + $0x110] sm:$0xff] %v5176
    %5305 = vst [vmem:[#allocation8 + $0x118] sm:$0xff] %v5177
    %5306 = vst [vmem:[#allocation8 + $0x120] sm:$0xff] %v5178
    %5307 = vst [vmem:[#allocation8 + $0x128] sm:$0xff] %v5179
    %5308 = vst [vmem:[#allocation8 + $0x130] sm:$0xff] %v5180
    %5309 = vst [vmem:[#allocation8 + $0x138] sm:$0xff] %v5181
    %5310 = vst [vmem:[#allocation8 + $0x140] sm:$0xff] %v5182
    %5311 = vst [vmem:[#allocation8 + $0x148] sm:$0xff] %v5183
    %5312 = vst [vmem:[#allocation8 + $0x150] sm:$0xff] %v5184
    %5313 = vst [vmem:[#allocation8 + $0x158] sm:$0xff] %v5185
    %5314 = vst [vmem:[#allocation8 + $0x160] sm:$0xff] %v5186
    %5315 = vst [vmem:[#allocation8 + $0x168] sm:$0xff] %v5187
    %5316 = vst [vmem:[#allocation8 + $0x170] sm:$0xff] %v5188
    %5317 = vst [vmem:[#allocation8 + $0x178] sm:$0xff] %v5189
    %5318 = vst [vmem:[#allocation8 + $0x180] sm:$0xff] %v5190
    %5319 = vst [vmem:[#allocation8 + $0x188] sm:$0xff] %v5191
    %5320 = vst [vmem:[#allocation8 + $0x190] sm:$0xff] %v5192
    %5321 = vst [vmem:[#allocation8 + $0x198] sm:$0xff] %v5193
    %5322 = vst [vmem:[#allocation8 + $0x1a0] sm:$0xff] %v5194
    %5323 = vst [vmem:[#allocation8 + $0x1a8] sm:$0xff] %v5195
    %5324 = vst [vmem:[#allocation8 + $0x1b0] sm:$0xff] %v5196
    %5325 = vst [vmem:[#allocation8 + $0x1b8] sm:$0xff] %v5197
    %5326 = vst [vmem:[#allocation8 + $0x1c0] sm:$0xff] %v5198
    %5327 = vst [vmem:[#allocation8 + $0x1c8] sm:$0xff] %v5199
    %5328 = vst [vmem:[#allocation8 + $0x1d0] sm:$0xff] %v5200
    %5329 = vst [vmem:[#allocation8 + $0x1d8] sm:$0xff] %v5201
    %5330 = vst [vmem:[#allocation8 + $0x1e0] sm:$0xff] %v5202
    %5331 = vst [vmem:[#allocation8 + $0x1e8] sm:$0xff] %v5203
    %5332 = vst [vmem:[#allocation8 + $0x1f0] sm:$0xff] %v5204
    %5333 = vst [vmem:[#allocation8 + $0x1f8] sm:$0xff] %v5205
    %5334 = vst [vmem:[#allocation8 + $0x200] sm:$0xff] %v5206
    %5335 = vst [vmem:[#allocation8 + $0x208] sm:$0xff] %v5207
    %5336 = vst [vmem:[#allocation8 + $0x210] sm:$0xff] %v5208
    %5337 = vst [vmem:[#allocation8 + $0x218] sm:$0xff] %v5209
    %5338 = vst [vmem:[#allocation8 + $0x220] sm:$0xff] %v5210
    %5339 = vst [vmem:[#allocation8 + $0x228] sm:$0xff] %v5211
    %5340 = vst [vmem:[#allocation8 + $0x230] sm:$0xff] %v5212
    %5341 = vst [vmem:[#allocation8 + $0x238] sm:$0xff] %v5213
    %5342 = vst [vmem:[#allocation8 + $0x240] sm:$0xff] %v5214
    %5343 = vst [vmem:[#allocation8 + $0x248] sm:$0xff] %v5215
    %5344 = vst [vmem:[#allocation8 + $0x250] sm:$0xff] %v5216
    %5345 = vst [vmem:[#allocation8 + $0x258] sm:$0xff] %v5217
    %5346 = vst [vmem:[#allocation8 + $0x260] sm:$0xff] %v5218
    %5347 = vst [vmem:[#allocation8 + $0x268] sm:$0xff] %v5219
    %5348 = vst [vmem:[#allocation8 + $0x270] sm:$0xff] %v5220
    %5349 = vst [vmem:[#allocation8 + $0x278] sm:$0xff] %v5221
    %5350 = vst [vmem:[#allocation8 + $0x280] sm:$0xff] %v5222
    %5351 = vst [vmem:[#allocation8 + $0x288] sm:$0xff] %v5223
    %5352 = vst [vmem:[#allocation8 + $0x290] sm:$0xff] %v5224
    %5353 = vst [vmem:[#allocation8 + $0x298] sm:$0xff] %v5225
    %5354 = vst [vmem:[#allocation8 + $0x2a0] sm:$0xff] %v5226
    %5355 = vst [vmem:[#allocation8 + $0x2a8] sm:$0xff] %v5227
    %5356 = vst [vmem:[#allocation8 + $0x2b0] sm:$0xff] %v5228
    %5357 = vst [vmem:[#allocation8 + $0x2b8] sm:$0xff] %v5229
    %5358 = vst [vmem:[#allocation8 + $0x2c0] sm:$0xff] %v5230
    %5359 = vst [vmem:[#allocation8 + $0x2c8] sm:$0xff] %v5231
    %5360 = vst [vmem:[#allocation8 + $0x2d0] sm:$0xff] %v5232
    %5361 = vst [vmem:[#allocation8 + $0x2d8] sm:$0xff] %v5233
    %5362 = vst [vmem:[#allocation8 + $0x2e0] sm:$0xff] %v5234
    %5363 = vst [vmem:[#allocation8 + $0x2e8] sm:$0xff] %v5235
    %5364 = vst [vmem:[#allocation8 + $0x2f0] sm:$0xff] %v5236
    %5365 = vst [vmem:[#allocation8 + $0x2f8] sm:$0xff] %v5237
    %5366 = vst [vmem:[#allocation8 + $0x300] sm:$0xff] %v5238
    %5367 = vst [vmem:[#allocation8 + $0x308] sm:$0xff] %v5239
    %5368 = vst [vmem:[#allocation8 + $0x310] sm:$0xff] %v5240
    %5369 = vst [vmem:[#allocation8 + $0x318] sm:$0xff] %v5241
    %5370 = vst [vmem:[#allocation8 + $0x320] sm:$0xff] %v5242
    %5371 = vst [vmem:[#allocation8 + $0x328] sm:$0xff] %v5243
    %5372 = vst [vmem:[#allocation8 + $0x330] sm:$0xff] %v5244
    %5373 = vst [vmem:[#allocation8 + $0x338] sm:$0xff] %v5245
    %5374 = vst [vmem:[#allocation8 + $0x340] sm:$0xff] %v5246
    %5375 = vst [vmem:[#allocation8 + $0x348] sm:$0xff] %v5247
    %5376 = vst [vmem:[#allocation8 + $0x350] sm:$0xff] %v5248
    %5377 = vst [vmem:[#allocation8 + $0x358] sm:$0xff] %v5249
    %5378 = vst [vmem:[#allocation8 + $0x360] sm:$0xff] %v5250
    %5379 = vst [vmem:[#allocation8 + $0x368] sm:$0xff] %v5251
    %5380 = vst [vmem:[#allocation8 + $0x370] sm:$0xff] %v5252
    %5381 = vst [vmem:[#allocation8 + $0x378] sm:$0xff] %v5253
    %5382 = vst [vmem:[#allocation8 + $0x380] sm:$0xff] %v5254
    %5383 = vst [vmem:[#allocation8 + $0x388] sm:$0xff] %v5255
    %5384 = vst [vmem:[#allocation8 + $0x390] sm:$0xff] %v5256
    %5385 = vst [vmem:[#allocation8 + $0x398] sm:$0xff] %v5257
    %5386 = vst [vmem:[#allocation8 + $0x3a0] sm:$0xff] %v5258
    %5387 = vst [vmem:[#allocation8 + $0x3a8] sm:$0xff] %v5259
    %5388 = vst [vmem:[#allocation8 + $0x3b0] sm:$0xff] %v5260
    %5389 = vst [vmem:[#allocation8 + $0x3b8] sm:$0xff] %v5261
    %5390 = vst [vmem:[#allocation8 + $0x3c0] sm:$0xff] %v5262
    %5391 = vst [vmem:[#allocation8 + $0x3c8] sm:$0xff] %v5263
    %5392 = vst [vmem:[#allocation8 + $0x3d0] sm:$0xff] %v5264
    %5393 = vst [vmem:[#allocation8 + $0x3d8] sm:$0xff] %v5265
    %5394 = vst [vmem:[#allocation8 + $0x3e0] sm:$0xff] %v5266
    %5395 = vst [vmem:[#allocation8 + $0x3e8] sm:$0xff] %v5267
    %5396 = vst [vmem:[#allocation8 + $0x3f0] sm:$0xff] %v5268
    %5397 = vst [vmem:[#allocation8 + $0x3f8] sm:$0xff] %v5269
    %s5398 = scalar_lea.vmem [#allocation2], 1024
    %v5399 = vld [vmem:[%s5398] sm:$0xff]
    %v5400 = vld [vmem:[%s5398 + $0x8] sm:$0xff]
    %v5401 = vld [vmem:[%s5398 + $0x10] sm:$0xff]
    %v5402 = vld [vmem:[%s5398 + $0x18] sm:$0xff]
    %v5403 = vld [vmem:[%s5398 + $0x20] sm:$0xff]
    %v5404 = vld [vmem:[%s5398 + $0x28] sm:$0xff]
    %v5405 = vld [vmem:[%s5398 + $0x30] sm:$0xff]
    %v5406 = vld [vmem:[%s5398 + $0x38] sm:$0xff]
    %v5407 = vld [vmem:[%s5398 + $0x40] sm:$0xff]
    %v5408 = vld [vmem:[%s5398 + $0x48] sm:$0xff]
    %v5409 = vld [vmem:[%s5398 + $0x50] sm:$0xff]
    %v5410 = vld [vmem:[%s5398 + $0x58] sm:$0xff]
    %v5411 = vld [vmem:[%s5398 + $0x60] sm:$0xff]
    %v5412 = vld [vmem:[%s5398 + $0x68] sm:$0xff]
    %v5413 = vld [vmem:[%s5398 + $0x70] sm:$0xff]
    %v5414 = vld [vmem:[%s5398 + $0x78] sm:$0xff]
    %v5415 = vld [vmem:[%s5398 + $0x80] sm:$0xff]
    %v5416 = vld [vmem:[%s5398 + $0x88] sm:$0xff]
    %v5417 = vld [vmem:[%s5398 + $0x90] sm:$0xff]
    %v5418 = vld [vmem:[%s5398 + $0x98] sm:$0xff]
    %v5419 = vld [vmem:[%s5398 + $0xa0] sm:$0xff]
    %v5420 = vld [vmem:[%s5398 + $0xa8] sm:$0xff]
    %v5421 = vld [vmem:[%s5398 + $0xb0] sm:$0xff]
    %v5422 = vld [vmem:[%s5398 + $0xb8] sm:$0xff]
    %v5423 = vld [vmem:[%s5398 + $0xc0] sm:$0xff]
    %v5424 = vld [vmem:[%s5398 + $0xc8] sm:$0xff]
    %v5425 = vld [vmem:[%s5398 + $0xd0] sm:$0xff]
    %v5426 = vld [vmem:[%s5398 + $0xd8] sm:$0xff]
    %v5427 = vld [vmem:[%s5398 + $0xe0] sm:$0xff]
    %v5428 = vld [vmem:[%s5398 + $0xe8] sm:$0xff]
    %v5429 = vld [vmem:[%s5398 + $0xf0] sm:$0xff]
    %v5430 = vld [vmem:[%s5398 + $0xf8] sm:$0xff]
    %v5431 = vld [vmem:[%s5398 + $0x100] sm:$0xff]
    %v5432 = vld [vmem:[%s5398 + $0x108] sm:$0xff]
    %v5433 = vld [vmem:[%s5398 + $0x110] sm:$0xff]
    %v5434 = vld [vmem:[%s5398 + $0x118] sm:$0xff]
    %v5435 = vld [vmem:[%s5398 + $0x120] sm:$0xff]
    %v5436 = vld [vmem:[%s5398 + $0x128] sm:$0xff]
    %v5437 = vld [vmem:[%s5398 + $0x130] sm:$0xff]
    %v5438 = vld [vmem:[%s5398 + $0x138] sm:$0xff]
    %v5439 = vld [vmem:[%s5398 + $0x140] sm:$0xff]
    %v5440 = vld [vmem:[%s5398 + $0x148] sm:$0xff]
    %v5441 = vld [vmem:[%s5398 + $0x150] sm:$0xff]
    %v5442 = vld [vmem:[%s5398 + $0x158] sm:$0xff]
    %v5443 = vld [vmem:[%s5398 + $0x160] sm:$0xff]
    %v5444 = vld [vmem:[%s5398 + $0x168] sm:$0xff]
    %v5445 = vld [vmem:[%s5398 + $0x170] sm:$0xff]
    %v5446 = vld [vmem:[%s5398 + $0x178] sm:$0xff]
    %v5447 = vld [vmem:[%s5398 + $0x180] sm:$0xff]
    %v5448 = vld [vmem:[%s5398 + $0x188] sm:$0xff]
    %v5449 = vld [vmem:[%s5398 + $0x190] sm:$0xff]
    %v5450 = vld [vmem:[%s5398 + $0x198] sm:$0xff]
    %v5451 = vld [vmem:[%s5398 + $0x1a0] sm:$0xff]
    %v5452 = vld [vmem:[%s5398 + $0x1a8] sm:$0xff]
    %v5453 = vld [vmem:[%s5398 + $0x1b0] sm:$0xff]
    %v5454 = vld [vmem:[%s5398 + $0x1b8] sm:$0xff]
    %v5455 = vld [vmem:[%s5398 + $0x1c0] sm:$0xff]
    %v5456 = vld [vmem:[%s5398 + $0x1c8] sm:$0xff]
    %v5457 = vld [vmem:[%s5398 + $0x1d0] sm:$0xff]
    %v5458 = vld [vmem:[%s5398 + $0x1d8] sm:$0xff]
    %v5459 = vld [vmem:[%s5398 + $0x1e0] sm:$0xff]
    %v5460 = vld [vmem:[%s5398 + $0x1e8] sm:$0xff]
    %v5461 = vld [vmem:[%s5398 + $0x1f0] sm:$0xff]
    %v5462 = vld [vmem:[%s5398 + $0x1f8] sm:$0xff]
    %v5463 = vld [vmem:[%s5398 + $0x200] sm:$0xff]
    %v5464 = vld [vmem:[%s5398 + $0x208] sm:$0xff]
    %v5465 = vld [vmem:[%s5398 + $0x210] sm:$0xff]
    %v5466 = vld [vmem:[%s5398 + $0x218] sm:$0xff]
    %v5467 = vld [vmem:[%s5398 + $0x220] sm:$0xff]
    %v5468 = vld [vmem:[%s5398 + $0x228] sm:$0xff]
    %v5469 = vld [vmem:[%s5398 + $0x230] sm:$0xff]
    %v5470 = vld [vmem:[%s5398 + $0x238] sm:$0xff]
    %v5471 = vld [vmem:[%s5398 + $0x240] sm:$0xff]
    %v5472 = vld [vmem:[%s5398 + $0x248] sm:$0xff]
    %v5473 = vld [vmem:[%s5398 + $0x250] sm:$0xff]
    %v5474 = vld [vmem:[%s5398 + $0x258] sm:$0xff]
    %v5475 = vld [vmem:[%s5398 + $0x260] sm:$0xff]
    %v5476 = vld [vmem:[%s5398 + $0x268] sm:$0xff]
    %v5477 = vld [vmem:[%s5398 + $0x270] sm:$0xff]
    %v5478 = vld [vmem:[%s5398 + $0x278] sm:$0xff]
    %v5479 = vld [vmem:[%s5398 + $0x280] sm:$0xff]
    %v5480 = vld [vmem:[%s5398 + $0x288] sm:$0xff]
    %v5481 = vld [vmem:[%s5398 + $0x290] sm:$0xff]
    %v5482 = vld [vmem:[%s5398 + $0x298] sm:$0xff]
    %v5483 = vld [vmem:[%s5398 + $0x2a0] sm:$0xff]
    %v5484 = vld [vmem:[%s5398 + $0x2a8] sm:$0xff]
    %v5485 = vld [vmem:[%s5398 + $0x2b0] sm:$0xff]
    %v5486 = vld [vmem:[%s5398 + $0x2b8] sm:$0xff]
    %v5487 = vld [vmem:[%s5398 + $0x2c0] sm:$0xff]
    %v5488 = vld [vmem:[%s5398 + $0x2c8] sm:$0xff]
    %v5489 = vld [vmem:[%s5398 + $0x2d0] sm:$0xff]
    %v5490 = vld [vmem:[%s5398 + $0x2d8] sm:$0xff]
    %v5491 = vld [vmem:[%s5398 + $0x2e0] sm:$0xff]
    %v5492 = vld [vmem:[%s5398 + $0x2e8] sm:$0xff]
    %v5493 = vld [vmem:[%s5398 + $0x2f0] sm:$0xff]
    %v5494 = vld [vmem:[%s5398 + $0x2f8] sm:$0xff]
    %v5495 = vld [vmem:[%s5398 + $0x300] sm:$0xff]
    %v5496 = vld [vmem:[%s5398 + $0x308] sm:$0xff]
    %v5497 = vld [vmem:[%s5398 + $0x310] sm:$0xff]
    %v5498 = vld [vmem:[%s5398 + $0x318] sm:$0xff]
    %v5499 = vld [vmem:[%s5398 + $0x320] sm:$0xff]
    %v5500 = vld [vmem:[%s5398 + $0x328] sm:$0xff]
    %v5501 = vld [vmem:[%s5398 + $0x330] sm:$0xff]
    %v5502 = vld [vmem:[%s5398 + $0x338] sm:$0xff]
    %v5503 = vld [vmem:[%s5398 + $0x340] sm:$0xff]
    %v5504 = vld [vmem:[%s5398 + $0x348] sm:$0xff]
    %v5505 = vld [vmem:[%s5398 + $0x350] sm:$0xff]
    %v5506 = vld [vmem:[%s5398 + $0x358] sm:$0xff]
    %v5507 = vld [vmem:[%s5398 + $0x360] sm:$0xff]
    %v5508 = vld [vmem:[%s5398 + $0x368] sm:$0xff]
    %v5509 = vld [vmem:[%s5398 + $0x370] sm:$0xff]
    %v5510 = vld [vmem:[%s5398 + $0x378] sm:$0xff]
    %v5511 = vld [vmem:[%s5398 + $0x380] sm:$0xff]
    %v5512 = vld [vmem:[%s5398 + $0x388] sm:$0xff]
    %v5513 = vld [vmem:[%s5398 + $0x390] sm:$0xff]
    %v5514 = vld [vmem:[%s5398 + $0x398] sm:$0xff]
    %v5515 = vld [vmem:[%s5398 + $0x3a0] sm:$0xff]
    %v5516 = vld [vmem:[%s5398 + $0x3a8] sm:$0xff]
    %v5517 = vld [vmem:[%s5398 + $0x3b0] sm:$0xff]
    %v5518 = vld [vmem:[%s5398 + $0x3b8] sm:$0xff]
    %v5519 = vld [vmem:[%s5398 + $0x3c0] sm:$0xff]
    %v5520 = vld [vmem:[%s5398 + $0x3c8] sm:$0xff]
    %v5521 = vld [vmem:[%s5398 + $0x3d0] sm:$0xff]
    %v5522 = vld [vmem:[%s5398 + $0x3d8] sm:$0xff]
    %v5523 = vld [vmem:[%s5398 + $0x3e0] sm:$0xff]
    %v5524 = vld [vmem:[%s5398 + $0x3e8] sm:$0xff]
    %v5525 = vld [vmem:[%s5398 + $0x3f0] sm:$0xff]
    %v5526 = vld [vmem:[%s5398 + $0x3f8] sm:$0xff]
    %v5527 = vpack.c.bf16 %v5401, %v5399
    %v5528 = vpack.c.bf16 %v5402, %v5400
    %v5529 = vpack.c.bf16 %v5405, %v5403
    %v5530 = vpack.c.bf16 %v5406, %v5404
    %v5531 = vpack.c.bf16 %v5409, %v5407
    %v5532 = vpack.c.bf16 %v5410, %v5408
    %v5533 = vpack.c.bf16 %v5413, %v5411
    %v5534 = vpack.c.bf16 %v5414, %v5412
    %v5535 = vpack.c.bf16 %v5417, %v5415
    %v5536 = vpack.c.bf16 %v5418, %v5416
    %v5537 = vpack.c.bf16 %v5421, %v5419
    %v5538 = vpack.c.bf16 %v5422, %v5420
    %v5539 = vpack.c.bf16 %v5425, %v5423
    %v5540 = vpack.c.bf16 %v5426, %v5424
    %v5541 = vpack.c.bf16 %v5429, %v5427
    %v5542 = vpack.c.bf16 %v5430, %v5428
    %v5543 = vpack.c.bf16 %v5433, %v5431
    %v5544 = vpack.c.bf16 %v5434, %v5432
    %v5545 = vpack.c.bf16 %v5437, %v5435
    %v5546 = vpack.c.bf16 %v5438, %v5436
    %v5547 = vpack.c.bf16 %v5441, %v5439
    %v5548 = vpack.c.bf16 %v5442, %v5440
    %v5549 = vpack.c.bf16 %v5445, %v5443
    %v5550 = vpack.c.bf16 %v5446, %v5444
    %v5551 = vpack.c.bf16 %v5449, %v5447
    %v5552 = vpack.c.bf16 %v5450, %v5448
    %v5553 = vpack.c.bf16 %v5453, %v5451
    %v5554 = vpack.c.bf16 %v5454, %v5452
    %v5555 = vpack.c.bf16 %v5457, %v5455
    %v5556 = vpack.c.bf16 %v5458, %v5456
    %v5557 = vpack.c.bf16 %v5461, %v5459
    %v5558 = vpack.c.bf16 %v5462, %v5460
    %v5559 = vpack.c.bf16 %v5465, %v5463
    %v5560 = vpack.c.bf16 %v5466, %v5464
    %v5561 = vpack.c.bf16 %v5469, %v5467
    %v5562 = vpack.c.bf16 %v5470, %v5468
    %v5563 = vpack.c.bf16 %v5473, %v5471
    %v5564 = vpack.c.bf16 %v5474, %v5472
    %v5565 = vpack.c.bf16 %v5477, %v5475
    %v5566 = vpack.c.bf16 %v5478, %v5476
    %v5567 = vpack.c.bf16 %v5481, %v5479
    %v5568 = vpack.c.bf16 %v5482, %v5480
    %v5569 = vpack.c.bf16 %v5485, %v5483
    %v5570 = vpack.c.bf16 %v5486, %v5484
    %v5571 = vpack.c.bf16 %v5489, %v5487
    %v5572 = vpack.c.bf16 %v5490, %v5488
    %v5573 = vpack.c.bf16 %v5493, %v5491
    %v5574 = vpack.c.bf16 %v5494, %v5492
    %v5575 = vpack.c.bf16 %v5497, %v5495
    %v5576 = vpack.c.bf16 %v5498, %v5496
    %v5577 = vpack.c.bf16 %v5501, %v5499
    %v5578 = vpack.c.bf16 %v5502, %v5500
    %v5579 = vpack.c.bf16 %v5505, %v5503
    %v5580 = vpack.c.bf16 %v5506, %v5504
    %v5581 = vpack.c.bf16 %v5509, %v5507
    %v5582 = vpack.c.bf16 %v5510, %v5508
    %v5583 = vpack.c.bf16 %v5513, %v5511
    %v5584 = vpack.c.bf16 %v5514, %v5512
    %v5585 = vpack.c.bf16 %v5517, %v5515
    %v5586 = vpack.c.bf16 %v5518, %v5516
    %v5587 = vpack.c.bf16 %v5521, %v5519
    %v5588 = vpack.c.bf16 %v5522, %v5520
    %v5589 = vpack.c.bf16 %v5525, %v5523
    %v5590 = vpack.c.bf16 %v5526, %v5524
    %5591 = vmatpush.bf16.msra.mxu0 %v579
    %5592 = vmatpush.bf16.msra.mxu0 %v577
    %5593 = vmatpush.bf16.msra.mxu0 %v575
    %5594 = vmatpush.bf16.msra.mxu0 %v573
    %5595 = vmatpush.bf16.msra.mxu0 %v571
    %5596 = vmatpush.bf16.msra.mxu0 %v569
    %5597 = vmatpush.bf16.msra.mxu0 %v567
    %5598 = vmatpush.bf16.msra.mxu0 %v565
    %5599 = vmatmul.bf16.gmra.mxu0 %v5527
    %v5600 = vpop.f32.mrf.mxu0
    %v5601 = vadd.f32 0.0, %v5600
    %v5602 = vpop.f32.mrf.mxu0
    %v5603 = vadd.f32 0.0, %v5602
    %5604 = vmatmul.bf16.gmra.mxu0 %v5529
    %v5605 = vpop.f32.mrf.mxu0
    %v5606 = vadd.f32 0.0, %v5605
    %v5607 = vpop.f32.mrf.mxu0
    %v5608 = vadd.f32 0.0, %v5607
    %5609 = vmatmul.bf16.gmra.mxu0 %v5531
    %v5610 = vpop.f32.mrf.mxu0
    %v5611 = vadd.f32 0.0, %v5610
    %v5612 = vpop.f32.mrf.mxu0
    %v5613 = vadd.f32 0.0, %v5612
    %5614 = vmatmul.bf16.gmra.mxu0 %v5533
    %v5615 = vpop.f32.mrf.mxu0
    %v5616 = vadd.f32 0.0, %v5615
    %v5617 = vpop.f32.mrf.mxu0
    %v5618 = vadd.f32 0.0, %v5617
    %5619 = vmatmul.bf16.gmra.mxu0 %v5535
    %v5620 = vpop.f32.mrf.mxu0
    %v5621 = vadd.f32 0.0, %v5620
    %v5622 = vpop.f32.mrf.mxu0
    %v5623 = vadd.f32 0.0, %v5622
    %5624 = vmatmul.bf16.gmra.mxu0 %v5537
    %v5625 = vpop.f32.mrf.mxu0
    %v5626 = vadd.f32 0.0, %v5625
    %v5627 = vpop.f32.mrf.mxu0
    %v5628 = vadd.f32 0.0, %v5627
    %5629 = vmatmul.bf16.gmra.mxu0 %v5539
    %v5630 = vpop.f32.mrf.mxu0
    %v5631 = vadd.f32 0.0, %v5630
    %v5632 = vpop.f32.mrf.mxu0
    %v5633 = vadd.f32 0.0, %v5632
    %5634 = vmatmul.bf16.gmra.mxu0 %v5541
    %v5635 = vpop.f32.mrf.mxu0
    %v5636 = vadd.f32 0.0, %v5635
    %v5637 = vpop.f32.mrf.mxu0
    %v5638 = vadd.f32 0.0, %v5637
    %5639 = vmatmul.bf16.gmra.mxu0 %v5543
    %v5640 = vpop.f32.mrf.mxu0
    %v5641 = vadd.f32 0.0, %v5640
    %v5642 = vpop.f32.mrf.mxu0
    %v5643 = vadd.f32 0.0, %v5642
    %5644 = vmatmul.bf16.gmra.mxu0 %v5545
    %v5645 = vpop.f32.mrf.mxu0
    %v5646 = vadd.f32 0.0, %v5645
    %v5647 = vpop.f32.mrf.mxu0
    %v5648 = vadd.f32 0.0, %v5647
    %5649 = vmatmul.bf16.gmra.mxu0 %v5547
    %v5650 = vpop.f32.mrf.mxu0
    %v5651 = vadd.f32 0.0, %v5650
    %v5652 = vpop.f32.mrf.mxu0
    %v5653 = vadd.f32 0.0, %v5652
    %5654 = vmatmul.bf16.gmra.mxu0 %v5549
    %v5655 = vpop.f32.mrf.mxu0
    %v5656 = vadd.f32 0.0, %v5655
    %v5657 = vpop.f32.mrf.mxu0
    %v5658 = vadd.f32 0.0, %v5657
    %5659 = vmatmul.bf16.gmra.mxu0 %v5551
    %v5660 = vpop.f32.mrf.mxu0
    %v5661 = vadd.f32 0.0, %v5660
    %v5662 = vpop.f32.mrf.mxu0
    %v5663 = vadd.f32 0.0, %v5662
    %5664 = vmatmul.bf16.gmra.mxu0 %v5553
    %v5665 = vpop.f32.mrf.mxu0
    %v5666 = vadd.f32 0.0, %v5665
    %v5667 = vpop.f32.mrf.mxu0
    %v5668 = vadd.f32 0.0, %v5667
    %5669 = vmatmul.bf16.gmra.mxu0 %v5555
    %v5670 = vpop.f32.mrf.mxu0
    %v5671 = vadd.f32 0.0, %v5670
    %v5672 = vpop.f32.mrf.mxu0
    %v5673 = vadd.f32 0.0, %v5672
    %5674 = vmatmul.bf16.gmra.mxu0 %v5557
    %v5675 = vpop.f32.mrf.mxu0
    %v5676 = vadd.f32 0.0, %v5675
    %v5677 = vpop.f32.mrf.mxu0
    %v5678 = vadd.f32 0.0, %v5677
    %5679 = vmatmul.bf16.gmra.mxu0 %v5559
    %v5680 = vpop.f32.mrf.mxu0
    %v5681 = vadd.f32 0.0, %v5680
    %v5682 = vpop.f32.mrf.mxu0
    %v5683 = vadd.f32 0.0, %v5682
    %5684 = vmatmul.bf16.gmra.mxu0 %v5561
    %v5685 = vpop.f32.mrf.mxu0
    %v5686 = vadd.f32 0.0, %v5685
    %v5687 = vpop.f32.mrf.mxu0
    %v5688 = vadd.f32 0.0, %v5687
    %5689 = vmatmul.bf16.gmra.mxu0 %v5563
    %v5690 = vpop.f32.mrf.mxu0
    %v5691 = vadd.f32 0.0, %v5690
    %v5692 = vpop.f32.mrf.mxu0
    %v5693 = vadd.f32 0.0, %v5692
    %5694 = vmatmul.bf16.gmra.mxu0 %v5565
    %v5695 = vpop.f32.mrf.mxu0
    %v5696 = vadd.f32 0.0, %v5695
    %v5697 = vpop.f32.mrf.mxu0
    %v5698 = vadd.f32 0.0, %v5697
    %5699 = vmatmul.bf16.gmra.mxu0 %v5567
    %v5700 = vpop.f32.mrf.mxu0
    %v5701 = vadd.f32 0.0, %v5700
    %v5702 = vpop.f32.mrf.mxu0
    %v5703 = vadd.f32 0.0, %v5702
    %5704 = vmatmul.bf16.gmra.mxu0 %v5569
    %v5705 = vpop.f32.mrf.mxu0
    %v5706 = vadd.f32 0.0, %v5705
    %v5707 = vpop.f32.mrf.mxu0
    %v5708 = vadd.f32 0.0, %v5707
    %5709 = vmatmul.bf16.gmra.mxu0 %v5571
    %v5710 = vpop.f32.mrf.mxu0
    %v5711 = vadd.f32 0.0, %v5710
    %v5712 = vpop.f32.mrf.mxu0
    %v5713 = vadd.f32 0.0, %v5712
    %5714 = vmatmul.bf16.gmra.mxu0 %v5573
    %v5715 = vpop.f32.mrf.mxu0
    %v5716 = vadd.f32 0.0, %v5715
    %v5717 = vpop.f32.mrf.mxu0
    %v5718 = vadd.f32 0.0, %v5717
    %5719 = vmatmul.bf16.gmra.mxu0 %v5575
    %v5720 = vpop.f32.mrf.mxu0
    %v5721 = vadd.f32 0.0, %v5720
    %v5722 = vpop.f32.mrf.mxu0
    %v5723 = vadd.f32 0.0, %v5722
    %5724 = vmatmul.bf16.gmra.mxu0 %v5577
    %v5725 = vpop.f32.mrf.mxu0
    %v5726 = vadd.f32 0.0, %v5725
    %v5727 = vpop.f32.mrf.mxu0
    %v5728 = vadd.f32 0.0, %v5727
    %5729 = vmatmul.bf16.gmra.mxu0 %v5579
    %v5730 = vpop.f32.mrf.mxu0
    %v5731 = vadd.f32 0.0, %v5730
    %v5732 = vpop.f32.mrf.mxu0
    %v5733 = vadd.f32 0.0, %v5732
    %5734 = vmatmul.bf16.gmra.mxu0 %v5581
    %v5735 = vpop.f32.mrf.mxu0
    %v5736 = vadd.f32 0.0, %v5735
    %v5737 = vpop.f32.mrf.mxu0
    %v5738 = vadd.f32 0.0, %v5737
    %5739 = vmatmul.bf16.gmra.mxu0 %v5583
    %v5740 = vpop.f32.mrf.mxu0
    %v5741 = vadd.f32 0.0, %v5740
    %v5742 = vpop.f32.mrf.mxu0
    %v5743 = vadd.f32 0.0, %v5742
    %5744 = vmatmul.bf16.gmra.mxu0 %v5585
    %v5745 = vpop.f32.mrf.mxu0
    %v5746 = vadd.f32 0.0, %v5745
    %v5747 = vpop.f32.mrf.mxu0
    %v5748 = vadd.f32 0.0, %v5747
    %5749 = vmatmul.bf16.gmra.mxu0 %v5587
    %v5750 = vpop.f32.mrf.mxu0
    %v5751 = vadd.f32 0.0, %v5750
    %v5752 = vpop.f32.mrf.mxu0
    %v5753 = vadd.f32 0.0, %v5752
    %5754 = vmatmul.bf16.gmra.mxu0 %v5589
    %v5755 = vpop.f32.mrf.mxu0
    %v5756 = vadd.f32 0.0, %v5755
    %v5757 = vpop.f32.mrf.mxu0
    %v5758 = vadd.f32 0.0, %v5757
    %5759 = vdwg.mxu0
    %5760 = vmatpush.bf16.msra.mxu0 %v595
    %5761 = vmatpush.bf16.msra.mxu0 %v593
    %5762 = vmatpush.bf16.msra.mxu0 %v591
    %5763 = vmatpush.bf16.msra.mxu0 %v589
    %5764 = vmatpush.bf16.msra.mxu0 %v587
    %5765 = vmatpush.bf16.msra.mxu0 %v585
    %5766 = vmatpush.bf16.msra.mxu0 %v583
    %5767 = vmatpush.bf16.msra.mxu0 %v581
    %5768 = vmatmul.bf16.gmra.mxu0 %v5528
    %v5769 = vpop.f32.mrf.mxu0
    %v5770 = vadd.f32 %v5601, %v5769
    %v5771 = vpop.f32.mrf.mxu0
    %v5772 = vadd.f32 %v5603, %v5771
    %5773 = vmatmul.bf16.gmra.mxu0 %v5530
    %v5774 = vpop.f32.mrf.mxu0
    %v5775 = vadd.f32 %v5606, %v5774
    %v5776 = vpop.f32.mrf.mxu0
    %v5777 = vadd.f32 %v5608, %v5776
    %5778 = vmatmul.bf16.gmra.mxu0 %v5532
    %v5779 = vpop.f32.mrf.mxu0
    %v5780 = vadd.f32 %v5611, %v5779
    %v5781 = vpop.f32.mrf.mxu0
    %v5782 = vadd.f32 %v5613, %v5781
    %5783 = vmatmul.bf16.gmra.mxu0 %v5534
    %v5784 = vpop.f32.mrf.mxu0
    %v5785 = vadd.f32 %v5616, %v5784
    %v5786 = vpop.f32.mrf.mxu0
    %v5787 = vadd.f32 %v5618, %v5786
    %5788 = vmatmul.bf16.gmra.mxu0 %v5536
    %v5789 = vpop.f32.mrf.mxu0
    %v5790 = vadd.f32 %v5621, %v5789
    %v5791 = vpop.f32.mrf.mxu0
    %v5792 = vadd.f32 %v5623, %v5791
    %5793 = vmatmul.bf16.gmra.mxu0 %v5538
    %v5794 = vpop.f32.mrf.mxu0
    %v5795 = vadd.f32 %v5626, %v5794
    %v5796 = vpop.f32.mrf.mxu0
    %v5797 = vadd.f32 %v5628, %v5796
    %5798 = vmatmul.bf16.gmra.mxu0 %v5540
    %v5799 = vpop.f32.mrf.mxu0
    %v5800 = vadd.f32 %v5631, %v5799
    %v5801 = vpop.f32.mrf.mxu0
    %v5802 = vadd.f32 %v5633, %v5801
    %5803 = vmatmul.bf16.gmra.mxu0 %v5542
    %v5804 = vpop.f32.mrf.mxu0
    %v5805 = vadd.f32 %v5636, %v5804
    %v5806 = vpop.f32.mrf.mxu0
    %v5807 = vadd.f32 %v5638, %v5806
    %5808 = vmatmul.bf16.gmra.mxu0 %v5544
    %v5809 = vpop.f32.mrf.mxu0
    %v5810 = vadd.f32 %v5641, %v5809
    %v5811 = vpop.f32.mrf.mxu0
    %v5812 = vadd.f32 %v5643, %v5811
    %5813 = vmatmul.bf16.gmra.mxu0 %v5546
    %v5814 = vpop.f32.mrf.mxu0
    %v5815 = vadd.f32 %v5646, %v5814
    %v5816 = vpop.f32.mrf.mxu0
    %v5817 = vadd.f32 %v5648, %v5816
    %5818 = vmatmul.bf16.gmra.mxu0 %v5548
    %v5819 = vpop.f32.mrf.mxu0
    %v5820 = vadd.f32 %v5651, %v5819
    %v5821 = vpop.f32.mrf.mxu0
    %v5822 = vadd.f32 %v5653, %v5821
    %5823 = vmatmul.bf16.gmra.mxu0 %v5550
    %v5824 = vpop.f32.mrf.mxu0
    %v5825 = vadd.f32 %v5656, %v5824
    %v5826 = vpop.f32.mrf.mxu0
    %v5827 = vadd.f32 %v5658, %v5826
    %5828 = vmatmul.bf16.gmra.mxu0 %v5552
    %v5829 = vpop.f32.mrf.mxu0
    %v5830 = vadd.f32 %v5661, %v5829
    %v5831 = vpop.f32.mrf.mxu0
    %v5832 = vadd.f32 %v5663, %v5831
    %5833 = vmatmul.bf16.gmra.mxu0 %v5554
    %v5834 = vpop.f32.mrf.mxu0
    %v5835 = vadd.f32 %v5666, %v5834
    %v5836 = vpop.f32.mrf.mxu0
    %v5837 = vadd.f32 %v5668, %v5836
    %5838 = vmatmul.bf16.gmra.mxu0 %v5556
    %v5839 = vpop.f32.mrf.mxu0
    %v5840 = vadd.f32 %v5671, %v5839
    %v5841 = vpop.f32.mrf.mxu0
    %v5842 = vadd.f32 %v5673, %v5841
    %5843 = vmatmul.bf16.gmra.mxu0 %v5558
    %v5844 = vpop.f32.mrf.mxu0
    %v5845 = vadd.f32 %v5676, %v5844
    %v5846 = vpop.f32.mrf.mxu0
    %v5847 = vadd.f32 %v5678, %v5846
    %5848 = vmatmul.bf16.gmra.mxu0 %v5560
    %v5849 = vpop.f32.mrf.mxu0
    %v5850 = vadd.f32 %v5681, %v5849
    %v5851 = vpop.f32.mrf.mxu0
    %v5852 = vadd.f32 %v5683, %v5851
    %5853 = vmatmul.bf16.gmra.mxu0 %v5562
    %v5854 = vpop.f32.mrf.mxu0
    %v5855 = vadd.f32 %v5686, %v5854
    %v5856 = vpop.f32.mrf.mxu0
    %v5857 = vadd.f32 %v5688, %v5856
    %5858 = vmatmul.bf16.gmra.mxu0 %v5564
    %v5859 = vpop.f32.mrf.mxu0
    %v5860 = vadd.f32 %v5691, %v5859
    %v5861 = vpop.f32.mrf.mxu0
    %v5862 = vadd.f32 %v5693, %v5861
    %5863 = vmatmul.bf16.gmra.mxu0 %v5566
    %v5864 = vpop.f32.mrf.mxu0
    %v5865 = vadd.f32 %v5696, %v5864
    %v5866 = vpop.f32.mrf.mxu0
    %v5867 = vadd.f32 %v5698, %v5866
    %5868 = vmatmul.bf16.gmra.mxu0 %v5568
    %v5869 = vpop.f32.mrf.mxu0
    %v5870 = vadd.f32 %v5701, %v5869
    %v5871 = vpop.f32.mrf.mxu0
    %v5872 = vadd.f32 %v5703, %v5871
    %5873 = vmatmul.bf16.gmra.mxu0 %v5570
    %v5874 = vpop.f32.mrf.mxu0
    %v5875 = vadd.f32 %v5706, %v5874
    %v5876 = vpop.f32.mrf.mxu0
    %v5877 = vadd.f32 %v5708, %v5876
    %5878 = vmatmul.bf16.gmra.mxu0 %v5572
    %v5879 = vpop.f32.mrf.mxu0
    %v5880 = vadd.f32 %v5711, %v5879
    %v5881 = vpop.f32.mrf.mxu0
    %v5882 = vadd.f32 %v5713, %v5881
    %5883 = vmatmul.bf16.gmra.mxu0 %v5574
    %v5884 = vpop.f32.mrf.mxu0
    %v5885 = vadd.f32 %v5716, %v5884
    %v5886 = vpop.f32.mrf.mxu0
    %v5887 = vadd.f32 %v5718, %v5886
    %5888 = vmatmul.bf16.gmra.mxu0 %v5576
    %v5889 = vpop.f32.mrf.mxu0
    %v5890 = vadd.f32 %v5721, %v5889
    %v5891 = vpop.f32.mrf.mxu0
    %v5892 = vadd.f32 %v5723, %v5891
    %5893 = vmatmul.bf16.gmra.mxu0 %v5578
    %v5894 = vpop.f32.mrf.mxu0
    %v5895 = vadd.f32 %v5726, %v5894
    %v5896 = vpop.f32.mrf.mxu0
    %v5897 = vadd.f32 %v5728, %v5896
    %5898 = vmatmul.bf16.gmra.mxu0 %v5580
    %v5899 = vpop.f32.mrf.mxu0
    %v5900 = vadd.f32 %v5731, %v5899
    %v5901 = vpop.f32.mrf.mxu0
    %v5902 = vadd.f32 %v5733, %v5901
    %5903 = vmatmul.bf16.gmra.mxu0 %v5582
    %v5904 = vpop.f32.mrf.mxu0
    %v5905 = vadd.f32 %v5736, %v5904
    %v5906 = vpop.f32.mrf.mxu0
    %v5907 = vadd.f32 %v5738, %v5906
    %5908 = vmatmul.bf16.gmra.mxu0 %v5584
    %v5909 = vpop.f32.mrf.mxu0
    %v5910 = vadd.f32 %v5741, %v5909
    %v5911 = vpop.f32.mrf.mxu0
    %v5912 = vadd.f32 %v5743, %v5911
    %5913 = vmatmul.bf16.gmra.mxu0 %v5586
    %v5914 = vpop.f32.mrf.mxu0
    %v5915 = vadd.f32 %v5746, %v5914
    %v5916 = vpop.f32.mrf.mxu0
    %v5917 = vadd.f32 %v5748, %v5916
    %5918 = vmatmul.bf16.gmra.mxu0 %v5588
    %v5919 = vpop.f32.mrf.mxu0
    %v5920 = vadd.f32 %v5751, %v5919
    %v5921 = vpop.f32.mrf.mxu0
    %v5922 = vadd.f32 %v5753, %v5921
    %5923 = vmatmul.bf16.gmra.mxu0 %v5590
    %v5924 = vpop.f32.mrf.mxu0
    %v5925 = vadd.f32 %v5756, %v5924
    %v5926 = vpop.f32.mrf.mxu0
    %v5927 = vadd.f32 %v5758, %v5926
    %5928 = vdwg.mxu0
    %5929 = vmatpush.bf16.msra.mxu0 %v580
    %5930 = vmatpush.bf16.msra.mxu0 %v578
    %5931 = vmatpush.bf16.msra.mxu0 %v576
    %5932 = vmatpush.bf16.msra.mxu0 %v574
    %5933 = vmatpush.bf16.msra.mxu0 %v572
    %5934 = vmatpush.bf16.msra.mxu0 %v570
    %5935 = vmatpush.bf16.msra.mxu0 %v568
    %5936 = vmatpush.bf16.msra.mxu0 %v566
    %5937 = vmatmul.bf16.gmra.mxu0 %v5527
    %v5938 = vpop.f32.mrf.mxu0
    %v5939 = vadd.f32 0.0, %v5938
    %v5940 = vpop.f32.mrf.mxu0
    %v5941 = vadd.f32 0.0, %v5940
    %5942 = vmatmul.bf16.gmra.mxu0 %v5529
    %v5943 = vpop.f32.mrf.mxu0
    %v5944 = vadd.f32 0.0, %v5943
    %v5945 = vpop.f32.mrf.mxu0
    %v5946 = vadd.f32 0.0, %v5945
    %5947 = vmatmul.bf16.gmra.mxu0 %v5531
    %v5948 = vpop.f32.mrf.mxu0
    %v5949 = vadd.f32 0.0, %v5948
    %v5950 = vpop.f32.mrf.mxu0
    %v5951 = vadd.f32 0.0, %v5950
    %5952 = vmatmul.bf16.gmra.mxu0 %v5533
    %v5953 = vpop.f32.mrf.mxu0
    %v5954 = vadd.f32 0.0, %v5953
    %v5955 = vpop.f32.mrf.mxu0
    %v5956 = vadd.f32 0.0, %v5955
    %5957 = vmatmul.bf16.gmra.mxu0 %v5535
    %v5958 = vpop.f32.mrf.mxu0
    %v5959 = vadd.f32 0.0, %v5958
    %v5960 = vpop.f32.mrf.mxu0
    %v5961 = vadd.f32 0.0, %v5960
    %5962 = vmatmul.bf16.gmra.mxu0 %v5537
    %v5963 = vpop.f32.mrf.mxu0
    %v5964 = vadd.f32 0.0, %v5963
    %v5965 = vpop.f32.mrf.mxu0
    %v5966 = vadd.f32 0.0, %v5965
    %5967 = vmatmul.bf16.gmra.mxu0 %v5539
    %v5968 = vpop.f32.mrf.mxu0
    %v5969 = vadd.f32 0.0, %v5968
    %v5970 = vpop.f32.mrf.mxu0
    %v5971 = vadd.f32 0.0, %v5970
    %5972 = vmatmul.bf16.gmra.mxu0 %v5541
    %v5973 = vpop.f32.mrf.mxu0
    %v5974 = vadd.f32 0.0, %v5973
    %v5975 = vpop.f32.mrf.mxu0
    %v5976 = vadd.f32 0.0, %v5975
    %5977 = vmatmul.bf16.gmra.mxu0 %v5543
    %v5978 = vpop.f32.mrf.mxu0
    %v5979 = vadd.f32 0.0, %v5978
    %v5980 = vpop.f32.mrf.mxu0
    %v5981 = vadd.f32 0.0, %v5980
    %5982 = vmatmul.bf16.gmra.mxu0 %v5545
    %v5983 = vpop.f32.mrf.mxu0
    %v5984 = vadd.f32 0.0, %v5983
    %v5985 = vpop.f32.mrf.mxu0
    %v5986 = vadd.f32 0.0, %v5985
    %5987 = vmatmul.bf16.gmra.mxu0 %v5547
    %v5988 = vpop.f32.mrf.mxu0
    %v5989 = vadd.f32 0.0, %v5988
    %v5990 = vpop.f32.mrf.mxu0
    %v5991 = vadd.f32 0.0, %v5990
    %5992 = vmatmul.bf16.gmra.mxu0 %v5549
    %v5993 = vpop.f32.mrf.mxu0
    %v5994 = vadd.f32 0.0, %v5993
    %v5995 = vpop.f32.mrf.mxu0
    %v5996 = vadd.f32 0.0, %v5995
    %5997 = vmatmul.bf16.gmra.mxu0 %v5551
    %v5998 = vpop.f32.mrf.mxu0
    %v5999 = vadd.f32 0.0, %v5998
    %v6000 = vpop.f32.mrf.mxu0
    %v6001 = vadd.f32 0.0, %v6000
    %6002 = vmatmul.bf16.gmra.mxu0 %v5553
    %v6003 = vpop.f32.mrf.mxu0
    %v6004 = vadd.f32 0.0, %v6003
    %v6005 = vpop.f32.mrf.mxu0
    %v6006 = vadd.f32 0.0, %v6005
    %6007 = vmatmul.bf16.gmra.mxu0 %v5555
    %v6008 = vpop.f32.mrf.mxu0
    %v6009 = vadd.f32 0.0, %v6008
    %v6010 = vpop.f32.mrf.mxu0
    %v6011 = vadd.f32 0.0, %v6010
    %6012 = vmatmul.bf16.gmra.mxu0 %v5557
    %v6013 = vpop.f32.mrf.mxu0
    %v6014 = vadd.f32 0.0, %v6013
    %v6015 = vpop.f32.mrf.mxu0
    %v6016 = vadd.f32 0.0, %v6015
    %6017 = vmatmul.bf16.gmra.mxu0 %v5559
    %v6018 = vpop.f32.mrf.mxu0
    %v6019 = vadd.f32 0.0, %v6018
    %v6020 = vpop.f32.mrf.mxu0
    %v6021 = vadd.f32 0.0, %v6020
    %6022 = vmatmul.bf16.gmra.mxu0 %v5561
    %v6023 = vpop.f32.mrf.mxu0
    %v6024 = vadd.f32 0.0, %v6023
    %v6025 = vpop.f32.mrf.mxu0
    %v6026 = vadd.f32 0.0, %v6025
    %6027 = vmatmul.bf16.gmra.mxu0 %v5563
    %v6028 = vpop.f32.mrf.mxu0
    %v6029 = vadd.f32 0.0, %v6028
    %v6030 = vpop.f32.mrf.mxu0
    %v6031 = vadd.f32 0.0, %v6030
    %6032 = vmatmul.bf16.gmra.mxu0 %v5565
    %v6033 = vpop.f32.mrf.mxu0
    %v6034 = vadd.f32 0.0, %v6033
    %v6035 = vpop.f32.mrf.mxu0
    %v6036 = vadd.f32 0.0, %v6035
    %6037 = vmatmul.bf16.gmra.mxu0 %v5567
    %v6038 = vpop.f32.mrf.mxu0
    %v6039 = vadd.f32 0.0, %v6038
    %v6040 = vpop.f32.mrf.mxu0
    %v6041 = vadd.f32 0.0, %v6040
    %6042 = vmatmul.bf16.gmra.mxu0 %v5569
    %v6043 = vpop.f32.mrf.mxu0
    %v6044 = vadd.f32 0.0, %v6043
    %v6045 = vpop.f32.mrf.mxu0
    %v6046 = vadd.f32 0.0, %v6045
    %6047 = vmatmul.bf16.gmra.mxu0 %v5571
    %v6048 = vpop.f32.mrf.mxu0
    %v6049 = vadd.f32 0.0, %v6048
    %v6050 = vpop.f32.mrf.mxu0
    %v6051 = vadd.f32 0.0, %v6050
    %6052 = vmatmul.bf16.gmra.mxu0 %v5573
    %v6053 = vpop.f32.mrf.mxu0
    %v6054 = vadd.f32 0.0, %v6053
    %v6055 = vpop.f32.mrf.mxu0
    %v6056 = vadd.f32 0.0, %v6055
    %6057 = vmatmul.bf16.gmra.mxu0 %v5575
    %v6058 = vpop.f32.mrf.mxu0
    %v6059 = vadd.f32 0.0, %v6058
    %v6060 = vpop.f32.mrf.mxu0
    %v6061 = vadd.f32 0.0, %v6060
    %6062 = vmatmul.bf16.gmra.mxu0 %v5577
    %v6063 = vpop.f32.mrf.mxu0
    %v6064 = vadd.f32 0.0, %v6063
    %v6065 = vpop.f32.mrf.mxu0
    %v6066 = vadd.f32 0.0, %v6065
    %6067 = vmatmul.bf16.gmra.mxu0 %v5579
    %v6068 = vpop.f32.mrf.mxu0
    %v6069 = vadd.f32 0.0, %v6068
    %v6070 = vpop.f32.mrf.mxu0
    %v6071 = vadd.f32 0.0, %v6070
    %6072 = vmatmul.bf16.gmra.mxu0 %v5581
    %v6073 = vpop.f32.mrf.mxu0
    %v6074 = vadd.f32 0.0, %v6073
    %v6075 = vpop.f32.mrf.mxu0
    %v6076 = vadd.f32 0.0, %v6075
    %6077 = vmatmul.bf16.gmra.mxu0 %v5583
    %v6078 = vpop.f32.mrf.mxu0
    %v6079 = vadd.f32 0.0, %v6078
    %v6080 = vpop.f32.mrf.mxu0
    %v6081 = vadd.f32 0.0, %v6080
    %6082 = vmatmul.bf16.gmra.mxu0 %v5585
    %v6083 = vpop.f32.mrf.mxu0
    %v6084 = vadd.f32 0.0, %v6083
    %v6085 = vpop.f32.mrf.mxu0
    %v6086 = vadd.f32 0.0, %v6085
    %6087 = vmatmul.bf16.gmra.mxu0 %v5587
    %v6088 = vpop.f32.mrf.mxu0
    %v6089 = vadd.f32 0.0, %v6088
    %v6090 = vpop.f32.mrf.mxu0
    %v6091 = vadd.f32 0.0, %v6090
    %6092 = vmatmul.bf16.gmra.mxu0 %v5589
    %v6093 = vpop.f32.mrf.mxu0
    %v6094 = vadd.f32 0.0, %v6093
    %v6095 = vpop.f32.mrf.mxu0
    %v6096 = vadd.f32 0.0, %v6095
    %6097 = vdwg.mxu0
    %6098 = vmatpush.bf16.msra.mxu0 %v596
    %6099 = vmatpush.bf16.msra.mxu0 %v594
    %6100 = vmatpush.bf16.msra.mxu0 %v592
    %6101 = vmatpush.bf16.msra.mxu0 %v590
    %6102 = vmatpush.bf16.msra.mxu0 %v588
    %6103 = vmatpush.bf16.msra.mxu0 %v586
    %6104 = vmatpush.bf16.msra.mxu0 %v584
    %6105 = vmatpush.bf16.msra.mxu0 %v582
    %6106 = vmatmul.bf16.gmra.mxu0 %v5528
    %v6107 = vpop.f32.mrf.mxu0
    %v6108 = vadd.f32 %v5939, %v6107
    %v6109 = vpop.f32.mrf.mxu0
    %v6110 = vadd.f32 %v5941, %v6109
    %6111 = vmatmul.bf16.gmra.mxu0 %v5530
    %v6112 = vpop.f32.mrf.mxu0
    %v6113 = vadd.f32 %v5944, %v6112
    %v6114 = vpop.f32.mrf.mxu0
    %v6115 = vadd.f32 %v5946, %v6114
    %6116 = vmatmul.bf16.gmra.mxu0 %v5532
    %v6117 = vpop.f32.mrf.mxu0
    %v6118 = vadd.f32 %v5949, %v6117
    %v6119 = vpop.f32.mrf.mxu0
    %v6120 = vadd.f32 %v5951, %v6119
    %6121 = vmatmul.bf16.gmra.mxu0 %v5534
    %v6122 = vpop.f32.mrf.mxu0
    %v6123 = vadd.f32 %v5954, %v6122
    %v6124 = vpop.f32.mrf.mxu0
    %v6125 = vadd.f32 %v5956, %v6124
    %6126 = vmatmul.bf16.gmra.mxu0 %v5536
    %v6127 = vpop.f32.mrf.mxu0
    %v6128 = vadd.f32 %v5959, %v6127
    %v6129 = vpop.f32.mrf.mxu0
    %v6130 = vadd.f32 %v5961, %v6129
    %6131 = vmatmul.bf16.gmra.mxu0 %v5538
    %v6132 = vpop.f32.mrf.mxu0
    %v6133 = vadd.f32 %v5964, %v6132
    %v6134 = vpop.f32.mrf.mxu0
    %v6135 = vadd.f32 %v5966, %v6134
    %6136 = vmatmul.bf16.gmra.mxu0 %v5540
    %v6137 = vpop.f32.mrf.mxu0
    %v6138 = vadd.f32 %v5969, %v6137
    %v6139 = vpop.f32.mrf.mxu0
    %v6140 = vadd.f32 %v5971, %v6139
    %6141 = vmatmul.bf16.gmra.mxu0 %v5542
    %v6142 = vpop.f32.mrf.mxu0
    %v6143 = vadd.f32 %v5974, %v6142
    %v6144 = vpop.f32.mrf.mxu0
    %v6145 = vadd.f32 %v5976, %v6144
    %6146 = vmatmul.bf16.gmra.mxu0 %v5544
    %v6147 = vpop.f32.mrf.mxu0
    %v6148 = vadd.f32 %v5979, %v6147
    %v6149 = vpop.f32.mrf.mxu0
    %v6150 = vadd.f32 %v5981, %v6149
    %6151 = vmatmul.bf16.gmra.mxu0 %v5546
    %v6152 = vpop.f32.mrf.mxu0
    %v6153 = vadd.f32 %v5984, %v6152
    %v6154 = vpop.f32.mrf.mxu0
    %v6155 = vadd.f32 %v5986, %v6154
    %6156 = vmatmul.bf16.gmra.mxu0 %v5548
    %v6157 = vpop.f32.mrf.mxu0
    %v6158 = vadd.f32 %v5989, %v6157
    %v6159 = vpop.f32.mrf.mxu0
    %v6160 = vadd.f32 %v5991, %v6159
    %6161 = vmatmul.bf16.gmra.mxu0 %v5550
    %v6162 = vpop.f32.mrf.mxu0
    %v6163 = vadd.f32 %v5994, %v6162
    %v6164 = vpop.f32.mrf.mxu0
    %v6165 = vadd.f32 %v5996, %v6164
    %6166 = vmatmul.bf16.gmra.mxu0 %v5552
    %v6167 = vpop.f32.mrf.mxu0
    %v6168 = vadd.f32 %v5999, %v6167
    %v6169 = vpop.f32.mrf.mxu0
    %v6170 = vadd.f32 %v6001, %v6169
    %6171 = vmatmul.bf16.gmra.mxu0 %v5554
    %v6172 = vpop.f32.mrf.mxu0
    %v6173 = vadd.f32 %v6004, %v6172
    %v6174 = vpop.f32.mrf.mxu0
    %v6175 = vadd.f32 %v6006, %v6174
    %6176 = vmatmul.bf16.gmra.mxu0 %v5556
    %v6177 = vpop.f32.mrf.mxu0
    %v6178 = vadd.f32 %v6009, %v6177
    %v6179 = vpop.f32.mrf.mxu0
    %v6180 = vadd.f32 %v6011, %v6179
    %6181 = vmatmul.bf16.gmra.mxu0 %v5558
    %v6182 = vpop.f32.mrf.mxu0
    %v6183 = vadd.f32 %v6014, %v6182
    %v6184 = vpop.f32.mrf.mxu0
    %v6185 = vadd.f32 %v6016, %v6184
    %6186 = vmatmul.bf16.gmra.mxu0 %v5560
    %v6187 = vpop.f32.mrf.mxu0
    %v6188 = vadd.f32 %v6019, %v6187
    %v6189 = vpop.f32.mrf.mxu0
    %v6190 = vadd.f32 %v6021, %v6189
    %6191 = vmatmul.bf16.gmra.mxu0 %v5562
    %v6192 = vpop.f32.mrf.mxu0
    %v6193 = vadd.f32 %v6024, %v6192
    %v6194 = vpop.f32.mrf.mxu0
    %v6195 = vadd.f32 %v6026, %v6194
    %6196 = vmatmul.bf16.gmra.mxu0 %v5564
    %v6197 = vpop.f32.mrf.mxu0
    %v6198 = vadd.f32 %v6029, %v6197
    %v6199 = vpop.f32.mrf.mxu0
    %v6200 = vadd.f32 %v6031, %v6199
    %6201 = vmatmul.bf16.gmra.mxu0 %v5566
    %v6202 = vpop.f32.mrf.mxu0
    %v6203 = vadd.f32 %v6034, %v6202
    %v6204 = vpop.f32.mrf.mxu0
    %v6205 = vadd.f32 %v6036, %v6204
    %6206 = vmatmul.bf16.gmra.mxu0 %v5568
    %v6207 = vpop.f32.mrf.mxu0
    %v6208 = vadd.f32 %v6039, %v6207
    %v6209 = vpop.f32.mrf.mxu0
    %v6210 = vadd.f32 %v6041, %v6209
    %6211 = vmatmul.bf16.gmra.mxu0 %v5570
    %v6212 = vpop.f32.mrf.mxu0
    %v6213 = vadd.f32 %v6044, %v6212
    %v6214 = vpop.f32.mrf.mxu0
    %v6215 = vadd.f32 %v6046, %v6214
    %6216 = vmatmul.bf16.gmra.mxu0 %v5572
    %v6217 = vpop.f32.mrf.mxu0
    %v6218 = vadd.f32 %v6049, %v6217
    %v6219 = vpop.f32.mrf.mxu0
    %v6220 = vadd.f32 %v6051, %v6219
    %6221 = vmatmul.bf16.gmra.mxu0 %v5574
    %v6222 = vpop.f32.mrf.mxu0
    %v6223 = vadd.f32 %v6054, %v6222
    %v6224 = vpop.f32.mrf.mxu0
    %v6225 = vadd.f32 %v6056, %v6224
    %6226 = vmatmul.bf16.gmra.mxu0 %v5576
    %v6227 = vpop.f32.mrf.mxu0
    %v6228 = vadd.f32 %v6059, %v6227
    %v6229 = vpop.f32.mrf.mxu0
    %v6230 = vadd.f32 %v6061, %v6229
    %6231 = vmatmul.bf16.gmra.mxu0 %v5578
    %v6232 = vpop.f32.mrf.mxu0
    %v6233 = vadd.f32 %v6064, %v6232
    %v6234 = vpop.f32.mrf.mxu0
    %v6235 = vadd.f32 %v6066, %v6234
    %6236 = vmatmul.bf16.gmra.mxu0 %v5580
    %v6237 = vpop.f32.mrf.mxu0
    %v6238 = vadd.f32 %v6069, %v6237
    %v6239 = vpop.f32.mrf.mxu0
    %v6240 = vadd.f32 %v6071, %v6239
    %6241 = vmatmul.bf16.gmra.mxu0 %v5582
    %v6242 = vpop.f32.mrf.mxu0
    %v6243 = vadd.f32 %v6074, %v6242
    %v6244 = vpop.f32.mrf.mxu0
    %v6245 = vadd.f32 %v6076, %v6244
    %6246 = vmatmul.bf16.gmra.mxu0 %v5584
    %v6247 = vpop.f32.mrf.mxu0
    %v6248 = vadd.f32 %v6079, %v6247
    %v6249 = vpop.f32.mrf.mxu0
    %v6250 = vadd.f32 %v6081, %v6249
    %6251 = vmatmul.bf16.gmra.mxu0 %v5586
    %v6252 = vpop.f32.mrf.mxu0
    %v6253 = vadd.f32 %v6084, %v6252
    %v6254 = vpop.f32.mrf.mxu0
    %v6255 = vadd.f32 %v6086, %v6254
    %6256 = vmatmul.bf16.gmra.mxu0 %v5588
    %v6257 = vpop.f32.mrf.mxu0
    %v6258 = vadd.f32 %v6089, %v6257
    %v6259 = vpop.f32.mrf.mxu0
    %v6260 = vadd.f32 %v6091, %v6259
    %6261 = vmatmul.bf16.gmra.mxu0 %v5590
    %v6262 = vpop.f32.mrf.mxu0
    %v6263 = vadd.f32 %v6094, %v6262
    %v6264 = vpop.f32.mrf.mxu0
    %v6265 = vadd.f32 %v6096, %v6264
    %6266 = vdwg.mxu0
    %v6267 = vpack.c.bf16 %v5772, %v5770
    %v6268 = vpack.c.bf16 %v6110, %v6108
    %v6269 = vpack.c.bf16 %v5777, %v5775
    %v6270 = vpack.c.bf16 %v6115, %v6113
    %v6271 = vpack.c.bf16 %v5782, %v5780
    %v6272 = vpack.c.bf16 %v6120, %v6118
    %v6273 = vpack.c.bf16 %v5787, %v5785
    %v6274 = vpack.c.bf16 %v6125, %v6123
    %v6275 = vpack.c.bf16 %v5792, %v5790
    %v6276 = vpack.c.bf16 %v6130, %v6128
    %v6277 = vpack.c.bf16 %v5797, %v5795
    %v6278 = vpack.c.bf16 %v6135, %v6133
    %v6279 = vpack.c.bf16 %v5802, %v5800
    %v6280 = vpack.c.bf16 %v6140, %v6138
    %v6281 = vpack.c.bf16 %v5807, %v5805
    %v6282 = vpack.c.bf16 %v6145, %v6143
    %v6283 = vpack.c.bf16 %v5812, %v5810
    %v6284 = vpack.c.bf16 %v6150, %v6148
    %v6285 = vpack.c.bf16 %v5817, %v5815
    %v6286 = vpack.c.bf16 %v6155, %v6153
    %v6287 = vpack.c.bf16 %v5822, %v5820
    %v6288 = vpack.c.bf16 %v6160, %v6158
    %v6289 = vpack.c.bf16 %v5827, %v5825
    %v6290 = vpack.c.bf16 %v6165, %v6163
    %v6291 = vpack.c.bf16 %v5832, %v5830
    %v6292 = vpack.c.bf16 %v6170, %v6168
    %v6293 = vpack.c.bf16 %v5837, %v5835
    %v6294 = vpack.c.bf16 %v6175, %v6173
    %v6295 = vpack.c.bf16 %v5842, %v5840
    %v6296 = vpack.c.bf16 %v6180, %v6178
    %v6297 = vpack.c.bf16 %v5847, %v5845
    %v6298 = vpack.c.bf16 %v6185, %v6183
    %v6299 = vpack.c.bf16 %v5852, %v5850
    %v6300 = vpack.c.bf16 %v6190, %v6188
    %v6301 = vpack.c.bf16 %v5857, %v5855
    %v6302 = vpack.c.bf16 %v6195, %v6193
    %v6303 = vpack.c.bf16 %v5862, %v5860
    %v6304 = vpack.c.bf16 %v6200, %v6198
    %v6305 = vpack.c.bf16 %v5867, %v5865
    %v6306 = vpack.c.bf16 %v6205, %v6203
    %v6307 = vpack.c.bf16 %v5872, %v5870
    %v6308 = vpack.c.bf16 %v6210, %v6208
    %v6309 = vpack.c.bf16 %v5877, %v5875
    %v6310 = vpack.c.bf16 %v6215, %v6213
    %v6311 = vpack.c.bf16 %v5882, %v5880
    %v6312 = vpack.c.bf16 %v6220, %v6218
    %v6313 = vpack.c.bf16 %v5887, %v5885
    %v6314 = vpack.c.bf16 %v6225, %v6223
    %v6315 = vpack.c.bf16 %v5892, %v5890
    %v6316 = vpack.c.bf16 %v6230, %v6228
    %v6317 = vpack.c.bf16 %v5897, %v5895
    %v6318 = vpack.c.bf16 %v6235, %v6233
    %v6319 = vpack.c.bf16 %v5902, %v5900
    %v6320 = vpack.c.bf16 %v6240, %v6238
    %v6321 = vpack.c.bf16 %v5907, %v5905
    %v6322 = vpack.c.bf16 %v6245, %v6243
    %v6323 = vpack.c.bf16 %v5912, %v5910
    %v6324 = vpack.c.bf16 %v6250, %v6248
    %v6325 = vpack.c.bf16 %v5917, %v5915
    %v6326 = vpack.c.bf16 %v6255, %v6253
    %v6327 = vpack.c.bf16 %v5922, %v5920
    %v6328 = vpack.c.bf16 %v6260, %v6258
    %v6329 = vpack.c.bf16 %v5927, %v5925
    %v6330 = vpack.c.bf16 %v6265, %v6263
    %6331 = vmatpush.bf16.msra.mxu0 %v6281
    %6332 = vmatpush.bf16.msra.mxu0 %v6279
    %6333 = vmatpush.bf16.msra.mxu0 %v6277
    %6334 = vmatpush.bf16.msra.mxu0 %v6275
    %6335 = vmatpush.bf16.msra.mxu0 %v6273
    %6336 = vmatpush.bf16.msra.mxu0 %v6271
    %6337 = vmatpush.bf16.msra.mxu0 %v6269
    %6338 = vmatpush.bf16.msra.mxu0 %v6267
    %6339 = vmatmul.bf16.gmra.mxu0 %v2073
    %v6340 = vpop.f32.mrf.mxu0
    %v6341 = vadd.f32 %v1372, %v6340
    %v6342 = vpop.f32.mrf.mxu0
    %v6343 = vadd.f32 %v1377, %v6342
    %6344 = vmatmul.bf16.gmra.mxu0 %v2077
    %v6345 = vpop.f32.mrf.mxu0
    %v6346 = vadd.f32 %v1382, %v6345
    %v6347 = vpop.f32.mrf.mxu0
    %v6348 = vadd.f32 %v1387, %v6347
    %6349 = vmatmul.bf16.gmra.mxu0 %v2081
    %v6350 = vpop.f32.mrf.mxu0
    %v6351 = vadd.f32 %v1392, %v6350
    %v6352 = vpop.f32.mrf.mxu0
    %v6353 = vadd.f32 %v1397, %v6352
    %6354 = vmatmul.bf16.gmra.mxu0 %v2085
    %v6355 = vpop.f32.mrf.mxu0
    %v6356 = vadd.f32 %v1402, %v6355
    %v6357 = vpop.f32.mrf.mxu0
    %v6358 = vadd.f32 %v1407, %v6357
    %6359 = vmatmul.bf16.gmra.mxu0 %v2089
    %v6360 = vpop.f32.mrf.mxu0
    %v6361 = vadd.f32 %v1412, %v6360
    %v6362 = vpop.f32.mrf.mxu0
    %v6363 = vadd.f32 %v1417, %v6362
    %6364 = vmatmul.bf16.gmra.mxu0 %v2093
    %v6365 = vpop.f32.mrf.mxu0
    %v6366 = vadd.f32 %v1422, %v6365
    %v6367 = vpop.f32.mrf.mxu0
    %v6368 = vadd.f32 %v1427, %v6367
    %6369 = vmatmul.bf16.gmra.mxu0 %v2097
    %v6370 = vpop.f32.mrf.mxu0
    %v6371 = vadd.f32 %v1432, %v6370
    %v6372 = vpop.f32.mrf.mxu0
    %v6373 = vadd.f32 %v1437, %v6372
    %6374 = vmatmul.bf16.gmra.mxu0 %v2101
    %v6375 = vpop.f32.mrf.mxu0
    %v6376 = vadd.f32 %v1442, %v6375
    %v6377 = vpop.f32.mrf.mxu0
    %v6378 = vadd.f32 %v1447, %v6377
    %6379 = vmatmul.bf16.gmra.mxu0 %v2105
    %v6380 = vpop.f32.mrf.mxu0
    %v6381 = vadd.f32 %v1452, %v6380
    %v6382 = vpop.f32.mrf.mxu0
    %v6383 = vadd.f32 %v1457, %v6382
    %6384 = vmatmul.bf16.gmra.mxu0 %v2109
    %v6385 = vpop.f32.mrf.mxu0
    %v6386 = vadd.f32 %v1462, %v6385
    %v6387 = vpop.f32.mrf.mxu0
    %v6388 = vadd.f32 %v1467, %v6387
    %6389 = vmatmul.bf16.gmra.mxu0 %v2113
    %v6390 = vpop.f32.mrf.mxu0
    %v6391 = vadd.f32 %v1472, %v6390
    %v6392 = vpop.f32.mrf.mxu0
    %v6393 = vadd.f32 %v1477, %v6392
    %6394 = vmatmul.bf16.gmra.mxu0 %v2117
    %v6395 = vpop.f32.mrf.mxu0
    %v6396 = vadd.f32 %v1482, %v6395
    %v6397 = vpop.f32.mrf.mxu0
    %v6398 = vadd.f32 %v1487, %v6397
    %6399 = vmatmul.bf16.gmra.mxu0 %v2121
    %v6400 = vpop.f32.mrf.mxu0
    %v6401 = vadd.f32 %v1492, %v6400
    %v6402 = vpop.f32.mrf.mxu0
    %v6403 = vadd.f32 %v1497, %v6402
    %6404 = vmatmul.bf16.gmra.mxu0 %v2125
    %v6405 = vpop.f32.mrf.mxu0
    %v6406 = vadd.f32 %v1502, %v6405
    %v6407 = vpop.f32.mrf.mxu0
    %v6408 = vadd.f32 %v1507, %v6407
    %6409 = vmatmul.bf16.gmra.mxu0 %v2129
    %v6410 = vpop.f32.mrf.mxu0
    %v6411 = vadd.f32 %v1512, %v6410
    %v6412 = vpop.f32.mrf.mxu0
    %v6413 = vadd.f32 %v1517, %v6412
    %6414 = vmatmul.bf16.gmra.mxu0 %v2133
    %v6415 = vpop.f32.mrf.mxu0
    %v6416 = vadd.f32 %v1522, %v6415
    %v6417 = vpop.f32.mrf.mxu0
    %v6418 = vadd.f32 %v1527, %v6417
    %6419 = vmatmul.bf16.gmra.mxu0 %v2137
    %v6420 = vpop.f32.mrf.mxu0
    %v6421 = vadd.f32 %v1532, %v6420
    %v6422 = vpop.f32.mrf.mxu0
    %v6423 = vadd.f32 %v1537, %v6422
    %6424 = vmatmul.bf16.gmra.mxu0 %v2141
    %v6425 = vpop.f32.mrf.mxu0
    %v6426 = vadd.f32 %v1542, %v6425
    %v6427 = vpop.f32.mrf.mxu0
    %v6428 = vadd.f32 %v1547, %v6427
    %6429 = vmatmul.bf16.gmra.mxu0 %v2145
    %v6430 = vpop.f32.mrf.mxu0
    %v6431 = vadd.f32 %v1552, %v6430
    %v6432 = vpop.f32.mrf.mxu0
    %v6433 = vadd.f32 %v1557, %v6432
    %6434 = vmatmul.bf16.gmra.mxu0 %v2149
    %v6435 = vpop.f32.mrf.mxu0
    %v6436 = vadd.f32 %v1562, %v6435
    %v6437 = vpop.f32.mrf.mxu0
    %v6438 = vadd.f32 %v1567, %v6437
    %6439 = vmatmul.bf16.gmra.mxu0 %v2153
    %v6440 = vpop.f32.mrf.mxu0
    %v6441 = vadd.f32 %v1572, %v6440
    %v6442 = vpop.f32.mrf.mxu0
    %v6443 = vadd.f32 %v1577, %v6442
    %6444 = vmatmul.bf16.gmra.mxu0 %v2157
    %v6445 = vpop.f32.mrf.mxu0
    %v6446 = vadd.f32 %v1582, %v6445
    %v6447 = vpop.f32.mrf.mxu0
    %v6448 = vadd.f32 %v1587, %v6447
    %6449 = vmatmul.bf16.gmra.mxu0 %v2161
    %v6450 = vpop.f32.mrf.mxu0
    %v6451 = vadd.f32 %v1592, %v6450
    %v6452 = vpop.f32.mrf.mxu0
    %v6453 = vadd.f32 %v1597, %v6452
    %6454 = vmatmul.bf16.gmra.mxu0 %v2165
    %v6455 = vpop.f32.mrf.mxu0
    %v6456 = vadd.f32 %v1602, %v6455
    %v6457 = vpop.f32.mrf.mxu0
    %v6458 = vadd.f32 %v1607, %v6457
    %6459 = vmatmul.bf16.gmra.mxu0 %v2169
    %v6460 = vpop.f32.mrf.mxu0
    %v6461 = vadd.f32 %v1612, %v6460
    %v6462 = vpop.f32.mrf.mxu0
    %v6463 = vadd.f32 %v1617, %v6462
    %6464 = vmatmul.bf16.gmra.mxu0 %v2173
    %v6465 = vpop.f32.mrf.mxu0
    %v6466 = vadd.f32 %v1622, %v6465
    %v6467 = vpop.f32.mrf.mxu0
    %v6468 = vadd.f32 %v1627, %v6467
    %6469 = vmatmul.bf16.gmra.mxu0 %v2177
    %v6470 = vpop.f32.mrf.mxu0
    %v6471 = vadd.f32 %v1632, %v6470
    %v6472 = vpop.f32.mrf.mxu0
    %v6473 = vadd.f32 %v1637, %v6472
    %6474 = vmatmul.bf16.gmra.mxu0 %v2181
    %v6475 = vpop.f32.mrf.mxu0
    %v6476 = vadd.f32 %v1642, %v6475
    %v6477 = vpop.f32.mrf.mxu0
    %v6478 = vadd.f32 %v1647, %v6477
    %6479 = vmatmul.bf16.gmra.mxu0 %v2185
    %v6480 = vpop.f32.mrf.mxu0
    %v6481 = vadd.f32 %v1652, %v6480
    %v6482 = vpop.f32.mrf.mxu0
    %v6483 = vadd.f32 %v1657, %v6482
    %6484 = vmatmul.bf16.gmra.mxu0 %v2189
    %v6485 = vpop.f32.mrf.mxu0
    %v6486 = vadd.f32 %v1662, %v6485
    %v6487 = vpop.f32.mrf.mxu0
    %v6488 = vadd.f32 %v1667, %v6487
    %6489 = vmatmul.bf16.gmra.mxu0 %v2193
    %v6490 = vpop.f32.mrf.mxu0
    %v6491 = vadd.f32 %v1672, %v6490
    %v6492 = vpop.f32.mrf.mxu0
    %v6493 = vadd.f32 %v1677, %v6492
    %6494 = vmatmul.bf16.gmra.mxu0 %v2197
    %v6495 = vpop.f32.mrf.mxu0
    %v6496 = vadd.f32 %v1682, %v6495
    %v6497 = vpop.f32.mrf.mxu0
    %v6498 = vadd.f32 %v1687, %v6497
    %6499 = vdwg.mxu0
    %6500 = vmatpush.bf16.msra.mxu0 %v6297
    %6501 = vmatpush.bf16.msra.mxu0 %v6295
    %6502 = vmatpush.bf16.msra.mxu0 %v6293
    %6503 = vmatpush.bf16.msra.mxu0 %v6291
    %6504 = vmatpush.bf16.msra.mxu0 %v6289
    %6505 = vmatpush.bf16.msra.mxu0 %v6287
    %6506 = vmatpush.bf16.msra.mxu0 %v6285
    %6507 = vmatpush.bf16.msra.mxu0 %v6283
    %6508 = vmatmul.bf16.gmra.mxu0 %v2074
    %v6509 = vpop.f32.mrf.mxu0
    %v6510 = vadd.f32 %v6341, %v6509
    %v6511 = vpop.f32.mrf.mxu0
    %v6512 = vadd.f32 %v6343, %v6511
    %6513 = vmatmul.bf16.gmra.mxu0 %v2078
    %v6514 = vpop.f32.mrf.mxu0
    %v6515 = vadd.f32 %v6346, %v6514
    %v6516 = vpop.f32.mrf.mxu0
    %v6517 = vadd.f32 %v6348, %v6516
    %6518 = vmatmul.bf16.gmra.mxu0 %v2082
    %v6519 = vpop.f32.mrf.mxu0
    %v6520 = vadd.f32 %v6351, %v6519
    %v6521 = vpop.f32.mrf.mxu0
    %v6522 = vadd.f32 %v6353, %v6521
    %6523 = vmatmul.bf16.gmra.mxu0 %v2086
    %v6524 = vpop.f32.mrf.mxu0
    %v6525 = vadd.f32 %v6356, %v6524
    %v6526 = vpop.f32.mrf.mxu0
    %v6527 = vadd.f32 %v6358, %v6526
    %6528 = vmatmul.bf16.gmra.mxu0 %v2090
    %v6529 = vpop.f32.mrf.mxu0
    %v6530 = vadd.f32 %v6361, %v6529
    %v6531 = vpop.f32.mrf.mxu0
    %v6532 = vadd.f32 %v6363, %v6531
    %6533 = vmatmul.bf16.gmra.mxu0 %v2094
    %v6534 = vpop.f32.mrf.mxu0
    %v6535 = vadd.f32 %v6366, %v6534
    %v6536 = vpop.f32.mrf.mxu0
    %v6537 = vadd.f32 %v6368, %v6536
    %6538 = vmatmul.bf16.gmra.mxu0 %v2098
    %v6539 = vpop.f32.mrf.mxu0
    %v6540 = vadd.f32 %v6371, %v6539
    %v6541 = vpop.f32.mrf.mxu0
    %v6542 = vadd.f32 %v6373, %v6541
    %6543 = vmatmul.bf16.gmra.mxu0 %v2102
    %v6544 = vpop.f32.mrf.mxu0
    %v6545 = vadd.f32 %v6376, %v6544
    %v6546 = vpop.f32.mrf.mxu0
    %v6547 = vadd.f32 %v6378, %v6546
    %6548 = vmatmul.bf16.gmra.mxu0 %v2106
    %v6549 = vpop.f32.mrf.mxu0
    %v6550 = vadd.f32 %v6381, %v6549
    %v6551 = vpop.f32.mrf.mxu0
    %v6552 = vadd.f32 %v6383, %v6551
    %6553 = vmatmul.bf16.gmra.mxu0 %v2110
    %v6554 = vpop.f32.mrf.mxu0
    %v6555 = vadd.f32 %v6386, %v6554
    %v6556 = vpop.f32.mrf.mxu0
    %v6557 = vadd.f32 %v6388, %v6556
    %6558 = vmatmul.bf16.gmra.mxu0 %v2114
    %v6559 = vpop.f32.mrf.mxu0
    %v6560 = vadd.f32 %v6391, %v6559
    %v6561 = vpop.f32.mrf.mxu0
    %v6562 = vadd.f32 %v6393, %v6561
    %6563 = vmatmul.bf16.gmra.mxu0 %v2118
    %v6564 = vpop.f32.mrf.mxu0
    %v6565 = vadd.f32 %v6396, %v6564
    %v6566 = vpop.f32.mrf.mxu0
    %v6567 = vadd.f32 %v6398, %v6566
    %6568 = vmatmul.bf16.gmra.mxu0 %v2122
    %v6569 = vpop.f32.mrf.mxu0
    %v6570 = vadd.f32 %v6401, %v6569
    %v6571 = vpop.f32.mrf.mxu0
    %v6572 = vadd.f32 %v6403, %v6571
    %6573 = vmatmul.bf16.gmra.mxu0 %v2126
    %v6574 = vpop.f32.mrf.mxu0
    %v6575 = vadd.f32 %v6406, %v6574
    %v6576 = vpop.f32.mrf.mxu0
    %v6577 = vadd.f32 %v6408, %v6576
    %6578 = vmatmul.bf16.gmra.mxu0 %v2130
    %v6579 = vpop.f32.mrf.mxu0
    %v6580 = vadd.f32 %v6411, %v6579
    %v6581 = vpop.f32.mrf.mxu0
    %v6582 = vadd.f32 %v6413, %v6581
    %6583 = vmatmul.bf16.gmra.mxu0 %v2134
    %v6584 = vpop.f32.mrf.mxu0
    %v6585 = vadd.f32 %v6416, %v6584
    %v6586 = vpop.f32.mrf.mxu0
    %v6587 = vadd.f32 %v6418, %v6586
    %6588 = vmatmul.bf16.gmra.mxu0 %v2138
    %v6589 = vpop.f32.mrf.mxu0
    %v6590 = vadd.f32 %v6421, %v6589
    %v6591 = vpop.f32.mrf.mxu0
    %v6592 = vadd.f32 %v6423, %v6591
    %6593 = vmatmul.bf16.gmra.mxu0 %v2142
    %v6594 = vpop.f32.mrf.mxu0
    %v6595 = vadd.f32 %v6426, %v6594
    %v6596 = vpop.f32.mrf.mxu0
    %v6597 = vadd.f32 %v6428, %v6596
    %6598 = vmatmul.bf16.gmra.mxu0 %v2146
    %v6599 = vpop.f32.mrf.mxu0
    %v6600 = vadd.f32 %v6431, %v6599
    %v6601 = vpop.f32.mrf.mxu0
    %v6602 = vadd.f32 %v6433, %v6601
    %6603 = vmatmul.bf16.gmra.mxu0 %v2150
    %v6604 = vpop.f32.mrf.mxu0
    %v6605 = vadd.f32 %v6436, %v6604
    %v6606 = vpop.f32.mrf.mxu0
    %v6607 = vadd.f32 %v6438, %v6606
    %6608 = vmatmul.bf16.gmra.mxu0 %v2154
    %v6609 = vpop.f32.mrf.mxu0
    %v6610 = vadd.f32 %v6441, %v6609
    %v6611 = vpop.f32.mrf.mxu0
    %v6612 = vadd.f32 %v6443, %v6611
    %6613 = vmatmul.bf16.gmra.mxu0 %v2158
    %v6614 = vpop.f32.mrf.mxu0
    %v6615 = vadd.f32 %v6446, %v6614
    %v6616 = vpop.f32.mrf.mxu0
    %v6617 = vadd.f32 %v6448, %v6616
    %6618 = vmatmul.bf16.gmra.mxu0 %v2162
    %v6619 = vpop.f32.mrf.mxu0
    %v6620 = vadd.f32 %v6451, %v6619
    %v6621 = vpop.f32.mrf.mxu0
    %v6622 = vadd.f32 %v6453, %v6621
    %6623 = vmatmul.bf16.gmra.mxu0 %v2166
    %v6624 = vpop.f32.mrf.mxu0
    %v6625 = vadd.f32 %v6456, %v6624
    %v6626 = vpop.f32.mrf.mxu0
    %v6627 = vadd.f32 %v6458, %v6626
    %6628 = vmatmul.bf16.gmra.mxu0 %v2170
    %v6629 = vpop.f32.mrf.mxu0
    %v6630 = vadd.f32 %v6461, %v6629
    %v6631 = vpop.f32.mrf.mxu0
    %v6632 = vadd.f32 %v6463, %v6631
    %6633 = vmatmul.bf16.gmra.mxu0 %v2174
    %v6634 = vpop.f32.mrf.mxu0
    %v6635 = vadd.f32 %v6466, %v6634
    %v6636 = vpop.f32.mrf.mxu0
    %v6637 = vadd.f32 %v6468, %v6636
    %6638 = vmatmul.bf16.gmra.mxu0 %v2178
    %v6639 = vpop.f32.mrf.mxu0
    %v6640 = vadd.f32 %v6471, %v6639
    %v6641 = vpop.f32.mrf.mxu0
    %v6642 = vadd.f32 %v6473, %v6641
    %6643 = vmatmul.bf16.gmra.mxu0 %v2182
    %v6644 = vpop.f32.mrf.mxu0
    %v6645 = vadd.f32 %v6476, %v6644
    %v6646 = vpop.f32.mrf.mxu0
    %v6647 = vadd.f32 %v6478, %v6646
    %6648 = vmatmul.bf16.gmra.mxu0 %v2186
    %v6649 = vpop.f32.mrf.mxu0
    %v6650 = vadd.f32 %v6481, %v6649
    %v6651 = vpop.f32.mrf.mxu0
    %v6652 = vadd.f32 %v6483, %v6651
    %6653 = vmatmul.bf16.gmra.mxu0 %v2190
    %v6654 = vpop.f32.mrf.mxu0
    %v6655 = vadd.f32 %v6486, %v6654
    %v6656 = vpop.f32.mrf.mxu0
    %v6657 = vadd.f32 %v6488, %v6656
    %6658 = vmatmul.bf16.gmra.mxu0 %v2194
    %v6659 = vpop.f32.mrf.mxu0
    %v6660 = vadd.f32 %v6491, %v6659
    %v6661 = vpop.f32.mrf.mxu0
    %v6662 = vadd.f32 %v6493, %v6661
    %6663 = vmatmul.bf16.gmra.mxu0 %v2198
    %v6664 = vpop.f32.mrf.mxu0
    %v6665 = vadd.f32 %v6496, %v6664
    %v6666 = vpop.f32.mrf.mxu0
    %v6667 = vadd.f32 %v6498, %v6666
    %6668 = vdwg.mxu0
    %6669 = vmatpush.bf16.msra.mxu0 %v6313
    %6670 = vmatpush.bf16.msra.mxu0 %v6311
    %6671 = vmatpush.bf16.msra.mxu0 %v6309
    %6672 = vmatpush.bf16.msra.mxu0 %v6307
    %6673 = vmatpush.bf16.msra.mxu0 %v6305
    %6674 = vmatpush.bf16.msra.mxu0 %v6303
    %6675 = vmatpush.bf16.msra.mxu0 %v6301
    %6676 = vmatpush.bf16.msra.mxu0 %v6299
    %6677 = vmatmul.bf16.gmra.mxu0 %v2075
    %v6678 = vpop.f32.mrf.mxu0
    %v6679 = vadd.f32 %v6510, %v6678
    %v6680 = vpop.f32.mrf.mxu0
    %v6681 = vadd.f32 %v6512, %v6680
    %6682 = vmatmul.bf16.gmra.mxu0 %v2079
    %v6683 = vpop.f32.mrf.mxu0
    %v6684 = vadd.f32 %v6515, %v6683
    %v6685 = vpop.f32.mrf.mxu0
    %v6686 = vadd.f32 %v6517, %v6685
    %6687 = vmatmul.bf16.gmra.mxu0 %v2083
    %v6688 = vpop.f32.mrf.mxu0
    %v6689 = vadd.f32 %v6520, %v6688
    %v6690 = vpop.f32.mrf.mxu0
    %v6691 = vadd.f32 %v6522, %v6690
    %6692 = vmatmul.bf16.gmra.mxu0 %v2087
    %v6693 = vpop.f32.mrf.mxu0
    %v6694 = vadd.f32 %v6525, %v6693
    %v6695 = vpop.f32.mrf.mxu0
    %v6696 = vadd.f32 %v6527, %v6695
    %6697 = vmatmul.bf16.gmra.mxu0 %v2091
    %v6698 = vpop.f32.mrf.mxu0
    %v6699 = vadd.f32 %v6530, %v6698
    %v6700 = vpop.f32.mrf.mxu0
    %v6701 = vadd.f32 %v6532, %v6700
    %6702 = vmatmul.bf16.gmra.mxu0 %v2095
    %v6703 = vpop.f32.mrf.mxu0
    %v6704 = vadd.f32 %v6535, %v6703
    %v6705 = vpop.f32.mrf.mxu0
    %v6706 = vadd.f32 %v6537, %v6705
    %6707 = vmatmul.bf16.gmra.mxu0 %v2099
    %v6708 = vpop.f32.mrf.mxu0
    %v6709 = vadd.f32 %v6540, %v6708
    %v6710 = vpop.f32.mrf.mxu0
    %v6711 = vadd.f32 %v6542, %v6710
    %6712 = vmatmul.bf16.gmra.mxu0 %v2103
    %v6713 = vpop.f32.mrf.mxu0
    %v6714 = vadd.f32 %v6545, %v6713
    %v6715 = vpop.f32.mrf.mxu0
    %v6716 = vadd.f32 %v6547, %v6715
    %6717 = vmatmul.bf16.gmra.mxu0 %v2107
    %v6718 = vpop.f32.mrf.mxu0
    %v6719 = vadd.f32 %v6550, %v6718
    %v6720 = vpop.f32.mrf.mxu0
    %v6721 = vadd.f32 %v6552, %v6720
    %6722 = vmatmul.bf16.gmra.mxu0 %v2111
    %v6723 = vpop.f32.mrf.mxu0
    %v6724 = vadd.f32 %v6555, %v6723
    %v6725 = vpop.f32.mrf.mxu0
    %v6726 = vadd.f32 %v6557, %v6725
    %6727 = vmatmul.bf16.gmra.mxu0 %v2115
    %v6728 = vpop.f32.mrf.mxu0
    %v6729 = vadd.f32 %v6560, %v6728
    %v6730 = vpop.f32.mrf.mxu0
    %v6731 = vadd.f32 %v6562, %v6730
    %6732 = vmatmul.bf16.gmra.mxu0 %v2119
    %v6733 = vpop.f32.mrf.mxu0
    %v6734 = vadd.f32 %v6565, %v6733
    %v6735 = vpop.f32.mrf.mxu0
    %v6736 = vadd.f32 %v6567, %v6735
    %6737 = vmatmul.bf16.gmra.mxu0 %v2123
    %v6738 = vpop.f32.mrf.mxu0
    %v6739 = vadd.f32 %v6570, %v6738
    %v6740 = vpop.f32.mrf.mxu0
    %v6741 = vadd.f32 %v6572, %v6740
    %6742 = vmatmul.bf16.gmra.mxu0 %v2127
    %v6743 = vpop.f32.mrf.mxu0
    %v6744 = vadd.f32 %v6575, %v6743
    %v6745 = vpop.f32.mrf.mxu0
    %v6746 = vadd.f32 %v6577, %v6745
    %6747 = vmatmul.bf16.gmra.mxu0 %v2131
    %v6748 = vpop.f32.mrf.mxu0
    %v6749 = vadd.f32 %v6580, %v6748
    %v6750 = vpop.f32.mrf.mxu0
    %v6751 = vadd.f32 %v6582, %v6750
    %6752 = vmatmul.bf16.gmra.mxu0 %v2135
    %v6753 = vpop.f32.mrf.mxu0
    %v6754 = vadd.f32 %v6585, %v6753
    %v6755 = vpop.f32.mrf.mxu0
    %v6756 = vadd.f32 %v6587, %v6755
    %6757 = vmatmul.bf16.gmra.mxu0 %v2139
    %v6758 = vpop.f32.mrf.mxu0
    %v6759 = vadd.f32 %v6590, %v6758
    %v6760 = vpop.f32.mrf.mxu0
    %v6761 = vadd.f32 %v6592, %v6760
    %6762 = vmatmul.bf16.gmra.mxu0 %v2143
    %v6763 = vpop.f32.mrf.mxu0
    %v6764 = vadd.f32 %v6595, %v6763
    %v6765 = vpop.f32.mrf.mxu0
    %v6766 = vadd.f32 %v6597, %v6765
    %6767 = vmatmul.bf16.gmra.mxu0 %v2147
    %v6768 = vpop.f32.mrf.mxu0
    %v6769 = vadd.f32 %v6600, %v6768
    %v6770 = vpop.f32.mrf.mxu0
    %v6771 = vadd.f32 %v6602, %v6770
    %6772 = vmatmul.bf16.gmra.mxu0 %v2151
    %v6773 = vpop.f32.mrf.mxu0
    %v6774 = vadd.f32 %v6605, %v6773
    %v6775 = vpop.f32.mrf.mxu0
    %v6776 = vadd.f32 %v6607, %v6775
    %6777 = vmatmul.bf16.gmra.mxu0 %v2155
    %v6778 = vpop.f32.mrf.mxu0
    %v6779 = vadd.f32 %v6610, %v6778
    %v6780 = vpop.f32.mrf.mxu0
    %v6781 = vadd.f32 %v6612, %v6780
    %6782 = vmatmul.bf16.gmra.mxu0 %v2159
    %v6783 = vpop.f32.mrf.mxu0
    %v6784 = vadd.f32 %v6615, %v6783
    %v6785 = vpop.f32.mrf.mxu0
    %v6786 = vadd.f32 %v6617, %v6785
    %6787 = vmatmul.bf16.gmra.mxu0 %v2163
    %v6788 = vpop.f32.mrf.mxu0
    %v6789 = vadd.f32 %v6620, %v6788
    %v6790 = vpop.f32.mrf.mxu0
    %v6791 = vadd.f32 %v6622, %v6790
    %6792 = vmatmul.bf16.gmra.mxu0 %v2167
    %v6793 = vpop.f32.mrf.mxu0
    %v6794 = vadd.f32 %v6625, %v6793
    %v6795 = vpop.f32.mrf.mxu0
    %v6796 = vadd.f32 %v6627, %v6795
    %6797 = vmatmul.bf16.gmra.mxu0 %v2171
    %v6798 = vpop.f32.mrf.mxu0
    %v6799 = vadd.f32 %v6630, %v6798
    %v6800 = vpop.f32.mrf.mxu0
    %v6801 = vadd.f32 %v6632, %v6800
    %6802 = vmatmul.bf16.gmra.mxu0 %v2175
    %v6803 = vpop.f32.mrf.mxu0
    %v6804 = vadd.f32 %v6635, %v6803
    %v6805 = vpop.f32.mrf.mxu0
    %v6806 = vadd.f32 %v6637, %v6805
    %6807 = vmatmul.bf16.gmra.mxu0 %v2179
    %v6808 = vpop.f32.mrf.mxu0
    %v6809 = vadd.f32 %v6640, %v6808
    %v6810 = vpop.f32.mrf.mxu0
    %v6811 = vadd.f32 %v6642, %v6810
    %6812 = vmatmul.bf16.gmra.mxu0 %v2183
    %v6813 = vpop.f32.mrf.mxu0
    %v6814 = vadd.f32 %v6645, %v6813
    %v6815 = vpop.f32.mrf.mxu0
    %v6816 = vadd.f32 %v6647, %v6815
    %6817 = vmatmul.bf16.gmra.mxu0 %v2187
    %v6818 = vpop.f32.mrf.mxu0
    %v6819 = vadd.f32 %v6650, %v6818
    %v6820 = vpop.f32.mrf.mxu0
    %v6821 = vadd.f32 %v6652, %v6820
    %6822 = vmatmul.bf16.gmra.mxu0 %v2191
    %v6823 = vpop.f32.mrf.mxu0
    %v6824 = vadd.f32 %v6655, %v6823
    %v6825 = vpop.f32.mrf.mxu0
    %v6826 = vadd.f32 %v6657, %v6825
    %6827 = vmatmul.bf16.gmra.mxu0 %v2195
    %v6828 = vpop.f32.mrf.mxu0
    %v6829 = vadd.f32 %v6660, %v6828
    %v6830 = vpop.f32.mrf.mxu0
    %v6831 = vadd.f32 %v6662, %v6830
    %6832 = vmatmul.bf16.gmra.mxu0 %v2199
    %v6833 = vpop.f32.mrf.mxu0
    %v6834 = vadd.f32 %v6665, %v6833
    %v6835 = vpop.f32.mrf.mxu0
    %v6836 = vadd.f32 %v6667, %v6835
    %6837 = vdwg.mxu0
    %6838 = vmatpush.bf16.msra.mxu0 %v6329
    %6839 = vmatpush.bf16.msra.mxu0 %v6327
    %6840 = vmatpush.bf16.msra.mxu0 %v6325
    %6841 = vmatpush.bf16.msra.mxu0 %v6323
    %6842 = vmatpush.bf16.msra.mxu0 %v6321
    %6843 = vmatpush.bf16.msra.mxu0 %v6319
    %6844 = vmatpush.bf16.msra.mxu0 %v6317
    %6845 = vmatpush.bf16.msra.mxu0 %v6315
    %6846 = vmatmul.bf16.gmra.mxu0 %v2076
    %v6847 = vpop.f32.mrf.mxu0
    %v6848 = vadd.f32 %v6679, %v6847
    %v6849 = vpop.f32.mrf.mxu0
    %v6850 = vadd.f32 %v6681, %v6849
    %6851 = vmatmul.bf16.gmra.mxu0 %v2080
    %v6852 = vpop.f32.mrf.mxu0
    %v6853 = vadd.f32 %v6684, %v6852
    %v6854 = vpop.f32.mrf.mxu0
    %v6855 = vadd.f32 %v6686, %v6854
    %6856 = vmatmul.bf16.gmra.mxu0 %v2084
    %v6857 = vpop.f32.mrf.mxu0
    %v6858 = vadd.f32 %v6689, %v6857
    %v6859 = vpop.f32.mrf.mxu0
    %v6860 = vadd.f32 %v6691, %v6859
    %6861 = vmatmul.bf16.gmra.mxu0 %v2088
    %v6862 = vpop.f32.mrf.mxu0
    %v6863 = vadd.f32 %v6694, %v6862
    %v6864 = vpop.f32.mrf.mxu0
    %v6865 = vadd.f32 %v6696, %v6864
    %6866 = vmatmul.bf16.gmra.mxu0 %v2092
    %v6867 = vpop.f32.mrf.mxu0
    %v6868 = vadd.f32 %v6699, %v6867
    %v6869 = vpop.f32.mrf.mxu0
    %v6870 = vadd.f32 %v6701, %v6869
    %6871 = vmatmul.bf16.gmra.mxu0 %v2096
    %v6872 = vpop.f32.mrf.mxu0
    %v6873 = vadd.f32 %v6704, %v6872
    %v6874 = vpop.f32.mrf.mxu0
    %v6875 = vadd.f32 %v6706, %v6874
    %6876 = vmatmul.bf16.gmra.mxu0 %v2100
    %v6877 = vpop.f32.mrf.mxu0
    %v6878 = vadd.f32 %v6709, %v6877
    %v6879 = vpop.f32.mrf.mxu0
    %v6880 = vadd.f32 %v6711, %v6879
    %6881 = vmatmul.bf16.gmra.mxu0 %v2104
    %v6882 = vpop.f32.mrf.mxu0
    %v6883 = vadd.f32 %v6714, %v6882
    %v6884 = vpop.f32.mrf.mxu0
    %v6885 = vadd.f32 %v6716, %v6884
    %6886 = vmatmul.bf16.gmra.mxu0 %v2108
    %v6887 = vpop.f32.mrf.mxu0
    %v6888 = vadd.f32 %v6719, %v6887
    %v6889 = vpop.f32.mrf.mxu0
    %v6890 = vadd.f32 %v6721, %v6889
    %6891 = vmatmul.bf16.gmra.mxu0 %v2112
    %v6892 = vpop.f32.mrf.mxu0
    %v6893 = vadd.f32 %v6724, %v6892
    %v6894 = vpop.f32.mrf.mxu0
    %v6895 = vadd.f32 %v6726, %v6894
    %6896 = vmatmul.bf16.gmra.mxu0 %v2116
    %v6897 = vpop.f32.mrf.mxu0
    %v6898 = vadd.f32 %v6729, %v6897
    %v6899 = vpop.f32.mrf.mxu0
    %v6900 = vadd.f32 %v6731, %v6899
    %6901 = vmatmul.bf16.gmra.mxu0 %v2120
    %v6902 = vpop.f32.mrf.mxu0
    %v6903 = vadd.f32 %v6734, %v6902
    %v6904 = vpop.f32.mrf.mxu0
    %v6905 = vadd.f32 %v6736, %v6904
    %6906 = vmatmul.bf16.gmra.mxu0 %v2124
    %v6907 = vpop.f32.mrf.mxu0
    %v6908 = vadd.f32 %v6739, %v6907
    %v6909 = vpop.f32.mrf.mxu0
    %v6910 = vadd.f32 %v6741, %v6909
    %6911 = vmatmul.bf16.gmra.mxu0 %v2128
    %v6912 = vpop.f32.mrf.mxu0
    %v6913 = vadd.f32 %v6744, %v6912
    %v6914 = vpop.f32.mrf.mxu0
    %v6915 = vadd.f32 %v6746, %v6914
    %6916 = vmatmul.bf16.gmra.mxu0 %v2132
    %v6917 = vpop.f32.mrf.mxu0
    %v6918 = vadd.f32 %v6749, %v6917
    %v6919 = vpop.f32.mrf.mxu0
    %v6920 = vadd.f32 %v6751, %v6919
    %6921 = vmatmul.bf16.gmra.mxu0 %v2136
    %v6922 = vpop.f32.mrf.mxu0
    %v6923 = vadd.f32 %v6754, %v6922
    %v6924 = vpop.f32.mrf.mxu0
    %v6925 = vadd.f32 %v6756, %v6924
    %6926 = vmatmul.bf16.gmra.mxu0 %v2140
    %v6927 = vpop.f32.mrf.mxu0
    %v6928 = vadd.f32 %v6759, %v6927
    %v6929 = vpop.f32.mrf.mxu0
    %v6930 = vadd.f32 %v6761, %v6929
    %6931 = vmatmul.bf16.gmra.mxu0 %v2144
    %v6932 = vpop.f32.mrf.mxu0
    %v6933 = vadd.f32 %v6764, %v6932
    %v6934 = vpop.f32.mrf.mxu0
    %v6935 = vadd.f32 %v6766, %v6934
    %6936 = vmatmul.bf16.gmra.mxu0 %v2148
    %v6937 = vpop.f32.mrf.mxu0
    %v6938 = vadd.f32 %v6769, %v6937
    %v6939 = vpop.f32.mrf.mxu0
    %v6940 = vadd.f32 %v6771, %v6939
    %6941 = vmatmul.bf16.gmra.mxu0 %v2152
    %v6942 = vpop.f32.mrf.mxu0
    %v6943 = vadd.f32 %v6774, %v6942
    %v6944 = vpop.f32.mrf.mxu0
    %v6945 = vadd.f32 %v6776, %v6944
    %6946 = vmatmul.bf16.gmra.mxu0 %v2156
    %v6947 = vpop.f32.mrf.mxu0
    %v6948 = vadd.f32 %v6779, %v6947
    %v6949 = vpop.f32.mrf.mxu0
    %v6950 = vadd.f32 %v6781, %v6949
    %6951 = vmatmul.bf16.gmra.mxu0 %v2160
    %v6952 = vpop.f32.mrf.mxu0
    %v6953 = vadd.f32 %v6784, %v6952
    %v6954 = vpop.f32.mrf.mxu0
    %v6955 = vadd.f32 %v6786, %v6954
    %6956 = vmatmul.bf16.gmra.mxu0 %v2164
    %v6957 = vpop.f32.mrf.mxu0
    %v6958 = vadd.f32 %v6789, %v6957
    %v6959 = vpop.f32.mrf.mxu0
    %v6960 = vadd.f32 %v6791, %v6959
    %6961 = vmatmul.bf16.gmra.mxu0 %v2168
    %v6962 = vpop.f32.mrf.mxu0
    %v6963 = vadd.f32 %v6794, %v6962
    %v6964 = vpop.f32.mrf.mxu0
    %v6965 = vadd.f32 %v6796, %v6964
    %6966 = vmatmul.bf16.gmra.mxu0 %v2172
    %v6967 = vpop.f32.mrf.mxu0
    %v6968 = vadd.f32 %v6799, %v6967
    %v6969 = vpop.f32.mrf.mxu0
    %v6970 = vadd.f32 %v6801, %v6969
    %6971 = vmatmul.bf16.gmra.mxu0 %v2176
    %v6972 = vpop.f32.mrf.mxu0
    %v6973 = vadd.f32 %v6804, %v6972
    %v6974 = vpop.f32.mrf.mxu0
    %v6975 = vadd.f32 %v6806, %v6974
    %6976 = vmatmul.bf16.gmra.mxu0 %v2180
    %v6977 = vpop.f32.mrf.mxu0
    %v6978 = vadd.f32 %v6809, %v6977
    %v6979 = vpop.f32.mrf.mxu0
    %v6980 = vadd.f32 %v6811, %v6979
    %6981 = vmatmul.bf16.gmra.mxu0 %v2184
    %v6982 = vpop.f32.mrf.mxu0
    %v6983 = vadd.f32 %v6814, %v6982
    %v6984 = vpop.f32.mrf.mxu0
    %v6985 = vadd.f32 %v6816, %v6984
    %6986 = vmatmul.bf16.gmra.mxu0 %v2188
    %v6987 = vpop.f32.mrf.mxu0
    %v6988 = vadd.f32 %v6819, %v6987
    %v6989 = vpop.f32.mrf.mxu0
    %v6990 = vadd.f32 %v6821, %v6989
    %6991 = vmatmul.bf16.gmra.mxu0 %v2192
    %v6992 = vpop.f32.mrf.mxu0
    %v6993 = vadd.f32 %v6824, %v6992
    %v6994 = vpop.f32.mrf.mxu0
    %v6995 = vadd.f32 %v6826, %v6994
    %6996 = vmatmul.bf16.gmra.mxu0 %v2196
    %v6997 = vpop.f32.mrf.mxu0
    %v6998 = vadd.f32 %v6829, %v6997
    %v6999 = vpop.f32.mrf.mxu0
    %v7000 = vadd.f32 %v6831, %v6999
    %7001 = vmatmul.bf16.gmra.mxu0 %v2200
    %v7002 = vpop.f32.mrf.mxu0
    %v7003 = vadd.f32 %v6834, %v7002
    %v7004 = vpop.f32.mrf.mxu0
    %v7005 = vadd.f32 %v6836, %v7004
    %7006 = vdwg.mxu0
    %7007 = vmatpush.bf16.msra.mxu0 %v6282
    %7008 = vmatpush.bf16.msra.mxu0 %v6280
    %7009 = vmatpush.bf16.msra.mxu0 %v6278
    %7010 = vmatpush.bf16.msra.mxu0 %v6276
    %7011 = vmatpush.bf16.msra.mxu0 %v6274
    %7012 = vmatpush.bf16.msra.mxu0 %v6272
    %7013 = vmatpush.bf16.msra.mxu0 %v6270
    %7014 = vmatpush.bf16.msra.mxu0 %v6268
    %7015 = vmatmul.bf16.gmra.mxu0 %v2073
    %v7016 = vpop.f32.mrf.mxu0
    %v7017 = vadd.f32 %v1372, %v7016
    %v7018 = vpop.f32.mrf.mxu0
    %v7019 = vadd.f32 %v1377, %v7018
    %7020 = vmatmul.bf16.gmra.mxu0 %v2077
    %v7021 = vpop.f32.mrf.mxu0
    %v7022 = vadd.f32 %v1382, %v7021
    %v7023 = vpop.f32.mrf.mxu0
    %v7024 = vadd.f32 %v1387, %v7023
    %7025 = vmatmul.bf16.gmra.mxu0 %v2081
    %v7026 = vpop.f32.mrf.mxu0
    %v7027 = vadd.f32 %v1392, %v7026
    %v7028 = vpop.f32.mrf.mxu0
    %v7029 = vadd.f32 %v1397, %v7028
    %7030 = vmatmul.bf16.gmra.mxu0 %v2085
    %v7031 = vpop.f32.mrf.mxu0
    %v7032 = vadd.f32 %v1402, %v7031
    %v7033 = vpop.f32.mrf.mxu0
    %v7034 = vadd.f32 %v1407, %v7033
    %7035 = vmatmul.bf16.gmra.mxu0 %v2089
    %v7036 = vpop.f32.mrf.mxu0
    %v7037 = vadd.f32 %v1412, %v7036
    %v7038 = vpop.f32.mrf.mxu0
    %v7039 = vadd.f32 %v1417, %v7038
    %7040 = vmatmul.bf16.gmra.mxu0 %v2093
    %v7041 = vpop.f32.mrf.mxu0
    %v7042 = vadd.f32 %v1422, %v7041
    %v7043 = vpop.f32.mrf.mxu0
    %v7044 = vadd.f32 %v1427, %v7043
    %7045 = vmatmul.bf16.gmra.mxu0 %v2097
    %v7046 = vpop.f32.mrf.mxu0
    %v7047 = vadd.f32 %v1432, %v7046
    %v7048 = vpop.f32.mrf.mxu0
    %v7049 = vadd.f32 %v1437, %v7048
    %7050 = vmatmul.bf16.gmra.mxu0 %v2101
    %v7051 = vpop.f32.mrf.mxu0
    %v7052 = vadd.f32 %v1442, %v7051
    %v7053 = vpop.f32.mrf.mxu0
    %v7054 = vadd.f32 %v1447, %v7053
    %7055 = vmatmul.bf16.gmra.mxu0 %v2105
    %v7056 = vpop.f32.mrf.mxu0
    %v7057 = vadd.f32 %v1452, %v7056
    %v7058 = vpop.f32.mrf.mxu0
    %v7059 = vadd.f32 %v1457, %v7058
    %7060 = vmatmul.bf16.gmra.mxu0 %v2109
    %v7061 = vpop.f32.mrf.mxu0
    %v7062 = vadd.f32 %v1462, %v7061
    %v7063 = vpop.f32.mrf.mxu0
    %v7064 = vadd.f32 %v1467, %v7063
    %7065 = vmatmul.bf16.gmra.mxu0 %v2113
    %v7066 = vpop.f32.mrf.mxu0
    %v7067 = vadd.f32 %v1472, %v7066
    %v7068 = vpop.f32.mrf.mxu0
    %v7069 = vadd.f32 %v1477, %v7068
    %7070 = vmatmul.bf16.gmra.mxu0 %v2117
    %v7071 = vpop.f32.mrf.mxu0
    %v7072 = vadd.f32 %v1482, %v7071
    %v7073 = vpop.f32.mrf.mxu0
    %v7074 = vadd.f32 %v1487, %v7073
    %7075 = vmatmul.bf16.gmra.mxu0 %v2121
    %v7076 = vpop.f32.mrf.mxu0
    %v7077 = vadd.f32 %v1492, %v7076
    %v7078 = vpop.f32.mrf.mxu0
    %v7079 = vadd.f32 %v1497, %v7078
    %7080 = vmatmul.bf16.gmra.mxu0 %v2125
    %v7081 = vpop.f32.mrf.mxu0
    %v7082 = vadd.f32 %v1502, %v7081
    %v7083 = vpop.f32.mrf.mxu0
    %v7084 = vadd.f32 %v1507, %v7083
    %7085 = vmatmul.bf16.gmra.mxu0 %v2129
    %v7086 = vpop.f32.mrf.mxu0
    %v7087 = vadd.f32 %v1512, %v7086
    %v7088 = vpop.f32.mrf.mxu0
    %v7089 = vadd.f32 %v1517, %v7088
    %7090 = vmatmul.bf16.gmra.mxu0 %v2133
    %v7091 = vpop.f32.mrf.mxu0
    %v7092 = vadd.f32 %v1522, %v7091
    %v7093 = vpop.f32.mrf.mxu0
    %v7094 = vadd.f32 %v1527, %v7093
    %7095 = vmatmul.bf16.gmra.mxu0 %v2137
    %v7096 = vpop.f32.mrf.mxu0
    %v7097 = vadd.f32 %v1532, %v7096
    %v7098 = vpop.f32.mrf.mxu0
    %v7099 = vadd.f32 %v1537, %v7098
    %7100 = vmatmul.bf16.gmra.mxu0 %v2141
    %v7101 = vpop.f32.mrf.mxu0
    %v7102 = vadd.f32 %v1542, %v7101
    %v7103 = vpop.f32.mrf.mxu0
    %v7104 = vadd.f32 %v1547, %v7103
    %7105 = vmatmul.bf16.gmra.mxu0 %v2145
    %v7106 = vpop.f32.mrf.mxu0
    %v7107 = vadd.f32 %v1552, %v7106
    %v7108 = vpop.f32.mrf.mxu0
    %v7109 = vadd.f32 %v1557, %v7108
    %7110 = vmatmul.bf16.gmra.mxu0 %v2149
    %v7111 = vpop.f32.mrf.mxu0
    %v7112 = vadd.f32 %v1562, %v7111
    %v7113 = vpop.f32.mrf.mxu0
    %v7114 = vadd.f32 %v1567, %v7113
    %7115 = vmatmul.bf16.gmra.mxu0 %v2153
    %v7116 = vpop.f32.mrf.mxu0
    %v7117 = vadd.f32 %v1572, %v7116
    %v7118 = vpop.f32.mrf.mxu0
    %v7119 = vadd.f32 %v1577, %v7118
    %7120 = vmatmul.bf16.gmra.mxu0 %v2157
    %v7121 = vpop.f32.mrf.mxu0
    %v7122 = vadd.f32 %v1582, %v7121
    %v7123 = vpop.f32.mrf.mxu0
    %v7124 = vadd.f32 %v1587, %v7123
    %7125 = vmatmul.bf16.gmra.mxu0 %v2161
    %v7126 = vpop.f32.mrf.mxu0
    %v7127 = vadd.f32 %v1592, %v7126
    %v7128 = vpop.f32.mrf.mxu0
    %v7129 = vadd.f32 %v1597, %v7128
    %7130 = vmatmul.bf16.gmra.mxu0 %v2165
    %v7131 = vpop.f32.mrf.mxu0
    %v7132 = vadd.f32 %v1602, %v7131
    %v7133 = vpop.f32.mrf.mxu0
    %v7134 = vadd.f32 %v1607, %v7133
    %7135 = vmatmul.bf16.gmra.mxu0 %v2169
    %v7136 = vpop.f32.mrf.mxu0
    %v7137 = vadd.f32 %v1612, %v7136
    %v7138 = vpop.f32.mrf.mxu0
    %v7139 = vadd.f32 %v1617, %v7138
    %7140 = vmatmul.bf16.gmra.mxu0 %v2173
    %v7141 = vpop.f32.mrf.mxu0
    %v7142 = vadd.f32 %v1622, %v7141
    %v7143 = vpop.f32.mrf.mxu0
    %v7144 = vadd.f32 %v1627, %v7143
    %7145 = vmatmul.bf16.gmra.mxu0 %v2177
    %v7146 = vpop.f32.mrf.mxu0
    %v7147 = vadd.f32 %v1632, %v7146
    %v7148 = vpop.f32.mrf.mxu0
    %v7149 = vadd.f32 %v1637, %v7148
    %7150 = vmatmul.bf16.gmra.mxu0 %v2181
    %v7151 = vpop.f32.mrf.mxu0
    %v7152 = vadd.f32 %v1642, %v7151
    %v7153 = vpop.f32.mrf.mxu0
    %v7154 = vadd.f32 %v1647, %v7153
    %7155 = vmatmul.bf16.gmra.mxu0 %v2185
    %v7156 = vpop.f32.mrf.mxu0
    %v7157 = vadd.f32 %v1652, %v7156
    %v7158 = vpop.f32.mrf.mxu0
    %v7159 = vadd.f32 %v1657, %v7158
    %7160 = vmatmul.bf16.gmra.mxu0 %v2189
    %v7161 = vpop.f32.mrf.mxu0
    %v7162 = vadd.f32 %v1662, %v7161
    %v7163 = vpop.f32.mrf.mxu0
    %v7164 = vadd.f32 %v1667, %v7163
    %7165 = vmatmul.bf16.gmra.mxu0 %v2193
    %v7166 = vpop.f32.mrf.mxu0
    %v7167 = vadd.f32 %v1672, %v7166
    %v7168 = vpop.f32.mrf.mxu0
    %v7169 = vadd.f32 %v1677, %v7168
    %7170 = vmatmul.bf16.gmra.mxu0 %v2197
    %v7171 = vpop.f32.mrf.mxu0
    %v7172 = vadd.f32 %v1682, %v7171
    %v7173 = vpop.f32.mrf.mxu0
    %v7174 = vadd.f32 %v1687, %v7173
    %7175 = vdwg.mxu0
    %7176 = vmatpush.bf16.msra.mxu0 %v6298
    %7177 = vmatpush.bf16.msra.mxu0 %v6296
    %7178 = vmatpush.bf16.msra.mxu0 %v6294
    %7179 = vmatpush.bf16.msra.mxu0 %v6292
    %7180 = vmatpush.bf16.msra.mxu0 %v6290
    %7181 = vmatpush.bf16.msra.mxu0 %v6288
    %7182 = vmatpush.bf16.msra.mxu0 %v6286
    %7183 = vmatpush.bf16.msra.mxu0 %v6284
    %7184 = vmatmul.bf16.gmra.mxu0 %v2074
    %v7185 = vpop.f32.mrf.mxu0
    %v7186 = vadd.f32 %v7017, %v7185
    %v7187 = vpop.f32.mrf.mxu0
    %v7188 = vadd.f32 %v7019, %v7187
    %7189 = vmatmul.bf16.gmra.mxu0 %v2078
    %v7190 = vpop.f32.mrf.mxu0
    %v7191 = vadd.f32 %v7022, %v7190
    %v7192 = vpop.f32.mrf.mxu0
    %v7193 = vadd.f32 %v7024, %v7192
    %7194 = vmatmul.bf16.gmra.mxu0 %v2082
    %v7195 = vpop.f32.mrf.mxu0
    %v7196 = vadd.f32 %v7027, %v7195
    %v7197 = vpop.f32.mrf.mxu0
    %v7198 = vadd.f32 %v7029, %v7197
    %7199 = vmatmul.bf16.gmra.mxu0 %v2086
    %v7200 = vpop.f32.mrf.mxu0
    %v7201 = vadd.f32 %v7032, %v7200
    %v7202 = vpop.f32.mrf.mxu0
    %v7203 = vadd.f32 %v7034, %v7202
    %7204 = vmatmul.bf16.gmra.mxu0 %v2090
    %v7205 = vpop.f32.mrf.mxu0
    %v7206 = vadd.f32 %v7037, %v7205
    %v7207 = vpop.f32.mrf.mxu0
    %v7208 = vadd.f32 %v7039, %v7207
    %7209 = vmatmul.bf16.gmra.mxu0 %v2094
    %v7210 = vpop.f32.mrf.mxu0
    %v7211 = vadd.f32 %v7042, %v7210
    %v7212 = vpop.f32.mrf.mxu0
    %v7213 = vadd.f32 %v7044, %v7212
    %7214 = vmatmul.bf16.gmra.mxu0 %v2098
    %v7215 = vpop.f32.mrf.mxu0
    %v7216 = vadd.f32 %v7047, %v7215
    %v7217 = vpop.f32.mrf.mxu0
    %v7218 = vadd.f32 %v7049, %v7217
    %7219 = vmatmul.bf16.gmra.mxu0 %v2102
    %v7220 = vpop.f32.mrf.mxu0
    %v7221 = vadd.f32 %v7052, %v7220
    %v7222 = vpop.f32.mrf.mxu0
    %v7223 = vadd.f32 %v7054, %v7222
    %7224 = vmatmul.bf16.gmra.mxu0 %v2106
    %v7225 = vpop.f32.mrf.mxu0
    %v7226 = vadd.f32 %v7057, %v7225
    %v7227 = vpop.f32.mrf.mxu0
    %v7228 = vadd.f32 %v7059, %v7227
    %7229 = vmatmul.bf16.gmra.mxu0 %v2110
    %v7230 = vpop.f32.mrf.mxu0
    %v7231 = vadd.f32 %v7062, %v7230
    %v7232 = vpop.f32.mrf.mxu0
    %v7233 = vadd.f32 %v7064, %v7232
    %7234 = vmatmul.bf16.gmra.mxu0 %v2114
    %v7235 = vpop.f32.mrf.mxu0
    %v7236 = vadd.f32 %v7067, %v7235
    %v7237 = vpop.f32.mrf.mxu0
    %v7238 = vadd.f32 %v7069, %v7237
    %7239 = vmatmul.bf16.gmra.mxu0 %v2118
    %v7240 = vpop.f32.mrf.mxu0
    %v7241 = vadd.f32 %v7072, %v7240
    %v7242 = vpop.f32.mrf.mxu0
    %v7243 = vadd.f32 %v7074, %v7242
    %7244 = vmatmul.bf16.gmra.mxu0 %v2122
    %v7245 = vpop.f32.mrf.mxu0
    %v7246 = vadd.f32 %v7077, %v7245
    %v7247 = vpop.f32.mrf.mxu0
    %v7248 = vadd.f32 %v7079, %v7247
    %7249 = vmatmul.bf16.gmra.mxu0 %v2126
    %v7250 = vpop.f32.mrf.mxu0
    %v7251 = vadd.f32 %v7082, %v7250
    %v7252 = vpop.f32.mrf.mxu0
    %v7253 = vadd.f32 %v7084, %v7252
    %7254 = vmatmul.bf16.gmra.mxu0 %v2130
    %v7255 = vpop.f32.mrf.mxu0
    %v7256 = vadd.f32 %v7087, %v7255
    %v7257 = vpop.f32.mrf.mxu0
    %v7258 = vadd.f32 %v7089, %v7257
    %7259 = vmatmul.bf16.gmra.mxu0 %v2134
    %v7260 = vpop.f32.mrf.mxu0
    %v7261 = vadd.f32 %v7092, %v7260
    %v7262 = vpop.f32.mrf.mxu0
    %v7263 = vadd.f32 %v7094, %v7262
    %7264 = vmatmul.bf16.gmra.mxu0 %v2138
    %v7265 = vpop.f32.mrf.mxu0
    %v7266 = vadd.f32 %v7097, %v7265
    %v7267 = vpop.f32.mrf.mxu0
    %v7268 = vadd.f32 %v7099, %v7267
    %7269 = vmatmul.bf16.gmra.mxu0 %v2142
    %v7270 = vpop.f32.mrf.mxu0
    %v7271 = vadd.f32 %v7102, %v7270
    %v7272 = vpop.f32.mrf.mxu0
    %v7273 = vadd.f32 %v7104, %v7272
    %7274 = vmatmul.bf16.gmra.mxu0 %v2146
    %v7275 = vpop.f32.mrf.mxu0
    %v7276 = vadd.f32 %v7107, %v7275
    %v7277 = vpop.f32.mrf.mxu0
    %v7278 = vadd.f32 %v7109, %v7277
    %7279 = vmatmul.bf16.gmra.mxu0 %v2150
    %v7280 = vpop.f32.mrf.mxu0
    %v7281 = vadd.f32 %v7112, %v7280
    %v7282 = vpop.f32.mrf.mxu0
    %v7283 = vadd.f32 %v7114, %v7282
    %7284 = vmatmul.bf16.gmra.mxu0 %v2154
    %v7285 = vpop.f32.mrf.mxu0
    %v7286 = vadd.f32 %v7117, %v7285
    %v7287 = vpop.f32.mrf.mxu0
    %v7288 = vadd.f32 %v7119, %v7287
    %7289 = vmatmul.bf16.gmra.mxu0 %v2158
    %v7290 = vpop.f32.mrf.mxu0
    %v7291 = vadd.f32 %v7122, %v7290
    %v7292 = vpop.f32.mrf.mxu0
    %v7293 = vadd.f32 %v7124, %v7292
    %7294 = vmatmul.bf16.gmra.mxu0 %v2162
    %v7295 = vpop.f32.mrf.mxu0
    %v7296 = vadd.f32 %v7127, %v7295
    %v7297 = vpop.f32.mrf.mxu0
    %v7298 = vadd.f32 %v7129, %v7297
    %7299 = vmatmul.bf16.gmra.mxu0 %v2166
    %v7300 = vpop.f32.mrf.mxu0
    %v7301 = vadd.f32 %v7132, %v7300
    %v7302 = vpop.f32.mrf.mxu0
    %v7303 = vadd.f32 %v7134, %v7302
    %7304 = vmatmul.bf16.gmra.mxu0 %v2170
    %v7305 = vpop.f32.mrf.mxu0
    %v7306 = vadd.f32 %v7137, %v7305
    %v7307 = vpop.f32.mrf.mxu0
    %v7308 = vadd.f32 %v7139, %v7307
    %7309 = vmatmul.bf16.gmra.mxu0 %v2174
    %v7310 = vpop.f32.mrf.mxu0
    %v7311 = vadd.f32 %v7142, %v7310
    %v7312 = vpop.f32.mrf.mxu0
    %v7313 = vadd.f32 %v7144, %v7312
    %7314 = vmatmul.bf16.gmra.mxu0 %v2178
    %v7315 = vpop.f32.mrf.mxu0
    %v7316 = vadd.f32 %v7147, %v7315
    %v7317 = vpop.f32.mrf.mxu0
    %v7318 = vadd.f32 %v7149, %v7317
    %7319 = vmatmul.bf16.gmra.mxu0 %v2182
    %v7320 = vpop.f32.mrf.mxu0
    %v7321 = vadd.f32 %v7152, %v7320
    %v7322 = vpop.f32.mrf.mxu0
    %v7323 = vadd.f32 %v7154, %v7322
    %7324 = vmatmul.bf16.gmra.mxu0 %v2186
    %v7325 = vpop.f32.mrf.mxu0
    %v7326 = vadd.f32 %v7157, %v7325
    %v7327 = vpop.f32.mrf.mxu0
    %v7328 = vadd.f32 %v7159, %v7327
    %7329 = vmatmul.bf16.gmra.mxu0 %v2190
    %v7330 = vpop.f32.mrf.mxu0
    %v7331 = vadd.f32 %v7162, %v7330
    %v7332 = vpop.f32.mrf.mxu0
    %v7333 = vadd.f32 %v7164, %v7332
    %7334 = vmatmul.bf16.gmra.mxu0 %v2194
    %v7335 = vpop.f32.mrf.mxu0
    %v7336 = vadd.f32 %v7167, %v7335
    %v7337 = vpop.f32.mrf.mxu0
    %v7338 = vadd.f32 %v7169, %v7337
    %7339 = vmatmul.bf16.gmra.mxu0 %v2198
    %v7340 = vpop.f32.mrf.mxu0
    %v7341 = vadd.f32 %v7172, %v7340
    %v7342 = vpop.f32.mrf.mxu0
    %v7343 = vadd.f32 %v7174, %v7342
    %7344 = vdwg.mxu0
    %7345 = vmatpush.bf16.msra.mxu0 %v6314
    %7346 = vmatpush.bf16.msra.mxu0 %v6312
    %7347 = vmatpush.bf16.msra.mxu0 %v6310
    %7348 = vmatpush.bf16.msra.mxu0 %v6308
    %7349 = vmatpush.bf16.msra.mxu0 %v6306
    %7350 = vmatpush.bf16.msra.mxu0 %v6304
    %7351 = vmatpush.bf16.msra.mxu0 %v6302
    %7352 = vmatpush.bf16.msra.mxu0 %v6300
    %7353 = vmatmul.bf16.gmra.mxu0 %v2075
    %v7354 = vpop.f32.mrf.mxu0
    %v7355 = vadd.f32 %v7186, %v7354
    %v7356 = vpop.f32.mrf.mxu0
    %v7357 = vadd.f32 %v7188, %v7356
    %7358 = vmatmul.bf16.gmra.mxu0 %v2079
    %v7359 = vpop.f32.mrf.mxu0
    %v7360 = vadd.f32 %v7191, %v7359
    %v7361 = vpop.f32.mrf.mxu0
    %v7362 = vadd.f32 %v7193, %v7361
    %7363 = vmatmul.bf16.gmra.mxu0 %v2083
    %v7364 = vpop.f32.mrf.mxu0
    %v7365 = vadd.f32 %v7196, %v7364
    %v7366 = vpop.f32.mrf.mxu0
    %v7367 = vadd.f32 %v7198, %v7366
    %7368 = vmatmul.bf16.gmra.mxu0 %v2087
    %v7369 = vpop.f32.mrf.mxu0
    %v7370 = vadd.f32 %v7201, %v7369
    %v7371 = vpop.f32.mrf.mxu0
    %v7372 = vadd.f32 %v7203, %v7371
    %7373 = vmatmul.bf16.gmra.mxu0 %v2091
    %v7374 = vpop.f32.mrf.mxu0
    %v7375 = vadd.f32 %v7206, %v7374
    %v7376 = vpop.f32.mrf.mxu0
    %v7377 = vadd.f32 %v7208, %v7376
    %7378 = vmatmul.bf16.gmra.mxu0 %v2095
    %v7379 = vpop.f32.mrf.mxu0
    %v7380 = vadd.f32 %v7211, %v7379
    %v7381 = vpop.f32.mrf.mxu0
    %v7382 = vadd.f32 %v7213, %v7381
    %7383 = vmatmul.bf16.gmra.mxu0 %v2099
    %v7384 = vpop.f32.mrf.mxu0
    %v7385 = vadd.f32 %v7216, %v7384
    %v7386 = vpop.f32.mrf.mxu0
    %v7387 = vadd.f32 %v7218, %v7386
    %7388 = vmatmul.bf16.gmra.mxu0 %v2103
    %v7389 = vpop.f32.mrf.mxu0
    %v7390 = vadd.f32 %v7221, %v7389
    %v7391 = vpop.f32.mrf.mxu0
    %v7392 = vadd.f32 %v7223, %v7391
    %7393 = vmatmul.bf16.gmra.mxu0 %v2107
    %v7394 = vpop.f32.mrf.mxu0
    %v7395 = vadd.f32 %v7226, %v7394
    %v7396 = vpop.f32.mrf.mxu0
    %v7397 = vadd.f32 %v7228, %v7396
    %7398 = vmatmul.bf16.gmra.mxu0 %v2111
    %v7399 = vpop.f32.mrf.mxu0
    %v7400 = vadd.f32 %v7231, %v7399
    %v7401 = vpop.f32.mrf.mxu0
    %v7402 = vadd.f32 %v7233, %v7401
    %7403 = vmatmul.bf16.gmra.mxu0 %v2115
    %v7404 = vpop.f32.mrf.mxu0
    %v7405 = vadd.f32 %v7236, %v7404
    %v7406 = vpop.f32.mrf.mxu0
    %v7407 = vadd.f32 %v7238, %v7406
    %7408 = vmatmul.bf16.gmra.mxu0 %v2119
    %v7409 = vpop.f32.mrf.mxu0
    %v7410 = vadd.f32 %v7241, %v7409
    %v7411 = vpop.f32.mrf.mxu0
    %v7412 = vadd.f32 %v7243, %v7411
    %7413 = vmatmul.bf16.gmra.mxu0 %v2123
    %v7414 = vpop.f32.mrf.mxu0
    %v7415 = vadd.f32 %v7246, %v7414
    %v7416 = vpop.f32.mrf.mxu0
    %v7417 = vadd.f32 %v7248, %v7416
    %7418 = vmatmul.bf16.gmra.mxu0 %v2127
    %v7419 = vpop.f32.mrf.mxu0
    %v7420 = vadd.f32 %v7251, %v7419
    %v7421 = vpop.f32.mrf.mxu0
    %v7422 = vadd.f32 %v7253, %v7421
    %7423 = vmatmul.bf16.gmra.mxu0 %v2131
    %v7424 = vpop.f32.mrf.mxu0
    %v7425 = vadd.f32 %v7256, %v7424
    %v7426 = vpop.f32.mrf.mxu0
    %v7427 = vadd.f32 %v7258, %v7426
    %7428 = vmatmul.bf16.gmra.mxu0 %v2135
    %v7429 = vpop.f32.mrf.mxu0
    %v7430 = vadd.f32 %v7261, %v7429
    %v7431 = vpop.f32.mrf.mxu0
    %v7432 = vadd.f32 %v7263, %v7431
    %7433 = vmatmul.bf16.gmra.mxu0 %v2139
    %v7434 = vpop.f32.mrf.mxu0
    %v7435 = vadd.f32 %v7266, %v7434
    %v7436 = vpop.f32.mrf.mxu0
    %v7437 = vadd.f32 %v7268, %v7436
    %7438 = vmatmul.bf16.gmra.mxu0 %v2143
    %v7439 = vpop.f32.mrf.mxu0
    %v7440 = vadd.f32 %v7271, %v7439
    %v7441 = vpop.f32.mrf.mxu0
    %v7442 = vadd.f32 %v7273, %v7441
    %7443 = vmatmul.bf16.gmra.mxu0 %v2147
    %v7444 = vpop.f32.mrf.mxu0
    %v7445 = vadd.f32 %v7276, %v7444
    %v7446 = vpop.f32.mrf.mxu0
    %v7447 = vadd.f32 %v7278, %v7446
    %7448 = vmatmul.bf16.gmra.mxu0 %v2151
    %v7449 = vpop.f32.mrf.mxu0
    %v7450 = vadd.f32 %v7281, %v7449
    %v7451 = vpop.f32.mrf.mxu0
    %v7452 = vadd.f32 %v7283, %v7451
    %7453 = vmatmul.bf16.gmra.mxu0 %v2155
    %v7454 = vpop.f32.mrf.mxu0
    %v7455 = vadd.f32 %v7286, %v7454
    %v7456 = vpop.f32.mrf.mxu0
    %v7457 = vadd.f32 %v7288, %v7456
    %7458 = vmatmul.bf16.gmra.mxu0 %v2159
    %v7459 = vpop.f32.mrf.mxu0
    %v7460 = vadd.f32 %v7291, %v7459
    %v7461 = vpop.f32.mrf.mxu0
    %v7462 = vadd.f32 %v7293, %v7461
    %7463 = vmatmul.bf16.gmra.mxu0 %v2163
    %v7464 = vpop.f32.mrf.mxu0
    %v7465 = vadd.f32 %v7296, %v7464
    %v7466 = vpop.f32.mrf.mxu0
    %v7467 = vadd.f32 %v7298, %v7466
    %7468 = vmatmul.bf16.gmra.mxu0 %v2167
    %v7469 = vpop.f32.mrf.mxu0
    %v7470 = vadd.f32 %v7301, %v7469
    %v7471 = vpop.f32.mrf.mxu0
    %v7472 = vadd.f32 %v7303, %v7471
    %7473 = vmatmul.bf16.gmra.mxu0 %v2171
    %v7474 = vpop.f32.mrf.mxu0
    %v7475 = vadd.f32 %v7306, %v7474
    %v7476 = vpop.f32.mrf.mxu0
    %v7477 = vadd.f32 %v7308, %v7476
    %7478 = vmatmul.bf16.gmra.mxu0 %v2175
    %v7479 = vpop.f32.mrf.mxu0
    %v7480 = vadd.f32 %v7311, %v7479
    %v7481 = vpop.f32.mrf.mxu0
    %v7482 = vadd.f32 %v7313, %v7481
    %7483 = vmatmul.bf16.gmra.mxu0 %v2179
    %v7484 = vpop.f32.mrf.mxu0
    %v7485 = vadd.f32 %v7316, %v7484
    %v7486 = vpop.f32.mrf.mxu0
    %v7487 = vadd.f32 %v7318, %v7486
    %7488 = vmatmul.bf16.gmra.mxu0 %v2183
    %v7489 = vpop.f32.mrf.mxu0
    %v7490 = vadd.f32 %v7321, %v7489
    %v7491 = vpop.f32.mrf.mxu0
    %v7492 = vadd.f32 %v7323, %v7491
    %7493 = vmatmul.bf16.gmra.mxu0 %v2187
    %v7494 = vpop.f32.mrf.mxu0
    %v7495 = vadd.f32 %v7326, %v7494
    %v7496 = vpop.f32.mrf.mxu0
    %v7497 = vadd.f32 %v7328, %v7496
    %7498 = vmatmul.bf16.gmra.mxu0 %v2191
    %v7499 = vpop.f32.mrf.mxu0
    %v7500 = vadd.f32 %v7331, %v7499
    %v7501 = vpop.f32.mrf.mxu0
    %v7502 = vadd.f32 %v7333, %v7501
    %7503 = vmatmul.bf16.gmra.mxu0 %v2195
    %v7504 = vpop.f32.mrf.mxu0
    %v7505 = vadd.f32 %v7336, %v7504
    %v7506 = vpop.f32.mrf.mxu0
    %v7507 = vadd.f32 %v7338, %v7506
    %7508 = vmatmul.bf16.gmra.mxu0 %v2199
    %v7509 = vpop.f32.mrf.mxu0
    %v7510 = vadd.f32 %v7341, %v7509
    %v7511 = vpop.f32.mrf.mxu0
    %v7512 = vadd.f32 %v7343, %v7511
    %7513 = vdwg.mxu0
    %7514 = vmatpush.bf16.msra.mxu0 %v6330
    %7515 = vmatpush.bf16.msra.mxu0 %v6328
    %7516 = vmatpush.bf16.msra.mxu0 %v6326
    %7517 = vmatpush.bf16.msra.mxu0 %v6324
    %7518 = vmatpush.bf16.msra.mxu0 %v6322
    %7519 = vmatpush.bf16.msra.mxu0 %v6320
    %7520 = vmatpush.bf16.msra.mxu0 %v6318
    %7521 = vmatpush.bf16.msra.mxu0 %v6316
    %7522 = vmatmul.bf16.gmra.mxu0 %v2076
    %v7523 = vpop.f32.mrf.mxu0
    %v7524 = vadd.f32 %v7355, %v7523
    %v7525 = vpop.f32.mrf.mxu0
    %v7526 = vadd.f32 %v7357, %v7525
    %7527 = vmatmul.bf16.gmra.mxu0 %v2080
    %v7528 = vpop.f32.mrf.mxu0
    %v7529 = vadd.f32 %v7360, %v7528
    %v7530 = vpop.f32.mrf.mxu0
    %v7531 = vadd.f32 %v7362, %v7530
    %7532 = vmatmul.bf16.gmra.mxu0 %v2084
    %v7533 = vpop.f32.mrf.mxu0
    %v7534 = vadd.f32 %v7365, %v7533
    %v7535 = vpop.f32.mrf.mxu0
    %v7536 = vadd.f32 %v7367, %v7535
    %7537 = vmatmul.bf16.gmra.mxu0 %v2088
    %v7538 = vpop.f32.mrf.mxu0
    %v7539 = vadd.f32 %v7370, %v7538
    %v7540 = vpop.f32.mrf.mxu0
    %v7541 = vadd.f32 %v7372, %v7540
    %7542 = vmatmul.bf16.gmra.mxu0 %v2092
    %v7543 = vpop.f32.mrf.mxu0
    %v7544 = vadd.f32 %v7375, %v7543
    %v7545 = vpop.f32.mrf.mxu0
    %v7546 = vadd.f32 %v7377, %v7545
    %7547 = vmatmul.bf16.gmra.mxu0 %v2096
    %v7548 = vpop.f32.mrf.mxu0
    %v7549 = vadd.f32 %v7380, %v7548
    %v7550 = vpop.f32.mrf.mxu0
    %v7551 = vadd.f32 %v7382, %v7550
    %7552 = vmatmul.bf16.gmra.mxu0 %v2100
    %v7553 = vpop.f32.mrf.mxu0
    %v7554 = vadd.f32 %v7385, %v7553
    %v7555 = vpop.f32.mrf.mxu0
    %v7556 = vadd.f32 %v7387, %v7555
    %7557 = vmatmul.bf16.gmra.mxu0 %v2104
    %v7558 = vpop.f32.mrf.mxu0
    %v7559 = vadd.f32 %v7390, %v7558
    %v7560 = vpop.f32.mrf.mxu0
    %v7561 = vadd.f32 %v7392, %v7560
    %7562 = vmatmul.bf16.gmra.mxu0 %v2108
    %v7563 = vpop.f32.mrf.mxu0
    %v7564 = vadd.f32 %v7395, %v7563
    %v7565 = vpop.f32.mrf.mxu0
    %v7566 = vadd.f32 %v7397, %v7565
    %7567 = vmatmul.bf16.gmra.mxu0 %v2112
    %v7568 = vpop.f32.mrf.mxu0
    %v7569 = vadd.f32 %v7400, %v7568
    %v7570 = vpop.f32.mrf.mxu0
    %v7571 = vadd.f32 %v7402, %v7570
    %7572 = vmatmul.bf16.gmra.mxu0 %v2116
    %v7573 = vpop.f32.mrf.mxu0
    %v7574 = vadd.f32 %v7405, %v7573
    %v7575 = vpop.f32.mrf.mxu0
    %v7576 = vadd.f32 %v7407, %v7575
    %7577 = vmatmul.bf16.gmra.mxu0 %v2120
    %v7578 = vpop.f32.mrf.mxu0
    %v7579 = vadd.f32 %v7410, %v7578
    %v7580 = vpop.f32.mrf.mxu0
    %v7581 = vadd.f32 %v7412, %v7580
    %7582 = vmatmul.bf16.gmra.mxu0 %v2124
    %v7583 = vpop.f32.mrf.mxu0
    %v7584 = vadd.f32 %v7415, %v7583
    %v7585 = vpop.f32.mrf.mxu0
    %v7586 = vadd.f32 %v7417, %v7585
    %7587 = vmatmul.bf16.gmra.mxu0 %v2128
    %v7588 = vpop.f32.mrf.mxu0
    %v7589 = vadd.f32 %v7420, %v7588
    %v7590 = vpop.f32.mrf.mxu0
    %v7591 = vadd.f32 %v7422, %v7590
    %7592 = vmatmul.bf16.gmra.mxu0 %v2132
    %v7593 = vpop.f32.mrf.mxu0
    %v7594 = vadd.f32 %v7425, %v7593
    %v7595 = vpop.f32.mrf.mxu0
    %v7596 = vadd.f32 %v7427, %v7595
    %7597 = vmatmul.bf16.gmra.mxu0 %v2136
    %v7598 = vpop.f32.mrf.mxu0
    %v7599 = vadd.f32 %v7430, %v7598
    %v7600 = vpop.f32.mrf.mxu0
    %v7601 = vadd.f32 %v7432, %v7600
    %7602 = vmatmul.bf16.gmra.mxu0 %v2140
    %v7603 = vpop.f32.mrf.mxu0
    %v7604 = vadd.f32 %v7435, %v7603
    %v7605 = vpop.f32.mrf.mxu0
    %v7606 = vadd.f32 %v7437, %v7605
    %7607 = vmatmul.bf16.gmra.mxu0 %v2144
    %v7608 = vpop.f32.mrf.mxu0
    %v7609 = vadd.f32 %v7440, %v7608
    %v7610 = vpop.f32.mrf.mxu0
    %v7611 = vadd.f32 %v7442, %v7610
    %7612 = vmatmul.bf16.gmra.mxu0 %v2148
    %v7613 = vpop.f32.mrf.mxu0
    %v7614 = vadd.f32 %v7445, %v7613
    %v7615 = vpop.f32.mrf.mxu0
    %v7616 = vadd.f32 %v7447, %v7615
    %7617 = vmatmul.bf16.gmra.mxu0 %v2152
    %v7618 = vpop.f32.mrf.mxu0
    %v7619 = vadd.f32 %v7450, %v7618
    %v7620 = vpop.f32.mrf.mxu0
    %v7621 = vadd.f32 %v7452, %v7620
    %7622 = vmatmul.bf16.gmra.mxu0 %v2156
    %v7623 = vpop.f32.mrf.mxu0
    %v7624 = vadd.f32 %v7455, %v7623
    %v7625 = vpop.f32.mrf.mxu0
    %v7626 = vadd.f32 %v7457, %v7625
    %7627 = vmatmul.bf16.gmra.mxu0 %v2160
    %v7628 = vpop.f32.mrf.mxu0
    %v7629 = vadd.f32 %v7460, %v7628
    %v7630 = vpop.f32.mrf.mxu0
    %v7631 = vadd.f32 %v7462, %v7630
    %7632 = vmatmul.bf16.gmra.mxu0 %v2164
    %v7633 = vpop.f32.mrf.mxu0
    %v7634 = vadd.f32 %v7465, %v7633
    %v7635 = vpop.f32.mrf.mxu0
    %v7636 = vadd.f32 %v7467, %v7635
    %7637 = vmatmul.bf16.gmra.mxu0 %v2168
    %v7638 = vpop.f32.mrf.mxu0
    %v7639 = vadd.f32 %v7470, %v7638
    %v7640 = vpop.f32.mrf.mxu0
    %v7641 = vadd.f32 %v7472, %v7640
    %7642 = vmatmul.bf16.gmra.mxu0 %v2172
    %v7643 = vpop.f32.mrf.mxu0
    %v7644 = vadd.f32 %v7475, %v7643
    %v7645 = vpop.f32.mrf.mxu0
    %v7646 = vadd.f32 %v7477, %v7645
    %7647 = vmatmul.bf16.gmra.mxu0 %v2176
    %v7648 = vpop.f32.mrf.mxu0
    %v7649 = vadd.f32 %v7480, %v7648
    %v7650 = vpop.f32.mrf.mxu0
    %v7651 = vadd.f32 %v7482, %v7650
    %7652 = vmatmul.bf16.gmra.mxu0 %v2180
    %v7653 = vpop.f32.mrf.mxu0
    %v7654 = vadd.f32 %v7485, %v7653
    %v7655 = vpop.f32.mrf.mxu0
    %v7656 = vadd.f32 %v7487, %v7655
    %7657 = vmatmul.bf16.gmra.mxu0 %v2184
    %v7658 = vpop.f32.mrf.mxu0
    %v7659 = vadd.f32 %v7490, %v7658
    %v7660 = vpop.f32.mrf.mxu0
    %v7661 = vadd.f32 %v7492, %v7660
    %7662 = vmatmul.bf16.gmra.mxu0 %v2188
    %v7663 = vpop.f32.mrf.mxu0
    %v7664 = vadd.f32 %v7495, %v7663
    %v7665 = vpop.f32.mrf.mxu0
    %v7666 = vadd.f32 %v7497, %v7665
    %7667 = vmatmul.bf16.gmra.mxu0 %v2192
    %v7668 = vpop.f32.mrf.mxu0
    %v7669 = vadd.f32 %v7500, %v7668
    %v7670 = vpop.f32.mrf.mxu0
    %v7671 = vadd.f32 %v7502, %v7670
    %7672 = vmatmul.bf16.gmra.mxu0 %v2196
    %v7673 = vpop.f32.mrf.mxu0
    %v7674 = vadd.f32 %v7505, %v7673
    %v7675 = vpop.f32.mrf.mxu0
    %v7676 = vadd.f32 %v7507, %v7675
    %7677 = vmatmul.bf16.gmra.mxu0 %v2200
    %v7678 = vpop.f32.mrf.mxu0
    %v7679 = vadd.f32 %v7510, %v7678
    %v7680 = vpop.f32.mrf.mxu0
    %v7681 = vadd.f32 %v7512, %v7680
    %7682 = vdwg.mxu0
    %v7683 = vpack.c.bf16 %v7524, %v6848
    %v7684 = vpack.c.bf16 %v7526, %v6850
    %v7685 = vpack.c.bf16 %v7529, %v6853
    %v7686 = vpack.c.bf16 %v7531, %v6855
    %v7687 = vpack.c.bf16 %v7534, %v6858
    %v7688 = vpack.c.bf16 %v7536, %v6860
    %v7689 = vpack.c.bf16 %v7539, %v6863
    %v7690 = vpack.c.bf16 %v7541, %v6865
    %v7691 = vpack.c.bf16 %v7544, %v6868
    %v7692 = vpack.c.bf16 %v7546, %v6870
    %v7693 = vpack.c.bf16 %v7549, %v6873
    %v7694 = vpack.c.bf16 %v7551, %v6875
    %v7695 = vpack.c.bf16 %v7554, %v6878
    %v7696 = vpack.c.bf16 %v7556, %v6880
    %v7697 = vpack.c.bf16 %v7559, %v6883
    %v7698 = vpack.c.bf16 %v7561, %v6885
    %v7699 = vpack.c.bf16 %v7564, %v6888
    %v7700 = vpack.c.bf16 %v7566, %v6890
    %v7701 = vpack.c.bf16 %v7569, %v6893
    %v7702 = vpack.c.bf16 %v7571, %v6895
    %v7703 = vpack.c.bf16 %v7574, %v6898
    %v7704 = vpack.c.bf16 %v7576, %v6900
    %v7705 = vpack.c.bf16 %v7579, %v6903
    %v7706 = vpack.c.bf16 %v7581, %v6905
    %v7707 = vpack.c.bf16 %v7584, %v6908
    %v7708 = vpack.c.bf16 %v7586, %v6910
    %v7709 = vpack.c.bf16 %v7589, %v6913
    %v7710 = vpack.c.bf16 %v7591, %v6915
    %v7711 = vpack.c.bf16 %v7594, %v6918
    %v7712 = vpack.c.bf16 %v7596, %v6920
    %v7713 = vpack.c.bf16 %v7599, %v6923
    %v7714 = vpack.c.bf16 %v7601, %v6925
    %v7715 = vpack.c.bf16 %v7604, %v6928
    %v7716 = vpack.c.bf16 %v7606, %v6930
    %v7717 = vpack.c.bf16 %v7609, %v6933
    %v7718 = vpack.c.bf16 %v7611, %v6935
    %v7719 = vpack.c.bf16 %v7614, %v6938
    %v7720 = vpack.c.bf16 %v7616, %v6940
    %v7721 = vpack.c.bf16 %v7619, %v6943
    %v7722 = vpack.c.bf16 %v7621, %v6945
    %v7723 = vpack.c.bf16 %v7624, %v6948
    %v7724 = vpack.c.bf16 %v7626, %v6950
    %v7725 = vpack.c.bf16 %v7629, %v6953
    %v7726 = vpack.c.bf16 %v7631, %v6955
    %v7727 = vpack.c.bf16 %v7634, %v6958
    %v7728 = vpack.c.bf16 %v7636, %v6960
    %v7729 = vpack.c.bf16 %v7639, %v6963
    %v7730 = vpack.c.bf16 %v7641, %v6965
    %v7731 = vpack.c.bf16 %v7644, %v6968
    %v7732 = vpack.c.bf16 %v7646, %v6970
    %v7733 = vpack.c.bf16 %v7649, %v6973
    %v7734 = vpack.c.bf16 %v7651, %v6975
    %v7735 = vpack.c.bf16 %v7654, %v6978
    %v7736 = vpack.c.bf16 %v7656, %v6980
    %v7737 = vpack.c.bf16 %v7659, %v6983
    %v7738 = vpack.c.bf16 %v7661, %v6985
    %v7739 = vpack.c.bf16 %v7664, %v6988
    %v7740 = vpack.c.bf16 %v7666, %v6990
    %v7741 = vpack.c.bf16 %v7669, %v6993
    %v7742 = vpack.c.bf16 %v7671, %v6995
    %v7743 = vpack.c.bf16 %v7674, %v6998
    %v7744 = vpack.c.bf16 %v7676, %v7000
    %v7745 = vpack.c.bf16 %v7679, %v7003
    %v7746 = vpack.c.bf16 %v7681, %v7005
    %s7747 = scalar_lea.vmem [#allocation7], 512
    %7748 = vst [vmem:[%s7747] sm:$0xff] %v7683
    %7749 = vst [vmem:[%s7747 + $0x8] sm:$0xff] %v7684
    %7750 = vst [vmem:[%s7747 + $0x10] sm:$0xff] %v7685
    %7751 = vst [vmem:[%s7747 + $0x18] sm:$0xff] %v7686
    %7752 = vst [vmem:[%s7747 + $0x20] sm:$0xff] %v7687
    %7753 = vst [vmem:[%s7747 + $0x28] sm:$0xff] %v7688
    %7754 = vst [vmem:[%s7747 + $0x30] sm:$0xff] %v7689
    %7755 = vst [vmem:[%s7747 + $0x38] sm:$0xff] %v7690
    %7756 = vst [vmem:[%s7747 + $0x40] sm:$0xff] %v7691
    %7757 = vst [vmem:[%s7747 + $0x48] sm:$0xff] %v7692
    %7758 = vst [vmem:[%s7747 + $0x50] sm:$0xff] %v7693
    %7759 = vst [vmem:[%s7747 + $0x58] sm:$0xff] %v7694
    %7760 = vst [vmem:[%s7747 + $0x60] sm:$0xff] %v7695
    %7761 = vst [vmem:[%s7747 + $0x68] sm:$0xff] %v7696
    %7762 = vst [vmem:[%s7747 + $0x70] sm:$0xff] %v7697
    %7763 = vst [vmem:[%s7747 + $0x78] sm:$0xff] %v7698
    %7764 = vst [vmem:[%s7747 + $0x80] sm:$0xff] %v7699
    %7765 = vst [vmem:[%s7747 + $0x88] sm:$0xff] %v7700
    %7766 = vst [vmem:[%s7747 + $0x90] sm:$0xff] %v7701
    %7767 = vst [vmem:[%s7747 + $0x98] sm:$0xff] %v7702
    %7768 = vst [vmem:[%s7747 + $0xa0] sm:$0xff] %v7703
    %7769 = vst [vmem:[%s7747 + $0xa8] sm:$0xff] %v7704
    %7770 = vst [vmem:[%s7747 + $0xb0] sm:$0xff] %v7705
    %7771 = vst [vmem:[%s7747 + $0xb8] sm:$0xff] %v7706
    %7772 = vst [vmem:[%s7747 + $0xc0] sm:$0xff] %v7707
    %7773 = vst [vmem:[%s7747 + $0xc8] sm:$0xff] %v7708
    %7774 = vst [vmem:[%s7747 + $0xd0] sm:$0xff] %v7709
    %7775 = vst [vmem:[%s7747 + $0xd8] sm:$0xff] %v7710
    %7776 = vst [vmem:[%s7747 + $0xe0] sm:$0xff] %v7711
    %7777 = vst [vmem:[%s7747 + $0xe8] sm:$0xff] %v7712
    %7778 = vst [vmem:[%s7747 + $0xf0] sm:$0xff] %v7713
    %7779 = vst [vmem:[%s7747 + $0xf8] sm:$0xff] %v7714
    %7780 = vst [vmem:[%s7747 + $0x100] sm:$0xff] %v7715
    %7781 = vst [vmem:[%s7747 + $0x108] sm:$0xff] %v7716
    %7782 = vst [vmem:[%s7747 + $0x110] sm:$0xff] %v7717
    %7783 = vst [vmem:[%s7747 + $0x118] sm:$0xff] %v7718
    %7784 = vst [vmem:[%s7747 + $0x120] sm:$0xff] %v7719
    %7785 = vst [vmem:[%s7747 + $0x128] sm:$0xff] %v7720
    %7786 = vst [vmem:[%s7747 + $0x130] sm:$0xff] %v7721
    %7787 = vst [vmem:[%s7747 + $0x138] sm:$0xff] %v7722
    %7788 = vst [vmem:[%s7747 + $0x140] sm:$0xff] %v7723
    %7789 = vst [vmem:[%s7747 + $0x148] sm:$0xff] %v7724
    %7790 = vst [vmem:[%s7747 + $0x150] sm:$0xff] %v7725
    %7791 = vst [vmem:[%s7747 + $0x158] sm:$0xff] %v7726
    %7792 = vst [vmem:[%s7747 + $0x160] sm:$0xff] %v7727
    %7793 = vst [vmem:[%s7747 + $0x168] sm:$0xff] %v7728
    %7794 = vst [vmem:[%s7747 + $0x170] sm:$0xff] %v7729
    %7795 = vst [vmem:[%s7747 + $0x178] sm:$0xff] %v7730
    %7796 = vst [vmem:[%s7747 + $0x180] sm:$0xff] %v7731
    %7797 = vst [vmem:[%s7747 + $0x188] sm:$0xff] %v7732
    %7798 = vst [vmem:[%s7747 + $0x190] sm:$0xff] %v7733
    %7799 = vst [vmem:[%s7747 + $0x198] sm:$0xff] %v7734
    %7800 = vst [vmem:[%s7747 + $0x1a0] sm:$0xff] %v7735
    %7801 = vst [vmem:[%s7747 + $0x1a8] sm:$0xff] %v7736
    %7802 = vst [vmem:[%s7747 + $0x1b0] sm:$0xff] %v7737
    %7803 = vst [vmem:[%s7747 + $0x1b8] sm:$0xff] %v7738
    %7804 = vst [vmem:[%s7747 + $0x1c0] sm:$0xff] %v7739
    %7805 = vst [vmem:[%s7747 + $0x1c8] sm:$0xff] %v7740
    %7806 = vst [vmem:[%s7747 + $0x1d0] sm:$0xff] %v7741
    %7807 = vst [vmem:[%s7747 + $0x1d8] sm:$0xff] %v7742
    %7808 = vst [vmem:[%s7747 + $0x1e0] sm:$0xff] %v7743
    %7809 = vst [vmem:[%s7747 + $0x1e8] sm:$0xff] %v7744
    %7810 = vst [vmem:[%s7747 + $0x1f0] sm:$0xff] %v7745
    %7811 = vst [vmem:[%s7747 + $0x1f8] sm:$0xff] %v7746
    %v7812 = vadd.f32 %v5399, %v5401
    %v7813 = vadd.f32 %v7812, %v5403
    %v7814 = vadd.f32 %v7813, %v5405
    %v7815 = vadd.f32 %v7814, %v5407
    %v7816 = vadd.f32 %v7815, %v5409
    %v7817 = vadd.f32 %v7816, %v5411
    %v7818 = vadd.f32 %v7817, %v5413
    %v7819 = vadd.f32 %v7818, %v5415
    %v7820 = vadd.f32 %v7819, %v5417
    %v7821 = vadd.f32 %v7820, %v5419
    %v7822 = vadd.f32 %v7821, %v5421
    %v7823 = vadd.f32 %v7822, %v5423
    %v7824 = vadd.f32 %v7823, %v5425
    %v7825 = vadd.f32 %v7824, %v5427
    %v7826 = vadd.f32 %v7825, %v5429
    %v7827 = vadd.f32 %v7826, %v5431
    %v7828 = vadd.f32 %v7827, %v5433
    %v7829 = vadd.f32 %v7828, %v5435
    %v7830 = vadd.f32 %v7829, %v5437
    %v7831 = vadd.f32 %v7830, %v5439
    %v7832 = vadd.f32 %v7831, %v5441
    %v7833 = vadd.f32 %v7832, %v5443
    %v7834 = vadd.f32 %v7833, %v5445
    %v7835 = vadd.f32 %v7834, %v5447
    %v7836 = vadd.f32 %v7835, %v5449
    %v7837 = vadd.f32 %v7836, %v5451
    %v7838 = vadd.f32 %v7837, %v5453
    %v7839 = vadd.f32 %v7838, %v5455
    %v7840 = vadd.f32 %v7839, %v5457
    %v7841 = vadd.f32 %v7840, %v5459
    %v7842 = vadd.f32 %v7841, %v5461
    %v7843 = vadd.f32 %v7842, %v5463
    %v7844 = vadd.f32 %v7843, %v5465
    %v7845 = vadd.f32 %v7844, %v5467
    %v7846 = vadd.f32 %v7845, %v5469
    %v7847 = vadd.f32 %v7846, %v5471
    %v7848 = vadd.f32 %v7847, %v5473
    %v7849 = vadd.f32 %v7848, %v5475
    %v7850 = vadd.f32 %v7849, %v5477
    %v7851 = vadd.f32 %v7850, %v5479
    %v7852 = vadd.f32 %v7851, %v5481
    %v7853 = vadd.f32 %v7852, %v5483
    %v7854 = vadd.f32 %v7853, %v5485
    %v7855 = vadd.f32 %v7854, %v5487
    %v7856 = vadd.f32 %v7855, %v5489
    %v7857 = vadd.f32 %v7856, %v5491
    %v7858 = vadd.f32 %v7857, %v5493
    %v7859 = vadd.f32 %v7858, %v5495
    %v7860 = vadd.f32 %v7859, %v5497
    %v7861 = vadd.f32 %v7860, %v5499
    %v7862 = vadd.f32 %v7861, %v5501
    %v7863 = vadd.f32 %v7862, %v5503
    %v7864 = vadd.f32 %v7863, %v5505
    %v7865 = vadd.f32 %v7864, %v5507
    %v7866 = vadd.f32 %v7865, %v5509
    %v7867 = vadd.f32 %v7866, %v5511
    %v7868 = vadd.f32 %v7867, %v5513
    %v7869 = vadd.f32 %v7868, %v5515
    %v7870 = vadd.f32 %v7869, %v5517
    %v7871 = vadd.f32 %v7870, %v5519
    %v7872 = vadd.f32 %v7871, %v5521
    %v7873 = vadd.f32 %v7872, %v5523
    %v7874 = vadd.f32 %v7873, %v5525
    %v7875 = vrot.slane %v7874, 4
    %v7876 = vadd.f32 %v7874, %v7875
    %v7877 = vrot.slane %v7876, 2
    %v7878 = vadd.f32 %v7876, %v7877
    %v7879 = vrot.slane %v7878, 1
    %v7880 = vadd.f32 %v7878, %v7879
    %v7881 = vadd.f32 %v5400, %v5402
    %v7882 = vadd.f32 %v7881, %v5404
    %v7883 = vadd.f32 %v7882, %v5406
    %v7884 = vadd.f32 %v7883, %v5408
    %v7885 = vadd.f32 %v7884, %v5410
    %v7886 = vadd.f32 %v7885, %v5412
    %v7887 = vadd.f32 %v7886, %v5414
    %v7888 = vadd.f32 %v7887, %v5416
    %v7889 = vadd.f32 %v7888, %v5418
    %v7890 = vadd.f32 %v7889, %v5420
    %v7891 = vadd.f32 %v7890, %v5422
    %v7892 = vadd.f32 %v7891, %v5424
    %v7893 = vadd.f32 %v7892, %v5426
    %v7894 = vadd.f32 %v7893, %v5428
    %v7895 = vadd.f32 %v7894, %v5430
    %v7896 = vadd.f32 %v7895, %v5432
    %v7897 = vadd.f32 %v7896, %v5434
    %v7898 = vadd.f32 %v7897, %v5436
    %v7899 = vadd.f32 %v7898, %v5438
    %v7900 = vadd.f32 %v7899, %v5440
    %v7901 = vadd.f32 %v7900, %v5442
    %v7902 = vadd.f32 %v7901, %v5444
    %v7903 = vadd.f32 %v7902, %v5446
    %v7904 = vadd.f32 %v7903, %v5448
    %v7905 = vadd.f32 %v7904, %v5450
    %v7906 = vadd.f32 %v7905, %v5452
    %v7907 = vadd.f32 %v7906, %v5454
    %v7908 = vadd.f32 %v7907, %v5456
    %v7909 = vadd.f32 %v7908, %v5458
    %v7910 = vadd.f32 %v7909, %v5460
    %v7911 = vadd.f32 %v7910, %v5462
    %v7912 = vadd.f32 %v7911, %v5464
    %v7913 = vadd.f32 %v7912, %v5466
    %v7914 = vadd.f32 %v7913, %v5468
    %v7915 = vadd.f32 %v7914, %v5470
    %v7916 = vadd.f32 %v7915, %v5472
    %v7917 = vadd.f32 %v7916, %v5474
    %v7918 = vadd.f32 %v7917, %v5476
    %v7919 = vadd.f32 %v7918, %v5478
    %v7920 = vadd.f32 %v7919, %v5480
    %v7921 = vadd.f32 %v7920, %v5482
    %v7922 = vadd.f32 %v7921, %v5484
    %v7923 = vadd.f32 %v7922, %v5486
    %v7924 = vadd.f32 %v7923, %v5488
    %v7925 = vadd.f32 %v7924, %v5490
    %v7926 = vadd.f32 %v7925, %v5492
    %v7927 = vadd.f32 %v7926, %v5494
    %v7928 = vadd.f32 %v7927, %v5496
    %v7929 = vadd.f32 %v7928, %v5498
    %v7930 = vadd.f32 %v7929, %v5500
    %v7931 = vadd.f32 %v7930, %v5502
    %v7932 = vadd.f32 %v7931, %v5504
    %v7933 = vadd.f32 %v7932, %v5506
    %v7934 = vadd.f32 %v7933, %v5508
    %v7935 = vadd.f32 %v7934, %v5510
    %v7936 = vadd.f32 %v7935, %v5512
    %v7937 = vadd.f32 %v7936, %v5514
    %v7938 = vadd.f32 %v7937, %v5516
    %v7939 = vadd.f32 %v7938, %v5518
    %v7940 = vadd.f32 %v7939, %v5520
    %v7941 = vadd.f32 %v7940, %v5522
    %v7942 = vadd.f32 %v7941, %v5524
    %v7943 = vadd.f32 %v7942, %v5526
    %v7944 = vrot.slane %v7943, 4
    %v7945 = vadd.f32 %v7943, %v7944
    %v7946 = vrot.slane %v7945, 2
    %v7947 = vadd.f32 %v7945, %v7946
    %v7948 = vrot.slane %v7947, 1
    %v7949 = vadd.f32 %v7947, %v7948
    %v7950 = vmul.f32 %v7880, %v3953
    %v7951 = vmul.f32 %v7949, %v3953
    %v7952 = vsub.f32 %v5399, %v7950
    %v7953 = vsub.f32 %v5400, %v7951
    %v7954 = vsub.f32 %v5401, %v7950
    %v7955 = vsub.f32 %v5402, %v7951
    %v7956 = vsub.f32 %v5403, %v7950
    %v7957 = vsub.f32 %v5404, %v7951
    %v7958 = vsub.f32 %v5405, %v7950
    %v7959 = vsub.f32 %v5406, %v7951
    %v7960 = vsub.f32 %v5407, %v7950
    %v7961 = vsub.f32 %v5408, %v7951
    %v7962 = vsub.f32 %v5409, %v7950
    %v7963 = vsub.f32 %v5410, %v7951
    %v7964 = vsub.f32 %v5411, %v7950
    %v7965 = vsub.f32 %v5412, %v7951
    %v7966 = vsub.f32 %v5413, %v7950
    %v7967 = vsub.f32 %v5414, %v7951
    %v7968 = vsub.f32 %v5415, %v7950
    %v7969 = vsub.f32 %v5416, %v7951
    %v7970 = vsub.f32 %v5417, %v7950
    %v7971 = vsub.f32 %v5418, %v7951
    %v7972 = vsub.f32 %v5419, %v7950
    %v7973 = vsub.f32 %v5420, %v7951
    %v7974 = vsub.f32 %v5421, %v7950
    %v7975 = vsub.f32 %v5422, %v7951
    %v7976 = vsub.f32 %v5423, %v7950
    %v7977 = vsub.f32 %v5424, %v7951
    %v7978 = vsub.f32 %v5425, %v7950
    %v7979 = vsub.f32 %v5426, %v7951
    %v7980 = vsub.f32 %v5427, %v7950
    %v7981 = vsub.f32 %v5428, %v7951
    %v7982 = vsub.f32 %v5429, %v7950
    %v7983 = vsub.f32 %v5430, %v7951
    %v7984 = vsub.f32 %v5431, %v7950
    %v7985 = vsub.f32 %v5432, %v7951
    %v7986 = vsub.f32 %v5433, %v7950
    %v7987 = vsub.f32 %v5434, %v7951
    %v7988 = vsub.f32 %v5435, %v7950
    %v7989 = vsub.f32 %v5436, %v7951
    %v7990 = vsub.f32 %v5437, %v7950
    %v7991 = vsub.f32 %v5438, %v7951
    %v7992 = vsub.f32 %v5439, %v7950
    %v7993 = vsub.f32 %v5440, %v7951
    %v7994 = vsub.f32 %v5441, %v7950
    %v7995 = vsub.f32 %v5442, %v7951
    %v7996 = vsub.f32 %v5443, %v7950
    %v7997 = vsub.f32 %v5444, %v7951
    %v7998 = vsub.f32 %v5445, %v7950
    %v7999 = vsub.f32 %v5446, %v7951
    %v8000 = vsub.f32 %v5447, %v7950
    %v8001 = vsub.f32 %v5448, %v7951
    %v8002 = vsub.f32 %v5449, %v7950
    %v8003 = vsub.f32 %v5450, %v7951
    %v8004 = vsub.f32 %v5451, %v7950
    %v8005 = vsub.f32 %v5452, %v7951
    %v8006 = vsub.f32 %v5453, %v7950
    %v8007 = vsub.f32 %v5454, %v7951
    %v8008 = vsub.f32 %v5455, %v7950
    %v8009 = vsub.f32 %v5456, %v7951
    %v8010 = vsub.f32 %v5457, %v7950
    %v8011 = vsub.f32 %v5458, %v7951
    %v8012 = vsub.f32 %v5459, %v7950
    %v8013 = vsub.f32 %v5460, %v7951
    %v8014 = vsub.f32 %v5461, %v7950
    %v8015 = vsub.f32 %v5462, %v7951
    %v8016 = vsub.f32 %v5463, %v7950
    %v8017 = vsub.f32 %v5464, %v7951
    %v8018 = vsub.f32 %v5465, %v7950
    %v8019 = vsub.f32 %v5466, %v7951
    %v8020 = vsub.f32 %v5467, %v7950
    %v8021 = vsub.f32 %v5468, %v7951
    %v8022 = vsub.f32 %v5469, %v7950
    %v8023 = vsub.f32 %v5470, %v7951
    %v8024 = vsub.f32 %v5471, %v7950
    %v8025 = vsub.f32 %v5472, %v7951
    %v8026 = vsub.f32 %v5473, %v7950
    %v8027 = vsub.f32 %v5474, %v7951
    %v8028 = vsub.f32 %v5475, %v7950
    %v8029 = vsub.f32 %v5476, %v7951
    %v8030 = vsub.f32 %v5477, %v7950
    %v8031 = vsub.f32 %v5478, %v7951
    %v8032 = vsub.f32 %v5479, %v7950
    %v8033 = vsub.f32 %v5480, %v7951
    %v8034 = vsub.f32 %v5481, %v7950
    %v8035 = vsub.f32 %v5482, %v7951
    %v8036 = vsub.f32 %v5483, %v7950
    %v8037 = vsub.f32 %v5484, %v7951
    %v8038 = vsub.f32 %v5485, %v7950
    %v8039 = vsub.f32 %v5486, %v7951
    %v8040 = vsub.f32 %v5487, %v7950
    %v8041 = vsub.f32 %v5488, %v7951
    %v8042 = vsub.f32 %v5489, %v7950
    %v8043 = vsub.f32 %v5490, %v7951
    %v8044 = vsub.f32 %v5491, %v7950
    %v8045 = vsub.f32 %v5492, %v7951
    %v8046 = vsub.f32 %v5493, %v7950
    %v8047 = vsub.f32 %v5494, %v7951
    %v8048 = vsub.f32 %v5495, %v7950
    %v8049 = vsub.f32 %v5496, %v7951
    %v8050 = vsub.f32 %v5497, %v7950
    %v8051 = vsub.f32 %v5498, %v7951
    %v8052 = vsub.f32 %v5499, %v7950
    %v8053 = vsub.f32 %v5500, %v7951
    %v8054 = vsub.f32 %v5501, %v7950
    %v8055 = vsub.f32 %v5502, %v7951
    %v8056 = vsub.f32 %v5503, %v7950
    %v8057 = vsub.f32 %v5504, %v7951
    %v8058 = vsub.f32 %v5505, %v7950
    %v8059 = vsub.f32 %v5506, %v7951
    %v8060 = vsub.f32 %v5507, %v7950
    %v8061 = vsub.f32 %v5508, %v7951
    %v8062 = vsub.f32 %v5509, %v7950
    %v8063 = vsub.f32 %v5510, %v7951
    %v8064 = vsub.f32 %v5511, %v7950
    %v8065 = vsub.f32 %v5512, %v7951
    %v8066 = vsub.f32 %v5513, %v7950
    %v8067 = vsub.f32 %v5514, %v7951
    %v8068 = vsub.f32 %v5515, %v7950
    %v8069 = vsub.f32 %v5516, %v7951
    %v8070 = vsub.f32 %v5517, %v7950
    %v8071 = vsub.f32 %v5518, %v7951
    %v8072 = vsub.f32 %v5519, %v7950
    %v8073 = vsub.f32 %v5520, %v7951
    %v8074 = vsub.f32 %v5521, %v7950
    %v8075 = vsub.f32 %v5522, %v7951
    %v8076 = vsub.f32 %v5523, %v7950
    %v8077 = vsub.f32 %v5524, %v7951
    %v8078 = vsub.f32 %v5525, %v7950
    %v8079 = vsub.f32 %v5526, %v7951
    %v8080 = vmul.f32 %v7952, %v7952
    %v8081 = vmul.f32 %v7953, %v7953
    %v8082 = vmul.f32 %v7954, %v7954
    %v8083 = vmul.f32 %v7955, %v7955
    %v8084 = vmul.f32 %v7956, %v7956
    %v8085 = vmul.f32 %v7957, %v7957
    %v8086 = vmul.f32 %v7958, %v7958
    %v8087 = vmul.f32 %v7959, %v7959
    %v8088 = vmul.f32 %v7960, %v7960
    %v8089 = vmul.f32 %v7961, %v7961
    %v8090 = vmul.f32 %v7962, %v7962
    %v8091 = vmul.f32 %v7963, %v7963
    %v8092 = vmul.f32 %v7964, %v7964
    %v8093 = vmul.f32 %v7965, %v7965
    %v8094 = vmul.f32 %v7966, %v7966
    %v8095 = vmul.f32 %v7967, %v7967
    %v8096 = vmul.f32 %v7968, %v7968
    %v8097 = vmul.f32 %v7969, %v7969
    %v8098 = vmul.f32 %v7970, %v7970
    %v8099 = vmul.f32 %v7971, %v7971
    %v8100 = vmul.f32 %v7972, %v7972
    %v8101 = vmul.f32 %v7973, %v7973
    %v8102 = vmul.f32 %v7974, %v7974
    %v8103 = vmul.f32 %v7975, %v7975
    %v8104 = vmul.f32 %v7976, %v7976
    %v8105 = vmul.f32 %v7977, %v7977
    %v8106 = vmul.f32 %v7978, %v7978
    %v8107 = vmul.f32 %v7979, %v7979
    %v8108 = vmul.f32 %v7980, %v7980
    %v8109 = vmul.f32 %v7981, %v7981
    %v8110 = vmul.f32 %v7982, %v7982
    %v8111 = vmul.f32 %v7983, %v7983
    %v8112 = vmul.f32 %v7984, %v7984
    %v8113 = vmul.f32 %v7985, %v7985
    %v8114 = vmul.f32 %v7986, %v7986
    %v8115 = vmul.f32 %v7987, %v7987
    %v8116 = vmul.f32 %v7988, %v7988
    %v8117 = vmul.f32 %v7989, %v7989
    %v8118 = vmul.f32 %v7990, %v7990
    %v8119 = vmul.f32 %v7991, %v7991
    %v8120 = vmul.f32 %v7992, %v7992
    %v8121 = vmul.f32 %v7993, %v7993
    %v8122 = vmul.f32 %v7994, %v7994
    %v8123 = vmul.f32 %v7995, %v7995
    %v8124 = vmul.f32 %v7996, %v7996
    %v8125 = vmul.f32 %v7997, %v7997
    %v8126 = vmul.f32 %v7998, %v7998
    %v8127 = vmul.f32 %v7999, %v7999
    %v8128 = vmul.f32 %v8000, %v8000
    %v8129 = vmul.f32 %v8001, %v8001
    %v8130 = vmul.f32 %v8002, %v8002
    %v8131 = vmul.f32 %v8003, %v8003
    %v8132 = vmul.f32 %v8004, %v8004
    %v8133 = vmul.f32 %v8005, %v8005
    %v8134 = vmul.f32 %v8006, %v8006
    %v8135 = vmul.f32 %v8007, %v8007
    %v8136 = vmul.f32 %v8008, %v8008
    %v8137 = vmul.f32 %v8009, %v8009
    %v8138 = vmul.f32 %v8010, %v8010
    %v8139 = vmul.f32 %v8011, %v8011
    %v8140 = vmul.f32 %v8012, %v8012
    %v8141 = vmul.f32 %v8013, %v8013
    %v8142 = vmul.f32 %v8014, %v8014
    %v8143 = vmul.f32 %v8015, %v8015
    %v8144 = vmul.f32 %v8016, %v8016
    %v8145 = vmul.f32 %v8017, %v8017
    %v8146 = vmul.f32 %v8018, %v8018
    %v8147 = vmul.f32 %v8019, %v8019
    %v8148 = vmul.f32 %v8020, %v8020
    %v8149 = vmul.f32 %v8021, %v8021
    %v8150 = vmul.f32 %v8022, %v8022
    %v8151 = vmul.f32 %v8023, %v8023
    %v8152 = vmul.f32 %v8024, %v8024
    %v8153 = vmul.f32 %v8025, %v8025
    %v8154 = vmul.f32 %v8026, %v8026
    %v8155 = vmul.f32 %v8027, %v8027
    %v8156 = vmul.f32 %v8028, %v8028
    %v8157 = vmul.f32 %v8029, %v8029
    %v8158 = vmul.f32 %v8030, %v8030
    %v8159 = vmul.f32 %v8031, %v8031
    %v8160 = vmul.f32 %v8032, %v8032
    %v8161 = vmul.f32 %v8033, %v8033
    %v8162 = vmul.f32 %v8034, %v8034
    %v8163 = vmul.f32 %v8035, %v8035
    %v8164 = vmul.f32 %v8036, %v8036
    %v8165 = vmul.f32 %v8037, %v8037
    %v8166 = vmul.f32 %v8038, %v8038
    %v8167 = vmul.f32 %v8039, %v8039
    %v8168 = vmul.f32 %v8040, %v8040
    %v8169 = vmul.f32 %v8041, %v8041
    %v8170 = vmul.f32 %v8042, %v8042
    %v8171 = vmul.f32 %v8043, %v8043
    %v8172 = vmul.f32 %v8044, %v8044
    %v8173 = vmul.f32 %v8045, %v8045
    %v8174 = vmul.f32 %v8046, %v8046
    %v8175 = vmul.f32 %v8047, %v8047
    %v8176 = vmul.f32 %v8048, %v8048
    %v8177 = vmul.f32 %v8049, %v8049
    %v8178 = vmul.f32 %v8050, %v8050
    %v8179 = vmul.f32 %v8051, %v8051
    %v8180 = vmul.f32 %v8052, %v8052
    %v8181 = vmul.f32 %v8053, %v8053
    %v8182 = vmul.f32 %v8054, %v8054
    %v8183 = vmul.f32 %v8055, %v8055
    %v8184 = vmul.f32 %v8056, %v8056
    %v8185 = vmul.f32 %v8057, %v8057
    %v8186 = vmul.f32 %v8058, %v8058
    %v8187 = vmul.f32 %v8059, %v8059
    %v8188 = vmul.f32 %v8060, %v8060
    %v8189 = vmul.f32 %v8061, %v8061
    %v8190 = vmul.f32 %v8062, %v8062
    %v8191 = vmul.f32 %v8063, %v8063
    %v8192 = vmul.f32 %v8064, %v8064
    %v8193 = vmul.f32 %v8065, %v8065
    %v8194 = vmul.f32 %v8066, %v8066
    %v8195 = vmul.f32 %v8067, %v8067
    %v8196 = vmul.f32 %v8068, %v8068
    %v8197 = vmul.f32 %v8069, %v8069
    %v8198 = vmul.f32 %v8070, %v8070
    %v8199 = vmul.f32 %v8071, %v8071
    %v8200 = vmul.f32 %v8072, %v8072
    %v8201 = vmul.f32 %v8073, %v8073
    %v8202 = vmul.f32 %v8074, %v8074
    %v8203 = vmul.f32 %v8075, %v8075
    %v8204 = vmul.f32 %v8076, %v8076
    %v8205 = vmul.f32 %v8077, %v8077
    %v8206 = vmul.f32 %v8078, %v8078
    %v8207 = vmul.f32 %v8079, %v8079
    %v8208 = vadd.f32 %v8080, %v8082
    %v8209 = vadd.f32 %v8208, %v8084
    %v8210 = vadd.f32 %v8209, %v8086
    %v8211 = vadd.f32 %v8210, %v8088
    %v8212 = vadd.f32 %v8211, %v8090
    %v8213 = vadd.f32 %v8212, %v8092
    %v8214 = vadd.f32 %v8213, %v8094
    %v8215 = vadd.f32 %v8214, %v8096
    %v8216 = vadd.f32 %v8215, %v8098
    %v8217 = vadd.f32 %v8216, %v8100
    %v8218 = vadd.f32 %v8217, %v8102
    %v8219 = vadd.f32 %v8218, %v8104
    %v8220 = vadd.f32 %v8219, %v8106
    %v8221 = vadd.f32 %v8220, %v8108
    %v8222 = vadd.f32 %v8221, %v8110
    %v8223 = vadd.f32 %v8222, %v8112
    %v8224 = vadd.f32 %v8223, %v8114
    %v8225 = vadd.f32 %v8224, %v8116
    %v8226 = vadd.f32 %v8225, %v8118
    %v8227 = vadd.f32 %v8226, %v8120
    %v8228 = vadd.f32 %v8227, %v8122
    %v8229 = vadd.f32 %v8228, %v8124
    %v8230 = vadd.f32 %v8229, %v8126
    %v8231 = vadd.f32 %v8230, %v8128
    %v8232 = vadd.f32 %v8231, %v8130
    %v8233 = vadd.f32 %v8232, %v8132
    %v8234 = vadd.f32 %v8233, %v8134
    %v8235 = vadd.f32 %v8234, %v8136
    %v8236 = vadd.f32 %v8235, %v8138
    %v8237 = vadd.f32 %v8236, %v8140
    %v8238 = vadd.f32 %v8237, %v8142
    %v8239 = vadd.f32 %v8238, %v8144
    %v8240 = vadd.f32 %v8239, %v8146
    %v8241 = vadd.f32 %v8240, %v8148
    %v8242 = vadd.f32 %v8241, %v8150
    %v8243 = vadd.f32 %v8242, %v8152
    %v8244 = vadd.f32 %v8243, %v8154
    %v8245 = vadd.f32 %v8244, %v8156
    %v8246 = vadd.f32 %v8245, %v8158
    %v8247 = vadd.f32 %v8246, %v8160
    %v8248 = vadd.f32 %v8247, %v8162
    %v8249 = vadd.f32 %v8248, %v8164
    %v8250 = vadd.f32 %v8249, %v8166
    %v8251 = vadd.f32 %v8250, %v8168
    %v8252 = vadd.f32 %v8251, %v8170
    %v8253 = vadd.f32 %v8252, %v8172
    %v8254 = vadd.f32 %v8253, %v8174
    %v8255 = vadd.f32 %v8254, %v8176
    %v8256 = vadd.f32 %v8255, %v8178
    %v8257 = vadd.f32 %v8256, %v8180
    %v8258 = vadd.f32 %v8257, %v8182
    %v8259 = vadd.f32 %v8258, %v8184
    %v8260 = vadd.f32 %v8259, %v8186
    %v8261 = vadd.f32 %v8260, %v8188
    %v8262 = vadd.f32 %v8261, %v8190
    %v8263 = vadd.f32 %v8262, %v8192
    %v8264 = vadd.f32 %v8263, %v8194
    %v8265 = vadd.f32 %v8264, %v8196
    %v8266 = vadd.f32 %v8265, %v8198
    %v8267 = vadd.f32 %v8266, %v8200
    %v8268 = vadd.f32 %v8267, %v8202
    %v8269 = vadd.f32 %v8268, %v8204
    %v8270 = vadd.f32 %v8269, %v8206
    %v8271 = vrot.slane %v8270, 4
    %v8272 = vadd.f32 %v8270, %v8271
    %v8273 = vrot.slane %v8272, 2
    %v8274 = vadd.f32 %v8272, %v8273
    %v8275 = vrot.slane %v8274, 1
    %v8276 = vadd.f32 %v8274, %v8275
    %v8277 = vadd.f32 %v8081, %v8083
    %v8278 = vadd.f32 %v8277, %v8085
    %v8279 = vadd.f32 %v8278, %v8087
    %v8280 = vadd.f32 %v8279, %v8089
    %v8281 = vadd.f32 %v8280, %v8091
    %v8282 = vadd.f32 %v8281, %v8093
    %v8283 = vadd.f32 %v8282, %v8095
    %v8284 = vadd.f32 %v8283, %v8097
    %v8285 = vadd.f32 %v8284, %v8099
    %v8286 = vadd.f32 %v8285, %v8101
    %v8287 = vadd.f32 %v8286, %v8103
    %v8288 = vadd.f32 %v8287, %v8105
    %v8289 = vadd.f32 %v8288, %v8107
    %v8290 = vadd.f32 %v8289, %v8109
    %v8291 = vadd.f32 %v8290, %v8111
    %v8292 = vadd.f32 %v8291, %v8113
    %v8293 = vadd.f32 %v8292, %v8115
    %v8294 = vadd.f32 %v8293, %v8117
    %v8295 = vadd.f32 %v8294, %v8119
    %v8296 = vadd.f32 %v8295, %v8121
    %v8297 = vadd.f32 %v8296, %v8123
    %v8298 = vadd.f32 %v8297, %v8125
    %v8299 = vadd.f32 %v8298, %v8127
    %v8300 = vadd.f32 %v8299, %v8129
    %v8301 = vadd.f32 %v8300, %v8131
    %v8302 = vadd.f32 %v8301, %v8133
    %v8303 = vadd.f32 %v8302, %v8135
    %v8304 = vadd.f32 %v8303, %v8137
    %v8305 = vadd.f32 %v8304, %v8139
    %v8306 = vadd.f32 %v8305, %v8141
    %v8307 = vadd.f32 %v8306, %v8143
    %v8308 = vadd.f32 %v8307, %v8145
    %v8309 = vadd.f32 %v8308, %v8147
    %v8310 = vadd.f32 %v8309, %v8149
    %v8311 = vadd.f32 %v8310, %v8151
    %v8312 = vadd.f32 %v8311, %v8153
    %v8313 = vadd.f32 %v8312, %v8155
    %v8314 = vadd.f32 %v8313, %v8157
    %v8315 = vadd.f32 %v8314, %v8159
    %v8316 = vadd.f32 %v8315, %v8161
    %v8317 = vadd.f32 %v8316, %v8163
    %v8318 = vadd.f32 %v8317, %v8165
    %v8319 = vadd.f32 %v8318, %v8167
    %v8320 = vadd.f32 %v8319, %v8169
    %v8321 = vadd.f32 %v8320, %v8171
    %v8322 = vadd.f32 %v8321, %v8173
    %v8323 = vadd.f32 %v8322, %v8175
    %v8324 = vadd.f32 %v8323, %v8177
    %v8325 = vadd.f32 %v8324, %v8179
    %v8326 = vadd.f32 %v8325, %v8181
    %v8327 = vadd.f32 %v8326, %v8183
    %v8328 = vadd.f32 %v8327, %v8185
    %v8329 = vadd.f32 %v8328, %v8187
    %v8330 = vadd.f32 %v8329, %v8189
    %v8331 = vadd.f32 %v8330, %v8191
    %v8332 = vadd.f32 %v8331, %v8193
    %v8333 = vadd.f32 %v8332, %v8195
    %v8334 = vadd.f32 %v8333, %v8197
    %v8335 = vadd.f32 %v8334, %v8199
    %v8336 = vadd.f32 %v8335, %v8201
    %v8337 = vadd.f32 %v8336, %v8203
    %v8338 = vadd.f32 %v8337, %v8205
    %v8339 = vadd.f32 %v8338, %v8207
    %v8340 = vrot.slane %v8339, 4
    %v8341 = vadd.f32 %v8339, %v8340
    %v8342 = vrot.slane %v8341, 2
    %v8343 = vadd.f32 %v8341, %v8342
    %v8344 = vrot.slane %v8343, 1
    %v8345 = vadd.f32 %v8343, %v8344
    %v8346 = vmul.f32 %v8276, %v3953
    %v8347 = vmul.f32 %v8345, %v3953
    %v8348 = vadd.f32 %v8346, 1e-05
    %v8349 = vadd.f32 %v8347, 1e-05
    %v8350 = vrsqrt.pop %v8348
    %v8351 = vmul.f32 %v8350, %v8348
    %v8352 = vmul.f32 %v8351, %v8350
    %v8353 = vmul.f32 0.5, %v8352
    %v8354 = vsub.f32 1.5, %v8353
    %v8355 = vmul.f32 %v8350, %v8354
    %vm8356 = vweird.f32 %v8348
    %vm8357 = vweird.f32 %v8350
    %vm8358 = vmor %vm8356, %vm8357
    %v8359 = vsel %vm8358, %v8350, %v8355
    %v8360 = vrsqrt.pop %v8349
    %v8361 = vmul.f32 %v8360, %v8349
    %v8362 = vmul.f32 %v8361, %v8360
    %v8363 = vmul.f32 0.5, %v8362
    %v8364 = vsub.f32 1.5, %v8363
    %v8365 = vmul.f32 %v8360, %v8364
    %vm8366 = vweird.f32 %v8349
    %vm8367 = vweird.f32 %v8360
    %vm8368 = vmor %vm8366, %vm8367
    %v8369 = vsel %vm8368, %v8360, %v8365
    %v8370 = vmul.f32 %v7952, %v8359
    %v8371 = vmul.f32 %v7953, %v8369
    %v8372 = vmul.f32 %v7954, %v8359
    %v8373 = vmul.f32 %v7955, %v8369
    %v8374 = vmul.f32 %v7956, %v8359
    %v8375 = vmul.f32 %v7957, %v8369
    %v8376 = vmul.f32 %v7958, %v8359
    %v8377 = vmul.f32 %v7959, %v8369
    %v8378 = vmul.f32 %v7960, %v8359
    %v8379 = vmul.f32 %v7961, %v8369
    %v8380 = vmul.f32 %v7962, %v8359
    %v8381 = vmul.f32 %v7963, %v8369
    %v8382 = vmul.f32 %v7964, %v8359
    %v8383 = vmul.f32 %v7965, %v8369
    %v8384 = vmul.f32 %v7966, %v8359
    %v8385 = vmul.f32 %v7967, %v8369
    %v8386 = vmul.f32 %v7968, %v8359
    %v8387 = vmul.f32 %v7969, %v8369
    %v8388 = vmul.f32 %v7970, %v8359
    %v8389 = vmul.f32 %v7971, %v8369
    %v8390 = vmul.f32 %v7972, %v8359
    %v8391 = vmul.f32 %v7973, %v8369
    %v8392 = vmul.f32 %v7974, %v8359
    %v8393 = vmul.f32 %v7975, %v8369
    %v8394 = vmul.f32 %v7976, %v8359
    %v8395 = vmul.f32 %v7977, %v8369
    %v8396 = vmul.f32 %v7978, %v8359
    %v8397 = vmul.f32 %v7979, %v8369
    %v8398 = vmul.f32 %v7980, %v8359
    %v8399 = vmul.f32 %v7981, %v8369
    %v8400 = vmul.f32 %v7982, %v8359
    %v8401 = vmul.f32 %v7983, %v8369
    %v8402 = vmul.f32 %v7984, %v8359
    %v8403 = vmul.f32 %v7985, %v8369
    %v8404 = vmul.f32 %v7986, %v8359
    %v8405 = vmul.f32 %v7987, %v8369
    %v8406 = vmul.f32 %v7988, %v8359
    %v8407 = vmul.f32 %v7989, %v8369
    %v8408 = vmul.f32 %v7990, %v8359
    %v8409 = vmul.f32 %v7991, %v8369
    %v8410 = vmul.f32 %v7992, %v8359
    %v8411 = vmul.f32 %v7993, %v8369
    %v8412 = vmul.f32 %v7994, %v8359
    %v8413 = vmul.f32 %v7995, %v8369
    %v8414 = vmul.f32 %v7996, %v8359
    %v8415 = vmul.f32 %v7997, %v8369
    %v8416 = vmul.f32 %v7998, %v8359
    %v8417 = vmul.f32 %v7999, %v8369
    %v8418 = vmul.f32 %v8000, %v8359
    %v8419 = vmul.f32 %v8001, %v8369
    %v8420 = vmul.f32 %v8002, %v8359
    %v8421 = vmul.f32 %v8003, %v8369
    %v8422 = vmul.f32 %v8004, %v8359
    %v8423 = vmul.f32 %v8005, %v8369
    %v8424 = vmul.f32 %v8006, %v8359
    %v8425 = vmul.f32 %v8007, %v8369
    %v8426 = vmul.f32 %v8008, %v8359
    %v8427 = vmul.f32 %v8009, %v8369
    %v8428 = vmul.f32 %v8010, %v8359
    %v8429 = vmul.f32 %v8011, %v8369
    %v8430 = vmul.f32 %v8012, %v8359
    %v8431 = vmul.f32 %v8013, %v8369
    %v8432 = vmul.f32 %v8014, %v8359
    %v8433 = vmul.f32 %v8015, %v8369
    %v8434 = vmul.f32 %v8016, %v8359
    %v8435 = vmul.f32 %v8017, %v8369
    %v8436 = vmul.f32 %v8018, %v8359
    %v8437 = vmul.f32 %v8019, %v8369
    %v8438 = vmul.f32 %v8020, %v8359
    %v8439 = vmul.f32 %v8021, %v8369
    %v8440 = vmul.f32 %v8022, %v8359
    %v8441 = vmul.f32 %v8023, %v8369
    %v8442 = vmul.f32 %v8024, %v8359
    %v8443 = vmul.f32 %v8025, %v8369
    %v8444 = vmul.f32 %v8026, %v8359
    %v8445 = vmul.f32 %v8027, %v8369
    %v8446 = vmul.f32 %v8028, %v8359
    %v8447 = vmul.f32 %v8029, %v8369
    %v8448 = vmul.f32 %v8030, %v8359
    %v8449 = vmul.f32 %v8031, %v8369
    %v8450 = vmul.f32 %v8032, %v8359
    %v8451 = vmul.f32 %v8033, %v8369
    %v8452 = vmul.f32 %v8034, %v8359
    %v8453 = vmul.f32 %v8035, %v8369
    %v8454 = vmul.f32 %v8036, %v8359
    %v8455 = vmul.f32 %v8037, %v8369
    %v8456 = vmul.f32 %v8038, %v8359
    %v8457 = vmul.f32 %v8039, %v8369
    %v8458 = vmul.f32 %v8040, %v8359
    %v8459 = vmul.f32 %v8041, %v8369
    %v8460 = vmul.f32 %v8042, %v8359
    %v8461 = vmul.f32 %v8043, %v8369
    %v8462 = vmul.f32 %v8044, %v8359
    %v8463 = vmul.f32 %v8045, %v8369
    %v8464 = vmul.f32 %v8046, %v8359
    %v8465 = vmul.f32 %v8047, %v8369
    %v8466 = vmul.f32 %v8048, %v8359
    %v8467 = vmul.f32 %v8049, %v8369
    %v8468 = vmul.f32 %v8050, %v8359
    %v8469 = vmul.f32 %v8051, %v8369
    %v8470 = vmul.f32 %v8052, %v8359
    %v8471 = vmul.f32 %v8053, %v8369
    %v8472 = vmul.f32 %v8054, %v8359
    %v8473 = vmul.f32 %v8055, %v8369
    %v8474 = vmul.f32 %v8056, %v8359
    %v8475 = vmul.f32 %v8057, %v8369
    %v8476 = vmul.f32 %v8058, %v8359
    %v8477 = vmul.f32 %v8059, %v8369
    %v8478 = vmul.f32 %v8060, %v8359
    %v8479 = vmul.f32 %v8061, %v8369
    %v8480 = vmul.f32 %v8062, %v8359
    %v8481 = vmul.f32 %v8063, %v8369
    %v8482 = vmul.f32 %v8064, %v8359
    %v8483 = vmul.f32 %v8065, %v8369
    %v8484 = vmul.f32 %v8066, %v8359
    %v8485 = vmul.f32 %v8067, %v8369
    %v8486 = vmul.f32 %v8068, %v8359
    %v8487 = vmul.f32 %v8069, %v8369
    %v8488 = vmul.f32 %v8070, %v8359
    %v8489 = vmul.f32 %v8071, %v8369
    %v8490 = vmul.f32 %v8072, %v8359
    %v8491 = vmul.f32 %v8073, %v8369
    %v8492 = vmul.f32 %v8074, %v8359
    %v8493 = vmul.f32 %v8075, %v8369
    %v8494 = vmul.f32 %v8076, %v8359
    %v8495 = vmul.f32 %v8077, %v8369
    %v8496 = vmul.f32 %v8078, %v8359
    %v8497 = vmul.f32 %v8079, %v8369
    %v8498 = vmul.f32 %v8370, %v4504
    %v8499 = vmul.f32 %v8371, %v4504
    %v8500 = vmul.f32 %v8372, %v4508
    %v8501 = vmul.f32 %v8373, %v4508
    %v8502 = vmul.f32 %v8374, %v4512
    %v8503 = vmul.f32 %v8375, %v4512
    %v8504 = vmul.f32 %v8376, %v4516
    %v8505 = vmul.f32 %v8377, %v4516
    %v8506 = vmul.f32 %v8378, %v4520
    %v8507 = vmul.f32 %v8379, %v4520
    %v8508 = vmul.f32 %v8380, %v4524
    %v8509 = vmul.f32 %v8381, %v4524
    %v8510 = vmul.f32 %v8382, %v4528
    %v8511 = vmul.f32 %v8383, %v4528
    %v8512 = vmul.f32 %v8384, %v4532
    %v8513 = vmul.f32 %v8385, %v4532
    %v8514 = vmul.f32 %v8386, %v4536
    %v8515 = vmul.f32 %v8387, %v4536
    %v8516 = vmul.f32 %v8388, %v4540
    %v8517 = vmul.f32 %v8389, %v4540
    %v8518 = vmul.f32 %v8390, %v4544
    %v8519 = vmul.f32 %v8391, %v4544
    %v8520 = vmul.f32 %v8392, %v4548
    %v8521 = vmul.f32 %v8393, %v4548
    %v8522 = vmul.f32 %v8394, %v4552
    %v8523 = vmul.f32 %v8395, %v4552
    %v8524 = vmul.f32 %v8396, %v4556
    %v8525 = vmul.f32 %v8397, %v4556
    %v8526 = vmul.f32 %v8398, %v4560
    %v8527 = vmul.f32 %v8399, %v4560
    %v8528 = vmul.f32 %v8400, %v4564
    %v8529 = vmul.f32 %v8401, %v4564
    %v8530 = vmul.f32 %v8402, %v4568
    %v8531 = vmul.f32 %v8403, %v4568
    %v8532 = vmul.f32 %v8404, %v4572
    %v8533 = vmul.f32 %v8405, %v4572
    %v8534 = vmul.f32 %v8406, %v4576
    %v8535 = vmul.f32 %v8407, %v4576
    %v8536 = vmul.f32 %v8408, %v4580
    %v8537 = vmul.f32 %v8409, %v4580
    %v8538 = vmul.f32 %v8410, %v4584
    %v8539 = vmul.f32 %v8411, %v4584
    %v8540 = vmul.f32 %v8412, %v4588
    %v8541 = vmul.f32 %v8413, %v4588
    %v8542 = vmul.f32 %v8414, %v4592
    %v8543 = vmul.f32 %v8415, %v4592
    %v8544 = vmul.f32 %v8416, %v4596
    %v8545 = vmul.f32 %v8417, %v4596
    %v8546 = vmul.f32 %v8418, %v4600
    %v8547 = vmul.f32 %v8419, %v4600
    %v8548 = vmul.f32 %v8420, %v4604
    %v8549 = vmul.f32 %v8421, %v4604
    %v8550 = vmul.f32 %v8422, %v4608
    %v8551 = vmul.f32 %v8423, %v4608
    %v8552 = vmul.f32 %v8424, %v4612
    %v8553 = vmul.f32 %v8425, %v4612
    %v8554 = vmul.f32 %v8426, %v4616
    %v8555 = vmul.f32 %v8427, %v4616
    %v8556 = vmul.f32 %v8428, %v4620
    %v8557 = vmul.f32 %v8429, %v4620
    %v8558 = vmul.f32 %v8430, %v4624
    %v8559 = vmul.f32 %v8431, %v4624
    %v8560 = vmul.f32 %v8432, %v4628
    %v8561 = vmul.f32 %v8433, %v4628
    %v8562 = vmul.f32 %v8434, %v4632
    %v8563 = vmul.f32 %v8435, %v4632
    %v8564 = vmul.f32 %v8436, %v4636
    %v8565 = vmul.f32 %v8437, %v4636
    %v8566 = vmul.f32 %v8438, %v4640
    %v8567 = vmul.f32 %v8439, %v4640
    %v8568 = vmul.f32 %v8440, %v4644
    %v8569 = vmul.f32 %v8441, %v4644
    %v8570 = vmul.f32 %v8442, %v4648
    %v8571 = vmul.f32 %v8443, %v4648
    %v8572 = vmul.f32 %v8444, %v4652
    %v8573 = vmul.f32 %v8445, %v4652
    %v8574 = vmul.f32 %v8446, %v4656
    %v8575 = vmul.f32 %v8447, %v4656
    %v8576 = vmul.f32 %v8448, %v4660
    %v8577 = vmul.f32 %v8449, %v4660
    %v8578 = vmul.f32 %v8450, %v4664
    %v8579 = vmul.f32 %v8451, %v4664
    %v8580 = vmul.f32 %v8452, %v4668
    %v8581 = vmul.f32 %v8453, %v4668
    %v8582 = vmul.f32 %v8454, %v4672
    %v8583 = vmul.f32 %v8455, %v4672
    %v8584 = vmul.f32 %v8456, %v4676
    %v8585 = vmul.f32 %v8457, %v4676
    %v8586 = vmul.f32 %v8458, %v4680
    %v8587 = vmul.f32 %v8459, %v4680
    %v8588 = vmul.f32 %v8460, %v4684
    %v8589 = vmul.f32 %v8461, %v4684
    %v8590 = vmul.f32 %v8462, %v4688
    %v8591 = vmul.f32 %v8463, %v4688
    %v8592 = vmul.f32 %v8464, %v4692
    %v8593 = vmul.f32 %v8465, %v4692
    %v8594 = vmul.f32 %v8466, %v4696
    %v8595 = vmul.f32 %v8467, %v4696
    %v8596 = vmul.f32 %v8468, %v4700
    %v8597 = vmul.f32 %v8469, %v4700
    %v8598 = vmul.f32 %v8470, %v4704
    %v8599 = vmul.f32 %v8471, %v4704
    %v8600 = vmul.f32 %v8472, %v4708
    %v8601 = vmul.f32 %v8473, %v4708
    %v8602 = vmul.f32 %v8474, %v4712
    %v8603 = vmul.f32 %v8475, %v4712
    %v8604 = vmul.f32 %v8476, %v4716
    %v8605 = vmul.f32 %v8477, %v4716
    %v8606 = vmul.f32 %v8478, %v4720
    %v8607 = vmul.f32 %v8479, %v4720
    %v8608 = vmul.f32 %v8480, %v4724
    %v8609 = vmul.f32 %v8481, %v4724
    %v8610 = vmul.f32 %v8482, %v4728
    %v8611 = vmul.f32 %v8483, %v4728
    %v8612 = vmul.f32 %v8484, %v4732
    %v8613 = vmul.f32 %v8485, %v4732
    %v8614 = vmul.f32 %v8486, %v4736
    %v8615 = vmul.f32 %v8487, %v4736
    %v8616 = vmul.f32 %v8488, %v4740
    %v8617 = vmul.f32 %v8489, %v4740
    %v8618 = vmul.f32 %v8490, %v4744
    %v8619 = vmul.f32 %v8491, %v4744
    %v8620 = vmul.f32 %v8492, %v4748
    %v8621 = vmul.f32 %v8493, %v4748
    %v8622 = vmul.f32 %v8494, %v4752
    %v8623 = vmul.f32 %v8495, %v4752
    %v8624 = vmul.f32 %v8496, %v4756
    %v8625 = vmul.f32 %v8497, %v4756
    %v8626 = vadd.f32 %v8498, %v4888
    %v8627 = vadd.f32 %v8499, %v4888
    %v8628 = vadd.f32 %v8500, %v4892
    %v8629 = vadd.f32 %v8501, %v4892
    %v8630 = vadd.f32 %v8502, %v4896
    %v8631 = vadd.f32 %v8503, %v4896
    %v8632 = vadd.f32 %v8504, %v4900
    %v8633 = vadd.f32 %v8505, %v4900
    %v8634 = vadd.f32 %v8506, %v4904
    %v8635 = vadd.f32 %v8507, %v4904
    %v8636 = vadd.f32 %v8508, %v4908
    %v8637 = vadd.f32 %v8509, %v4908
    %v8638 = vadd.f32 %v8510, %v4912
    %v8639 = vadd.f32 %v8511, %v4912
    %v8640 = vadd.f32 %v8512, %v4916
    %v8641 = vadd.f32 %v8513, %v4916
    %v8642 = vadd.f32 %v8514, %v4920
    %v8643 = vadd.f32 %v8515, %v4920
    %v8644 = vadd.f32 %v8516, %v4924
    %v8645 = vadd.f32 %v8517, %v4924
    %v8646 = vadd.f32 %v8518, %v4928
    %v8647 = vadd.f32 %v8519, %v4928
    %v8648 = vadd.f32 %v8520, %v4932
    %v8649 = vadd.f32 %v8521, %v4932
    %v8650 = vadd.f32 %v8522, %v4936
    %v8651 = vadd.f32 %v8523, %v4936
    %v8652 = vadd.f32 %v8524, %v4940
    %v8653 = vadd.f32 %v8525, %v4940
    %v8654 = vadd.f32 %v8526, %v4944
    %v8655 = vadd.f32 %v8527, %v4944
    %v8656 = vadd.f32 %v8528, %v4948
    %v8657 = vadd.f32 %v8529, %v4948
    %v8658 = vadd.f32 %v8530, %v4952
    %v8659 = vadd.f32 %v8531, %v4952
    %v8660 = vadd.f32 %v8532, %v4956
    %v8661 = vadd.f32 %v8533, %v4956
    %v8662 = vadd.f32 %v8534, %v4960
    %v8663 = vadd.f32 %v8535, %v4960
    %v8664 = vadd.f32 %v8536, %v4964
    %v8665 = vadd.f32 %v8537, %v4964
    %v8666 = vadd.f32 %v8538, %v4968
    %v8667 = vadd.f32 %v8539, %v4968
    %v8668 = vadd.f32 %v8540, %v4972
    %v8669 = vadd.f32 %v8541, %v4972
    %v8670 = vadd.f32 %v8542, %v4976
    %v8671 = vadd.f32 %v8543, %v4976
    %v8672 = vadd.f32 %v8544, %v4980
    %v8673 = vadd.f32 %v8545, %v4980
    %v8674 = vadd.f32 %v8546, %v4984
    %v8675 = vadd.f32 %v8547, %v4984
    %v8676 = vadd.f32 %v8548, %v4988
    %v8677 = vadd.f32 %v8549, %v4988
    %v8678 = vadd.f32 %v8550, %v4992
    %v8679 = vadd.f32 %v8551, %v4992
    %v8680 = vadd.f32 %v8552, %v4996
    %v8681 = vadd.f32 %v8553, %v4996
    %v8682 = vadd.f32 %v8554, %v5000
    %v8683 = vadd.f32 %v8555, %v5000
    %v8684 = vadd.f32 %v8556, %v5004
    %v8685 = vadd.f32 %v8557, %v5004
    %v8686 = vadd.f32 %v8558, %v5008
    %v8687 = vadd.f32 %v8559, %v5008
    %v8688 = vadd.f32 %v8560, %v5012
    %v8689 = vadd.f32 %v8561, %v5012
    %v8690 = vadd.f32 %v8562, %v5016
    %v8691 = vadd.f32 %v8563, %v5016
    %v8692 = vadd.f32 %v8564, %v5020
    %v8693 = vadd.f32 %v8565, %v5020
    %v8694 = vadd.f32 %v8566, %v5024
    %v8695 = vadd.f32 %v8567, %v5024
    %v8696 = vadd.f32 %v8568, %v5028
    %v8697 = vadd.f32 %v8569, %v5028
    %v8698 = vadd.f32 %v8570, %v5032
    %v8699 = vadd.f32 %v8571, %v5032
    %v8700 = vadd.f32 %v8572, %v5036
    %v8701 = vadd.f32 %v8573, %v5036
    %v8702 = vadd.f32 %v8574, %v5040
    %v8703 = vadd.f32 %v8575, %v5040
    %v8704 = vadd.f32 %v8576, %v5044
    %v8705 = vadd.f32 %v8577, %v5044
    %v8706 = vadd.f32 %v8578, %v5048
    %v8707 = vadd.f32 %v8579, %v5048
    %v8708 = vadd.f32 %v8580, %v5052
    %v8709 = vadd.f32 %v8581, %v5052
    %v8710 = vadd.f32 %v8582, %v5056
    %v8711 = vadd.f32 %v8583, %v5056
    %v8712 = vadd.f32 %v8584, %v5060
    %v8713 = vadd.f32 %v8585, %v5060
    %v8714 = vadd.f32 %v8586, %v5064
    %v8715 = vadd.f32 %v8587, %v5064
    %v8716 = vadd.f32 %v8588, %v5068
    %v8717 = vadd.f32 %v8589, %v5068
    %v8718 = vadd.f32 %v8590, %v5072
    %v8719 = vadd.f32 %v8591, %v5072
    %v8720 = vadd.f32 %v8592, %v5076
    %v8721 = vadd.f32 %v8593, %v5076
    %v8722 = vadd.f32 %v8594, %v5080
    %v8723 = vadd.f32 %v8595, %v5080
    %v8724 = vadd.f32 %v8596, %v5084
    %v8725 = vadd.f32 %v8597, %v5084
    %v8726 = vadd.f32 %v8598, %v5088
    %v8727 = vadd.f32 %v8599, %v5088
    %v8728 = vadd.f32 %v8600, %v5092
    %v8729 = vadd.f32 %v8601, %v5092
    %v8730 = vadd.f32 %v8602, %v5096
    %v8731 = vadd.f32 %v8603, %v5096
    %v8732 = vadd.f32 %v8604, %v5100
    %v8733 = vadd.f32 %v8605, %v5100
    %v8734 = vadd.f32 %v8606, %v5104
    %v8735 = vadd.f32 %v8607, %v5104
    %v8736 = vadd.f32 %v8608, %v5108
    %v8737 = vadd.f32 %v8609, %v5108
    %v8738 = vadd.f32 %v8610, %v5112
    %v8739 = vadd.f32 %v8611, %v5112
    %v8740 = vadd.f32 %v8612, %v5116
    %v8741 = vadd.f32 %v8613, %v5116
    %v8742 = vadd.f32 %v8614, %v5120
    %v8743 = vadd.f32 %v8615, %v5120
    %v8744 = vadd.f32 %v8616, %v5124
    %v8745 = vadd.f32 %v8617, %v5124
    %v8746 = vadd.f32 %v8618, %v5128
    %v8747 = vadd.f32 %v8619, %v5128
    %v8748 = vadd.f32 %v8620, %v5132
    %v8749 = vadd.f32 %v8621, %v5132
    %v8750 = vadd.f32 %v8622, %v5136
    %v8751 = vadd.f32 %v8623, %v5136
    %v8752 = vadd.f32 %v8624, %v5140
    %v8753 = vadd.f32 %v8625, %v5140
    %s8754 = scalar_lea.vmem [#allocation8], 1024
    %8755 = vst [vmem:[%s8754] sm:$0xff] %v8626
    %8756 = vst [vmem:[%s8754 + $0x8] sm:$0xff] %v8627
    %8757 = vst [vmem:[%s8754 + $0x10] sm:$0xff] %v8628
    %8758 = vst [vmem:[%s8754 + $0x18] sm:$0xff] %v8629
    %8759 = vst [vmem:[%s8754 + $0x20] sm:$0xff] %v8630
    %8760 = vst [vmem:[%s8754 + $0x28] sm:$0xff] %v8631
    %8761 = vst [vmem:[%s8754 + $0x30] sm:$0xff] %v8632
    %8762 = vst [vmem:[%s8754 + $0x38] sm:$0xff] %v8633
    %8763 = vst [vmem:[%s8754 + $0x40] sm:$0xff] %v8634
    %8764 = vst [vmem:[%s8754 + $0x48] sm:$0xff] %v8635
    %8765 = vst [vmem:[%s8754 + $0x50] sm:$0xff] %v8636
    %8766 = vst [vmem:[%s8754 + $0x58] sm:$0xff] %v8637
    %8767 = vst [vmem:[%s8754 + $0x60] sm:$0xff] %v8638
    %8768 = vst [vmem:[%s8754 + $0x68] sm:$0xff] %v8639
    %8769 = vst [vmem:[%s8754 + $0x70] sm:$0xff] %v8640
    %8770 = vst [vmem:[%s8754 + $0x78] sm:$0xff] %v8641
    %8771 = vst [vmem:[%s8754 + $0x80] sm:$0xff] %v8642
    %8772 = vst [vmem:[%s8754 + $0x88] sm:$0xff] %v8643
    %8773 = vst [vmem:[%s8754 + $0x90] sm:$0xff] %v8644
    %8774 = vst [vmem:[%s8754 + $0x98] sm:$0xff] %v8645
    %8775 = vst [vmem:[%s8754 + $0xa0] sm:$0xff] %v8646
    %8776 = vst [vmem:[%s8754 + $0xa8] sm:$0xff] %v8647
    %8777 = vst [vmem:[%s8754 + $0xb0] sm:$0xff] %v8648
    %8778 = vst [vmem:[%s8754 + $0xb8] sm:$0xff] %v8649
    %8779 = vst [vmem:[%s8754 + $0xc0] sm:$0xff] %v8650
    %8780 = vst [vmem:[%s8754 + $0xc8] sm:$0xff] %v8651
    %8781 = vst [vmem:[%s8754 + $0xd0] sm:$0xff] %v8652
    %8782 = vst [vmem:[%s8754 + $0xd8] sm:$0xff] %v8653
    %8783 = vst [vmem:[%s8754 + $0xe0] sm:$0xff] %v8654
    %8784 = vst [vmem:[%s8754 + $0xe8] sm:$0xff] %v8655
    %8785 = vst [vmem:[%s8754 + $0xf0] sm:$0xff] %v8656
    %8786 = vst [vmem:[%s8754 + $0xf8] sm:$0xff] %v8657
    %8787 = vst [vmem:[%s8754 + $0x100] sm:$0xff] %v8658
    %8788 = vst [vmem:[%s8754 + $0x108] sm:$0xff] %v8659
    %8789 = vst [vmem:[%s8754 + $0x110] sm:$0xff] %v8660
    %8790 = vst [vmem:[%s8754 + $0x118] sm:$0xff] %v8661
    %8791 = vst [vmem:[%s8754 + $0x120] sm:$0xff] %v8662
    %8792 = vst [vmem:[%s8754 + $0x128] sm:$0xff] %v8663
    %8793 = vst [vmem:[%s8754 + $0x130] sm:$0xff] %v8664
    %8794 = vst [vmem:[%s8754 + $0x138] sm:$0xff] %v8665
    %8795 = vst [vmem:[%s8754 + $0x140] sm:$0xff] %v8666
    %8796 = vst [vmem:[%s8754 + $0x148] sm:$0xff] %v8667
    %8797 = vst [vmem:[%s8754 + $0x150] sm:$0xff] %v8668
    %8798 = vst [vmem:[%s8754 + $0x158] sm:$0xff] %v8669
    %8799 = vst [vmem:[%s8754 + $0x160] sm:$0xff] %v8670
    %8800 = vst [vmem:[%s8754 + $0x168] sm:$0xff] %v8671
    %8801 = vst [vmem:[%s8754 + $0x170] sm:$0xff] %v8672
    %8802 = vst [vmem:[%s8754 + $0x178] sm:$0xff] %v8673
    %8803 = vst [vmem:[%s8754 + $0x180] sm:$0xff] %v8674
    %8804 = vst [vmem:[%s8754 + $0x188] sm:$0xff] %v8675
    %8805 = vst [vmem:[%s8754 + $0x190] sm:$0xff] %v8676
    %8806 = vst [vmem:[%s8754 + $0x198] sm:$0xff] %v8677
    %8807 = vst [vmem:[%s8754 + $0x1a0] sm:$0xff] %v8678
    %8808 = vst [vmem:[%s8754 + $0x1a8] sm:$0xff] %v8679
    %8809 = vst [vmem:[%s8754 + $0x1b0] sm:$0xff] %v8680
    %8810 = vst [vmem:[%s8754 + $0x1b8] sm:$0xff] %v8681
    %8811 = vst [vmem:[%s8754 + $0x1c0] sm:$0xff] %v8682
    %8812 = vst [vmem:[%s8754 + $0x1c8] sm:$0xff] %v8683
    %8813 = vst [vmem:[%s8754 + $0x1d0] sm:$0xff] %v8684
    %8814 = vst [vmem:[%s8754 + $0x1d8] sm:$0xff] %v8685
    %8815 = vst [vmem:[%s8754 + $0x1e0] sm:$0xff] %v8686
    %8816 = vst [vmem:[%s8754 + $0x1e8] sm:$0xff] %v8687
    %8817 = vst [vmem:[%s8754 + $0x1f0] sm:$0xff] %v8688
    %8818 = vst [vmem:[%s8754 + $0x1f8] sm:$0xff] %v8689
    %8819 = vst [vmem:[%s8754 + $0x200] sm:$0xff] %v8690
    %8820 = vst [vmem:[%s8754 + $0x208] sm:$0xff] %v8691
    %8821 = vst [vmem:[%s8754 + $0x210] sm:$0xff] %v8692
    %8822 = vst [vmem:[%s8754 + $0x218] sm:$0xff] %v8693
    %8823 = vst [vmem:[%s8754 + $0x220] sm:$0xff] %v8694
    %8824 = vst [vmem:[%s8754 + $0x228] sm:$0xff] %v8695
    %8825 = vst [vmem:[%s8754 + $0x230] sm:$0xff] %v8696
    %8826 = vst [vmem:[%s8754 + $0x238] sm:$0xff] %v8697
    %8827 = vst [vmem:[%s8754 + $0x240] sm:$0xff] %v8698
    %8828 = vst [vmem:[%s8754 + $0x248] sm:$0xff] %v8699
    %8829 = vst [vmem:[%s8754 + $0x250] sm:$0xff] %v8700
    %8830 = vst [vmem:[%s8754 + $0x258] sm:$0xff] %v8701
    %8831 = vst [vmem:[%s8754 + $0x260] sm:$0xff] %v8702
    %8832 = vst [vmem:[%s8754 + $0x268] sm:$0xff] %v8703
    %8833 = vst [vmem:[%s8754 + $0x270] sm:$0xff] %v8704
    %8834 = vst [vmem:[%s8754 + $0x278] sm:$0xff] %v8705
    %8835 = vst [vmem:[%s8754 + $0x280] sm:$0xff] %v8706
    %8836 = vst [vmem:[%s8754 + $0x288] sm:$0xff] %v8707
    %8837 = vst [vmem:[%s8754 + $0x290] sm:$0xff] %v8708
    %8838 = vst [vmem:[%s8754 + $0x298] sm:$0xff] %v8709
    %8839 = vst [vmem:[%s8754 + $0x2a0] sm:$0xff] %v8710
    %8840 = vst [vmem:[%s8754 + $0x2a8] sm:$0xff] %v8711
    %8841 = vst [vmem:[%s8754 + $0x2b0] sm:$0xff] %v8712
    %8842 = vst [vmem:[%s8754 + $0x2b8] sm:$0xff] %v8713
    %8843 = vst [vmem:[%s8754 + $0x2c0] sm:$0xff] %v8714
    %8844 = vst [vmem:[%s8754 + $0x2c8] sm:$0xff] %v8715
    %8845 = vst [vmem:[%s8754 + $0x2d0] sm:$0xff] %v8716
    %8846 = vst [vmem:[%s8754 + $0x2d8] sm:$0xff] %v8717
    %8847 = vst [vmem:[%s8754 + $0x2e0] sm:$0xff] %v8718
    %8848 = vst [vmem:[%s8754 + $0x2e8] sm:$0xff] %v8719
    %8849 = vst [vmem:[%s8754 + $0x2f0] sm:$0xff] %v8720
    %8850 = vst [vmem:[%s8754 + $0x2f8] sm:$0xff] %v8721
    %8851 = vst [vmem:[%s8754 + $0x300] sm:$0xff] %v8722
    %8852 = vst [vmem:[%s8754 + $0x308] sm:$0xff] %v8723
    %8853 = vst [vmem:[%s8754 + $0x310] sm:$0xff] %v8724
    %8854 = vst [vmem:[%s8754 + $0x318] sm:$0xff] %v8725
    %8855 = vst [vmem:[%s8754 + $0x320] sm:$0xff] %v8726
    %8856 = vst [vmem:[%s8754 + $0x328] sm:$0xff] %v8727
    %8857 = vst [vmem:[%s8754 + $0x330] sm:$0xff] %v8728
    %8858 = vst [vmem:[%s8754 + $0x338] sm:$0xff] %v8729
    %8859 = vst [vmem:[%s8754 + $0x340] sm:$0xff] %v8730
    %8860 = vst [vmem:[%s8754 + $0x348] sm:$0xff] %v8731
    %8861 = vst [vmem:[%s8754 + $0x350] sm:$0xff] %v8732
    %8862 = vst [vmem:[%s8754 + $0x358] sm:$0xff] %v8733
    %8863 = vst [vmem:[%s8754 + $0x360] sm:$0xff] %v8734
    %8864 = vst [vmem:[%s8754 + $0x368] sm:$0xff] %v8735
    %8865 = vst [vmem:[%s8754 + $0x370] sm:$0xff] %v8736
    %8866 = vst [vmem:[%s8754 + $0x378] sm:$0xff] %v8737
    %8867 = vst [vmem:[%s8754 + $0x380] sm:$0xff] %v8738
    %8868 = vst [vmem:[%s8754 + $0x388] sm:$0xff] %v8739
    %8869 = vst [vmem:[%s8754 + $0x390] sm:$0xff] %v8740
    %8870 = vst [vmem:[%s8754 + $0x398] sm:$0xff] %v8741
    %8871 = vst [vmem:[%s8754 + $0x3a0] sm:$0xff] %v8742
    %8872 = vst [vmem:[%s8754 + $0x3a8] sm:$0xff] %v8743
    %8873 = vst [vmem:[%s8754 + $0x3b0] sm:$0xff] %v8744
    %8874 = vst [vmem:[%s8754 + $0x3b8] sm:$0xff] %v8745
    %8875 = vst [vmem:[%s8754 + $0x3c0] sm:$0xff] %v8746
    %8876 = vst [vmem:[%s8754 + $0x3c8] sm:$0xff] %v8747
    %8877 = vst [vmem:[%s8754 + $0x3d0] sm:$0xff] %v8748
    %8878 = vst [vmem:[%s8754 + $0x3d8] sm:$0xff] %v8749
    %8879 = vst [vmem:[%s8754 + $0x3e0] sm:$0xff] %v8750
    %8880 = vst [vmem:[%s8754 + $0x3e8] sm:$0xff] %v8751
    %8881 = vst [vmem:[%s8754 + $0x3f0] sm:$0xff] %v8752
    %8882 = vst [vmem:[%s8754 + $0x3f8] sm:$0xff] %v8753
    // Predicated region
    $region26: #{tpu_custom_call.1} parent=1 // pred_check
      _
    $region27: #{tpu_custom_call.1} parent=1 // pred_check_branch
      %8884 = sbr.rel (0) target = $region29
    $region28: #{tpu_custom_call.1} parent=1 // pred_region
      %8886 = vsyncadd [#allocation4], 0
      %s8887 = sshll.u32 [#allocation7], 4
      %s8888 = int_to_ptr.vmem [resolvable:$true] %s8887
      %s8889 = sshll.u32 %s4, 4
      %s8890 = int_to_ptr.hbm [resolvable:$true] %s8889
      %8895 = dma.vmem_to_hbm [thread:$0]  %s8888, 16384, %s8890, [#allocation4], 128, 128, 8
    $region29: #{tpu_custom_call.1} parent=1 // pred_fallthru
      _
    // Predicated region
    $region30: #{tpu_custom_call.1} parent=1 // pred_check
      _
    $region31: #{tpu_custom_call.1} parent=1 // pred_check_branch
      %8897 = sbr.rel (0) target = $region33
    $region32: #{tpu_custom_call.1} parent=1 // pred_region
      %8899 = vsyncadd [#allocation9], 0
      %s8900 = sshll.u32 [#allocation8], 4
      %s8901 = int_to_ptr.vmem [resolvable:$true] %s8900
      %s8902 = sshll.u32 %s5, 4
      %s8903 = int_to_ptr.hbm [resolvable:$true] %s8902
      %8908 = dma.vmem_to_hbm [thread:$0]  %s8901, 32768, %s8903, [#allocation9], 256, 256, 16
    $region33: #{tpu_custom_call.1} parent=1 // pred_fallthru
      _
    // Predicated region
    $region34: #{tpu_custom_call.1} parent=1 // pred_check
      _
    $region35: #{tpu_custom_call.1} parent=1 // pred_check_branch
      %8910 = sbr.rel (0) target = $region37
    $region36: #{tpu_custom_call.1} parent=1 // pred_region
      %8912 = dma.done [#allocation4], 16384
    $region37: #{tpu_custom_call.1} parent=1 // pred_fallthru
      _
    // Predicated region
    $region38: #{tpu_custom_call.1} parent=1 // pred_check
      _
    $region39: #{tpu_custom_call.1} parent=1 // pred_check_branch
      %8914 = sbr.rel (0) target = $region41
    $region40: #{tpu_custom_call.1} parent=1 // pred_region
      %8916 = dma.done [#allocation9], 32768
    $region41: #{tpu_custom_call.1} parent=1 // pred_fallthru
      _
    %8917 = vsyncpa [#allocation3], 1
    %8918 = vsyncpa [#allocation6], 1
    %8919 = vsyncpa [#allocation4], 1
    %8920 = vsyncpa [#allocation9], 1

</llo_original>
